<compile_context>
chip_gen: v7x
topology: tpu7x:2x2x1
jax: 0.10.0
libtpu: 0.0.40
codegen_flags: <defaults>
</compile_context>

<pallas_src>
import jax
import jax.numpy as jnp
from jax.experimental import pallas as pl
from jax.experimental.pallas import tpu as pltpu

# ----------------------------- model dimensions ------------------------------
INPUT_DIM = 16     # source vocab
OUTPUT_DIM = 16    # target vocab
ENC_EMB = 32
DEC_EMB = 32
ENC_HID = 32
DEC_HID = 32
OUT_PAD = 128      # lane-padded logits width (sliced back to OUTPUT_DIM outside)

_VMEM = pl.BlockSpec(memory_space=pltpu.MemorySpace.VMEM)
_SMEM = pl.BlockSpec(memory_space=pltpu.MemorySpace.SMEM)


# ------------------------------- GRU cell helper ------------------------------
def _gru_cell(x, h, w_ih, w_hh, b_ih, b_hh, H):
    """PyTorch nn.GRU cell semantics, gate order (r, z, n)."""
    gx = jnp.dot(x, w_ih, preferred_element_type=jnp.float32) + b_ih
    gh = jnp.dot(h, w_hh, preferred_element_type=jnp.float32) + b_hh
    r = jax.nn.sigmoid(gx[:, 0:H] + gh[:, 0:H])
    z = jax.nn.sigmoid(gx[:, H:2 * H] + gh[:, H:2 * H])
    n = jnp.tanh(gx[:, 2 * H:3 * H] + r * gh[:, 2 * H:3 * H])
    return (1.0 - z) * n + z * h


def _onehot_rows(tok_ref, n_t, n_b, vocab):
    """[n_t*n_b, vocab] one-hot matrix from SMEM token ids, row order (t, b)."""
    iota = jax.lax.broadcasted_iota(jnp.int32, (1, vocab), 1)
    rows = []
    for t in range(n_t):
        for b in range(n_b):
            rows.append((iota == tok_ref[t, b]).astype(jnp.float32))
    return jnp.concatenate(rows, axis=0)


# ------------------------ fully fused seq2seq Pallas kernel -------------------
def seq2seq_kernel(src_ref, trg_ref, tf_ref,                 # SMEM: tokens + tf mask
                   enc_emb_ref, dec_emb_ref,
                   wih_f_ref, whh_f_ref, bih_f_ref, bhh_f_ref,
                   wih_b_ref, whh_b_ref, bih_b_ref, bhh_b_ref,
                   wfc_ref, bfc_ref,
                   wae_ref, v_ref, wch_ref, bch_ref,
                   wih_d_ref, bih_d_ref, wout_ref, bout_ref,
                   pred_ref):
    L, B = src_ref.shape
    T = trg_ref.shape[0]
    He = whh_f_ref.shape[0]
    Hd = wch_ref.shape[0]
    Vi = enc_emb_ref.shape[0]
    Vo = dec_emb_ref.shape[0]
    P = pred_ref.shape[1]

    # ---------- in-kernel embedding lookups: one-hot @ emb on the MXU ----------
    # TODO(synk): dropout on embeddings is identity here (eval-mode forward).
    emb_src = jnp.dot(_onehot_rows(src_ref, L, B, Vi), enc_emb_ref[...],
                      preferred_element_type=jnp.float32)          # [L*B, ENC_EMB]
    emb_trg = jnp.dot(_onehot_rows(trg_ref, T, B, Vo), dec_emb_ref[...],
                      preferred_element_type=jnp.float32)          # [T*B, DEC_EMB]

    # ------------------------------ encoder (bi-GRU) ---------------------------
    wih_f = wih_f_ref[...]; whh_f = whh_f_ref[...]
    bih_f = bih_f_ref[...]; bhh_f = bhh_f_ref[...]
    wih_b = wih_b_ref[...]; whh_b = whh_b_ref[...]
    bih_b = bih_b_ref[...]; bhh_b = bhh_b_ref[...]

    h_f = jnp.zeros((B, He), jnp.float32)
    h_b = jnp.zeros((B, He), jnp.float32)
    hf_steps = [None] * L
    hb_steps = [None] * L
    for t in range(L):                                   # fully unrolled (static)
        h_f = _gru_cell(emb_src[t * B:(t + 1) * B], h_f, wih_f, whh_f, bih_f, bhh_f, He)
        hf_steps[t] = h_f
        tb = L - 1 - t
        h_b = _gru_cell(emb_src[tb * B:(tb + 1) * B], h_b, wih_b, whh_b, bih_b, bhh_b, He)
        hb_steps[tb] = h_b

    # decoder initial hidden = tanh(fc(cat(h_fwd_final, h_bwd_final)))
    h = jnp.tanh(jnp.dot(jnp.concatenate([h_f, h_b], axis=1), wfc_ref[...],
                         preferred_element_type=jnp.float32) + bfc_ref[...])

    # encoder outputs, batch-first flattened [B*L, 2*He] (row = b*L + l);
    # assembled once from vreg-resident per-step states, never leaves the kernel.
    eo = jnp.stack([jnp.concatenate([hf_steps[l], hb_steps[l]], axis=1)
                    for l in range(L)], axis=1).reshape(B * L, 2 * He)

    # -------------- decoder-invariant prep (hoisted out of the loop) -----------
    e_e = jnp.dot(eo, wae_ref[...], preferred_element_type=jnp.float32)  # [B*L, Hd]
    v_rep = jnp.broadcast_to(v_ref[...], (Hd, L))                        # [Hd, L]
    ls = jax.lax.broadcasted_iota(jnp.int32, (L, L), 0)
    ll = jax.lax.broadcasted_iota(jnp.int32, (L, L), 1)
    diag_mask = jnp.concatenate([(ls == ll).astype(jnp.float32)] * B, axis=0)  # [B*L, L]
    brow = jax.lax.broadcasted_iota(jnp.int32, (B, B * L), 0)
    jcol = jax.lax.broadcasted_iota(jnp.int32, (B, B * L), 1)
    sel_bT = ((jcol >= brow * L) & (jcol < (brow + 1) * L)).astype(jnp.float32)  # [B, B*L]

    wch = wch_ref[...]; bch = bch_ref[...]               # [Hd, Hd+3Hd]: [attn_wh | dec_whh]
    wih_d = wih_d_ref[...]; bih_d = bih_d_ref[...]       # [emb+2He, 3Hd]
    wout = wout_ref[...]; bout = bout_ref[...]           # [128, OUT_PAD]
    dec_emb = dec_emb_ref[...]

    emb = emb_trg[0:B]                                   # first decoder input = trg[0]
    preds = [jnp.zeros((B, P), jnp.float32)]             # outputs[0] stays zero

    for t in range(1, T):                                # fully unrolled (static)
        # ---- attention energy + GRU hidden gates share LHS h: one matmul ----
        hproj = jnp.dot(h, wch, preferred_element_type=jnp.float32) + bch   # [B, 4Hd]
        e_h = hproj[:, 0:Hd]
        gh = hproj[:, Hd:4 * Hd]

        # ---- attention, all 2D / MXU (no 3D reduces, no reshuffling reshapes) ----
        energy = jnp.tanh(
            jnp.broadcast_to(e_h[:, None, :], (B, L, Hd)).reshape(B * L, Hd) + e_e)
        m_all = jnp.dot(energy, v_rep, preferred_element_type=jnp.float32)  # [B*L, L]
        scores = jnp.dot(sel_bT, m_all * diag_mask,
                         preferred_element_type=jnp.float32)                # [B, L]
        smax = jnp.max(scores, axis=1, keepdims=True)
        ex = jnp.exp(scores - smax)
        attn = ex / jnp.sum(ex, axis=1, keepdims=True)                      # [B, L]
        attn_blk = jnp.concatenate([attn] * B, axis=1) * sel_bT             # [B, B*L]
        weighted = jnp.dot(attn_blk, eo, preferred_element_type=jnp.float32)  # [B, 2He]

        # ---- GRU cell, input = cat(embedded, weighted): one matmul ----
        x_in = jnp.concatenate([emb, weighted], axis=1)
        gx = jnp.dot(x_in, wih_d, preferred_element_type=jnp.float32) + bih_d
        r = jax.nn.sigmoid(gx[:, 0:Hd] + gh[:, 0:Hd])
        z = jax.nn.sigmoid(gx[:, Hd:2 * Hd] + gh[:, Hd:2 * Hd])
        n = jnp.tanh(gx[:, 2 * Hd:3 * Hd] + r * gh[:, 2 * Hd:3 * Hd])
        h = (1.0 - z) * n + z * h

        # ---- fc_out(cat(output, weighted, embedded)), lane-padded, one matmul ----
        fc_in = jnp.concatenate([h, weighted, emb], axis=1)                 # [B, 128]
        pred = jnp.dot(fc_in, wout, preferred_element_type=jnp.float32) + bout
        preds.append(pred)

        # ---- next input: teacher forcing vs greedy argmax, all in-kernel ----
        if t + 1 < T:
            logits = pred[:, 0:Vo]
            mx = jnp.max(logits, axis=1, keepdims=True)
            # (logits == mx) one-hot; exact first-index tie-break dropped (ties
            # are measure-zero with f32 logits).
            onehot = (logits == mx).astype(jnp.float32)
            emb_gen = jnp.dot(onehot, dec_emb, preferred_element_type=jnp.float32)
            tf = (tf_ref[t] > 0).astype(jnp.float32)     # exact blend for tf in {0,1}
            emb = tf * emb_trg[t * B:(t + 1) * B] + (1.0 - tf) * emb_gen

    # single dense store of the whole flattened result [T*B, OUT_PAD]
    pred_ref[...] = jnp.concatenate(preds, axis=0)


# -------------------------------- Seq2Seq forward ------------------------------
@jax.jit
def seq2seq_forward(packed, src, trg, tf_key, teacher_forcing_ratio=0.5):
    trg_len, batch = trg.shape
    # deterministic stand-in for python random.random() teacher-forcing draws
    tf_mask = (jax.random.uniform(tf_key, (trg_len,)) < teacher_forcing_ratio
               ).astype(jnp.int32)

    pred_flat = pl.pallas_call(
        seq2seq_kernel,
        out_shape=jax.ShapeDtypeStruct((trg_len * batch, OUT_PAD), jnp.float32),
        in_specs=[_SMEM, _SMEM, _SMEM] + [_VMEM] * 20,
        out_specs=_VMEM,
    )(src, trg, tf_mask,
      packed['enc_emb'], packed['dec_emb'],
      packed['enc_wih_f'], packed['enc_whh_f'], packed['enc_bih_f'], packed['enc_bhh_f'],
      packed['enc_wih_b'], packed['enc_whh_b'], packed['enc_bih_b'], packed['enc_bhh_b'],
      packed['enc_wfc'], packed['enc_bfc'],
      packed['attn_we'], packed['attn_v'], packed['wcomb_h'], packed['bcomb_h'],
      packed['dec_wih'], packed['dec_bih'],
      packed['wout'], packed['bout'])

    return pred_flat[:, :OUTPUT_DIM].reshape(trg_len, batch, OUTPUT_DIM)


# ------------------------------ parameter init ---------------------------------
def init_params(key):
    """PyTorch-like parameters (weights stored pre-transposed: [in, out])."""
    names_shapes = [
        ('enc_emb',  (INPUT_DIM, ENC_EMB)),
        ('dec_emb',  (OUTPUT_DIM, DEC_EMB)),
        # encoder bidirectional GRU
        ('enc_wih_f', (ENC_EMB, 3 * ENC_HID)), ('enc_whh_f', (ENC_HID, 3 * ENC_HID)),
        ('enc_bih_f', (1, 3 * ENC_HID)),       ('enc_bhh_f', (1, 3 * ENC_HID)),
        ('enc_wih_b', (ENC_EMB, 3 * ENC_HID)), ('enc_whh_b', (ENC_HID, 3 * ENC_HID)),
        ('enc_bih_b', (1, 3 * ENC_HID)),       ('enc_bhh_b', (1, 3 * ENC_HID)),
        # encoder fc (split along cat(fwd, bwd) input)
        ('enc_wfc_f', (ENC_HID, DEC_HID)), ('enc_wfc_b', (ENC_HID, DEC_HID)),
        ('enc_bfc',   (1, DEC_HID)),
        # attention: Linear(2*enc_hid + dec_hid, dec_hid), v = Linear(dec_hid, 1, bias=False)
        ('attn_wh', (DEC_HID, DEC_HID)), ('attn_we', (2 * ENC_HID, DEC_HID)),
        ('attn_b',  (1, DEC_HID)),       ('attn_v',  (DEC_HID, 1)),
        # decoder GRU: input = cat(embedded, weighted)
        ('dec_wih_e', (DEC_EMB, 3 * DEC_HID)), ('dec_wih_w', (2 * ENC_HID, 3 * DEC_HID)),
        ('dec_whh',   (DEC_HID, 3 * DEC_HID)),
        ('dec_bih',   (1, 3 * DEC_HID)),       ('dec_bhh',   (1, 3 * DEC_HID)),
        # fc_out: input = cat(output, weighted, embedded)
        ('out_wh', (DEC_HID, OUTPUT_DIM)), ('out_ww', (2 * ENC_HID, OUTPUT_DIM)),
        ('out_we', (DEC_EMB, OUTPUT_DIM)), ('out_b',  (1, OUTPUT_DIM)),
    ]
    keys = jax.random.split(key, len(names_shapes))
    return {name: 0.1 * jax.random.normal(k, shape, dtype=jnp.float32)
            for (name, shape), k in zip(names_shapes, keys)}


def pack_params(p):
    """One-time (outside jit) weight packing: concat shared-LHS weights, lane-pad fc_out."""
    wout = jnp.zeros((DEC_HID + 2 * ENC_HID + DEC_EMB, OUT_PAD), jnp.float32)
    wout = wout.at[:, :OUTPUT_DIM].set(
        jnp.concatenate([p['out_wh'], p['out_ww'], p['out_we']], axis=0))
    bout = jnp.zeros((1, OUT_PAD), jnp.float32).at[:, :OUTPUT_DIM].set(p['out_b'])
    return dict(
        enc_emb=p['enc_emb'], dec_emb=p['dec_emb'],
        enc_wih_f=p['enc_wih_f'], enc_whh_f=p['enc_whh_f'],
        enc_bih_f=p['enc_bih_f'], enc_bhh_f=p['enc_bhh_f'],
        enc_wih_b=p['enc_wih_b'], enc_whh_b=p['enc_whh_b'],
        enc_bih_b=p['enc_bih_b'], enc_bhh_b=p['enc_bhh_b'],
        enc_wfc=jnp.concatenate([p['enc_wfc_f'], p['enc_wfc_b']], axis=0),   # [2He, Hd]
        enc_bfc=p['enc_bfc'],
        attn_we=p['attn_we'],
        attn_v=p['attn_v'],                                                  # [Hd, 1]
        wcomb_h=jnp.concatenate([p['attn_wh'], p['dec_whh']], axis=1),       # [Hd, 4Hd]
        bcomb_h=jnp.concatenate([p['attn_b'], p['dec_bhh']], axis=1),        # [1, 4Hd]
        dec_wih=jnp.concatenate([p['dec_wih_e'], p['dec_wih_w']], axis=0),   # [emb+2He, 3Hd]
        dec_bih=p['dec_bih'],
        wout=wout, bout=bout,
    )


# ------------------------------------ main --------------------------------------
if __name__ == "__main__":
    key = jax.random.PRNGKey(0)
    kp, ks, kt, ktf = jax.random.split(key, 4)
    params = init_params(kp)
    packed = pack_params(params)            # call-invariant packing, done once

    SRC_LEN, TRG_LEN, BATCH = 8, 8, 2
    src = jax.random.randint(ks, (SRC_LEN, BATCH), 0, INPUT_DIM, dtype=jnp.int32)
    trg = jax.random.randint(kt, (TRG_LEN, BATCH), 0, OUTPUT_DIM, dtype=jnp.int32)

    outputs = seq2seq_forward(packed, src, trg, ktf)
    outputs = jax.block_until_ready(outputs)

    assert outputs.shape == (TRG_LEN, BATCH, OUTPUT_DIM), outputs.shape
    assert bool(jnp.all(jnp.isfinite(outputs)))
    assert bool(jnp.all(outputs[0] == 0.0))          # outputs[0] stays zero (torch semantics)
    print("KERNEL_OK")
</pallas_src>

<mosaic_0001>
module attributes {stable_mosaic.version = 11 : i64} {
  func.func @seq2seq_kernel(%arg0: memref<8x2xi32, #tpu.memory_space<smem>>, %arg1: memref<8x2xi32, #tpu.memory_space<smem>>, %arg2: memref<8xi32, #tpu.memory_space<smem>>, %arg3: memref<16x32xf32, #tpu.memory_space<vmem>>, %arg4: memref<16x32xf32, #tpu.memory_space<vmem>>, %arg5: memref<32x96xf32, #tpu.memory_space<vmem>>, %arg6: memref<32x96xf32, #tpu.memory_space<vmem>>, %arg7: memref<1x96xf32, #tpu.memory_space<vmem>>, %arg8: memref<1x96xf32, #tpu.memory_space<vmem>>, %arg9: memref<32x96xf32, #tpu.memory_space<vmem>>, %arg10: memref<32x96xf32, #tpu.memory_space<vmem>>, %arg11: memref<1x96xf32, #tpu.memory_space<vmem>>, %arg12: memref<1x96xf32, #tpu.memory_space<vmem>>, %arg13: memref<64x32xf32, #tpu.memory_space<vmem>>, %arg14: memref<1x32xf32, #tpu.memory_space<vmem>>, %arg15: memref<64x32xf32, #tpu.memory_space<vmem>>, %arg16: memref<32x1xf32, #tpu.memory_space<vmem>>, %arg17: memref<32x128xf32, #tpu.memory_space<vmem>>, %arg18: memref<1x128xf32, #tpu.memory_space<vmem>>, %arg19: memref<96x96xf32, #tpu.memory_space<vmem>>, %arg20: memref<1x96xf32, #tpu.memory_space<vmem>>, %arg21: memref<128x128xf32, #tpu.memory_space<vmem>>, %arg22: memref<1x128xf32, #tpu.memory_space<vmem>>, %arg23: memref<16x128xf32, #tpu.memory_space<vmem>>) attributes {dimension_semantics = [], scalar_prefetch = 0 : i64, scratch_operands = 0 : i64, tpu.core_type = #tpu.core_type<tc>} {
    %0 = tpu.iota {dimensions = array<i32: 1>} : vector<1x16xi32>
    %c0 = arith.constant 0 : index
    %c0_0 = arith.constant 0 : index
    %1 = memref.load %arg0[%c0, %c0_0] : memref<8x2xi32, #tpu.memory_space<smem>>
    %2 = vector.broadcast %1 : i32 to vector<1x16xi32>
    %3 = arith.cmpi eq, %0, %2 : vector<1x16xi32>
    %4 = arith.extui %3 : vector<1x16xi1> to vector<1x16xi32>
    %5 = arith.sitofp %4 : vector<1x16xi32> to vector<1x16xf32>
    %c0_1 = arith.constant 0 : index
    %c1 = arith.constant 1 : index
    %6 = memref.load %arg0[%c0_1, %c1] : memref<8x2xi32, #tpu.memory_space<smem>>
    %7 = vector.broadcast %6 : i32 to vector<1x16xi32>
    %8 = arith.cmpi eq, %0, %7 : vector<1x16xi32>
    %9 = arith.extui %8 : vector<1x16xi1> to vector<1x16xi32>
    %10 = arith.sitofp %9 : vector<1x16xi32> to vector<1x16xf32>
    %c1_2 = arith.constant 1 : index
    %c0_3 = arith.constant 0 : index
    %11 = memref.load %arg0[%c1_2, %c0_3] : memref<8x2xi32, #tpu.memory_space<smem>>
    %12 = vector.broadcast %11 : i32 to vector<1x16xi32>
    %13 = arith.cmpi eq, %0, %12 : vector<1x16xi32>
    %14 = arith.extui %13 : vector<1x16xi1> to vector<1x16xi32>
    %15 = arith.sitofp %14 : vector<1x16xi32> to vector<1x16xf32>
    %c1_4 = arith.constant 1 : index
    %c1_5 = arith.constant 1 : index
    %16 = memref.load %arg0[%c1_4, %c1_5] : memref<8x2xi32, #tpu.memory_space<smem>>
    %17 = vector.broadcast %16 : i32 to vector<1x16xi32>
    %18 = arith.cmpi eq, %0, %17 : vector<1x16xi32>
    %19 = arith.extui %18 : vector<1x16xi1> to vector<1x16xi32>
    %20 = arith.sitofp %19 : vector<1x16xi32> to vector<1x16xf32>
    %c2 = arith.constant 2 : index
    %c0_6 = arith.constant 0 : index
    %21 = memref.load %arg0[%c2, %c0_6] : memref<8x2xi32, #tpu.memory_space<smem>>
    %22 = vector.broadcast %21 : i32 to vector<1x16xi32>
    %23 = arith.cmpi eq, %0, %22 : vector<1x16xi32>
    %24 = arith.extui %23 : vector<1x16xi1> to vector<1x16xi32>
    %25 = arith.sitofp %24 : vector<1x16xi32> to vector<1x16xf32>
    %c2_7 = arith.constant 2 : index
    %c1_8 = arith.constant 1 : index
    %26 = memref.load %arg0[%c2_7, %c1_8] : memref<8x2xi32, #tpu.memory_space<smem>>
    %27 = vector.broadcast %26 : i32 to vector<1x16xi32>
    %28 = arith.cmpi eq, %0, %27 : vector<1x16xi32>
    %29 = arith.extui %28 : vector<1x16xi1> to vector<1x16xi32>
    %30 = arith.sitofp %29 : vector<1x16xi32> to vector<1x16xf32>
    %c3 = arith.constant 3 : index
    %c0_9 = arith.constant 0 : index
    %31 = memref.load %arg0[%c3, %c0_9] : memref<8x2xi32, #tpu.memory_space<smem>>
    %32 = vector.broadcast %31 : i32 to vector<1x16xi32>
    %33 = arith.cmpi eq, %0, %32 : vector<1x16xi32>
    %34 = arith.extui %33 : vector<1x16xi1> to vector<1x16xi32>
    %35 = arith.sitofp %34 : vector<1x16xi32> to vector<1x16xf32>
    %c3_10 = arith.constant 3 : index
    %c1_11 = arith.constant 1 : index
    %36 = memref.load %arg0[%c3_10, %c1_11] : memref<8x2xi32, #tpu.memory_space<smem>>
    %37 = vector.broadcast %36 : i32 to vector<1x16xi32>
    %38 = arith.cmpi eq, %0, %37 : vector<1x16xi32>
    %39 = arith.extui %38 : vector<1x16xi1> to vector<1x16xi32>
    %40 = arith.sitofp %39 : vector<1x16xi32> to vector<1x16xf32>
    %c4 = arith.constant 4 : index
    %c0_12 = arith.constant 0 : index
    %41 = memref.load %arg0[%c4, %c0_12] : memref<8x2xi32, #tpu.memory_space<smem>>
    %42 = vector.broadcast %41 : i32 to vector<1x16xi32>
    %43 = arith.cmpi eq, %0, %42 : vector<1x16xi32>
    %44 = arith.extui %43 : vector<1x16xi1> to vector<1x16xi32>
    %45 = arith.sitofp %44 : vector<1x16xi32> to vector<1x16xf32>
    %c4_13 = arith.constant 4 : index
    %c1_14 = arith.constant 1 : index
    %46 = memref.load %arg0[%c4_13, %c1_14] : memref<8x2xi32, #tpu.memory_space<smem>>
    %47 = vector.broadcast %46 : i32 to vector<1x16xi32>
    %48 = arith.cmpi eq, %0, %47 : vector<1x16xi32>
    %49 = arith.extui %48 : vector<1x16xi1> to vector<1x16xi32>
    %50 = arith.sitofp %49 : vector<1x16xi32> to vector<1x16xf32>
    %c5 = arith.constant 5 : index
    %c0_15 = arith.constant 0 : index
    %51 = memref.load %arg0[%c5, %c0_15] : memref<8x2xi32, #tpu.memory_space<smem>>
    %52 = vector.broadcast %51 : i32 to vector<1x16xi32>
    %53 = arith.cmpi eq, %0, %52 : vector<1x16xi32>
    %54 = arith.extui %53 : vector<1x16xi1> to vector<1x16xi32>
    %55 = arith.sitofp %54 : vector<1x16xi32> to vector<1x16xf32>
    %c5_16 = arith.constant 5 : index
    %c1_17 = arith.constant 1 : index
    %56 = memref.load %arg0[%c5_16, %c1_17] : memref<8x2xi32, #tpu.memory_space<smem>>
    %57 = vector.broadcast %56 : i32 to vector<1x16xi32>
    %58 = arith.cmpi eq, %0, %57 : vector<1x16xi32>
    %59 = arith.extui %58 : vector<1x16xi1> to vector<1x16xi32>
    %60 = arith.sitofp %59 : vector<1x16xi32> to vector<1x16xf32>
    %c6 = arith.constant 6 : index
    %c0_18 = arith.constant 0 : index
    %61 = memref.load %arg0[%c6, %c0_18] : memref<8x2xi32, #tpu.memory_space<smem>>
    %62 = vector.broadcast %61 : i32 to vector<1x16xi32>
    %63 = arith.cmpi eq, %0, %62 : vector<1x16xi32>
    %64 = arith.extui %63 : vector<1x16xi1> to vector<1x16xi32>
    %65 = arith.sitofp %64 : vector<1x16xi32> to vector<1x16xf32>
    %c6_19 = arith.constant 6 : index
    %c1_20 = arith.constant 1 : index
    %66 = memref.load %arg0[%c6_19, %c1_20] : memref<8x2xi32, #tpu.memory_space<smem>>
    %67 = vector.broadcast %66 : i32 to vector<1x16xi32>
    %68 = arith.cmpi eq, %0, %67 : vector<1x16xi32>
    %69 = arith.extui %68 : vector<1x16xi1> to vector<1x16xi32>
    %70 = arith.sitofp %69 : vector<1x16xi32> to vector<1x16xf32>
    %c7 = arith.constant 7 : index
    %c0_21 = arith.constant 0 : index
    %71 = memref.load %arg0[%c7, %c0_21] : memref<8x2xi32, #tpu.memory_space<smem>>
    %72 = vector.broadcast %71 : i32 to vector<1x16xi32>
    %73 = arith.cmpi eq, %0, %72 : vector<1x16xi32>
    %74 = arith.extui %73 : vector<1x16xi1> to vector<1x16xi32>
    %75 = arith.sitofp %74 : vector<1x16xi32> to vector<1x16xf32>
    %c7_22 = arith.constant 7 : index
    %c1_23 = arith.constant 1 : index
    %76 = memref.load %arg0[%c7_22, %c1_23] : memref<8x2xi32, #tpu.memory_space<smem>>
    %77 = vector.broadcast %76 : i32 to vector<1x16xi32>
    %78 = arith.cmpi eq, %0, %77 : vector<1x16xi32>
    %79 = arith.extui %78 : vector<1x16xi1> to vector<1x16xi32>
    %80 = arith.sitofp %79 : vector<1x16xi32> to vector<1x16xf32>
    %81 = tpu.concatenate %5, %10, %15, %20, %25, %30, %35, %40, %45, %50, %55, %60, %65, %70, %75, %80 in 0 : vector<1x16xf32>, vector<1x16xf32>, vector<1x16xf32>, vector<1x16xf32>, vector<1x16xf32>, vector<1x16xf32>, vector<1x16xf32>, vector<1x16xf32>, vector<1x16xf32>, vector<1x16xf32>, vector<1x16xf32>, vector<1x16xf32>, vector<1x16xf32>, vector<1x16xf32>, vector<1x16xf32>, vector<1x16xf32> -> vector<16x16xf32>
    %c0_24 = arith.constant 0 : index
    %c0_25 = arith.constant 0 : index
    %82 = vector.load %arg3[%c0_24, %c0_25] : memref<16x32xf32, #tpu.memory_space<vmem>>, vector<16x32xf32>
    %cst = arith.constant dense<0.000000e+00> : vector<16x32xf32>
    %83 = tpu.matmul %81, %82, %cst {dimension_numbers = #tpu.dot_dimension_numbers<[1], [0], [0], [1], [0, 0, 1, 1], [], []>} : vector<16x16xf32>, vector<16x32xf32>, vector<16x32xf32> -> vector<16x32xf32>
    %84 = tpu.iota {dimensions = array<i32: 1>} : vector<1x16xi32>
    %c0_26 = arith.constant 0 : index
    %c0_27 = arith.constant 0 : index
    %85 = memref.load %arg1[%c0_26, %c0_27] : memref<8x2xi32, #tpu.memory_space<smem>>
    %86 = vector.broadcast %85 : i32 to vector<1x16xi32>
    %87 = arith.cmpi eq, %84, %86 : vector<1x16xi32>
    %88 = arith.extui %87 : vector<1x16xi1> to vector<1x16xi32>
    %89 = arith.sitofp %88 : vector<1x16xi32> to vector<1x16xf32>
    %c0_28 = arith.constant 0 : index
    %c1_29 = arith.constant 1 : index
    %90 = memref.load %arg1[%c0_28, %c1_29] : memref<8x2xi32, #tpu.memory_space<smem>>
    %91 = vector.broadcast %90 : i32 to vector<1x16xi32>
    %92 = arith.cmpi eq, %84, %91 : vector<1x16xi32>
    %93 = arith.extui %92 : vector<1x16xi1> to vector<1x16xi32>
    %94 = arith.sitofp %93 : vector<1x16xi32> to vector<1x16xf32>
    %c1_30 = arith.constant 1 : index
    %c0_31 = arith.constant 0 : index
    %95 = memref.load %arg1[%c1_30, %c0_31] : memref<8x2xi32, #tpu.memory_space<smem>>
    %96 = vector.broadcast %95 : i32 to vector<1x16xi32>
    %97 = arith.cmpi eq, %84, %96 : vector<1x16xi32>
    %98 = arith.extui %97 : vector<1x16xi1> to vector<1x16xi32>
    %99 = arith.sitofp %98 : vector<1x16xi32> to vector<1x16xf32>
    %c1_32 = arith.constant 1 : index
    %c1_33 = arith.constant 1 : index
    %100 = memref.load %arg1[%c1_32, %c1_33] : memref<8x2xi32, #tpu.memory_space<smem>>
    %101 = vector.broadcast %100 : i32 to vector<1x16xi32>
    %102 = arith.cmpi eq, %84, %101 : vector<1x16xi32>
    %103 = arith.extui %102 : vector<1x16xi1> to vector<1x16xi32>
    %104 = arith.sitofp %103 : vector<1x16xi32> to vector<1x16xf32>
    %c2_34 = arith.constant 2 : index
    %c0_35 = arith.constant 0 : index
    %105 = memref.load %arg1[%c2_34, %c0_35] : memref<8x2xi32, #tpu.memory_space<smem>>
    %106 = vector.broadcast %105 : i32 to vector<1x16xi32>
    %107 = arith.cmpi eq, %84, %106 : vector<1x16xi32>
    %108 = arith.extui %107 : vector<1x16xi1> to vector<1x16xi32>
    %109 = arith.sitofp %108 : vector<1x16xi32> to vector<1x16xf32>
    %c2_36 = arith.constant 2 : index
    %c1_37 = arith.constant 1 : index
    %110 = memref.load %arg1[%c2_36, %c1_37] : memref<8x2xi32, #tpu.memory_space<smem>>
    %111 = vector.broadcast %110 : i32 to vector<1x16xi32>
    %112 = arith.cmpi eq, %84, %111 : vector<1x16xi32>
    %113 = arith.extui %112 : vector<1x16xi1> to vector<1x16xi32>
    %114 = arith.sitofp %113 : vector<1x16xi32> to vector<1x16xf32>
    %c3_38 = arith.constant 3 : index
    %c0_39 = arith.constant 0 : index
    %115 = memref.load %arg1[%c3_38, %c0_39] : memref<8x2xi32, #tpu.memory_space<smem>>
    %116 = vector.broadcast %115 : i32 to vector<1x16xi32>
    %117 = arith.cmpi eq, %84, %116 : vector<1x16xi32>
    %118 = arith.extui %117 : vector<1x16xi1> to vector<1x16xi32>
    %119 = arith.sitofp %118 : vector<1x16xi32> to vector<1x16xf32>
    %c3_40 = arith.constant 3 : index
    %c1_41 = arith.constant 1 : index
    %120 = memref.load %arg1[%c3_40, %c1_41] : memref<8x2xi32, #tpu.memory_space<smem>>
    %121 = vector.broadcast %120 : i32 to vector<1x16xi32>
    %122 = arith.cmpi eq, %84, %121 : vector<1x16xi32>
    %123 = arith.extui %122 : vector<1x16xi1> to vector<1x16xi32>
    %124 = arith.sitofp %123 : vector<1x16xi32> to vector<1x16xf32>
    %c4_42 = arith.constant 4 : index
    %c0_43 = arith.constant 0 : index
    %125 = memref.load %arg1[%c4_42, %c0_43] : memref<8x2xi32, #tpu.memory_space<smem>>
    %126 = vector.broadcast %125 : i32 to vector<1x16xi32>
    %127 = arith.cmpi eq, %84, %126 : vector<1x16xi32>
    %128 = arith.extui %127 : vector<1x16xi1> to vector<1x16xi32>
    %129 = arith.sitofp %128 : vector<1x16xi32> to vector<1x16xf32>
    %c4_44 = arith.constant 4 : index
    %c1_45 = arith.constant 1 : index
    %130 = memref.load %arg1[%c4_44, %c1_45] : memref<8x2xi32, #tpu.memory_space<smem>>
    %131 = vector.broadcast %130 : i32 to vector<1x16xi32>
    %132 = arith.cmpi eq, %84, %131 : vector<1x16xi32>
    %133 = arith.extui %132 : vector<1x16xi1> to vector<1x16xi32>
    %134 = arith.sitofp %133 : vector<1x16xi32> to vector<1x16xf32>
    %c5_46 = arith.constant 5 : index
    %c0_47 = arith.constant 0 : index
    %135 = memref.load %arg1[%c5_46, %c0_47] : memref<8x2xi32, #tpu.memory_space<smem>>
    %136 = vector.broadcast %135 : i32 to vector<1x16xi32>
    %137 = arith.cmpi eq, %84, %136 : vector<1x16xi32>
    %138 = arith.extui %137 : vector<1x16xi1> to vector<1x16xi32>
    %139 = arith.sitofp %138 : vector<1x16xi32> to vector<1x16xf32>
    %c5_48 = arith.constant 5 : index
    %c1_49 = arith.constant 1 : index
    %140 = memref.load %arg1[%c5_48, %c1_49] : memref<8x2xi32, #tpu.memory_space<smem>>
    %141 = vector.broadcast %140 : i32 to vector<1x16xi32>
    %142 = arith.cmpi eq, %84, %141 : vector<1x16xi32>
    %143 = arith.extui %142 : vector<1x16xi1> to vector<1x16xi32>
    %144 = arith.sitofp %143 : vector<1x16xi32> to vector<1x16xf32>
    %c6_50 = arith.constant 6 : index
    %c0_51 = arith.constant 0 : index
    %145 = memref.load %arg1[%c6_50, %c0_51] : memref<8x2xi32, #tpu.memory_space<smem>>
    %146 = vector.broadcast %145 : i32 to vector<1x16xi32>
    %147 = arith.cmpi eq, %84, %146 : vector<1x16xi32>
    %148 = arith.extui %147 : vector<1x16xi1> to vector<1x16xi32>
    %149 = arith.sitofp %148 : vector<1x16xi32> to vector<1x16xf32>
    %c6_52 = arith.constant 6 : index
    %c1_53 = arith.constant 1 : index
    %150 = memref.load %arg1[%c6_52, %c1_53] : memref<8x2xi32, #tpu.memory_space<smem>>
    %151 = vector.broadcast %150 : i32 to vector<1x16xi32>
    %152 = arith.cmpi eq, %84, %151 : vector<1x16xi32>
    %153 = arith.extui %152 : vector<1x16xi1> to vector<1x16xi32>
    %154 = arith.sitofp %153 : vector<1x16xi32> to vector<1x16xf32>
    %c7_54 = arith.constant 7 : index
    %c0_55 = arith.constant 0 : index
    %155 = memref.load %arg1[%c7_54, %c0_55] : memref<8x2xi32, #tpu.memory_space<smem>>
    %156 = vector.broadcast %155 : i32 to vector<1x16xi32>
    %157 = arith.cmpi eq, %84, %156 : vector<1x16xi32>
    %158 = arith.extui %157 : vector<1x16xi1> to vector<1x16xi32>
    %159 = arith.sitofp %158 : vector<1x16xi32> to vector<1x16xf32>
    %c7_56 = arith.constant 7 : index
    %c1_57 = arith.constant 1 : index
    %160 = memref.load %arg1[%c7_56, %c1_57] : memref<8x2xi32, #tpu.memory_space<smem>>
    %161 = vector.broadcast %160 : i32 to vector<1x16xi32>
    %162 = arith.cmpi eq, %84, %161 : vector<1x16xi32>
    %163 = arith.extui %162 : vector<1x16xi1> to vector<1x16xi32>
    %164 = arith.sitofp %163 : vector<1x16xi32> to vector<1x16xf32>
    %165 = tpu.concatenate %89, %94, %99, %104, %109, %114, %119, %124, %129, %134, %139, %144, %149, %154, %159, %164 in 0 : vector<1x16xf32>, vector<1x16xf32>, vector<1x16xf32>, vector<1x16xf32>, vector<1x16xf32>, vector<1x16xf32>, vector<1x16xf32>, vector<1x16xf32>, vector<1x16xf32>, vector<1x16xf32>, vector<1x16xf32>, vector<1x16xf32>, vector<1x16xf32>, vector<1x16xf32>, vector<1x16xf32>, vector<1x16xf32> -> vector<16x16xf32>
    %c0_58 = arith.constant 0 : index
    %c0_59 = arith.constant 0 : index
    %166 = vector.load %arg4[%c0_58, %c0_59] : memref<16x32xf32, #tpu.memory_space<vmem>>, vector<16x32xf32>
    %cst_60 = arith.constant dense<0.000000e+00> : vector<16x32xf32>
    %167 = tpu.matmul %165, %166, %cst_60 {dimension_numbers = #tpu.dot_dimension_numbers<[1], [0], [0], [1], [0, 0, 1, 1], [], []>} : vector<16x16xf32>, vector<16x32xf32>, vector<16x32xf32> -> vector<16x32xf32>
    %c0_61 = arith.constant 0 : index
    %c0_62 = arith.constant 0 : index
    %168 = vector.load %arg5[%c0_61, %c0_62] : memref<32x96xf32, #tpu.memory_space<vmem>>, vector<32x96xf32>
    %c0_63 = arith.constant 0 : index
    %c0_64 = arith.constant 0 : index
    %169 = vector.load %arg6[%c0_63, %c0_64] : memref<32x96xf32, #tpu.memory_space<vmem>>, vector<32x96xf32>
    %c0_65 = arith.constant 0 : index
    %c0_66 = arith.constant 0 : index
    %170 = vector.load %arg7[%c0_65, %c0_66] : memref<1x96xf32, #tpu.memory_space<vmem>>, vector<1x96xf32>
    %c0_67 = arith.constant 0 : index
    %c0_68 = arith.constant 0 : index
    %171 = vector.load %arg8[%c0_67, %c0_68] : memref<1x96xf32, #tpu.memory_space<vmem>>, vector<1x96xf32>
    %c0_69 = arith.constant 0 : index
    %c0_70 = arith.constant 0 : index
    %172 = vector.load %arg9[%c0_69, %c0_70] : memref<32x96xf32, #tpu.memory_space<vmem>>, vector<32x96xf32>
    %c0_71 = arith.constant 0 : index
    %c0_72 = arith.constant 0 : index
    %173 = vector.load %arg10[%c0_71, %c0_72] : memref<32x96xf32, #tpu.memory_space<vmem>>, vector<32x96xf32>
    %c0_73 = arith.constant 0 : index
    %c0_74 = arith.constant 0 : index
    %174 = vector.load %arg11[%c0_73, %c0_74] : memref<1x96xf32, #tpu.memory_space<vmem>>, vector<1x96xf32>
    %c0_75 = arith.constant 0 : index
    %c0_76 = arith.constant 0 : index
    %175 = vector.load %arg12[%c0_75, %c0_76] : memref<1x96xf32, #tpu.memory_space<vmem>>, vector<1x96xf32>
    %cst_77 = arith.constant 0.000000e+00 : f32
    %176 = vector.broadcast %cst_77 : f32 to vector<2x32xf32>
    %cst_78 = arith.constant 0.000000e+00 : f32
    %177 = vector.broadcast %cst_78 : f32 to vector<2x32xf32>
    %178 = vector.extract_strided_slice %83 {offsets = [0, 0], sizes = [2, 32], strides = [1, 1]} : vector<16x32xf32> to vector<2x32xf32>
    %cst_79 = arith.constant dense<0.000000e+00> : vector<2x96xf32>
    %179 = tpu.matmul %178, %168, %cst_79 {dimension_numbers = #tpu.dot_dimension_numbers<[1], [0], [0], [1], [0, 0, 1, 1], [], []>} : vector<2x32xf32>, vector<32x96xf32>, vector<2x96xf32> -> vector<2x96xf32>
    %180 = vector.broadcast %170 : vector<1x96xf32> to vector<2x96xf32>
    %181 = arith.addf %179, %180 : vector<2x96xf32>
    %cst_80 = arith.constant dense<0.000000e+00> : vector<2x96xf32>
    %182 = tpu.matmul %176, %169, %cst_80 {dimension_numbers = #tpu.dot_dimension_numbers<[1], [0], [0], [1], [0, 0, 1, 1], [], []>} : vector<2x32xf32>, vector<32x96xf32>, vector<2x96xf32> -> vector<2x96xf32>
    %183 = vector.broadcast %171 : vector<1x96xf32> to vector<2x96xf32>
    %184 = arith.addf %182, %183 : vector<2x96xf32>
    %185 = vector.extract_strided_slice %181 {offsets = [0, 0], sizes = [2, 32], strides = [1, 1]} : vector<2x96xf32> to vector<2x32xf32>
    %186 = vector.extract_strided_slice %184 {offsets = [0, 0], sizes = [2, 32], strides = [1, 1]} : vector<2x96xf32> to vector<2x32xf32>
    %187 = arith.addf %185, %186 : vector<2x32xf32>
    %188 = arith.negf %187 : vector<2x32xf32>
    %189 = math.exp %188 : vector<2x32xf32>
    %cst_81 = arith.constant 1.000000e+00 : f32
    %190 = vector.broadcast %cst_81 : f32 to vector<2x32xf32>
    %191 = arith.addf %190, %189 : vector<2x32xf32>
    %192 = arith.divf %190, %191 : vector<2x32xf32>
    %193 = vector.extract_strided_slice %181 {offsets = [0, 32], sizes = [2, 32], strides = [1, 1]} : vector<2x96xf32> to vector<2x32xf32>
    %194 = vector.extract_strided_slice %184 {offsets = [0, 32], sizes = [2, 32], strides = [1, 1]} : vector<2x96xf32> to vector<2x32xf32>
    %195 = arith.addf %193, %194 : vector<2x32xf32>
    %196 = arith.negf %195 : vector<2x32xf32>
    %197 = math.exp %196 : vector<2x32xf32>
    %cst_82 = arith.constant 1.000000e+00 : f32
    %198 = vector.broadcast %cst_82 : f32 to vector<2x32xf32>
    %199 = arith.addf %198, %197 : vector<2x32xf32>
    %200 = arith.divf %198, %199 : vector<2x32xf32>
    %201 = vector.extract_strided_slice %181 {offsets = [0, 64], sizes = [2, 32], strides = [1, 1]} : vector<2x96xf32> to vector<2x32xf32>
    %202 = vector.extract_strided_slice %184 {offsets = [0, 64], sizes = [2, 32], strides = [1, 1]} : vector<2x96xf32> to vector<2x32xf32>
    %203 = arith.mulf %192, %202 : vector<2x32xf32>
    %204 = arith.addf %201, %203 : vector<2x32xf32>
    %205 = math.tanh %204 : vector<2x32xf32>
    %cst_83 = arith.constant 1.000000e+00 : f32
    %206 = vector.broadcast %cst_83 : f32 to vector<2x32xf32>
    %207 = arith.subf %206, %200 : vector<2x32xf32>
    %208 = arith.mulf %207, %205 : vector<2x32xf32>
    %209 = arith.mulf %200, %176 : vector<2x32xf32>
    %210 = arith.addf %208, %209 : vector<2x32xf32>
    %211 = vector.extract_strided_slice %83 {offsets = [14, 0], sizes = [2, 32], strides = [1, 1]} : vector<16x32xf32> to vector<2x32xf32>
    %cst_84 = arith.constant dense<0.000000e+00> : vector<2x96xf32>
    %212 = tpu.matmul %211, %172, %cst_84 {dimension_numbers = #tpu.dot_dimension_numbers<[1], [0], [0], [1], [0, 0, 1, 1], [], []>} : vector<2x32xf32>, vector<32x96xf32>, vector<2x96xf32> -> vector<2x96xf32>
    %213 = vector.broadcast %174 : vector<1x96xf32> to vector<2x96xf32>
    %214 = arith.addf %212, %213 : vector<2x96xf32>
    %cst_85 = arith.constant dense<0.000000e+00> : vector<2x96xf32>
    %215 = tpu.matmul %177, %173, %cst_85 {dimension_numbers = #tpu.dot_dimension_numbers<[1], [0], [0], [1], [0, 0, 1, 1], [], []>} : vector<2x32xf32>, vector<32x96xf32>, vector<2x96xf32> -> vector<2x96xf32>
    %216 = vector.broadcast %175 : vector<1x96xf32> to vector<2x96xf32>
    %217 = arith.addf %215, %216 : vector<2x96xf32>
    %218 = vector.extract_strided_slice %214 {offsets = [0, 0], sizes = [2, 32], strides = [1, 1]} : vector<2x96xf32> to vector<2x32xf32>
    %219 = vector.extract_strided_slice %217 {offsets = [0, 0], sizes = [2, 32], strides = [1, 1]} : vector<2x96xf32> to vector<2x32xf32>
    %220 = arith.addf %218, %219 : vector<2x32xf32>
    %221 = arith.negf %220 : vector<2x32xf32>
    %222 = math.exp %221 : vector<2x32xf32>
    %cst_86 = arith.constant 1.000000e+00 : f32
    %223 = vector.broadcast %cst_86 : f32 to vector<2x32xf32>
    %224 = arith.addf %223, %222 : vector<2x32xf32>
    %225 = arith.divf %223, %224 : vector<2x32xf32>
    %226 = vector.extract_strided_slice %214 {offsets = [0, 32], sizes = [2, 32], strides = [1, 1]} : vector<2x96xf32> to vector<2x32xf32>
    %227 = vector.extract_strided_slice %217 {offsets = [0, 32], sizes = [2, 32], strides = [1, 1]} : vector<2x96xf32> to vector<2x32xf32>
    %228 = arith.addf %226, %227 : vector<2x32xf32>
    %229 = arith.negf %228 : vector<2x32xf32>
    %230 = math.exp %229 : vector<2x32xf32>
    %cst_87 = arith.constant 1.000000e+00 : f32
    %231 = vector.broadcast %cst_87 : f32 to vector<2x32xf32>
    %232 = arith.addf %231, %230 : vector<2x32xf32>
    %233 = arith.divf %231, %232 : vector<2x32xf32>
    %234 = vector.extract_strided_slice %214 {offsets = [0, 64], sizes = [2, 32], strides = [1, 1]} : vector<2x96xf32> to vector<2x32xf32>
    %235 = vector.extract_strided_slice %217 {offsets = [0, 64], sizes = [2, 32], strides = [1, 1]} : vector<2x96xf32> to vector<2x32xf32>
    %236 = arith.mulf %225, %235 : vector<2x32xf32>
    %237 = arith.addf %234, %236 : vector<2x32xf32>
    %238 = math.tanh %237 : vector<2x32xf32>
    %cst_88 = arith.constant 1.000000e+00 : f32
    %239 = vector.broadcast %cst_88 : f32 to vector<2x32xf32>
    %240 = arith.subf %239, %233 : vector<2x32xf32>
    %241 = arith.mulf %240, %238 : vector<2x32xf32>
    %242 = arith.mulf %233, %177 : vector<2x32xf32>
    %243 = arith.addf %241, %242 : vector<2x32xf32>
    %244 = vector.extract_strided_slice %83 {offsets = [2, 0], sizes = [2, 32], strides = [1, 1]} : vector<16x32xf32> to vector<2x32xf32>
    %cst_89 = arith.constant dense<0.000000e+00> : vector<2x96xf32>
    %245 = tpu.matmul %244, %168, %cst_89 {dimension_numbers = #tpu.dot_dimension_numbers<[1], [0], [0], [1], [0, 0, 1, 1], [], []>} : vector<2x32xf32>, vector<32x96xf32>, vector<2x96xf32> -> vector<2x96xf32>
    %246 = vector.broadcast %170 : vector<1x96xf32> to vector<2x96xf32>
    %247 = arith.addf %245, %246 : vector<2x96xf32>
    %cst_90 = arith.constant dense<0.000000e+00> : vector<2x96xf32>
    %248 = tpu.matmul %210, %169, %cst_90 {dimension_numbers = #tpu.dot_dimension_numbers<[1], [0], [0], [1], [0, 0, 1, 1], [], []>} : vector<2x32xf32>, vector<32x96xf32>, vector<2x96xf32> -> vector<2x96xf32>
    %249 = vector.broadcast %171 : vector<1x96xf32> to vector<2x96xf32>
    %250 = arith.addf %248, %249 : vector<2x96xf32>
    %251 = vector.extract_strided_slice %247 {offsets = [0, 0], sizes = [2, 32], strides = [1, 1]} : vector<2x96xf32> to vector<2x32xf32>
    %252 = vector.extract_strided_slice %250 {offsets = [0, 0], sizes = [2, 32], strides = [1, 1]} : vector<2x96xf32> to vector<2x32xf32>
    %253 = arith.addf %251, %252 : vector<2x32xf32>
    %254 = arith.negf %253 : vector<2x32xf32>
    %255 = math.exp %254 : vector<2x32xf32>
    %cst_91 = arith.constant 1.000000e+00 : f32
    %256 = vector.broadcast %cst_91 : f32 to vector<2x32xf32>
    %257 = arith.addf %256, %255 : vector<2x32xf32>
    %258 = arith.divf %256, %257 : vector<2x32xf32>
    %259 = vector.extract_strided_slice %247 {offsets = [0, 32], sizes = [2, 32], strides = [1, 1]} : vector<2x96xf32> to vector<2x32xf32>
    %260 = vector.extract_strided_slice %250 {offsets = [0, 32], sizes = [2, 32], strides = [1, 1]} : vector<2x96xf32> to vector<2x32xf32>
    %261 = arith.addf %259, %260 : vector<2x32xf32>
    %262 = arith.negf %261 : vector<2x32xf32>
    %263 = math.exp %262 : vector<2x32xf32>
    %cst_92 = arith.constant 1.000000e+00 : f32
    %264 = vector.broadcast %cst_92 : f32 to vector<2x32xf32>
    %265 = arith.addf %264, %263 : vector<2x32xf32>
    %266 = arith.divf %264, %265 : vector<2x32xf32>
    %267 = vector.extract_strided_slice %247 {offsets = [0, 64], sizes = [2, 32], strides = [1, 1]} : vector<2x96xf32> to vector<2x32xf32>
    %268 = vector.extract_strided_slice %250 {offsets = [0, 64], sizes = [2, 32], strides = [1, 1]} : vector<2x96xf32> to vector<2x32xf32>
    %269 = arith.mulf %258, %268 : vector<2x32xf32>
    %270 = arith.addf %267, %269 : vector<2x32xf32>
    %271 = math.tanh %270 : vector<2x32xf32>
    %cst_93 = arith.constant 1.000000e+00 : f32
    %272 = vector.broadcast %cst_93 : f32 to vector<2x32xf32>
    %273 = arith.subf %272, %266 : vector<2x32xf32>
    %274 = arith.mulf %273, %271 : vector<2x32xf32>
    %275 = arith.mulf %266, %210 : vector<2x32xf32>
    %276 = arith.addf %274, %275 : vector<2x32xf32>
    %277 = vector.extract_strided_slice %83 {offsets = [12, 0], sizes = [2, 32], strides = [1, 1]} : vector<16x32xf32> to vector<2x32xf32>
    %cst_94 = arith.constant dense<0.000000e+00> : vector<2x96xf32>
    %278 = tpu.matmul %277, %172, %cst_94 {dimension_numbers = #tpu.dot_dimension_numbers<[1], [0], [0], [1], [0, 0, 1, 1], [], []>} : vector<2x32xf32>, vector<32x96xf32>, vector<2x96xf32> -> vector<2x96xf32>
    %279 = vector.broadcast %174 : vector<1x96xf32> to vector<2x96xf32>
    %280 = arith.addf %278, %279 : vector<2x96xf32>
    %cst_95 = arith.constant dense<0.000000e+00> : vector<2x96xf32>
    %281 = tpu.matmul %243, %173, %cst_95 {dimension_numbers = #tpu.dot_dimension_numbers<[1], [0], [0], [1], [0, 0, 1, 1], [], []>} : vector<2x32xf32>, vector<32x96xf32>, vector<2x96xf32> -> vector<2x96xf32>
    %282 = vector.broadcast %175 : vector<1x96xf32> to vector<2x96xf32>
    %283 = arith.addf %281, %282 : vector<2x96xf32>
    %284 = vector.extract_strided_slice %280 {offsets = [0, 0], sizes = [2, 32], strides = [1, 1]} : vector<2x96xf32> to vector<2x32xf32>
    %285 = vector.extract_strided_slice %283 {offsets = [0, 0], sizes = [2, 32], strides = [1, 1]} : vector<2x96xf32> to vector<2x32xf32>
    %286 = arith.addf %284, %285 : vector<2x32xf32>
    %287 = arith.negf %286 : vector<2x32xf32>
    %288 = math.exp %287 : vector<2x32xf32>
    %cst_96 = arith.constant 1.000000e+00 : f32
    %289 = vector.broadcast %cst_96 : f32 to vector<2x32xf32>
    %290 = arith.addf %289, %288 : vector<2x32xf32>
    %291 = arith.divf %289, %290 : vector<2x32xf32>
    %292 = vector.extract_strided_slice %280 {offsets = [0, 32], sizes = [2, 32], strides = [1, 1]} : vector<2x96xf32> to vector<2x32xf32>
    %293 = vector.extract_strided_slice %283 {offsets = [0, 32], sizes = [2, 32], strides = [1, 1]} : vector<2x96xf32> to vector<2x32xf32>
    %294 = arith.addf %292, %293 : vector<2x32xf32>
    %295 = arith.negf %294 : vector<2x32xf32>
    %296 = math.exp %295 : vector<2x32xf32>
    %cst_97 = arith.constant 1.000000e+00 : f32
    %297 = vector.broadcast %cst_97 : f32 to vector<2x32xf32>
    %298 = arith.addf %297, %296 : vector<2x32xf32>
    %299 = arith.divf %297, %298 : vector<2x32xf32>
    %300 = vector.extract_strided_slice %280 {offsets = [0, 64], sizes = [2, 32], strides = [1, 1]} : vector<2x96xf32> to vector<2x32xf32>
    %301 = vector.extract_strided_slice %283 {offsets = [0, 64], sizes = [2, 32], strides = [1, 1]} : vector<2x96xf32> to vector<2x32xf32>
    %302 = arith.mulf %291, %301 : vector<2x32xf32>
    %303 = arith.addf %300, %302 : vector<2x32xf32>
    %304 = math.tanh %303 : vector<2x32xf32>
    %cst_98 = arith.constant 1.000000e+00 : f32
    %305 = vector.broadcast %cst_98 : f32 to vector<2x32xf32>
    %306 = arith.subf %305, %299 : vector<2x32xf32>
    %307 = arith.mulf %306, %304 : vector<2x32xf32>
    %308 = arith.mulf %299, %243 : vector<2x32xf32>
    %309 = arith.addf %307, %308 : vector<2x32xf32>
    %310 = vector.extract_strided_slice %83 {offsets = [4, 0], sizes = [2, 32], strides = [1, 1]} : vector<16x32xf32> to vector<2x32xf32>
    %cst_99 = arith.constant dense<0.000000e+00> : vector<2x96xf32>
    %311 = tpu.matmul %310, %168, %cst_99 {dimension_numbers = #tpu.dot_dimension_numbers<[1], [0], [0], [1], [0, 0, 1, 1], [], []>} : vector<2x32xf32>, vector<32x96xf32>, vector<2x96xf32> -> vector<2x96xf32>
    %312 = vector.broadcast %170 : vector<1x96xf32> to vector<2x96xf32>
    %313 = arith.addf %311, %312 : vector<2x96xf32>
    %cst_100 = arith.constant dense<0.000000e+00> : vector<2x96xf32>
    %314 = tpu.matmul %276, %169, %cst_100 {dimension_numbers = #tpu.dot_dimension_numbers<[1], [0], [0], [1], [0, 0, 1, 1], [], []>} : vector<2x32xf32>, vector<32x96xf32>, vector<2x96xf32> -> vector<2x96xf32>
    %315 = vector.broadcast %171 : vector<1x96xf32> to vector<2x96xf32>
    %316 = arith.addf %314, %315 : vector<2x96xf32>
    %317 = vector.extract_strided_slice %313 {offsets = [0, 0], sizes = [2, 32], strides = [1, 1]} : vector<2x96xf32> to vector<2x32xf32>
    %318 = vector.extract_strided_slice %316 {offsets = [0, 0], sizes = [2, 32], strides = [1, 1]} : vector<2x96xf32> to vector<2x32xf32>
    %319 = arith.addf %317, %318 : vector<2x32xf32>
    %320 = arith.negf %319 : vector<2x32xf32>
    %321 = math.exp %320 : vector<2x32xf32>
    %cst_101 = arith.constant 1.000000e+00 : f32
    %322 = vector.broadcast %cst_101 : f32 to vector<2x32xf32>
    %323 = arith.addf %322, %321 : vector<2x32xf32>
    %324 = arith.divf %322, %323 : vector<2x32xf32>
    %325 = vector.extract_strided_slice %313 {offsets = [0, 32], sizes = [2, 32], strides = [1, 1]} : vector<2x96xf32> to vector<2x32xf32>
    %326 = vector.extract_strided_slice %316 {offsets = [0, 32], sizes = [2, 32], strides = [1, 1]} : vector<2x96xf32> to vector<2x32xf32>
    %327 = arith.addf %325, %326 : vector<2x32xf32>
    %328 = arith.negf %327 : vector<2x32xf32>
    %329 = math.exp %328 : vector<2x32xf32>
    %cst_102 = arith.constant 1.000000e+00 : f32
    %330 = vector.broadcast %cst_102 : f32 to vector<2x32xf32>
    %331 = arith.addf %330, %329 : vector<2x32xf32>
    %332 = arith.divf %330, %331 : vector<2x32xf32>
    %333 = vector.extract_strided_slice %313 {offsets = [0, 64], sizes = [2, 32], strides = [1, 1]} : vector<2x96xf32> to vector<2x32xf32>
    %334 = vector.extract_strided_slice %316 {offsets = [0, 64], sizes = [2, 32], strides = [1, 1]} : vector<2x96xf32> to vector<2x32xf32>
    %335 = arith.mulf %324, %334 : vector<2x32xf32>
    %336 = arith.addf %333, %335 : vector<2x32xf32>
    %337 = math.tanh %336 : vector<2x32xf32>
    %cst_103 = arith.constant 1.000000e+00 : f32
    %338 = vector.broadcast %cst_103 : f32 to vector<2x32xf32>
    %339 = arith.subf %338, %332 : vector<2x32xf32>
    %340 = arith.mulf %339, %337 : vector<2x32xf32>
    %341 = arith.mulf %332, %276 : vector<2x32xf32>
    %342 = arith.addf %340, %341 : vector<2x32xf32>
    %343 = vector.extract_strided_slice %83 {offsets = [10, 0], sizes = [2, 32], strides = [1, 1]} : vector<16x32xf32> to vector<2x32xf32>
    %cst_104 = arith.constant dense<0.000000e+00> : vector<2x96xf32>
    %344 = tpu.matmul %343, %172, %cst_104 {dimension_numbers = #tpu.dot_dimension_numbers<[1], [0], [0], [1], [0, 0, 1, 1], [], []>} : vector<2x32xf32>, vector<32x96xf32>, vector<2x96xf32> -> vector<2x96xf32>
    %345 = vector.broadcast %174 : vector<1x96xf32> to vector<2x96xf32>
    %346 = arith.addf %344, %345 : vector<2x96xf32>
    %cst_105 = arith.constant dense<0.000000e+00> : vector<2x96xf32>
    %347 = tpu.matmul %309, %173, %cst_105 {dimension_numbers = #tpu.dot_dimension_numbers<[1], [0], [0], [1], [0, 0, 1, 1], [], []>} : vector<2x32xf32>, vector<32x96xf32>, vector<2x96xf32> -> vector<2x96xf32>
    %348 = vector.broadcast %175 : vector<1x96xf32> to vector<2x96xf32>
    %349 = arith.addf %347, %348 : vector<2x96xf32>
    %350 = vector.extract_strided_slice %346 {offsets = [0, 0], sizes = [2, 32], strides = [1, 1]} : vector<2x96xf32> to vector<2x32xf32>
    %351 = vector.extract_strided_slice %349 {offsets = [0, 0], sizes = [2, 32], strides = [1, 1]} : vector<2x96xf32> to vector<2x32xf32>
    %352 = arith.addf %350, %351 : vector<2x32xf32>
    %353 = arith.negf %352 : vector<2x32xf32>
    %354 = math.exp %353 : vector<2x32xf32>
    %cst_106 = arith.constant 1.000000e+00 : f32
    %355 = vector.broadcast %cst_106 : f32 to vector<2x32xf32>
    %356 = arith.addf %355, %354 : vector<2x32xf32>
    %357 = arith.divf %355, %356 : vector<2x32xf32>
    %358 = vector.extract_strided_slice %346 {offsets = [0, 32], sizes = [2, 32], strides = [1, 1]} : vector<2x96xf32> to vector<2x32xf32>
    %359 = vector.extract_strided_slice %349 {offsets = [0, 32], sizes = [2, 32], strides = [1, 1]} : vector<2x96xf32> to vector<2x32xf32>
    %360 = arith.addf %358, %359 : vector<2x32xf32>
    %361 = arith.negf %360 : vector<2x32xf32>
    %362 = math.exp %361 : vector<2x32xf32>
    %cst_107 = arith.constant 1.000000e+00 : f32
    %363 = vector.broadcast %cst_107 : f32 to vector<2x32xf32>
    %364 = arith.addf %363, %362 : vector<2x32xf32>
    %365 = arith.divf %363, %364 : vector<2x32xf32>
    %366 = vector.extract_strided_slice %346 {offsets = [0, 64], sizes = [2, 32], strides = [1, 1]} : vector<2x96xf32> to vector<2x32xf32>
    %367 = vector.extract_strided_slice %349 {offsets = [0, 64], sizes = [2, 32], strides = [1, 1]} : vector<2x96xf32> to vector<2x32xf32>
    %368 = arith.mulf %357, %367 : vector<2x32xf32>
    %369 = arith.addf %366, %368 : vector<2x32xf32>
    %370 = math.tanh %369 : vector<2x32xf32>
    %cst_108 = arith.constant 1.000000e+00 : f32
    %371 = vector.broadcast %cst_108 : f32 to vector<2x32xf32>
    %372 = arith.subf %371, %365 : vector<2x32xf32>
    %373 = arith.mulf %372, %370 : vector<2x32xf32>
    %374 = arith.mulf %365, %309 : vector<2x32xf32>
    %375 = arith.addf %373, %374 : vector<2x32xf32>
    %376 = vector.extract_strided_slice %83 {offsets = [6, 0], sizes = [2, 32], strides = [1, 1]} : vector<16x32xf32> to vector<2x32xf32>
    %cst_109 = arith.constant dense<0.000000e+00> : vector<2x96xf32>
    %377 = tpu.matmul %376, %168, %cst_109 {dimension_numbers = #tpu.dot_dimension_numbers<[1], [0], [0], [1], [0, 0, 1, 1], [], []>} : vector<2x32xf32>, vector<32x96xf32>, vector<2x96xf32> -> vector<2x96xf32>
    %378 = vector.broadcast %170 : vector<1x96xf32> to vector<2x96xf32>
    %379 = arith.addf %377, %378 : vector<2x96xf32>
    %cst_110 = arith.constant dense<0.000000e+00> : vector<2x96xf32>
    %380 = tpu.matmul %342, %169, %cst_110 {dimension_numbers = #tpu.dot_dimension_numbers<[1], [0], [0], [1], [0, 0, 1, 1], [], []>} : vector<2x32xf32>, vector<32x96xf32>, vector<2x96xf32> -> vector<2x96xf32>
    %381 = vector.broadcast %171 : vector<1x96xf32> to vector<2x96xf32>
    %382 = arith.addf %380, %381 : vector<2x96xf32>
    %383 = vector.extract_strided_slice %379 {offsets = [0, 0], sizes = [2, 32], strides = [1, 1]} : vector<2x96xf32> to vector<2x32xf32>
    %384 = vector.extract_strided_slice %382 {offsets = [0, 0], sizes = [2, 32], strides = [1, 1]} : vector<2x96xf32> to vector<2x32xf32>
    %385 = arith.addf %383, %384 : vector<2x32xf32>
    %386 = arith.negf %385 : vector<2x32xf32>
    %387 = math.exp %386 : vector<2x32xf32>
    %cst_111 = arith.constant 1.000000e+00 : f32
    %388 = vector.broadcast %cst_111 : f32 to vector<2x32xf32>
    %389 = arith.addf %388, %387 : vector<2x32xf32>
    %390 = arith.divf %388, %389 : vector<2x32xf32>
    %391 = vector.extract_strided_slice %379 {offsets = [0, 32], sizes = [2, 32], strides = [1, 1]} : vector<2x96xf32> to vector<2x32xf32>
    %392 = vector.extract_strided_slice %382 {offsets = [0, 32], sizes = [2, 32], strides = [1, 1]} : vector<2x96xf32> to vector<2x32xf32>
    %393 = arith.addf %391, %392 : vector<2x32xf32>
    %394 = arith.negf %393 : vector<2x32xf32>
    %395 = math.exp %394 : vector<2x32xf32>
    %cst_112 = arith.constant 1.000000e+00 : f32
    %396 = vector.broadcast %cst_112 : f32 to vector<2x32xf32>
    %397 = arith.addf %396, %395 : vector<2x32xf32>
    %398 = arith.divf %396, %397 : vector<2x32xf32>
    %399 = vector.extract_strided_slice %379 {offsets = [0, 64], sizes = [2, 32], strides = [1, 1]} : vector<2x96xf32> to vector<2x32xf32>
    %400 = vector.extract_strided_slice %382 {offsets = [0, 64], sizes = [2, 32], strides = [1, 1]} : vector<2x96xf32> to vector<2x32xf32>
    %401 = arith.mulf %390, %400 : vector<2x32xf32>
    %402 = arith.addf %399, %401 : vector<2x32xf32>
    %403 = math.tanh %402 : vector<2x32xf32>
    %cst_113 = arith.constant 1.000000e+00 : f32
    %404 = vector.broadcast %cst_113 : f32 to vector<2x32xf32>
    %405 = arith.subf %404, %398 : vector<2x32xf32>
    %406 = arith.mulf %405, %403 : vector<2x32xf32>
    %407 = arith.mulf %398, %342 : vector<2x32xf32>
    %408 = arith.addf %406, %407 : vector<2x32xf32>
    %409 = vector.extract_strided_slice %83 {offsets = [8, 0], sizes = [2, 32], strides = [1, 1]} : vector<16x32xf32> to vector<2x32xf32>
    %cst_114 = arith.constant dense<0.000000e+00> : vector<2x96xf32>
    %410 = tpu.matmul %409, %172, %cst_114 {dimension_numbers = #tpu.dot_dimension_numbers<[1], [0], [0], [1], [0, 0, 1, 1], [], []>} : vector<2x32xf32>, vector<32x96xf32>, vector<2x96xf32> -> vector<2x96xf32>
    %411 = vector.broadcast %174 : vector<1x96xf32> to vector<2x96xf32>
    %412 = arith.addf %410, %411 : vector<2x96xf32>
    %cst_115 = arith.constant dense<0.000000e+00> : vector<2x96xf32>
    %413 = tpu.matmul %375, %173, %cst_115 {dimension_numbers = #tpu.dot_dimension_numbers<[1], [0], [0], [1], [0, 0, 1, 1], [], []>} : vector<2x32xf32>, vector<32x96xf32>, vector<2x96xf32> -> vector<2x96xf32>
    %414 = vector.broadcast %175 : vector<1x96xf32> to vector<2x96xf32>
    %415 = arith.addf %413, %414 : vector<2x96xf32>
    %416 = vector.extract_strided_slice %412 {offsets = [0, 0], sizes = [2, 32], strides = [1, 1]} : vector<2x96xf32> to vector<2x32xf32>
    %417 = vector.extract_strided_slice %415 {offsets = [0, 0], sizes = [2, 32], strides = [1, 1]} : vector<2x96xf32> to vector<2x32xf32>
    %418 = arith.addf %416, %417 : vector<2x32xf32>
    %419 = arith.negf %418 : vector<2x32xf32>
    %420 = math.exp %419 : vector<2x32xf32>
    %cst_116 = arith.constant 1.000000e+00 : f32
    %421 = vector.broadcast %cst_116 : f32 to vector<2x32xf32>
    %422 = arith.addf %421, %420 : vector<2x32xf32>
    %423 = arith.divf %421, %422 : vector<2x32xf32>
    %424 = vector.extract_strided_slice %412 {offsets = [0, 32], sizes = [2, 32], strides = [1, 1]} : vector<2x96xf32> to vector<2x32xf32>
    %425 = vector.extract_strided_slice %415 {offsets = [0, 32], sizes = [2, 32], strides = [1, 1]} : vector<2x96xf32> to vector<2x32xf32>
    %426 = arith.addf %424, %425 : vector<2x32xf32>
    %427 = arith.negf %426 : vector<2x32xf32>
    %428 = math.exp %427 : vector<2x32xf32>
    %cst_117 = arith.constant 1.000000e+00 : f32
    %429 = vector.broadcast %cst_117 : f32 to vector<2x32xf32>
    %430 = arith.addf %429, %428 : vector<2x32xf32>
    %431 = arith.divf %429, %430 : vector<2x32xf32>
    %432 = vector.extract_strided_slice %412 {offsets = [0, 64], sizes = [2, 32], strides = [1, 1]} : vector<2x96xf32> to vector<2x32xf32>
    %433 = vector.extract_strided_slice %415 {offsets = [0, 64], sizes = [2, 32], strides = [1, 1]} : vector<2x96xf32> to vector<2x32xf32>
    %434 = arith.mulf %423, %433 : vector<2x32xf32>
    %435 = arith.addf %432, %434 : vector<2x32xf32>
    %436 = math.tanh %435 : vector<2x32xf32>
    %cst_118 = arith.constant 1.000000e+00 : f32
    %437 = vector.broadcast %cst_118 : f32 to vector<2x32xf32>
    %438 = arith.subf %437, %431 : vector<2x32xf32>
    %439 = arith.mulf %438, %436 : vector<2x32xf32>
    %440 = arith.mulf %431, %375 : vector<2x32xf32>
    %441 = arith.addf %439, %440 : vector<2x32xf32>
    %442 = vector.extract_strided_slice %83 {offsets = [8, 0], sizes = [2, 32], strides = [1, 1]} : vector<16x32xf32> to vector<2x32xf32>
    %cst_119 = arith.constant dense<0.000000e+00> : vector<2x96xf32>
    %443 = tpu.matmul %442, %168, %cst_119 {dimension_numbers = #tpu.dot_dimension_numbers<[1], [0], [0], [1], [0, 0, 1, 1], [], []>} : vector<2x32xf32>, vector<32x96xf32>, vector<2x96xf32> -> vector<2x96xf32>
    %444 = vector.broadcast %170 : vector<1x96xf32> to vector<2x96xf32>
    %445 = arith.addf %443, %444 : vector<2x96xf32>
    %cst_120 = arith.constant dense<0.000000e+00> : vector<2x96xf32>
    %446 = tpu.matmul %408, %169, %cst_120 {dimension_numbers = #tpu.dot_dimension_numbers<[1], [0], [0], [1], [0, 0, 1, 1], [], []>} : vector<2x32xf32>, vector<32x96xf32>, vector<2x96xf32> -> vector<2x96xf32>
    %447 = vector.broadcast %171 : vector<1x96xf32> to vector<2x96xf32>
    %448 = arith.addf %446, %447 : vector<2x96xf32>
    %449 = vector.extract_strided_slice %445 {offsets = [0, 0], sizes = [2, 32], strides = [1, 1]} : vector<2x96xf32> to vector<2x32xf32>
    %450 = vector.extract_strided_slice %448 {offsets = [0, 0], sizes = [2, 32], strides = [1, 1]} : vector<2x96xf32> to vector<2x32xf32>
    %451 = arith.addf %449, %450 : vector<2x32xf32>
    %452 = arith.negf %451 : vector<2x32xf32>
    %453 = math.exp %452 : vector<2x32xf32>
    %cst_121 = arith.constant 1.000000e+00 : f32
    %454 = vector.broadcast %cst_121 : f32 to vector<2x32xf32>
    %455 = arith.addf %454, %453 : vector<2x32xf32>
    %456 = arith.divf %454, %455 : vector<2x32xf32>
    %457 = vector.extract_strided_slice %445 {offsets = [0, 32], sizes = [2, 32], strides = [1, 1]} : vector<2x96xf32> to vector<2x32xf32>
    %458 = vector.extract_strided_slice %448 {offsets = [0, 32], sizes = [2, 32], strides = [1, 1]} : vector<2x96xf32> to vector<2x32xf32>
    %459 = arith.addf %457, %458 : vector<2x32xf32>
    %460 = arith.negf %459 : vector<2x32xf32>
    %461 = math.exp %460 : vector<2x32xf32>
    %cst_122 = arith.constant 1.000000e+00 : f32
    %462 = vector.broadcast %cst_122 : f32 to vector<2x32xf32>
    %463 = arith.addf %462, %461 : vector<2x32xf32>
    %464 = arith.divf %462, %463 : vector<2x32xf32>
    %465 = vector.extract_strided_slice %445 {offsets = [0, 64], sizes = [2, 32], strides = [1, 1]} : vector<2x96xf32> to vector<2x32xf32>
    %466 = vector.extract_strided_slice %448 {offsets = [0, 64], sizes = [2, 32], strides = [1, 1]} : vector<2x96xf32> to vector<2x32xf32>
    %467 = arith.mulf %456, %466 : vector<2x32xf32>
    %468 = arith.addf %465, %467 : vector<2x32xf32>
    %469 = math.tanh %468 : vector<2x32xf32>
    %cst_123 = arith.constant 1.000000e+00 : f32
    %470 = vector.broadcast %cst_123 : f32 to vector<2x32xf32>
    %471 = arith.subf %470, %464 : vector<2x32xf32>
    %472 = arith.mulf %471, %469 : vector<2x32xf32>
    %473 = arith.mulf %464, %408 : vector<2x32xf32>
    %474 = arith.addf %472, %473 : vector<2x32xf32>
    %475 = vector.extract_strided_slice %83 {offsets = [6, 0], sizes = [2, 32], strides = [1, 1]} : vector<16x32xf32> to vector<2x32xf32>
    %cst_124 = arith.constant dense<0.000000e+00> : vector<2x96xf32>
    %476 = tpu.matmul %475, %172, %cst_124 {dimension_numbers = #tpu.dot_dimension_numbers<[1], [0], [0], [1], [0, 0, 1, 1], [], []>} : vector<2x32xf32>, vector<32x96xf32>, vector<2x96xf32> -> vector<2x96xf32>
    %477 = vector.broadcast %174 : vector<1x96xf32> to vector<2x96xf32>
    %478 = arith.addf %476, %477 : vector<2x96xf32>
    %cst_125 = arith.constant dense<0.000000e+00> : vector<2x96xf32>
    %479 = tpu.matmul %441, %173, %cst_125 {dimension_numbers = #tpu.dot_dimension_numbers<[1], [0], [0], [1], [0, 0, 1, 1], [], []>} : vector<2x32xf32>, vector<32x96xf32>, vector<2x96xf32> -> vector<2x96xf32>
    %480 = vector.broadcast %175 : vector<1x96xf32> to vector<2x96xf32>
    %481 = arith.addf %479, %480 : vector<2x96xf32>
    %482 = vector.extract_strided_slice %478 {offsets = [0, 0], sizes = [2, 32], strides = [1, 1]} : vector<2x96xf32> to vector<2x32xf32>
    %483 = vector.extract_strided_slice %481 {offsets = [0, 0], sizes = [2, 32], strides = [1, 1]} : vector<2x96xf32> to vector<2x32xf32>
    %484 = arith.addf %482, %483 : vector<2x32xf32>
    %485 = arith.negf %484 : vector<2x32xf32>
    %486 = math.exp %485 : vector<2x32xf32>
    %cst_126 = arith.constant 1.000000e+00 : f32
    %487 = vector.broadcast %cst_126 : f32 to vector<2x32xf32>
    %488 = arith.addf %487, %486 : vector<2x32xf32>
    %489 = arith.divf %487, %488 : vector<2x32xf32>
    %490 = vector.extract_strided_slice %478 {offsets = [0, 32], sizes = [2, 32], strides = [1, 1]} : vector<2x96xf32> to vector<2x32xf32>
    %491 = vector.extract_strided_slice %481 {offsets = [0, 32], sizes = [2, 32], strides = [1, 1]} : vector<2x96xf32> to vector<2x32xf32>
    %492 = arith.addf %490, %491 : vector<2x32xf32>
    %493 = arith.negf %492 : vector<2x32xf32>
    %494 = math.exp %493 : vector<2x32xf32>
    %cst_127 = arith.constant 1.000000e+00 : f32
    %495 = vector.broadcast %cst_127 : f32 to vector<2x32xf32>
    %496 = arith.addf %495, %494 : vector<2x32xf32>
    %497 = arith.divf %495, %496 : vector<2x32xf32>
    %498 = vector.extract_strided_slice %478 {offsets = [0, 64], sizes = [2, 32], strides = [1, 1]} : vector<2x96xf32> to vector<2x32xf32>
    %499 = vector.extract_strided_slice %481 {offsets = [0, 64], sizes = [2, 32], strides = [1, 1]} : vector<2x96xf32> to vector<2x32xf32>
    %500 = arith.mulf %489, %499 : vector<2x32xf32>
    %501 = arith.addf %498, %500 : vector<2x32xf32>
    %502 = math.tanh %501 : vector<2x32xf32>
    %cst_128 = arith.constant 1.000000e+00 : f32
    %503 = vector.broadcast %cst_128 : f32 to vector<2x32xf32>
    %504 = arith.subf %503, %497 : vector<2x32xf32>
    %505 = arith.mulf %504, %502 : vector<2x32xf32>
    %506 = arith.mulf %497, %441 : vector<2x32xf32>
    %507 = arith.addf %505, %506 : vector<2x32xf32>
    %508 = vector.extract_strided_slice %83 {offsets = [10, 0], sizes = [2, 32], strides = [1, 1]} : vector<16x32xf32> to vector<2x32xf32>
    %cst_129 = arith.constant dense<0.000000e+00> : vector<2x96xf32>
    %509 = tpu.matmul %508, %168, %cst_129 {dimension_numbers = #tpu.dot_dimension_numbers<[1], [0], [0], [1], [0, 0, 1, 1], [], []>} : vector<2x32xf32>, vector<32x96xf32>, vector<2x96xf32> -> vector<2x96xf32>
    %510 = vector.broadcast %170 : vector<1x96xf32> to vector<2x96xf32>
    %511 = arith.addf %509, %510 : vector<2x96xf32>
    %cst_130 = arith.constant dense<0.000000e+00> : vector<2x96xf32>
    %512 = tpu.matmul %474, %169, %cst_130 {dimension_numbers = #tpu.dot_dimension_numbers<[1], [0], [0], [1], [0, 0, 1, 1], [], []>} : vector<2x32xf32>, vector<32x96xf32>, vector<2x96xf32> -> vector<2x96xf32>
    %513 = vector.broadcast %171 : vector<1x96xf32> to vector<2x96xf32>
    %514 = arith.addf %512, %513 : vector<2x96xf32>
    %515 = vector.extract_strided_slice %511 {offsets = [0, 0], sizes = [2, 32], strides = [1, 1]} : vector<2x96xf32> to vector<2x32xf32>
    %516 = vector.extract_strided_slice %514 {offsets = [0, 0], sizes = [2, 32], strides = [1, 1]} : vector<2x96xf32> to vector<2x32xf32>
    %517 = arith.addf %515, %516 : vector<2x32xf32>
    %518 = arith.negf %517 : vector<2x32xf32>
    %519 = math.exp %518 : vector<2x32xf32>
    %cst_131 = arith.constant 1.000000e+00 : f32
    %520 = vector.broadcast %cst_131 : f32 to vector<2x32xf32>
    %521 = arith.addf %520, %519 : vector<2x32xf32>
    %522 = arith.divf %520, %521 : vector<2x32xf32>
    %523 = vector.extract_strided_slice %511 {offsets = [0, 32], sizes = [2, 32], strides = [1, 1]} : vector<2x96xf32> to vector<2x32xf32>
    %524 = vector.extract_strided_slice %514 {offsets = [0, 32], sizes = [2, 32], strides = [1, 1]} : vector<2x96xf32> to vector<2x32xf32>
    %525 = arith.addf %523, %524 : vector<2x32xf32>
    %526 = arith.negf %525 : vector<2x32xf32>
    %527 = math.exp %526 : vector<2x32xf32>
    %cst_132 = arith.constant 1.000000e+00 : f32
    %528 = vector.broadcast %cst_132 : f32 to vector<2x32xf32>
    %529 = arith.addf %528, %527 : vector<2x32xf32>
    %530 = arith.divf %528, %529 : vector<2x32xf32>
    %531 = vector.extract_strided_slice %511 {offsets = [0, 64], sizes = [2, 32], strides = [1, 1]} : vector<2x96xf32> to vector<2x32xf32>
    %532 = vector.extract_strided_slice %514 {offsets = [0, 64], sizes = [2, 32], strides = [1, 1]} : vector<2x96xf32> to vector<2x32xf32>
    %533 = arith.mulf %522, %532 : vector<2x32xf32>
    %534 = arith.addf %531, %533 : vector<2x32xf32>
    %535 = math.tanh %534 : vector<2x32xf32>
    %cst_133 = arith.constant 1.000000e+00 : f32
    %536 = vector.broadcast %cst_133 : f32 to vector<2x32xf32>
    %537 = arith.subf %536, %530 : vector<2x32xf32>
    %538 = arith.mulf %537, %535 : vector<2x32xf32>
    %539 = arith.mulf %530, %474 : vector<2x32xf32>
    %540 = arith.addf %538, %539 : vector<2x32xf32>
    %541 = vector.extract_strided_slice %83 {offsets = [4, 0], sizes = [2, 32], strides = [1, 1]} : vector<16x32xf32> to vector<2x32xf32>
    %cst_134 = arith.constant dense<0.000000e+00> : vector<2x96xf32>
    %542 = tpu.matmul %541, %172, %cst_134 {dimension_numbers = #tpu.dot_dimension_numbers<[1], [0], [0], [1], [0, 0, 1, 1], [], []>} : vector<2x32xf32>, vector<32x96xf32>, vector<2x96xf32> -> vector<2x96xf32>
    %543 = vector.broadcast %174 : vector<1x96xf32> to vector<2x96xf32>
    %544 = arith.addf %542, %543 : vector<2x96xf32>
    %cst_135 = arith.constant dense<0.000000e+00> : vector<2x96xf32>
    %545 = tpu.matmul %507, %173, %cst_135 {dimension_numbers = #tpu.dot_dimension_numbers<[1], [0], [0], [1], [0, 0, 1, 1], [], []>} : vector<2x32xf32>, vector<32x96xf32>, vector<2x96xf32> -> vector<2x96xf32>
    %546 = vector.broadcast %175 : vector<1x96xf32> to vector<2x96xf32>
    %547 = arith.addf %545, %546 : vector<2x96xf32>
    %548 = vector.extract_strided_slice %544 {offsets = [0, 0], sizes = [2, 32], strides = [1, 1]} : vector<2x96xf32> to vector<2x32xf32>
    %549 = vector.extract_strided_slice %547 {offsets = [0, 0], sizes = [2, 32], strides = [1, 1]} : vector<2x96xf32> to vector<2x32xf32>
    %550 = arith.addf %548, %549 : vector<2x32xf32>
    %551 = arith.negf %550 : vector<2x32xf32>
    %552 = math.exp %551 : vector<2x32xf32>
    %cst_136 = arith.constant 1.000000e+00 : f32
    %553 = vector.broadcast %cst_136 : f32 to vector<2x32xf32>
    %554 = arith.addf %553, %552 : vector<2x32xf32>
    %555 = arith.divf %553, %554 : vector<2x32xf32>
    %556 = vector.extract_strided_slice %544 {offsets = [0, 32], sizes = [2, 32], strides = [1, 1]} : vector<2x96xf32> to vector<2x32xf32>
    %557 = vector.extract_strided_slice %547 {offsets = [0, 32], sizes = [2, 32], strides = [1, 1]} : vector<2x96xf32> to vector<2x32xf32>
    %558 = arith.addf %556, %557 : vector<2x32xf32>
    %559 = arith.negf %558 : vector<2x32xf32>
    %560 = math.exp %559 : vector<2x32xf32>
    %cst_137 = arith.constant 1.000000e+00 : f32
    %561 = vector.broadcast %cst_137 : f32 to vector<2x32xf32>
    %562 = arith.addf %561, %560 : vector<2x32xf32>
    %563 = arith.divf %561, %562 : vector<2x32xf32>
    %564 = vector.extract_strided_slice %544 {offsets = [0, 64], sizes = [2, 32], strides = [1, 1]} : vector<2x96xf32> to vector<2x32xf32>
    %565 = vector.extract_strided_slice %547 {offsets = [0, 64], sizes = [2, 32], strides = [1, 1]} : vector<2x96xf32> to vector<2x32xf32>
    %566 = arith.mulf %555, %565 : vector<2x32xf32>
    %567 = arith.addf %564, %566 : vector<2x32xf32>
    %568 = math.tanh %567 : vector<2x32xf32>
    %cst_138 = arith.constant 1.000000e+00 : f32
    %569 = vector.broadcast %cst_138 : f32 to vector<2x32xf32>
    %570 = arith.subf %569, %563 : vector<2x32xf32>
    %571 = arith.mulf %570, %568 : vector<2x32xf32>
    %572 = arith.mulf %563, %507 : vector<2x32xf32>
    %573 = arith.addf %571, %572 : vector<2x32xf32>
    %574 = vector.extract_strided_slice %83 {offsets = [12, 0], sizes = [2, 32], strides = [1, 1]} : vector<16x32xf32> to vector<2x32xf32>
    %cst_139 = arith.constant dense<0.000000e+00> : vector<2x96xf32>
    %575 = tpu.matmul %574, %168, %cst_139 {dimension_numbers = #tpu.dot_dimension_numbers<[1], [0], [0], [1], [0, 0, 1, 1], [], []>} : vector<2x32xf32>, vector<32x96xf32>, vector<2x96xf32> -> vector<2x96xf32>
    %576 = vector.broadcast %170 : vector<1x96xf32> to vector<2x96xf32>
    %577 = arith.addf %575, %576 : vector<2x96xf32>
    %cst_140 = arith.constant dense<0.000000e+00> : vector<2x96xf32>
    %578 = tpu.matmul %540, %169, %cst_140 {dimension_numbers = #tpu.dot_dimension_numbers<[1], [0], [0], [1], [0, 0, 1, 1], [], []>} : vector<2x32xf32>, vector<32x96xf32>, vector<2x96xf32> -> vector<2x96xf32>
    %579 = vector.broadcast %171 : vector<1x96xf32> to vector<2x96xf32>
    %580 = arith.addf %578, %579 : vector<2x96xf32>
    %581 = vector.extract_strided_slice %577 {offsets = [0, 0], sizes = [2, 32], strides = [1, 1]} : vector<2x96xf32> to vector<2x32xf32>
    %582 = vector.extract_strided_slice %580 {offsets = [0, 0], sizes = [2, 32], strides = [1, 1]} : vector<2x96xf32> to vector<2x32xf32>
    %583 = arith.addf %581, %582 : vector<2x32xf32>
    %584 = arith.negf %583 : vector<2x32xf32>
    %585 = math.exp %584 : vector<2x32xf32>
    %cst_141 = arith.constant 1.000000e+00 : f32
    %586 = vector.broadcast %cst_141 : f32 to vector<2x32xf32>
    %587 = arith.addf %586, %585 : vector<2x32xf32>
    %588 = arith.divf %586, %587 : vector<2x32xf32>
    %589 = vector.extract_strided_slice %577 {offsets = [0, 32], sizes = [2, 32], strides = [1, 1]} : vector<2x96xf32> to vector<2x32xf32>
    %590 = vector.extract_strided_slice %580 {offsets = [0, 32], sizes = [2, 32], strides = [1, 1]} : vector<2x96xf32> to vector<2x32xf32>
    %591 = arith.addf %589, %590 : vector<2x32xf32>
    %592 = arith.negf %591 : vector<2x32xf32>
    %593 = math.exp %592 : vector<2x32xf32>
    %cst_142 = arith.constant 1.000000e+00 : f32
    %594 = vector.broadcast %cst_142 : f32 to vector<2x32xf32>
    %595 = arith.addf %594, %593 : vector<2x32xf32>
    %596 = arith.divf %594, %595 : vector<2x32xf32>
    %597 = vector.extract_strided_slice %577 {offsets = [0, 64], sizes = [2, 32], strides = [1, 1]} : vector<2x96xf32> to vector<2x32xf32>
    %598 = vector.extract_strided_slice %580 {offsets = [0, 64], sizes = [2, 32], strides = [1, 1]} : vector<2x96xf32> to vector<2x32xf32>
    %599 = arith.mulf %588, %598 : vector<2x32xf32>
    %600 = arith.addf %597, %599 : vector<2x32xf32>
    %601 = math.tanh %600 : vector<2x32xf32>
    %cst_143 = arith.constant 1.000000e+00 : f32
    %602 = vector.broadcast %cst_143 : f32 to vector<2x32xf32>
    %603 = arith.subf %602, %596 : vector<2x32xf32>
    %604 = arith.mulf %603, %601 : vector<2x32xf32>
    %605 = arith.mulf %596, %540 : vector<2x32xf32>
    %606 = arith.addf %604, %605 : vector<2x32xf32>
    %607 = vector.extract_strided_slice %83 {offsets = [2, 0], sizes = [2, 32], strides = [1, 1]} : vector<16x32xf32> to vector<2x32xf32>
    %cst_144 = arith.constant dense<0.000000e+00> : vector<2x96xf32>
    %608 = tpu.matmul %607, %172, %cst_144 {dimension_numbers = #tpu.dot_dimension_numbers<[1], [0], [0], [1], [0, 0, 1, 1], [], []>} : vector<2x32xf32>, vector<32x96xf32>, vector<2x96xf32> -> vector<2x96xf32>
    %609 = vector.broadcast %174 : vector<1x96xf32> to vector<2x96xf32>
    %610 = arith.addf %608, %609 : vector<2x96xf32>
    %cst_145 = arith.constant dense<0.000000e+00> : vector<2x96xf32>
    %611 = tpu.matmul %573, %173, %cst_145 {dimension_numbers = #tpu.dot_dimension_numbers<[1], [0], [0], [1], [0, 0, 1, 1], [], []>} : vector<2x32xf32>, vector<32x96xf32>, vector<2x96xf32> -> vector<2x96xf32>
    %612 = vector.broadcast %175 : vector<1x96xf32> to vector<2x96xf32>
    %613 = arith.addf %611, %612 : vector<2x96xf32>
    %614 = vector.extract_strided_slice %610 {offsets = [0, 0], sizes = [2, 32], strides = [1, 1]} : vector<2x96xf32> to vector<2x32xf32>
    %615 = vector.extract_strided_slice %613 {offsets = [0, 0], sizes = [2, 32], strides = [1, 1]} : vector<2x96xf32> to vector<2x32xf32>
    %616 = arith.addf %614, %615 : vector<2x32xf32>
    %617 = arith.negf %616 : vector<2x32xf32>
    %618 = math.exp %617 : vector<2x32xf32>
    %cst_146 = arith.constant 1.000000e+00 : f32
    %619 = vector.broadcast %cst_146 : f32 to vector<2x32xf32>
    %620 = arith.addf %619, %618 : vector<2x32xf32>
    %621 = arith.divf %619, %620 : vector<2x32xf32>
    %622 = vector.extract_strided_slice %610 {offsets = [0, 32], sizes = [2, 32], strides = [1, 1]} : vector<2x96xf32> to vector<2x32xf32>
    %623 = vector.extract_strided_slice %613 {offsets = [0, 32], sizes = [2, 32], strides = [1, 1]} : vector<2x96xf32> to vector<2x32xf32>
    %624 = arith.addf %622, %623 : vector<2x32xf32>
    %625 = arith.negf %624 : vector<2x32xf32>
    %626 = math.exp %625 : vector<2x32xf32>
    %cst_147 = arith.constant 1.000000e+00 : f32
    %627 = vector.broadcast %cst_147 : f32 to vector<2x32xf32>
    %628 = arith.addf %627, %626 : vector<2x32xf32>
    %629 = arith.divf %627, %628 : vector<2x32xf32>
    %630 = vector.extract_strided_slice %610 {offsets = [0, 64], sizes = [2, 32], strides = [1, 1]} : vector<2x96xf32> to vector<2x32xf32>
    %631 = vector.extract_strided_slice %613 {offsets = [0, 64], sizes = [2, 32], strides = [1, 1]} : vector<2x96xf32> to vector<2x32xf32>
    %632 = arith.mulf %621, %631 : vector<2x32xf32>
    %633 = arith.addf %630, %632 : vector<2x32xf32>
    %634 = math.tanh %633 : vector<2x32xf32>
    %cst_148 = arith.constant 1.000000e+00 : f32
    %635 = vector.broadcast %cst_148 : f32 to vector<2x32xf32>
    %636 = arith.subf %635, %629 : vector<2x32xf32>
    %637 = arith.mulf %636, %634 : vector<2x32xf32>
    %638 = arith.mulf %629, %573 : vector<2x32xf32>
    %639 = arith.addf %637, %638 : vector<2x32xf32>
    %640 = vector.extract_strided_slice %83 {offsets = [14, 0], sizes = [2, 32], strides = [1, 1]} : vector<16x32xf32> to vector<2x32xf32>
    %cst_149 = arith.constant dense<0.000000e+00> : vector<2x96xf32>
    %641 = tpu.matmul %640, %168, %cst_149 {dimension_numbers = #tpu.dot_dimension_numbers<[1], [0], [0], [1], [0, 0, 1, 1], [], []>} : vector<2x32xf32>, vector<32x96xf32>, vector<2x96xf32> -> vector<2x96xf32>
    %642 = vector.broadcast %170 : vector<1x96xf32> to vector<2x96xf32>
    %643 = arith.addf %641, %642 : vector<2x96xf32>
    %cst_150 = arith.constant dense<0.000000e+00> : vector<2x96xf32>
    %644 = tpu.matmul %606, %169, %cst_150 {dimension_numbers = #tpu.dot_dimension_numbers<[1], [0], [0], [1], [0, 0, 1, 1], [], []>} : vector<2x32xf32>, vector<32x96xf32>, vector<2x96xf32> -> vector<2x96xf32>
    %645 = vector.broadcast %171 : vector<1x96xf32> to vector<2x96xf32>
    %646 = arith.addf %644, %645 : vector<2x96xf32>
    %647 = vector.extract_strided_slice %643 {offsets = [0, 0], sizes = [2, 32], strides = [1, 1]} : vector<2x96xf32> to vector<2x32xf32>
    %648 = vector.extract_strided_slice %646 {offsets = [0, 0], sizes = [2, 32], strides = [1, 1]} : vector<2x96xf32> to vector<2x32xf32>
    %649 = arith.addf %647, %648 : vector<2x32xf32>
    %650 = arith.negf %649 : vector<2x32xf32>
    %651 = math.exp %650 : vector<2x32xf32>
    %cst_151 = arith.constant 1.000000e+00 : f32
    %652 = vector.broadcast %cst_151 : f32 to vector<2x32xf32>
    %653 = arith.addf %652, %651 : vector<2x32xf32>
    %654 = arith.divf %652, %653 : vector<2x32xf32>
    %655 = vector.extract_strided_slice %643 {offsets = [0, 32], sizes = [2, 32], strides = [1, 1]} : vector<2x96xf32> to vector<2x32xf32>
    %656 = vector.extract_strided_slice %646 {offsets = [0, 32], sizes = [2, 32], strides = [1, 1]} : vector<2x96xf32> to vector<2x32xf32>
    %657 = arith.addf %655, %656 : vector<2x32xf32>
    %658 = arith.negf %657 : vector<2x32xf32>
    %659 = math.exp %658 : vector<2x32xf32>
    %cst_152 = arith.constant 1.000000e+00 : f32
    %660 = vector.broadcast %cst_152 : f32 to vector<2x32xf32>
    %661 = arith.addf %660, %659 : vector<2x32xf32>
    %662 = arith.divf %660, %661 : vector<2x32xf32>
    %663 = vector.extract_strided_slice %643 {offsets = [0, 64], sizes = [2, 32], strides = [1, 1]} : vector<2x96xf32> to vector<2x32xf32>
    %664 = vector.extract_strided_slice %646 {offsets = [0, 64], sizes = [2, 32], strides = [1, 1]} : vector<2x96xf32> to vector<2x32xf32>
    %665 = arith.mulf %654, %664 : vector<2x32xf32>
    %666 = arith.addf %663, %665 : vector<2x32xf32>
    %667 = math.tanh %666 : vector<2x32xf32>
    %cst_153 = arith.constant 1.000000e+00 : f32
    %668 = vector.broadcast %cst_153 : f32 to vector<2x32xf32>
    %669 = arith.subf %668, %662 : vector<2x32xf32>
    %670 = arith.mulf %669, %667 : vector<2x32xf32>
    %671 = arith.mulf %662, %606 : vector<2x32xf32>
    %672 = arith.addf %670, %671 : vector<2x32xf32>
    %673 = vector.extract_strided_slice %83 {offsets = [0, 0], sizes = [2, 32], strides = [1, 1]} : vector<16x32xf32> to vector<2x32xf32>
    %cst_154 = arith.constant dense<0.000000e+00> : vector<2x96xf32>
    %674 = tpu.matmul %673, %172, %cst_154 {dimension_numbers = #tpu.dot_dimension_numbers<[1], [0], [0], [1], [0, 0, 1, 1], [], []>} : vector<2x32xf32>, vector<32x96xf32>, vector<2x96xf32> -> vector<2x96xf32>
    %675 = vector.broadcast %174 : vector<1x96xf32> to vector<2x96xf32>
    %676 = arith.addf %674, %675 : vector<2x96xf32>
    %cst_155 = arith.constant dense<0.000000e+00> : vector<2x96xf32>
    %677 = tpu.matmul %639, %173, %cst_155 {dimension_numbers = #tpu.dot_dimension_numbers<[1], [0], [0], [1], [0, 0, 1, 1], [], []>} : vector<2x32xf32>, vector<32x96xf32>, vector<2x96xf32> -> vector<2x96xf32>
    %678 = vector.broadcast %175 : vector<1x96xf32> to vector<2x96xf32>
    %679 = arith.addf %677, %678 : vector<2x96xf32>
    %680 = vector.extract_strided_slice %676 {offsets = [0, 0], sizes = [2, 32], strides = [1, 1]} : vector<2x96xf32> to vector<2x32xf32>
    %681 = vector.extract_strided_slice %679 {offsets = [0, 0], sizes = [2, 32], strides = [1, 1]} : vector<2x96xf32> to vector<2x32xf32>
    %682 = arith.addf %680, %681 : vector<2x32xf32>
    %683 = arith.negf %682 : vector<2x32xf32>
    %684 = math.exp %683 : vector<2x32xf32>
    %cst_156 = arith.constant 1.000000e+00 : f32
    %685 = vector.broadcast %cst_156 : f32 to vector<2x32xf32>
    %686 = arith.addf %685, %684 : vector<2x32xf32>
    %687 = arith.divf %685, %686 : vector<2x32xf32>
    %688 = vector.extract_strided_slice %676 {offsets = [0, 32], sizes = [2, 32], strides = [1, 1]} : vector<2x96xf32> to vector<2x32xf32>
    %689 = vector.extract_strided_slice %679 {offsets = [0, 32], sizes = [2, 32], strides = [1, 1]} : vector<2x96xf32> to vector<2x32xf32>
    %690 = arith.addf %688, %689 : vector<2x32xf32>
    %691 = arith.negf %690 : vector<2x32xf32>
    %692 = math.exp %691 : vector<2x32xf32>
    %cst_157 = arith.constant 1.000000e+00 : f32
    %693 = vector.broadcast %cst_157 : f32 to vector<2x32xf32>
    %694 = arith.addf %693, %692 : vector<2x32xf32>
    %695 = arith.divf %693, %694 : vector<2x32xf32>
    %696 = vector.extract_strided_slice %676 {offsets = [0, 64], sizes = [2, 32], strides = [1, 1]} : vector<2x96xf32> to vector<2x32xf32>
    %697 = vector.extract_strided_slice %679 {offsets = [0, 64], sizes = [2, 32], strides = [1, 1]} : vector<2x96xf32> to vector<2x32xf32>
    %698 = arith.mulf %687, %697 : vector<2x32xf32>
    %699 = arith.addf %696, %698 : vector<2x32xf32>
    %700 = math.tanh %699 : vector<2x32xf32>
    %cst_158 = arith.constant 1.000000e+00 : f32
    %701 = vector.broadcast %cst_158 : f32 to vector<2x32xf32>
    %702 = arith.subf %701, %695 : vector<2x32xf32>
    %703 = arith.mulf %702, %700 : vector<2x32xf32>
    %704 = arith.mulf %695, %639 : vector<2x32xf32>
    %705 = arith.addf %703, %704 : vector<2x32xf32>
    %706 = tpu.concatenate %672, %705 in 1 : vector<2x32xf32>, vector<2x32xf32> -> vector<2x64xf32>
    %c0_159 = arith.constant 0 : index
    %c0_160 = arith.constant 0 : index
    %707 = vector.load %arg13[%c0_159, %c0_160] : memref<64x32xf32, #tpu.memory_space<vmem>>, vector<64x32xf32>
    %cst_161 = arith.constant dense<0.000000e+00> : vector<2x32xf32>
    %708 = tpu.matmul %706, %707, %cst_161 {dimension_numbers = #tpu.dot_dimension_numbers<[1], [0], [0], [1], [0, 0, 1, 1], [], []>} : vector<2x64xf32>, vector<64x32xf32>, vector<2x32xf32> -> vector<2x32xf32>
    %c0_162 = arith.constant 0 : index
    %c0_163 = arith.constant 0 : index
    %709 = vector.load %arg14[%c0_162, %c0_163] : memref<1x32xf32, #tpu.memory_space<vmem>>, vector<1x32xf32>
    %710 = vector.broadcast %709 : vector<1x32xf32> to vector<2x32xf32>
    %711 = arith.addf %708, %710 : vector<2x32xf32>
    %712 = math.tanh %711 : vector<2x32xf32>
    %713 = tpu.concatenate %210, %705 in 1 : vector<2x32xf32>, vector<2x32xf32> -> vector<2x64xf32>
    %714 = tpu.concatenate %276, %639 in 1 : vector<2x32xf32>, vector<2x32xf32> -> vector<2x64xf32>
    %715 = tpu.concatenate %342, %573 in 1 : vector<2x32xf32>, vector<2x32xf32> -> vector<2x64xf32>
    %716 = tpu.concatenate %408, %507 in 1 : vector<2x32xf32>, vector<2x32xf32> -> vector<2x64xf32>
    %717 = tpu.concatenate %474, %441 in 1 : vector<2x32xf32>, vector<2x32xf32> -> vector<2x64xf32>
    %718 = tpu.concatenate %540, %375 in 1 : vector<2x32xf32>, vector<2x32xf32> -> vector<2x64xf32>
    %719 = tpu.concatenate %606, %309 in 1 : vector<2x32xf32>, vector<2x32xf32> -> vector<2x64xf32>
    %720 = tpu.concatenate %672, %243 in 1 : vector<2x32xf32>, vector<2x32xf32> -> vector<2x64xf32>
    %721 = vector.shape_cast %713 : vector<2x64xf32> to vector<2x1x64xf32>
    %722 = vector.shape_cast %714 : vector<2x64xf32> to vector<2x1x64xf32>
    %723 = vector.shape_cast %715 : vector<2x64xf32> to vector<2x1x64xf32>
    %724 = vector.shape_cast %716 : vector<2x64xf32> to vector<2x1x64xf32>
    %725 = vector.shape_cast %717 : vector<2x64xf32> to vector<2x1x64xf32>
    %726 = vector.shape_cast %718 : vector<2x64xf32> to vector<2x1x64xf32>
    %727 = vector.shape_cast %719 : vector<2x64xf32> to vector<2x1x64xf32>
    %728 = vector.shape_cast %720 : vector<2x64xf32> to vector<2x1x64xf32>
    %729 = tpu.concatenate %721, %722, %723, %724, %725, %726, %727, %728 in 1 : vector<2x1x64xf32>, vector<2x1x64xf32>, vector<2x1x64xf32>, vector<2x1x64xf32>, vector<2x1x64xf32>, vector<2x1x64xf32>, vector<2x1x64xf32>, vector<2x1x64xf32> -> vector<2x8x64xf32>
    %730 = vector.shape_cast %729 : vector<2x8x64xf32> to vector<16x64xf32>
    %c0_164 = arith.constant 0 : index
    %c0_165 = arith.constant 0 : index
    %731 = vector.load %arg15[%c0_164, %c0_165] : memref<64x32xf32, #tpu.memory_space<vmem>>, vector<64x32xf32>
    %cst_166 = arith.constant dense<0.000000e+00> : vector<16x32xf32>
    %732 = tpu.matmul %730, %731, %cst_166 {dimension_numbers = #tpu.dot_dimension_numbers<[1], [0], [0], [1], [0, 0, 1, 1], [], []>} : vector<16x64xf32>, vector<64x32xf32>, vector<16x32xf32> -> vector<16x32xf32>
    %c0_167 = arith.constant 0 : index
    %c0_168 = arith.constant 0 : index
    %733 = vector.load %arg16[%c0_167, %c0_168] : memref<32x1xf32, #tpu.memory_space<vmem>>, vector<32x1xf32>
    %734 = vector.shape_cast %733 : vector<32x1xf32> to vector<32x1xf32>
    %735 = vector.broadcast %734 : vector<32x1xf32> to vector<32x8xf32>
    %736 = tpu.iota {dimensions = array<i32: 0>} : vector<8x8xi32>
    %737 = tpu.iota {dimensions = array<i32: 1>} : vector<8x8xi32>
    %738 = arith.cmpi eq, %736, %737 : vector<8x8xi32>
    %739 = arith.extui %738 : vector<8x8xi1> to vector<8x8xi32>
    %740 = arith.sitofp %739 : vector<8x8xi32> to vector<8x8xf32>
    %741 = tpu.concatenate %740, %740 in 0 : vector<8x8xf32>, vector<8x8xf32> -> vector<16x8xf32>
    %742 = tpu.iota {dimensions = array<i32: 0>} : vector<2x16xi32>
    %743 = tpu.iota {dimensions = array<i32: 1>} : vector<2x16xi32>
    %c8_i32 = arith.constant 8 : i32
    %744 = vector.broadcast %c8_i32 : i32 to vector<2x16xi32>
    %745 = arith.muli %742, %744 : vector<2x16xi32>
    %746 = arith.cmpi sge, %743, %745 : vector<2x16xi32>
    %c1_i32 = arith.constant 1 : i32
    %747 = vector.broadcast %c1_i32 : i32 to vector<2x16xi32>
    %748 = arith.addi %742, %747 : vector<2x16xi32>
    %c8_i32_169 = arith.constant 8 : i32
    %749 = vector.broadcast %c8_i32_169 : i32 to vector<2x16xi32>
    %750 = arith.muli %748, %749 : vector<2x16xi32>
    %751 = arith.cmpi slt, %743, %750 : vector<2x16xi32>
    %752 = arith.andi %746, %751 : vector<2x16xi1>
    %753 = arith.extui %752 : vector<2x16xi1> to vector<2x16xi32>
    %754 = arith.sitofp %753 : vector<2x16xi32> to vector<2x16xf32>
    %c0_170 = arith.constant 0 : index
    %c0_171 = arith.constant 0 : index
    %755 = vector.load %arg17[%c0_170, %c0_171] : memref<32x128xf32, #tpu.memory_space<vmem>>, vector<32x128xf32>
    %c0_172 = arith.constant 0 : index
    %c0_173 = arith.constant 0 : index
    %756 = vector.load %arg18[%c0_172, %c0_173] : memref<1x128xf32, #tpu.memory_space<vmem>>, vector<1x128xf32>
    %c0_174 = arith.constant 0 : index
    %c0_175 = arith.constant 0 : index
    %757 = vector.load %arg19[%c0_174, %c0_175] : memref<96x96xf32, #tpu.memory_space<vmem>>, vector<96x96xf32>
    %c0_176 = arith.constant 0 : index
    %c0_177 = arith.constant 0 : index
    %758 = vector.load %arg20[%c0_176, %c0_177] : memref<1x96xf32, #tpu.memory_space<vmem>>, vector<1x96xf32>
    %c0_178 = arith.constant 0 : index
    %c0_179 = arith.constant 0 : index
    %759 = vector.load %arg21[%c0_178, %c0_179] : memref<128x128xf32, #tpu.memory_space<vmem>>, vector<128x128xf32>
    %c0_180 = arith.constant 0 : index
    %c0_181 = arith.constant 0 : index
    %760 = vector.load %arg22[%c0_180, %c0_181] : memref<1x128xf32, #tpu.memory_space<vmem>>, vector<1x128xf32>
    %c0_182 = arith.constant 0 : index
    %c0_183 = arith.constant 0 : index
    %761 = vector.load %arg4[%c0_182, %c0_183] : memref<16x32xf32, #tpu.memory_space<vmem>>, vector<16x32xf32>
    %762 = vector.extract_strided_slice %167 {offsets = [0, 0], sizes = [2, 32], strides = [1, 1]} : vector<16x32xf32> to vector<2x32xf32>
    %cst_184 = arith.constant 0.000000e+00 : f32
    %763 = vector.broadcast %cst_184 : f32 to vector<2x128xf32>
    %cst_185 = arith.constant dense<0.000000e+00> : vector<2x128xf32>
    %764 = tpu.matmul %712, %755, %cst_185 {dimension_numbers = #tpu.dot_dimension_numbers<[1], [0], [0], [1], [0, 0, 1, 1], [], []>} : vector<2x32xf32>, vector<32x128xf32>, vector<2x128xf32> -> vector<2x128xf32>
    %765 = vector.broadcast %756 : vector<1x128xf32> to vector<2x128xf32>
    %766 = arith.addf %764, %765 : vector<2x128xf32>
    %767 = vector.extract_strided_slice %766 {offsets = [0, 0], sizes = [2, 32], strides = [1, 1]} : vector<2x128xf32> to vector<2x32xf32>
    %768 = vector.extract_strided_slice %766 {offsets = [0, 32], sizes = [2, 96], strides = [1, 1]} : vector<2x128xf32> to vector<2x96xf32>
    %769 = vector.shape_cast %767 : vector<2x32xf32> to vector<2x1x32xf32>
    %770 = vector.shape_cast %769 : vector<2x1x32xf32> to vector<2x1x32xf32>
    %771 = vector.broadcast %770 : vector<2x1x32xf32> to vector<2x8x32xf32>
    %772 = vector.shape_cast %771 : vector<2x8x32xf32> to vector<16x32xf32>
    %773 = arith.addf %772, %732 : vector<16x32xf32>
    %774 = math.tanh %773 : vector<16x32xf32>
    %cst_186 = arith.constant dense<0.000000e+00> : vector<16x8xf32>
    %775 = tpu.matmul %774, %735, %cst_186 {dimension_numbers = #tpu.dot_dimension_numbers<[1], [0], [0], [1], [0, 0, 1, 1], [], []>} : vector<16x32xf32>, vector<32x8xf32>, vector<16x8xf32> -> vector<16x8xf32>
    %776 = arith.mulf %775, %741 : vector<16x8xf32>
    %cst_187 = arith.constant dense<0.000000e+00> : vector<2x8xf32>
    %777 = tpu.matmul %754, %776, %cst_187 {dimension_numbers = #tpu.dot_dimension_numbers<[1], [0], [0], [1], [0, 0, 1, 1], [], []>} : vector<2x16xf32>, vector<16x8xf32>, vector<2x8xf32> -> vector<2x8xf32>
    %cst_188 = arith.constant dense<0xFF800000> : vector<2xf32>
    %778 = vector.multi_reduction <maximumf>, %777, %cst_188 [1] : vector<2x8xf32> to vector<2xf32>
    %779 = vector.shape_cast %778 : vector<2xf32> to vector<2x1xf32>
    %780 = vector.broadcast %779 : vector<2x1xf32> to vector<2x8xf32>
    %781 = arith.subf %777, %780 : vector<2x8xf32>
    %782 = math.exp %781 : vector<2x8xf32>
    %cst_189 = arith.constant dense<0.000000e+00> : vector<2xf32>
    %783 = vector.multi_reduction <add>, %782, %cst_189 [1] : vector<2x8xf32> to vector<2xf32>
    %784 = vector.shape_cast %783 : vector<2xf32> to vector<2x1xf32>
    %785 = vector.broadcast %784 : vector<2x1xf32> to vector<2x8xf32>
    %786 = arith.divf %782, %785 : vector<2x8xf32>
    %787 = tpu.concatenate %786, %786 in 1 : vector<2x8xf32>, vector<2x8xf32> -> vector<2x16xf32>
    %788 = arith.mulf %787, %754 : vector<2x16xf32>
    %cst_190 = arith.constant dense<0.000000e+00> : vector<2x64xf32>
    %789 = tpu.matmul %788, %730, %cst_190 {dimension_numbers = #tpu.dot_dimension_numbers<[1], [0], [0], [1], [0, 0, 1, 1], [], []>} : vector<2x16xf32>, vector<16x64xf32>, vector<2x64xf32> -> vector<2x64xf32>
    %790 = tpu.concatenate %762, %789 in 1 : vector<2x32xf32>, vector<2x64xf32> -> vector<2x96xf32>
    %cst_191 = arith.constant dense<0.000000e+00> : vector<2x96xf32>
    %791 = tpu.matmul %790, %757, %cst_191 {dimension_numbers = #tpu.dot_dimension_numbers<[1], [0], [0], [1], [0, 0, 1, 1], [], []>} : vector<2x96xf32>, vector<96x96xf32>, vector<2x96xf32> -> vector<2x96xf32>
    %792 = vector.broadcast %758 : vector<1x96xf32> to vector<2x96xf32>
    %793 = arith.addf %791, %792 : vector<2x96xf32>
    %794 = vector.extract_strided_slice %793 {offsets = [0, 0], sizes = [2, 32], strides = [1, 1]} : vector<2x96xf32> to vector<2x32xf32>
    %795 = vector.extract_strided_slice %768 {offsets = [0, 0], sizes = [2, 32], strides = [1, 1]} : vector<2x96xf32> to vector<2x32xf32>
    %796 = arith.addf %794, %795 : vector<2x32xf32>
    %797 = arith.negf %796 : vector<2x32xf32>
    %798 = math.exp %797 : vector<2x32xf32>
    %cst_192 = arith.constant 1.000000e+00 : f32
    %799 = vector.broadcast %cst_192 : f32 to vector<2x32xf32>
    %800 = arith.addf %799, %798 : vector<2x32xf32>
    %801 = arith.divf %799, %800 : vector<2x32xf32>
    %802 = vector.extract_strided_slice %793 {offsets = [0, 32], sizes = [2, 32], strides = [1, 1]} : vector<2x96xf32> to vector<2x32xf32>
    %803 = vector.extract_strided_slice %768 {offsets = [0, 32], sizes = [2, 32], strides = [1, 1]} : vector<2x96xf32> to vector<2x32xf32>
    %804 = arith.addf %802, %803 : vector<2x32xf32>
    %805 = arith.negf %804 : vector<2x32xf32>
    %806 = math.exp %805 : vector<2x32xf32>
    %cst_193 = arith.constant 1.000000e+00 : f32
    %807 = vector.broadcast %cst_193 : f32 to vector<2x32xf32>
    %808 = arith.addf %807, %806 : vector<2x32xf32>
    %809 = arith.divf %807, %808 : vector<2x32xf32>
    %810 = vector.extract_strided_slice %793 {offsets = [0, 64], sizes = [2, 32], strides = [1, 1]} : vector<2x96xf32> to vector<2x32xf32>
    %811 = vector.extract_strided_slice %768 {offsets = [0, 64], sizes = [2, 32], strides = [1, 1]} : vector<2x96xf32> to vector<2x32xf32>
    %812 = arith.mulf %801, %811 : vector<2x32xf32>
    %813 = arith.addf %810, %812 : vector<2x32xf32>
    %814 = math.tanh %813 : vector<2x32xf32>
    %cst_194 = arith.constant 1.000000e+00 : f32
    %815 = vector.broadcast %cst_194 : f32 to vector<2x32xf32>
    %816 = arith.subf %815, %809 : vector<2x32xf32>
    %817 = arith.mulf %816, %814 : vector<2x32xf32>
    %818 = arith.mulf %809, %712 : vector<2x32xf32>
    %819 = arith.addf %817, %818 : vector<2x32xf32>
    %820 = tpu.concatenate %819, %789, %762 in 1 : vector<2x32xf32>, vector<2x64xf32>, vector<2x32xf32> -> vector<2x128xf32>
    %cst_195 = arith.constant dense<0.000000e+00> : vector<2x128xf32>
    %821 = tpu.matmul %820, %759, %cst_195 {dimension_numbers = #tpu.dot_dimension_numbers<[1], [0], [0], [1], [0, 0, 1, 1], [], []>} : vector<2x128xf32>, vector<128x128xf32>, vector<2x128xf32> -> vector<2x128xf32>
    %822 = vector.broadcast %760 : vector<1x128xf32> to vector<2x128xf32>
    %823 = arith.addf %821, %822 : vector<2x128xf32>
    %824 = vector.extract_strided_slice %823 {offsets = [0, 0], sizes = [2, 16], strides = [1, 1]} : vector<2x128xf32> to vector<2x16xf32>
    %cst_196 = arith.constant dense<0xFF800000> : vector<2xf32>
    %825 = vector.multi_reduction <maximumf>, %824, %cst_196 [1] : vector<2x16xf32> to vector<2xf32>
    %826 = vector.shape_cast %825 : vector<2xf32> to vector<2x1xf32>
    %827 = vector.broadcast %826 : vector<2x1xf32> to vector<2x16xf32>
    %828 = arith.cmpf oeq, %824, %827 : vector<2x16xf32>
    %829 = arith.extui %828 : vector<2x16xi1> to vector<2x16xi32>
    %830 = arith.sitofp %829 : vector<2x16xi32> to vector<2x16xf32>
    %cst_197 = arith.constant dense<0.000000e+00> : vector<2x32xf32>
    %831 = tpu.matmul %830, %761, %cst_197 {dimension_numbers = #tpu.dot_dimension_numbers<[1], [0], [0], [1], [0, 0, 1, 1], [], []>} : vector<2x16xf32>, vector<16x32xf32>, vector<2x32xf32> -> vector<2x32xf32>
    %c1_198 = arith.constant 1 : index
    %832 = memref.load %arg2[%c1_198] : memref<8xi32, #tpu.memory_space<smem>>
    %c0_i32 = arith.constant 0 : i32
    %833 = arith.cmpi sgt, %832, %c0_i32 : i32
    %834 = arith.extui %833 : i1 to i32
    %835 = arith.sitofp %834 : i32 to f32
    %836 = vector.extract_strided_slice %167 {offsets = [2, 0], sizes = [2, 32], strides = [1, 1]} : vector<16x32xf32> to vector<2x32xf32>
    %837 = vector.broadcast %835 : f32 to vector<2x32xf32>
    %838 = arith.mulf %837, %836 : vector<2x32xf32>
    %cst_199 = arith.constant 1.000000e+00 : f32
    %839 = arith.subf %cst_199, %835 : f32
    %840 = vector.broadcast %839 : f32 to vector<2x32xf32>
    %841 = arith.mulf %840, %831 : vector<2x32xf32>
    %842 = arith.addf %838, %841 : vector<2x32xf32>
    %cst_200 = arith.constant dense<0.000000e+00> : vector<2x128xf32>
    %843 = tpu.matmul %819, %755, %cst_200 {dimension_numbers = #tpu.dot_dimension_numbers<[1], [0], [0], [1], [0, 0, 1, 1], [], []>} : vector<2x32xf32>, vector<32x128xf32>, vector<2x128xf32> -> vector<2x128xf32>
    %844 = vector.broadcast %756 : vector<1x128xf32> to vector<2x128xf32>
    %845 = arith.addf %843, %844 : vector<2x128xf32>
    %846 = vector.extract_strided_slice %845 {offsets = [0, 0], sizes = [2, 32], strides = [1, 1]} : vector<2x128xf32> to vector<2x32xf32>
    %847 = vector.extract_strided_slice %845 {offsets = [0, 32], sizes = [2, 96], strides = [1, 1]} : vector<2x128xf32> to vector<2x96xf32>
    %848 = vector.shape_cast %846 : vector<2x32xf32> to vector<2x1x32xf32>
    %849 = vector.shape_cast %848 : vector<2x1x32xf32> to vector<2x1x32xf32>
    %850 = vector.broadcast %849 : vector<2x1x32xf32> to vector<2x8x32xf32>
    %851 = vector.shape_cast %850 : vector<2x8x32xf32> to vector<16x32xf32>
    %852 = arith.addf %851, %732 : vector<16x32xf32>
    %853 = math.tanh %852 : vector<16x32xf32>
    %cst_201 = arith.constant dense<0.000000e+00> : vector<16x8xf32>
    %854 = tpu.matmul %853, %735, %cst_201 {dimension_numbers = #tpu.dot_dimension_numbers<[1], [0], [0], [1], [0, 0, 1, 1], [], []>} : vector<16x32xf32>, vector<32x8xf32>, vector<16x8xf32> -> vector<16x8xf32>
    %855 = arith.mulf %854, %741 : vector<16x8xf32>
    %cst_202 = arith.constant dense<0.000000e+00> : vector<2x8xf32>
    %856 = tpu.matmul %754, %855, %cst_202 {dimension_numbers = #tpu.dot_dimension_numbers<[1], [0], [0], [1], [0, 0, 1, 1], [], []>} : vector<2x16xf32>, vector<16x8xf32>, vector<2x8xf32> -> vector<2x8xf32>
    %cst_203 = arith.constant dense<0xFF800000> : vector<2xf32>
    %857 = vector.multi_reduction <maximumf>, %856, %cst_203 [1] : vector<2x8xf32> to vector<2xf32>
    %858 = vector.shape_cast %857 : vector<2xf32> to vector<2x1xf32>
    %859 = vector.broadcast %858 : vector<2x1xf32> to vector<2x8xf32>
    %860 = arith.subf %856, %859 : vector<2x8xf32>
    %861 = math.exp %860 : vector<2x8xf32>
    %cst_204 = arith.constant dense<0.000000e+00> : vector<2xf32>
    %862 = vector.multi_reduction <add>, %861, %cst_204 [1] : vector<2x8xf32> to vector<2xf32>
    %863 = vector.shape_cast %862 : vector<2xf32> to vector<2x1xf32>
    %864 = vector.broadcast %863 : vector<2x1xf32> to vector<2x8xf32>
    %865 = arith.divf %861, %864 : vector<2x8xf32>
    %866 = tpu.concatenate %865, %865 in 1 : vector<2x8xf32>, vector<2x8xf32> -> vector<2x16xf32>
    %867 = arith.mulf %866, %754 : vector<2x16xf32>
    %cst_205 = arith.constant dense<0.000000e+00> : vector<2x64xf32>
    %868 = tpu.matmul %867, %730, %cst_205 {dimension_numbers = #tpu.dot_dimension_numbers<[1], [0], [0], [1], [0, 0, 1, 1], [], []>} : vector<2x16xf32>, vector<16x64xf32>, vector<2x64xf32> -> vector<2x64xf32>
    %869 = tpu.concatenate %842, %868 in 1 : vector<2x32xf32>, vector<2x64xf32> -> vector<2x96xf32>
    %cst_206 = arith.constant dense<0.000000e+00> : vector<2x96xf32>
    %870 = tpu.matmul %869, %757, %cst_206 {dimension_numbers = #tpu.dot_dimension_numbers<[1], [0], [0], [1], [0, 0, 1, 1], [], []>} : vector<2x96xf32>, vector<96x96xf32>, vector<2x96xf32> -> vector<2x96xf32>
    %871 = vector.broadcast %758 : vector<1x96xf32> to vector<2x96xf32>
    %872 = arith.addf %870, %871 : vector<2x96xf32>
    %873 = vector.extract_strided_slice %872 {offsets = [0, 0], sizes = [2, 32], strides = [1, 1]} : vector<2x96xf32> to vector<2x32xf32>
    %874 = vector.extract_strided_slice %847 {offsets = [0, 0], sizes = [2, 32], strides = [1, 1]} : vector<2x96xf32> to vector<2x32xf32>
    %875 = arith.addf %873, %874 : vector<2x32xf32>
    %876 = arith.negf %875 : vector<2x32xf32>
    %877 = math.exp %876 : vector<2x32xf32>
    %cst_207 = arith.constant 1.000000e+00 : f32
    %878 = vector.broadcast %cst_207 : f32 to vector<2x32xf32>
    %879 = arith.addf %878, %877 : vector<2x32xf32>
    %880 = arith.divf %878, %879 : vector<2x32xf32>
    %881 = vector.extract_strided_slice %872 {offsets = [0, 32], sizes = [2, 32], strides = [1, 1]} : vector<2x96xf32> to vector<2x32xf32>
    %882 = vector.extract_strided_slice %847 {offsets = [0, 32], sizes = [2, 32], strides = [1, 1]} : vector<2x96xf32> to vector<2x32xf32>
    %883 = arith.addf %881, %882 : vector<2x32xf32>
    %884 = arith.negf %883 : vector<2x32xf32>
    %885 = math.exp %884 : vector<2x32xf32>
    %cst_208 = arith.constant 1.000000e+00 : f32
    %886 = vector.broadcast %cst_208 : f32 to vector<2x32xf32>
    %887 = arith.addf %886, %885 : vector<2x32xf32>
    %888 = arith.divf %886, %887 : vector<2x32xf32>
    %889 = vector.extract_strided_slice %872 {offsets = [0, 64], sizes = [2, 32], strides = [1, 1]} : vector<2x96xf32> to vector<2x32xf32>
    %890 = vector.extract_strided_slice %847 {offsets = [0, 64], sizes = [2, 32], strides = [1, 1]} : vector<2x96xf32> to vector<2x32xf32>
    %891 = arith.mulf %880, %890 : vector<2x32xf32>
    %892 = arith.addf %889, %891 : vector<2x32xf32>
    %893 = math.tanh %892 : vector<2x32xf32>
    %cst_209 = arith.constant 1.000000e+00 : f32
    %894 = vector.broadcast %cst_209 : f32 to vector<2x32xf32>
    %895 = arith.subf %894, %888 : vector<2x32xf32>
    %896 = arith.mulf %895, %893 : vector<2x32xf32>
    %897 = arith.mulf %888, %819 : vector<2x32xf32>
    %898 = arith.addf %896, %897 : vector<2x32xf32>
    %899 = tpu.concatenate %898, %868, %842 in 1 : vector<2x32xf32>, vector<2x64xf32>, vector<2x32xf32> -> vector<2x128xf32>
    %cst_210 = arith.constant dense<0.000000e+00> : vector<2x128xf32>
    %900 = tpu.matmul %899, %759, %cst_210 {dimension_numbers = #tpu.dot_dimension_numbers<[1], [0], [0], [1], [0, 0, 1, 1], [], []>} : vector<2x128xf32>, vector<128x128xf32>, vector<2x128xf32> -> vector<2x128xf32>
    %901 = vector.broadcast %760 : vector<1x128xf32> to vector<2x128xf32>
    %902 = arith.addf %900, %901 : vector<2x128xf32>
    %903 = vector.extract_strided_slice %902 {offsets = [0, 0], sizes = [2, 16], strides = [1, 1]} : vector<2x128xf32> to vector<2x16xf32>
    %cst_211 = arith.constant dense<0xFF800000> : vector<2xf32>
    %904 = vector.multi_reduction <maximumf>, %903, %cst_211 [1] : vector<2x16xf32> to vector<2xf32>
    %905 = vector.shape_cast %904 : vector<2xf32> to vector<2x1xf32>
    %906 = vector.broadcast %905 : vector<2x1xf32> to vector<2x16xf32>
    %907 = arith.cmpf oeq, %903, %906 : vector<2x16xf32>
    %908 = arith.extui %907 : vector<2x16xi1> to vector<2x16xi32>
    %909 = arith.sitofp %908 : vector<2x16xi32> to vector<2x16xf32>
    %cst_212 = arith.constant dense<0.000000e+00> : vector<2x32xf32>
    %910 = tpu.matmul %909, %761, %cst_212 {dimension_numbers = #tpu.dot_dimension_numbers<[1], [0], [0], [1], [0, 0, 1, 1], [], []>} : vector<2x16xf32>, vector<16x32xf32>, vector<2x32xf32> -> vector<2x32xf32>
    %c2_213 = arith.constant 2 : index
    %911 = memref.load %arg2[%c2_213] : memref<8xi32, #tpu.memory_space<smem>>
    %c0_i32_214 = arith.constant 0 : i32
    %912 = arith.cmpi sgt, %911, %c0_i32_214 : i32
    %913 = arith.extui %912 : i1 to i32
    %914 = arith.sitofp %913 : i32 to f32
    %915 = vector.extract_strided_slice %167 {offsets = [4, 0], sizes = [2, 32], strides = [1, 1]} : vector<16x32xf32> to vector<2x32xf32>
    %916 = vector.broadcast %914 : f32 to vector<2x32xf32>
    %917 = arith.mulf %916, %915 : vector<2x32xf32>
    %cst_215 = arith.constant 1.000000e+00 : f32
    %918 = arith.subf %cst_215, %914 : f32
    %919 = vector.broadcast %918 : f32 to vector<2x32xf32>
    %920 = arith.mulf %919, %910 : vector<2x32xf32>
    %921 = arith.addf %917, %920 : vector<2x32xf32>
    %cst_216 = arith.constant dense<0.000000e+00> : vector<2x128xf32>
    %922 = tpu.matmul %898, %755, %cst_216 {dimension_numbers = #tpu.dot_dimension_numbers<[1], [0], [0], [1], [0, 0, 1, 1], [], []>} : vector<2x32xf32>, vector<32x128xf32>, vector<2x128xf32> -> vector<2x128xf32>
    %923 = vector.broadcast %756 : vector<1x128xf32> to vector<2x128xf32>
    %924 = arith.addf %922, %923 : vector<2x128xf32>
    %925 = vector.extract_strided_slice %924 {offsets = [0, 0], sizes = [2, 32], strides = [1, 1]} : vector<2x128xf32> to vector<2x32xf32>
    %926 = vector.extract_strided_slice %924 {offsets = [0, 32], sizes = [2, 96], strides = [1, 1]} : vector<2x128xf32> to vector<2x96xf32>
    %927 = vector.shape_cast %925 : vector<2x32xf32> to vector<2x1x32xf32>
    %928 = vector.shape_cast %927 : vector<2x1x32xf32> to vector<2x1x32xf32>
    %929 = vector.broadcast %928 : vector<2x1x32xf32> to vector<2x8x32xf32>
    %930 = vector.shape_cast %929 : vector<2x8x32xf32> to vector<16x32xf32>
    %931 = arith.addf %930, %732 : vector<16x32xf32>
    %932 = math.tanh %931 : vector<16x32xf32>
    %cst_217 = arith.constant dense<0.000000e+00> : vector<16x8xf32>
    %933 = tpu.matmul %932, %735, %cst_217 {dimension_numbers = #tpu.dot_dimension_numbers<[1], [0], [0], [1], [0, 0, 1, 1], [], []>} : vector<16x32xf32>, vector<32x8xf32>, vector<16x8xf32> -> vector<16x8xf32>
    %934 = arith.mulf %933, %741 : vector<16x8xf32>
    %cst_218 = arith.constant dense<0.000000e+00> : vector<2x8xf32>
    %935 = tpu.matmul %754, %934, %cst_218 {dimension_numbers = #tpu.dot_dimension_numbers<[1], [0], [0], [1], [0, 0, 1, 1], [], []>} : vector<2x16xf32>, vector<16x8xf32>, vector<2x8xf32> -> vector<2x8xf32>
    %cst_219 = arith.constant dense<0xFF800000> : vector<2xf32>
    %936 = vector.multi_reduction <maximumf>, %935, %cst_219 [1] : vector<2x8xf32> to vector<2xf32>
    %937 = vector.shape_cast %936 : vector<2xf32> to vector<2x1xf32>
    %938 = vector.broadcast %937 : vector<2x1xf32> to vector<2x8xf32>
    %939 = arith.subf %935, %938 : vector<2x8xf32>
    %940 = math.exp %939 : vector<2x8xf32>
    %cst_220 = arith.constant dense<0.000000e+00> : vector<2xf32>
    %941 = vector.multi_reduction <add>, %940, %cst_220 [1] : vector<2x8xf32> to vector<2xf32>
    %942 = vector.shape_cast %941 : vector<2xf32> to vector<2x1xf32>
    %943 = vector.broadcast %942 : vector<2x1xf32> to vector<2x8xf32>
    %944 = arith.divf %940, %943 : vector<2x8xf32>
    %945 = tpu.concatenate %944, %944 in 1 : vector<2x8xf32>, vector<2x8xf32> -> vector<2x16xf32>
    %946 = arith.mulf %945, %754 : vector<2x16xf32>
    %cst_221 = arith.constant dense<0.000000e+00> : vector<2x64xf32>
    %947 = tpu.matmul %946, %730, %cst_221 {dimension_numbers = #tpu.dot_dimension_numbers<[1], [0], [0], [1], [0, 0, 1, 1], [], []>} : vector<2x16xf32>, vector<16x64xf32>, vector<2x64xf32> -> vector<2x64xf32>
    %948 = tpu.concatenate %921, %947 in 1 : vector<2x32xf32>, vector<2x64xf32> -> vector<2x96xf32>
    %cst_222 = arith.constant dense<0.000000e+00> : vector<2x96xf32>
    %949 = tpu.matmul %948, %757, %cst_222 {dimension_numbers = #tpu.dot_dimension_numbers<[1], [0], [0], [1], [0, 0, 1, 1], [], []>} : vector<2x96xf32>, vector<96x96xf32>, vector<2x96xf32> -> vector<2x96xf32>
    %950 = vector.broadcast %758 : vector<1x96xf32> to vector<2x96xf32>
    %951 = arith.addf %949, %950 : vector<2x96xf32>
    %952 = vector.extract_strided_slice %951 {offsets = [0, 0], sizes = [2, 32], strides = [1, 1]} : vector<2x96xf32> to vector<2x32xf32>
    %953 = vector.extract_strided_slice %926 {offsets = [0, 0], sizes = [2, 32], strides = [1, 1]} : vector<2x96xf32> to vector<2x32xf32>
    %954 = arith.addf %952, %953 : vector<2x32xf32>
    %955 = arith.negf %954 : vector<2x32xf32>
    %956 = math.exp %955 : vector<2x32xf32>
    %cst_223 = arith.constant 1.000000e+00 : f32
    %957 = vector.broadcast %cst_223 : f32 to vector<2x32xf32>
    %958 = arith.addf %957, %956 : vector<2x32xf32>
    %959 = arith.divf %957, %958 : vector<2x32xf32>
    %960 = vector.extract_strided_slice %951 {offsets = [0, 32], sizes = [2, 32], strides = [1, 1]} : vector<2x96xf32> to vector<2x32xf32>
    %961 = vector.extract_strided_slice %926 {offsets = [0, 32], sizes = [2, 32], strides = [1, 1]} : vector<2x96xf32> to vector<2x32xf32>
    %962 = arith.addf %960, %961 : vector<2x32xf32>
    %963 = arith.negf %962 : vector<2x32xf32>
    %964 = math.exp %963 : vector<2x32xf32>
    %cst_224 = arith.constant 1.000000e+00 : f32
    %965 = vector.broadcast %cst_224 : f32 to vector<2x32xf32>
    %966 = arith.addf %965, %964 : vector<2x32xf32>
    %967 = arith.divf %965, %966 : vector<2x32xf32>
    %968 = vector.extract_strided_slice %951 {offsets = [0, 64], sizes = [2, 32], strides = [1, 1]} : vector<2x96xf32> to vector<2x32xf32>
    %969 = vector.extract_strided_slice %926 {offsets = [0, 64], sizes = [2, 32], strides = [1, 1]} : vector<2x96xf32> to vector<2x32xf32>
    %970 = arith.mulf %959, %969 : vector<2x32xf32>
    %971 = arith.addf %968, %970 : vector<2x32xf32>
    %972 = math.tanh %971 : vector<2x32xf32>
    %cst_225 = arith.constant 1.000000e+00 : f32
    %973 = vector.broadcast %cst_225 : f32 to vector<2x32xf32>
    %974 = arith.subf %973, %967 : vector<2x32xf32>
    %975 = arith.mulf %974, %972 : vector<2x32xf32>
    %976 = arith.mulf %967, %898 : vector<2x32xf32>
    %977 = arith.addf %975, %976 : vector<2x32xf32>
    %978 = tpu.concatenate %977, %947, %921 in 1 : vector<2x32xf32>, vector<2x64xf32>, vector<2x32xf32> -> vector<2x128xf32>
    %cst_226 = arith.constant dense<0.000000e+00> : vector<2x128xf32>
    %979 = tpu.matmul %978, %759, %cst_226 {dimension_numbers = #tpu.dot_dimension_numbers<[1], [0], [0], [1], [0, 0, 1, 1], [], []>} : vector<2x128xf32>, vector<128x128xf32>, vector<2x128xf32> -> vector<2x128xf32>
    %980 = vector.broadcast %760 : vector<1x128xf32> to vector<2x128xf32>
    %981 = arith.addf %979, %980 : vector<2x128xf32>
    %982 = vector.extract_strided_slice %981 {offsets = [0, 0], sizes = [2, 16], strides = [1, 1]} : vector<2x128xf32> to vector<2x16xf32>
    %cst_227 = arith.constant dense<0xFF800000> : vector<2xf32>
    %983 = vector.multi_reduction <maximumf>, %982, %cst_227 [1] : vector<2x16xf32> to vector<2xf32>
    %984 = vector.shape_cast %983 : vector<2xf32> to vector<2x1xf32>
    %985 = vector.broadcast %984 : vector<2x1xf32> to vector<2x16xf32>
    %986 = arith.cmpf oeq, %982, %985 : vector<2x16xf32>
    %987 = arith.extui %986 : vector<2x16xi1> to vector<2x16xi32>
    %988 = arith.sitofp %987 : vector<2x16xi32> to vector<2x16xf32>
    %cst_228 = arith.constant dense<0.000000e+00> : vector<2x32xf32>
    %989 = tpu.matmul %988, %761, %cst_228 {dimension_numbers = #tpu.dot_dimension_numbers<[1], [0], [0], [1], [0, 0, 1, 1], [], []>} : vector<2x16xf32>, vector<16x32xf32>, vector<2x32xf32> -> vector<2x32xf32>
    %c3_229 = arith.constant 3 : index
    %990 = memref.load %arg2[%c3_229] : memref<8xi32, #tpu.memory_space<smem>>
    %c0_i32_230 = arith.constant 0 : i32
    %991 = arith.cmpi sgt, %990, %c0_i32_230 : i32
    %992 = arith.extui %991 : i1 to i32
    %993 = arith.sitofp %992 : i32 to f32
    %994 = vector.extract_strided_slice %167 {offsets = [6, 0], sizes = [2, 32], strides = [1, 1]} : vector<16x32xf32> to vector<2x32xf32>
    %995 = vector.broadcast %993 : f32 to vector<2x32xf32>
    %996 = arith.mulf %995, %994 : vector<2x32xf32>
    %cst_231 = arith.constant 1.000000e+00 : f32
    %997 = arith.subf %cst_231, %993 : f32
    %998 = vector.broadcast %997 : f32 to vector<2x32xf32>
    %999 = arith.mulf %998, %989 : vector<2x32xf32>
    %1000 = arith.addf %996, %999 : vector<2x32xf32>
    %cst_232 = arith.constant dense<0.000000e+00> : vector<2x128xf32>
    %1001 = tpu.matmul %977, %755, %cst_232 {dimension_numbers = #tpu.dot_dimension_numbers<[1], [0], [0], [1], [0, 0, 1, 1], [], []>} : vector<2x32xf32>, vector<32x128xf32>, vector<2x128xf32> -> vector<2x128xf32>
    %1002 = vector.broadcast %756 : vector<1x128xf32> to vector<2x128xf32>
    %1003 = arith.addf %1001, %1002 : vector<2x128xf32>
    %1004 = vector.extract_strided_slice %1003 {offsets = [0, 0], sizes = [2, 32], strides = [1, 1]} : vector<2x128xf32> to vector<2x32xf32>
    %1005 = vector.extract_strided_slice %1003 {offsets = [0, 32], sizes = [2, 96], strides = [1, 1]} : vector<2x128xf32> to vector<2x96xf32>
    %1006 = vector.shape_cast %1004 : vector<2x32xf32> to vector<2x1x32xf32>
    %1007 = vector.shape_cast %1006 : vector<2x1x32xf32> to vector<2x1x32xf32>
    %1008 = vector.broadcast %1007 : vector<2x1x32xf32> to vector<2x8x32xf32>
    %1009 = vector.shape_cast %1008 : vector<2x8x32xf32> to vector<16x32xf32>
    %1010 = arith.addf %1009, %732 : vector<16x32xf32>
    %1011 = math.tanh %1010 : vector<16x32xf32>
    %cst_233 = arith.constant dense<0.000000e+00> : vector<16x8xf32>
    %1012 = tpu.matmul %1011, %735, %cst_233 {dimension_numbers = #tpu.dot_dimension_numbers<[1], [0], [0], [1], [0, 0, 1, 1], [], []>} : vector<16x32xf32>, vector<32x8xf32>, vector<16x8xf32> -> vector<16x8xf32>
    %1013 = arith.mulf %1012, %741 : vector<16x8xf32>
    %cst_234 = arith.constant dense<0.000000e+00> : vector<2x8xf32>
    %1014 = tpu.matmul %754, %1013, %cst_234 {dimension_numbers = #tpu.dot_dimension_numbers<[1], [0], [0], [1], [0, 0, 1, 1], [], []>} : vector<2x16xf32>, vector<16x8xf32>, vector<2x8xf32> -> vector<2x8xf32>
    %cst_235 = arith.constant dense<0xFF800000> : vector<2xf32>
    %1015 = vector.multi_reduction <maximumf>, %1014, %cst_235 [1] : vector<2x8xf32> to vector<2xf32>
    %1016 = vector.shape_cast %1015 : vector<2xf32> to vector<2x1xf32>
    %1017 = vector.broadcast %1016 : vector<2x1xf32> to vector<2x8xf32>
    %1018 = arith.subf %1014, %1017 : vector<2x8xf32>
    %1019 = math.exp %1018 : vector<2x8xf32>
    %cst_236 = arith.constant dense<0.000000e+00> : vector<2xf32>
    %1020 = vector.multi_reduction <add>, %1019, %cst_236 [1] : vector<2x8xf32> to vector<2xf32>
    %1021 = vector.shape_cast %1020 : vector<2xf32> to vector<2x1xf32>
    %1022 = vector.broadcast %1021 : vector<2x1xf32> to vector<2x8xf32>
    %1023 = arith.divf %1019, %1022 : vector<2x8xf32>
    %1024 = tpu.concatenate %1023, %1023 in 1 : vector<2x8xf32>, vector<2x8xf32> -> vector<2x16xf32>
    %1025 = arith.mulf %1024, %754 : vector<2x16xf32>
    %cst_237 = arith.constant dense<0.000000e+00> : vector<2x64xf32>
    %1026 = tpu.matmul %1025, %730, %cst_237 {dimension_numbers = #tpu.dot_dimension_numbers<[1], [0], [0], [1], [0, 0, 1, 1], [], []>} : vector<2x16xf32>, vector<16x64xf32>, vector<2x64xf32> -> vector<2x64xf32>
    %1027 = tpu.concatenate %1000, %1026 in 1 : vector<2x32xf32>, vector<2x64xf32> -> vector<2x96xf32>
    %cst_238 = arith.constant dense<0.000000e+00> : vector<2x96xf32>
    %1028 = tpu.matmul %1027, %757, %cst_238 {dimension_numbers = #tpu.dot_dimension_numbers<[1], [0], [0], [1], [0, 0, 1, 1], [], []>} : vector<2x96xf32>, vector<96x96xf32>, vector<2x96xf32> -> vector<2x96xf32>
    %1029 = vector.broadcast %758 : vector<1x96xf32> to vector<2x96xf32>
    %1030 = arith.addf %1028, %1029 : vector<2x96xf32>
    %1031 = vector.extract_strided_slice %1030 {offsets = [0, 0], sizes = [2, 32], strides = [1, 1]} : vector<2x96xf32> to vector<2x32xf32>
    %1032 = vector.extract_strided_slice %1005 {offsets = [0, 0], sizes = [2, 32], strides = [1, 1]} : vector<2x96xf32> to vector<2x32xf32>
    %1033 = arith.addf %1031, %1032 : vector<2x32xf32>
    %1034 = arith.negf %1033 : vector<2x32xf32>
    %1035 = math.exp %1034 : vector<2x32xf32>
    %cst_239 = arith.constant 1.000000e+00 : f32
    %1036 = vector.broadcast %cst_239 : f32 to vector<2x32xf32>
    %1037 = arith.addf %1036, %1035 : vector<2x32xf32>
    %1038 = arith.divf %1036, %1037 : vector<2x32xf32>
    %1039 = vector.extract_strided_slice %1030 {offsets = [0, 32], sizes = [2, 32], strides = [1, 1]} : vector<2x96xf32> to vector<2x32xf32>
    %1040 = vector.extract_strided_slice %1005 {offsets = [0, 32], sizes = [2, 32], strides = [1, 1]} : vector<2x96xf32> to vector<2x32xf32>
    %1041 = arith.addf %1039, %1040 : vector<2x32xf32>
    %1042 = arith.negf %1041 : vector<2x32xf32>
    %1043 = math.exp %1042 : vector<2x32xf32>
    %cst_240 = arith.constant 1.000000e+00 : f32
    %1044 = vector.broadcast %cst_240 : f32 to vector<2x32xf32>
    %1045 = arith.addf %1044, %1043 : vector<2x32xf32>
    %1046 = arith.divf %1044, %1045 : vector<2x32xf32>
    %1047 = vector.extract_strided_slice %1030 {offsets = [0, 64], sizes = [2, 32], strides = [1, 1]} : vector<2x96xf32> to vector<2x32xf32>
    %1048 = vector.extract_strided_slice %1005 {offsets = [0, 64], sizes = [2, 32], strides = [1, 1]} : vector<2x96xf32> to vector<2x32xf32>
    %1049 = arith.mulf %1038, %1048 : vector<2x32xf32>
    %1050 = arith.addf %1047, %1049 : vector<2x32xf32>
    %1051 = math.tanh %1050 : vector<2x32xf32>
    %cst_241 = arith.constant 1.000000e+00 : f32
    %1052 = vector.broadcast %cst_241 : f32 to vector<2x32xf32>
    %1053 = arith.subf %1052, %1046 : vector<2x32xf32>
    %1054 = arith.mulf %1053, %1051 : vector<2x32xf32>
    %1055 = arith.mulf %1046, %977 : vector<2x32xf32>
    %1056 = arith.addf %1054, %1055 : vector<2x32xf32>
    %1057 = tpu.concatenate %1056, %1026, %1000 in 1 : vector<2x32xf32>, vector<2x64xf32>, vector<2x32xf32> -> vector<2x128xf32>
    %cst_242 = arith.constant dense<0.000000e+00> : vector<2x128xf32>
    %1058 = tpu.matmul %1057, %759, %cst_242 {dimension_numbers = #tpu.dot_dimension_numbers<[1], [0], [0], [1], [0, 0, 1, 1], [], []>} : vector<2x128xf32>, vector<128x128xf32>, vector<2x128xf32> -> vector<2x128xf32>
    %1059 = vector.broadcast %760 : vector<1x128xf32> to vector<2x128xf32>
    %1060 = arith.addf %1058, %1059 : vector<2x128xf32>
    %1061 = vector.extract_strided_slice %1060 {offsets = [0, 0], sizes = [2, 16], strides = [1, 1]} : vector<2x128xf32> to vector<2x16xf32>
    %cst_243 = arith.constant dense<0xFF800000> : vector<2xf32>
    %1062 = vector.multi_reduction <maximumf>, %1061, %cst_243 [1] : vector<2x16xf32> to vector<2xf32>
    %1063 = vector.shape_cast %1062 : vector<2xf32> to vector<2x1xf32>
    %1064 = vector.broadcast %1063 : vector<2x1xf32> to vector<2x16xf32>
    %1065 = arith.cmpf oeq, %1061, %1064 : vector<2x16xf32>
    %1066 = arith.extui %1065 : vector<2x16xi1> to vector<2x16xi32>
    %1067 = arith.sitofp %1066 : vector<2x16xi32> to vector<2x16xf32>
    %cst_244 = arith.constant dense<0.000000e+00> : vector<2x32xf32>
    %1068 = tpu.matmul %1067, %761, %cst_244 {dimension_numbers = #tpu.dot_dimension_numbers<[1], [0], [0], [1], [0, 0, 1, 1], [], []>} : vector<2x16xf32>, vector<16x32xf32>, vector<2x32xf32> -> vector<2x32xf32>
    %c4_245 = arith.constant 4 : index
    %1069 = memref.load %arg2[%c4_245] : memref<8xi32, #tpu.memory_space<smem>>
    %c0_i32_246 = arith.constant 0 : i32
    %1070 = arith.cmpi sgt, %1069, %c0_i32_246 : i32
    %1071 = arith.extui %1070 : i1 to i32
    %1072 = arith.sitofp %1071 : i32 to f32
    %1073 = vector.extract_strided_slice %167 {offsets = [8, 0], sizes = [2, 32], strides = [1, 1]} : vector<16x32xf32> to vector<2x32xf32>
    %1074 = vector.broadcast %1072 : f32 to vector<2x32xf32>
    %1075 = arith.mulf %1074, %1073 : vector<2x32xf32>
    %cst_247 = arith.constant 1.000000e+00 : f32
    %1076 = arith.subf %cst_247, %1072 : f32
    %1077 = vector.broadcast %1076 : f32 to vector<2x32xf32>
    %1078 = arith.mulf %1077, %1068 : vector<2x32xf32>
    %1079 = arith.addf %1075, %1078 : vector<2x32xf32>
    %cst_248 = arith.constant dense<0.000000e+00> : vector<2x128xf32>
    %1080 = tpu.matmul %1056, %755, %cst_248 {dimension_numbers = #tpu.dot_dimension_numbers<[1], [0], [0], [1], [0, 0, 1, 1], [], []>} : vector<2x32xf32>, vector<32x128xf32>, vector<2x128xf32> -> vector<2x128xf32>
    %1081 = vector.broadcast %756 : vector<1x128xf32> to vector<2x128xf32>
    %1082 = arith.addf %1080, %1081 : vector<2x128xf32>
    %1083 = vector.extract_strided_slice %1082 {offsets = [0, 0], sizes = [2, 32], strides = [1, 1]} : vector<2x128xf32> to vector<2x32xf32>
    %1084 = vector.extract_strided_slice %1082 {offsets = [0, 32], sizes = [2, 96], strides = [1, 1]} : vector<2x128xf32> to vector<2x96xf32>
    %1085 = vector.shape_cast %1083 : vector<2x32xf32> to vector<2x1x32xf32>
    %1086 = vector.shape_cast %1085 : vector<2x1x32xf32> to vector<2x1x32xf32>
    %1087 = vector.broadcast %1086 : vector<2x1x32xf32> to vector<2x8x32xf32>
    %1088 = vector.shape_cast %1087 : vector<2x8x32xf32> to vector<16x32xf32>
    %1089 = arith.addf %1088, %732 : vector<16x32xf32>
    %1090 = math.tanh %1089 : vector<16x32xf32>
    %cst_249 = arith.constant dense<0.000000e+00> : vector<16x8xf32>
    %1091 = tpu.matmul %1090, %735, %cst_249 {dimension_numbers = #tpu.dot_dimension_numbers<[1], [0], [0], [1], [0, 0, 1, 1], [], []>} : vector<16x32xf32>, vector<32x8xf32>, vector<16x8xf32> -> vector<16x8xf32>
    %1092 = arith.mulf %1091, %741 : vector<16x8xf32>
    %cst_250 = arith.constant dense<0.000000e+00> : vector<2x8xf32>
    %1093 = tpu.matmul %754, %1092, %cst_250 {dimension_numbers = #tpu.dot_dimension_numbers<[1], [0], [0], [1], [0, 0, 1, 1], [], []>} : vector<2x16xf32>, vector<16x8xf32>, vector<2x8xf32> -> vector<2x8xf32>
    %cst_251 = arith.constant dense<0xFF800000> : vector<2xf32>
    %1094 = vector.multi_reduction <maximumf>, %1093, %cst_251 [1] : vector<2x8xf32> to vector<2xf32>
    %1095 = vector.shape_cast %1094 : vector<2xf32> to vector<2x1xf32>
    %1096 = vector.broadcast %1095 : vector<2x1xf32> to vector<2x8xf32>
    %1097 = arith.subf %1093, %1096 : vector<2x8xf32>
    %1098 = math.exp %1097 : vector<2x8xf32>
    %cst_252 = arith.constant dense<0.000000e+00> : vector<2xf32>
    %1099 = vector.multi_reduction <add>, %1098, %cst_252 [1] : vector<2x8xf32> to vector<2xf32>
    %1100 = vector.shape_cast %1099 : vector<2xf32> to vector<2x1xf32>
    %1101 = vector.broadcast %1100 : vector<2x1xf32> to vector<2x8xf32>
    %1102 = arith.divf %1098, %1101 : vector<2x8xf32>
    %1103 = tpu.concatenate %1102, %1102 in 1 : vector<2x8xf32>, vector<2x8xf32> -> vector<2x16xf32>
    %1104 = arith.mulf %1103, %754 : vector<2x16xf32>
    %cst_253 = arith.constant dense<0.000000e+00> : vector<2x64xf32>
    %1105 = tpu.matmul %1104, %730, %cst_253 {dimension_numbers = #tpu.dot_dimension_numbers<[1], [0], [0], [1], [0, 0, 1, 1], [], []>} : vector<2x16xf32>, vector<16x64xf32>, vector<2x64xf32> -> vector<2x64xf32>
    %1106 = tpu.concatenate %1079, %1105 in 1 : vector<2x32xf32>, vector<2x64xf32> -> vector<2x96xf32>
    %cst_254 = arith.constant dense<0.000000e+00> : vector<2x96xf32>
    %1107 = tpu.matmul %1106, %757, %cst_254 {dimension_numbers = #tpu.dot_dimension_numbers<[1], [0], [0], [1], [0, 0, 1, 1], [], []>} : vector<2x96xf32>, vector<96x96xf32>, vector<2x96xf32> -> vector<2x96xf32>
    %1108 = vector.broadcast %758 : vector<1x96xf32> to vector<2x96xf32>
    %1109 = arith.addf %1107, %1108 : vector<2x96xf32>
    %1110 = vector.extract_strided_slice %1109 {offsets = [0, 0], sizes = [2, 32], strides = [1, 1]} : vector<2x96xf32> to vector<2x32xf32>
    %1111 = vector.extract_strided_slice %1084 {offsets = [0, 0], sizes = [2, 32], strides = [1, 1]} : vector<2x96xf32> to vector<2x32xf32>
    %1112 = arith.addf %1110, %1111 : vector<2x32xf32>
    %1113 = arith.negf %1112 : vector<2x32xf32>
    %1114 = math.exp %1113 : vector<2x32xf32>
    %cst_255 = arith.constant 1.000000e+00 : f32
    %1115 = vector.broadcast %cst_255 : f32 to vector<2x32xf32>
    %1116 = arith.addf %1115, %1114 : vector<2x32xf32>
    %1117 = arith.divf %1115, %1116 : vector<2x32xf32>
    %1118 = vector.extract_strided_slice %1109 {offsets = [0, 32], sizes = [2, 32], strides = [1, 1]} : vector<2x96xf32> to vector<2x32xf32>
    %1119 = vector.extract_strided_slice %1084 {offsets = [0, 32], sizes = [2, 32], strides = [1, 1]} : vector<2x96xf32> to vector<2x32xf32>
    %1120 = arith.addf %1118, %1119 : vector<2x32xf32>
    %1121 = arith.negf %1120 : vector<2x32xf32>
    %1122 = math.exp %1121 : vector<2x32xf32>
    %cst_256 = arith.constant 1.000000e+00 : f32
    %1123 = vector.broadcast %cst_256 : f32 to vector<2x32xf32>
    %1124 = arith.addf %1123, %1122 : vector<2x32xf32>
    %1125 = arith.divf %1123, %1124 : vector<2x32xf32>
    %1126 = vector.extract_strided_slice %1109 {offsets = [0, 64], sizes = [2, 32], strides = [1, 1]} : vector<2x96xf32> to vector<2x32xf32>
    %1127 = vector.extract_strided_slice %1084 {offsets = [0, 64], sizes = [2, 32], strides = [1, 1]} : vector<2x96xf32> to vector<2x32xf32>
    %1128 = arith.mulf %1117, %1127 : vector<2x32xf32>
    %1129 = arith.addf %1126, %1128 : vector<2x32xf32>
    %1130 = math.tanh %1129 : vector<2x32xf32>
    %cst_257 = arith.constant 1.000000e+00 : f32
    %1131 = vector.broadcast %cst_257 : f32 to vector<2x32xf32>
    %1132 = arith.subf %1131, %1125 : vector<2x32xf32>
    %1133 = arith.mulf %1132, %1130 : vector<2x32xf32>
    %1134 = arith.mulf %1125, %1056 : vector<2x32xf32>
    %1135 = arith.addf %1133, %1134 : vector<2x32xf32>
    %1136 = tpu.concatenate %1135, %1105, %1079 in 1 : vector<2x32xf32>, vector<2x64xf32>, vector<2x32xf32> -> vector<2x128xf32>
    %cst_258 = arith.constant dense<0.000000e+00> : vector<2x128xf32>
    %1137 = tpu.matmul %1136, %759, %cst_258 {dimension_numbers = #tpu.dot_dimension_numbers<[1], [0], [0], [1], [0, 0, 1, 1], [], []>} : vector<2x128xf32>, vector<128x128xf32>, vector<2x128xf32> -> vector<2x128xf32>
    %1138 = vector.broadcast %760 : vector<1x128xf32> to vector<2x128xf32>
    %1139 = arith.addf %1137, %1138 : vector<2x128xf32>
    %1140 = vector.extract_strided_slice %1139 {offsets = [0, 0], sizes = [2, 16], strides = [1, 1]} : vector<2x128xf32> to vector<2x16xf32>
    %cst_259 = arith.constant dense<0xFF800000> : vector<2xf32>
    %1141 = vector.multi_reduction <maximumf>, %1140, %cst_259 [1] : vector<2x16xf32> to vector<2xf32>
    %1142 = vector.shape_cast %1141 : vector<2xf32> to vector<2x1xf32>
    %1143 = vector.broadcast %1142 : vector<2x1xf32> to vector<2x16xf32>
    %1144 = arith.cmpf oeq, %1140, %1143 : vector<2x16xf32>
    %1145 = arith.extui %1144 : vector<2x16xi1> to vector<2x16xi32>
    %1146 = arith.sitofp %1145 : vector<2x16xi32> to vector<2x16xf32>
    %cst_260 = arith.constant dense<0.000000e+00> : vector<2x32xf32>
    %1147 = tpu.matmul %1146, %761, %cst_260 {dimension_numbers = #tpu.dot_dimension_numbers<[1], [0], [0], [1], [0, 0, 1, 1], [], []>} : vector<2x16xf32>, vector<16x32xf32>, vector<2x32xf32> -> vector<2x32xf32>
    %c5_261 = arith.constant 5 : index
    %1148 = memref.load %arg2[%c5_261] : memref<8xi32, #tpu.memory_space<smem>>
    %c0_i32_262 = arith.constant 0 : i32
    %1149 = arith.cmpi sgt, %1148, %c0_i32_262 : i32
    %1150 = arith.extui %1149 : i1 to i32
    %1151 = arith.sitofp %1150 : i32 to f32
    %1152 = vector.extract_strided_slice %167 {offsets = [10, 0], sizes = [2, 32], strides = [1, 1]} : vector<16x32xf32> to vector<2x32xf32>
    %1153 = vector.broadcast %1151 : f32 to vector<2x32xf32>
    %1154 = arith.mulf %1153, %1152 : vector<2x32xf32>
    %cst_263 = arith.constant 1.000000e+00 : f32
    %1155 = arith.subf %cst_263, %1151 : f32
    %1156 = vector.broadcast %1155 : f32 to vector<2x32xf32>
    %1157 = arith.mulf %1156, %1147 : vector<2x32xf32>
    %1158 = arith.addf %1154, %1157 : vector<2x32xf32>
    %cst_264 = arith.constant dense<0.000000e+00> : vector<2x128xf32>
    %1159 = tpu.matmul %1135, %755, %cst_264 {dimension_numbers = #tpu.dot_dimension_numbers<[1], [0], [0], [1], [0, 0, 1, 1], [], []>} : vector<2x32xf32>, vector<32x128xf32>, vector<2x128xf32> -> vector<2x128xf32>
    %1160 = vector.broadcast %756 : vector<1x128xf32> to vector<2x128xf32>
    %1161 = arith.addf %1159, %1160 : vector<2x128xf32>
    %1162 = vector.extract_strided_slice %1161 {offsets = [0, 0], sizes = [2, 32], strides = [1, 1]} : vector<2x128xf32> to vector<2x32xf32>
    %1163 = vector.extract_strided_slice %1161 {offsets = [0, 32], sizes = [2, 96], strides = [1, 1]} : vector<2x128xf32> to vector<2x96xf32>
    %1164 = vector.shape_cast %1162 : vector<2x32xf32> to vector<2x1x32xf32>
    %1165 = vector.shape_cast %1164 : vector<2x1x32xf32> to vector<2x1x32xf32>
    %1166 = vector.broadcast %1165 : vector<2x1x32xf32> to vector<2x8x32xf32>
    %1167 = vector.shape_cast %1166 : vector<2x8x32xf32> to vector<16x32xf32>
    %1168 = arith.addf %1167, %732 : vector<16x32xf32>
    %1169 = math.tanh %1168 : vector<16x32xf32>
    %cst_265 = arith.constant dense<0.000000e+00> : vector<16x8xf32>
    %1170 = tpu.matmul %1169, %735, %cst_265 {dimension_numbers = #tpu.dot_dimension_numbers<[1], [0], [0], [1], [0, 0, 1, 1], [], []>} : vector<16x32xf32>, vector<32x8xf32>, vector<16x8xf32> -> vector<16x8xf32>
    %1171 = arith.mulf %1170, %741 : vector<16x8xf32>
    %cst_266 = arith.constant dense<0.000000e+00> : vector<2x8xf32>
    %1172 = tpu.matmul %754, %1171, %cst_266 {dimension_numbers = #tpu.dot_dimension_numbers<[1], [0], [0], [1], [0, 0, 1, 1], [], []>} : vector<2x16xf32>, vector<16x8xf32>, vector<2x8xf32> -> vector<2x8xf32>
    %cst_267 = arith.constant dense<0xFF800000> : vector<2xf32>
    %1173 = vector.multi_reduction <maximumf>, %1172, %cst_267 [1] : vector<2x8xf32> to vector<2xf32>
    %1174 = vector.shape_cast %1173 : vector<2xf32> to vector<2x1xf32>
    %1175 = vector.broadcast %1174 : vector<2x1xf32> to vector<2x8xf32>
    %1176 = arith.subf %1172, %1175 : vector<2x8xf32>
    %1177 = math.exp %1176 : vector<2x8xf32>
    %cst_268 = arith.constant dense<0.000000e+00> : vector<2xf32>
    %1178 = vector.multi_reduction <add>, %1177, %cst_268 [1] : vector<2x8xf32> to vector<2xf32>
    %1179 = vector.shape_cast %1178 : vector<2xf32> to vector<2x1xf32>
    %1180 = vector.broadcast %1179 : vector<2x1xf32> to vector<2x8xf32>
    %1181 = arith.divf %1177, %1180 : vector<2x8xf32>
    %1182 = tpu.concatenate %1181, %1181 in 1 : vector<2x8xf32>, vector<2x8xf32> -> vector<2x16xf32>
    %1183 = arith.mulf %1182, %754 : vector<2x16xf32>
    %cst_269 = arith.constant dense<0.000000e+00> : vector<2x64xf32>
    %1184 = tpu.matmul %1183, %730, %cst_269 {dimension_numbers = #tpu.dot_dimension_numbers<[1], [0], [0], [1], [0, 0, 1, 1], [], []>} : vector<2x16xf32>, vector<16x64xf32>, vector<2x64xf32> -> vector<2x64xf32>
    %1185 = tpu.concatenate %1158, %1184 in 1 : vector<2x32xf32>, vector<2x64xf32> -> vector<2x96xf32>
    %cst_270 = arith.constant dense<0.000000e+00> : vector<2x96xf32>
    %1186 = tpu.matmul %1185, %757, %cst_270 {dimension_numbers = #tpu.dot_dimension_numbers<[1], [0], [0], [1], [0, 0, 1, 1], [], []>} : vector<2x96xf32>, vector<96x96xf32>, vector<2x96xf32> -> vector<2x96xf32>
    %1187 = vector.broadcast %758 : vector<1x96xf32> to vector<2x96xf32>
    %1188 = arith.addf %1186, %1187 : vector<2x96xf32>
    %1189 = vector.extract_strided_slice %1188 {offsets = [0, 0], sizes = [2, 32], strides = [1, 1]} : vector<2x96xf32> to vector<2x32xf32>
    %1190 = vector.extract_strided_slice %1163 {offsets = [0, 0], sizes = [2, 32], strides = [1, 1]} : vector<2x96xf32> to vector<2x32xf32>
    %1191 = arith.addf %1189, %1190 : vector<2x32xf32>
    %1192 = arith.negf %1191 : vector<2x32xf32>
    %1193 = math.exp %1192 : vector<2x32xf32>
    %cst_271 = arith.constant 1.000000e+00 : f32
    %1194 = vector.broadcast %cst_271 : f32 to vector<2x32xf32>
    %1195 = arith.addf %1194, %1193 : vector<2x32xf32>
    %1196 = arith.divf %1194, %1195 : vector<2x32xf32>
    %1197 = vector.extract_strided_slice %1188 {offsets = [0, 32], sizes = [2, 32], strides = [1, 1]} : vector<2x96xf32> to vector<2x32xf32>
    %1198 = vector.extract_strided_slice %1163 {offsets = [0, 32], sizes = [2, 32], strides = [1, 1]} : vector<2x96xf32> to vector<2x32xf32>
    %1199 = arith.addf %1197, %1198 : vector<2x32xf32>
    %1200 = arith.negf %1199 : vector<2x32xf32>
    %1201 = math.exp %1200 : vector<2x32xf32>
    %cst_272 = arith.constant 1.000000e+00 : f32
    %1202 = vector.broadcast %cst_272 : f32 to vector<2x32xf32>
    %1203 = arith.addf %1202, %1201 : vector<2x32xf32>
    %1204 = arith.divf %1202, %1203 : vector<2x32xf32>
    %1205 = vector.extract_strided_slice %1188 {offsets = [0, 64], sizes = [2, 32], strides = [1, 1]} : vector<2x96xf32> to vector<2x32xf32>
    %1206 = vector.extract_strided_slice %1163 {offsets = [0, 64], sizes = [2, 32], strides = [1, 1]} : vector<2x96xf32> to vector<2x32xf32>
    %1207 = arith.mulf %1196, %1206 : vector<2x32xf32>
    %1208 = arith.addf %1205, %1207 : vector<2x32xf32>
    %1209 = math.tanh %1208 : vector<2x32xf32>
    %cst_273 = arith.constant 1.000000e+00 : f32
    %1210 = vector.broadcast %cst_273 : f32 to vector<2x32xf32>
    %1211 = arith.subf %1210, %1204 : vector<2x32xf32>
    %1212 = arith.mulf %1211, %1209 : vector<2x32xf32>
    %1213 = arith.mulf %1204, %1135 : vector<2x32xf32>
    %1214 = arith.addf %1212, %1213 : vector<2x32xf32>
    %1215 = tpu.concatenate %1214, %1184, %1158 in 1 : vector<2x32xf32>, vector<2x64xf32>, vector<2x32xf32> -> vector<2x128xf32>
    %cst_274 = arith.constant dense<0.000000e+00> : vector<2x128xf32>
    %1216 = tpu.matmul %1215, %759, %cst_274 {dimension_numbers = #tpu.dot_dimension_numbers<[1], [0], [0], [1], [0, 0, 1, 1], [], []>} : vector<2x128xf32>, vector<128x128xf32>, vector<2x128xf32> -> vector<2x128xf32>
    %1217 = vector.broadcast %760 : vector<1x128xf32> to vector<2x128xf32>
    %1218 = arith.addf %1216, %1217 : vector<2x128xf32>
    %1219 = vector.extract_strided_slice %1218 {offsets = [0, 0], sizes = [2, 16], strides = [1, 1]} : vector<2x128xf32> to vector<2x16xf32>
    %cst_275 = arith.constant dense<0xFF800000> : vector<2xf32>
    %1220 = vector.multi_reduction <maximumf>, %1219, %cst_275 [1] : vector<2x16xf32> to vector<2xf32>
    %1221 = vector.shape_cast %1220 : vector<2xf32> to vector<2x1xf32>
    %1222 = vector.broadcast %1221 : vector<2x1xf32> to vector<2x16xf32>
    %1223 = arith.cmpf oeq, %1219, %1222 : vector<2x16xf32>
    %1224 = arith.extui %1223 : vector<2x16xi1> to vector<2x16xi32>
    %1225 = arith.sitofp %1224 : vector<2x16xi32> to vector<2x16xf32>
    %cst_276 = arith.constant dense<0.000000e+00> : vector<2x32xf32>
    %1226 = tpu.matmul %1225, %761, %cst_276 {dimension_numbers = #tpu.dot_dimension_numbers<[1], [0], [0], [1], [0, 0, 1, 1], [], []>} : vector<2x16xf32>, vector<16x32xf32>, vector<2x32xf32> -> vector<2x32xf32>
    %c6_277 = arith.constant 6 : index
    %1227 = memref.load %arg2[%c6_277] : memref<8xi32, #tpu.memory_space<smem>>
    %c0_i32_278 = arith.constant 0 : i32
    %1228 = arith.cmpi sgt, %1227, %c0_i32_278 : i32
    %1229 = arith.extui %1228 : i1 to i32
    %1230 = arith.sitofp %1229 : i32 to f32
    %1231 = vector.extract_strided_slice %167 {offsets = [12, 0], sizes = [2, 32], strides = [1, 1]} : vector<16x32xf32> to vector<2x32xf32>
    %1232 = vector.broadcast %1230 : f32 to vector<2x32xf32>
    %1233 = arith.mulf %1232, %1231 : vector<2x32xf32>
    %cst_279 = arith.constant 1.000000e+00 : f32
    %1234 = arith.subf %cst_279, %1230 : f32
    %1235 = vector.broadcast %1234 : f32 to vector<2x32xf32>
    %1236 = arith.mulf %1235, %1226 : vector<2x32xf32>
    %1237 = arith.addf %1233, %1236 : vector<2x32xf32>
    %cst_280 = arith.constant dense<0.000000e+00> : vector<2x128xf32>
    %1238 = tpu.matmul %1214, %755, %cst_280 {dimension_numbers = #tpu.dot_dimension_numbers<[1], [0], [0], [1], [0, 0, 1, 1], [], []>} : vector<2x32xf32>, vector<32x128xf32>, vector<2x128xf32> -> vector<2x128xf32>
    %1239 = vector.broadcast %756 : vector<1x128xf32> to vector<2x128xf32>
    %1240 = arith.addf %1238, %1239 : vector<2x128xf32>
    %1241 = vector.extract_strided_slice %1240 {offsets = [0, 0], sizes = [2, 32], strides = [1, 1]} : vector<2x128xf32> to vector<2x32xf32>
    %1242 = vector.extract_strided_slice %1240 {offsets = [0, 32], sizes = [2, 96], strides = [1, 1]} : vector<2x128xf32> to vector<2x96xf32>
    %1243 = vector.shape_cast %1241 : vector<2x32xf32> to vector<2x1x32xf32>
    %1244 = vector.shape_cast %1243 : vector<2x1x32xf32> to vector<2x1x32xf32>
    %1245 = vector.broadcast %1244 : vector<2x1x32xf32> to vector<2x8x32xf32>
    %1246 = vector.shape_cast %1245 : vector<2x8x32xf32> to vector<16x32xf32>
    %1247 = arith.addf %1246, %732 : vector<16x32xf32>
    %1248 = math.tanh %1247 : vector<16x32xf32>
    %cst_281 = arith.constant dense<0.000000e+00> : vector<16x8xf32>
    %1249 = tpu.matmul %1248, %735, %cst_281 {dimension_numbers = #tpu.dot_dimension_numbers<[1], [0], [0], [1], [0, 0, 1, 1], [], []>} : vector<16x32xf32>, vector<32x8xf32>, vector<16x8xf32> -> vector<16x8xf32>
    %1250 = arith.mulf %1249, %741 : vector<16x8xf32>
    %cst_282 = arith.constant dense<0.000000e+00> : vector<2x8xf32>
    %1251 = tpu.matmul %754, %1250, %cst_282 {dimension_numbers = #tpu.dot_dimension_numbers<[1], [0], [0], [1], [0, 0, 1, 1], [], []>} : vector<2x16xf32>, vector<16x8xf32>, vector<2x8xf32> -> vector<2x8xf32>
    %cst_283 = arith.constant dense<0xFF800000> : vector<2xf32>
    %1252 = vector.multi_reduction <maximumf>, %1251, %cst_283 [1] : vector<2x8xf32> to vector<2xf32>
    %1253 = vector.shape_cast %1252 : vector<2xf32> to vector<2x1xf32>
    %1254 = vector.broadcast %1253 : vector<2x1xf32> to vector<2x8xf32>
    %1255 = arith.subf %1251, %1254 : vector<2x8xf32>
    %1256 = math.exp %1255 : vector<2x8xf32>
    %cst_284 = arith.constant dense<0.000000e+00> : vector<2xf32>
    %1257 = vector.multi_reduction <add>, %1256, %cst_284 [1] : vector<2x8xf32> to vector<2xf32>
    %1258 = vector.shape_cast %1257 : vector<2xf32> to vector<2x1xf32>
    %1259 = vector.broadcast %1258 : vector<2x1xf32> to vector<2x8xf32>
    %1260 = arith.divf %1256, %1259 : vector<2x8xf32>
    %1261 = tpu.concatenate %1260, %1260 in 1 : vector<2x8xf32>, vector<2x8xf32> -> vector<2x16xf32>
    %1262 = arith.mulf %1261, %754 : vector<2x16xf32>
    %cst_285 = arith.constant dense<0.000000e+00> : vector<2x64xf32>
    %1263 = tpu.matmul %1262, %730, %cst_285 {dimension_numbers = #tpu.dot_dimension_numbers<[1], [0], [0], [1], [0, 0, 1, 1], [], []>} : vector<2x16xf32>, vector<16x64xf32>, vector<2x64xf32> -> vector<2x64xf32>
    %1264 = tpu.concatenate %1237, %1263 in 1 : vector<2x32xf32>, vector<2x64xf32> -> vector<2x96xf32>
    %cst_286 = arith.constant dense<0.000000e+00> : vector<2x96xf32>
    %1265 = tpu.matmul %1264, %757, %cst_286 {dimension_numbers = #tpu.dot_dimension_numbers<[1], [0], [0], [1], [0, 0, 1, 1], [], []>} : vector<2x96xf32>, vector<96x96xf32>, vector<2x96xf32> -> vector<2x96xf32>
    %1266 = vector.broadcast %758 : vector<1x96xf32> to vector<2x96xf32>
    %1267 = arith.addf %1265, %1266 : vector<2x96xf32>
    %1268 = vector.extract_strided_slice %1267 {offsets = [0, 0], sizes = [2, 32], strides = [1, 1]} : vector<2x96xf32> to vector<2x32xf32>
    %1269 = vector.extract_strided_slice %1242 {offsets = [0, 0], sizes = [2, 32], strides = [1, 1]} : vector<2x96xf32> to vector<2x32xf32>
    %1270 = arith.addf %1268, %1269 : vector<2x32xf32>
    %1271 = arith.negf %1270 : vector<2x32xf32>
    %1272 = math.exp %1271 : vector<2x32xf32>
    %cst_287 = arith.constant 1.000000e+00 : f32
    %1273 = vector.broadcast %cst_287 : f32 to vector<2x32xf32>
    %1274 = arith.addf %1273, %1272 : vector<2x32xf32>
    %1275 = arith.divf %1273, %1274 : vector<2x32xf32>
    %1276 = vector.extract_strided_slice %1267 {offsets = [0, 32], sizes = [2, 32], strides = [1, 1]} : vector<2x96xf32> to vector<2x32xf32>
    %1277 = vector.extract_strided_slice %1242 {offsets = [0, 32], sizes = [2, 32], strides = [1, 1]} : vector<2x96xf32> to vector<2x32xf32>
    %1278 = arith.addf %1276, %1277 : vector<2x32xf32>
    %1279 = arith.negf %1278 : vector<2x32xf32>
    %1280 = math.exp %1279 : vector<2x32xf32>
    %cst_288 = arith.constant 1.000000e+00 : f32
    %1281 = vector.broadcast %cst_288 : f32 to vector<2x32xf32>
    %1282 = arith.addf %1281, %1280 : vector<2x32xf32>
    %1283 = arith.divf %1281, %1282 : vector<2x32xf32>
    %1284 = vector.extract_strided_slice %1267 {offsets = [0, 64], sizes = [2, 32], strides = [1, 1]} : vector<2x96xf32> to vector<2x32xf32>
    %1285 = vector.extract_strided_slice %1242 {offsets = [0, 64], sizes = [2, 32], strides = [1, 1]} : vector<2x96xf32> to vector<2x32xf32>
    %1286 = arith.mulf %1275, %1285 : vector<2x32xf32>
    %1287 = arith.addf %1284, %1286 : vector<2x32xf32>
    %1288 = math.tanh %1287 : vector<2x32xf32>
    %cst_289 = arith.constant 1.000000e+00 : f32
    %1289 = vector.broadcast %cst_289 : f32 to vector<2x32xf32>
    %1290 = arith.subf %1289, %1283 : vector<2x32xf32>
    %1291 = arith.mulf %1290, %1288 : vector<2x32xf32>
    %1292 = arith.mulf %1283, %1214 : vector<2x32xf32>
    %1293 = arith.addf %1291, %1292 : vector<2x32xf32>
    %1294 = tpu.concatenate %1293, %1263, %1237 in 1 : vector<2x32xf32>, vector<2x64xf32>, vector<2x32xf32> -> vector<2x128xf32>
    %cst_290 = arith.constant dense<0.000000e+00> : vector<2x128xf32>
    %1295 = tpu.matmul %1294, %759, %cst_290 {dimension_numbers = #tpu.dot_dimension_numbers<[1], [0], [0], [1], [0, 0, 1, 1], [], []>} : vector<2x128xf32>, vector<128x128xf32>, vector<2x128xf32> -> vector<2x128xf32>
    %1296 = vector.broadcast %760 : vector<1x128xf32> to vector<2x128xf32>
    %1297 = arith.addf %1295, %1296 : vector<2x128xf32>
    %1298 = tpu.concatenate %763, %823, %902, %981, %1060, %1139, %1218, %1297 in 0 : vector<2x128xf32>, vector<2x128xf32>, vector<2x128xf32>, vector<2x128xf32>, vector<2x128xf32>, vector<2x128xf32>, vector<2x128xf32>, vector<2x128xf32> -> vector<16x128xf32>
    %c0_291 = arith.constant 0 : index
    %c0_292 = arith.constant 0 : index
    %1299 = vector.load %arg23[%c0_291, %c0_292] : memref<16x128xf32, #tpu.memory_space<vmem>>, vector<16x128xf32>
    tpu.vector_store %arg23[%c0_291, %c0_292], %1298 {strides = array<i32>} : memref<16x128xf32, #tpu.memory_space<vmem>>, vector<16x128xf32>,
    return
  }
}

</mosaic_0001>

<llo_original>
// kernel: seq2seq_forward.1
$region0: #{seq2seq_forward.1}
  #allocation0 [shape = 'u32[]', space=smem, size = 0x4, offset = 0x4, fixed_abs, tag = 'smem constant byte address 0x4 - core index']
  #allocation1 [shape = 'u32[144,128]{1,0:T(1,128)}', space=vmem, size = 0x12000, scoped, tag = 'internal scratch']
  %s0 = inlined_call_operand.vmem [shape: s32[8,2], index: 0, kind: input, shape index: {}]
  %s1 = inlined_call_operand.vmem [shape: s32[8,2], index: 1, kind: input, shape index: {}]
  %s2 = inlined_call_operand.vmem [shape: s32[8], index: 2, kind: input, shape index: {}]
  %s3 = inlined_call_operand.hbm [shape: f32[16,32], index: 3, kind: input, shape index: {}]
  %s4 = inlined_call_operand.hbm [shape: f32[16,32], index: 4, kind: input, shape index: {}]
  %s5 = inlined_call_operand.hbm [shape: f32[32,96], index: 5, kind: input, shape index: {}]
  %s6 = inlined_call_operand.hbm [shape: f32[32,96], index: 6, kind: input, shape index: {}]
  %s7 = inlined_call_operand.vmem [shape: f32[1,96], index: 7, kind: input, shape index: {}]
  %s8 = inlined_call_operand.hbm [shape: f32[1,96], index: 8, kind: input, shape index: {}]
  %s9 = inlined_call_operand.hbm [shape: f32[32,96], index: 9, kind: input, shape index: {}]
  %s10 = inlined_call_operand.hbm [shape: f32[32,96], index: 10, kind: input, shape index: {}]
  %s11 = inlined_call_operand.hbm [shape: f32[1,96], index: 11, kind: input, shape index: {}]
  %s12 = inlined_call_operand.hbm [shape: f32[1,96], index: 12, kind: input, shape index: {}]
  %s13 = inlined_call_operand.vmem [shape: f32[64,32], index: 13, kind: input, shape index: {}]
  %s14 = inlined_call_operand.vmem [shape: f32[1,32], index: 14, kind: input, shape index: {}]
  %s15 = inlined_call_operand.vmem [shape: f32[64,32], index: 15, kind: input, shape index: {}]
  %s16 = inlined_call_operand.vmem [shape: f32[32,1], index: 16, kind: input, shape index: {}]
  %s17 = inlined_call_operand.vmem [shape: f32[32,128], index: 17, kind: input, shape index: {}]
  %s18 = inlined_call_operand.vmem [shape: f32[1,128], index: 18, kind: input, shape index: {}]
  %s19 = inlined_call_operand.vmem [shape: f32[96,96], index: 19, kind: input, shape index: {}]
  %s20 = inlined_call_operand.vmem [shape: f32[1,96], index: 20, kind: input, shape index: {}]
  %s21 = inlined_call_operand.vmem [shape: f32[128,128], index: 21, kind: input, shape index: {}]
  %s22 = inlined_call_operand.vmem [shape: f32[1,128], index: 22, kind: input, shape index: {}]
  %s23 = inlined_call_operand.hbm [shape: f32[16,128], index: 23, kind: output, shape index: {}]
  %s24 = sld [smem:[#allocation0]]
  $region150: #{seq2seq_forward.1} parent=0
    _
  %s26 = ssub.s32 1, %s24
  %s27 = scalar_select 0, %s26, %s24
  $region1: #{seq2seq_forward.1} parent=0
    #allocation2 [shape = 'u8[4096]{0}', space=smem, size = 0x1000, scoped, tag = 'input window, operand 0, single buffered']
    #allocation3 [shape = 's32[1]{0}', space=sflag, size = 0x4, scoped, tag = 'scoped memory for seq2seq_forward.1']
    #allocation4 [shape = 's32[1]{0}', space=sflag, size = 0x4, scoped, tag = 'scoped memory for seq2seq_forward.1']
    #allocation5 [shape = 's32[1]{0}', space=sflag, size = 0x4, scoped, tag = 'scoped memory for seq2seq_forward.1']
    #allocation6 [shape = 'u8[4096]{0}', space=smem, size = 0x1000, scoped, tag = 'input window, operand 1, single buffered']
    #allocation7 [shape = 's32[1]{0}', space=sflag, size = 0x4, scoped, tag = 'scoped memory for seq2seq_forward.1']
    #allocation8 [shape = 'u8[512]{0}', space=smem, size = 0x200, scoped, tag = 'input window, operand 2, single buffered']
    #allocation9 [shape = 'u8[8192]{0}', space=vmem, size = 0x2000, scoped, tag = 'input window, operand 3, single buffered']
    #allocation10 [shape = 'u8[8192]{0}', space=vmem, size = 0x2000, scoped, tag = 'input window, operand 4, single buffered']
    #allocation11 [shape = 's32[1]{0}', space=sflag, size = 0x4, scoped, tag = 'scoped memory for seq2seq_forward.1']
    #allocation12 [shape = 'u8[16384]{0}', space=vmem, size = 0x4000, scoped, tag = 'input window, operand 5, single buffered']
    #allocation13 [shape = 'u8[16384]{0}', space=vmem, size = 0x4000, scoped, tag = 'input window, operand 6, single buffered']
    #allocation14 [shape = 's32[1]{0}', space=sflag, size = 0x4, scoped, tag = 'scoped memory for seq2seq_forward.1']
    #allocation15 [shape = 'u8[512]{0}', space=vmem, size = 0x400, scoped, tag = 'input window, operand 8, single buffered']
    #allocation16 [shape = 'u8[16384]{0}', space=vmem, size = 0x4000, scoped, tag = 'input window, operand 9, single buffered']
    #allocation17 [shape = 's32[1]{0}', space=sflag, size = 0x4, scoped, tag = 'scoped memory for seq2seq_forward.1']
    #allocation18 [shape = 'u8[16384]{0}', space=vmem, size = 0x4000, scoped, tag = 'input window, operand 10, single buffered']
    #allocation19 [shape = 'u8[512]{0}', space=vmem, size = 0x400, scoped, tag = 'input window, operand 11, single buffered']
    #allocation20 [shape = 's32[1]{0}', space=sflag, size = 0x4, scoped, tag = 'scoped memory for seq2seq_forward.1']
    #allocation21 [shape = 'u8[512]{0}', space=vmem, size = 0x400, scoped, tag = 'input window, operand 12, single buffered']
    #allocation22 [shape = 'u8[8192]{0}', space=vmem, size = 0x2000, scoped, tag = 'output window, operand 0, single buffered']
    %28 = vsyncpa [#allocation5], 0
    %29 = vsyncpa [#allocation7], 0
    %30 = vsyncpa [#allocation3], 0
    %31 = vsyncpa [#allocation11], 0
    %32 = vsyncpa [#allocation14], 0
    %33 = vsyncpa [#allocation17], 0
    %34 = vsyncpa [#allocation20], 0
    %35 = vsyncpa [#allocation4], 0
    // Predicated region
    $region2: #{seq2seq_forward.1} parent=1 // pred_check
      _
    $region3: #{seq2seq_forward.1} parent=1 // pred_check_branch
      %37 = sbr.rel (0) target = $region5
    $region4: #{seq2seq_forward.1} parent=1 // pred_region
      %s39 = ssub.s32 128, 128
      %40 = vsyncadd [#allocation5], %s39
      %s42 = sshll.u32 %s0, 4
      %s43 = int_to_ptr.vmem [resolvable:$true] %s42
      %45 = dma.vmem_to_smem %s43, 128, [#allocation2], [#allocation5]
    $region5: #{seq2seq_forward.1} parent=1 // pred_fallthru
      _
    // Predicated region
    $region6: #{seq2seq_forward.1} parent=1 // pred_check
      _
    $region7: #{seq2seq_forward.1} parent=1 // pred_check_branch
      %47 = sbr.rel (0) target = $region9
    $region8: #{seq2seq_forward.1} parent=1 // pred_region
      %s49 = ssub.s32 128, 128
      %50 = vsyncadd [#allocation7], %s49
      %s52 = sshll.u32 %s1, 4
      %s53 = int_to_ptr.vmem [resolvable:$true] %s52
      %55 = dma.vmem_to_smem %s53, 128, [#allocation6], [#allocation7]
    $region9: #{seq2seq_forward.1} parent=1 // pred_fallthru
      _
    // Predicated region
    $region10: #{seq2seq_forward.1} parent=1 // pred_check
      _
    $region11: #{seq2seq_forward.1} parent=1 // pred_check_branch
      %57 = sbr.rel (0) target = $region13
    $region12: #{seq2seq_forward.1} parent=1 // pred_region
      %s59 = ssub.s32 16, 16
      %60 = vsyncadd [#allocation7], %s59
      %s62 = sshll.u32 %s2, 4
      %s63 = int_to_ptr.vmem [resolvable:$true] %s62
      %65 = dma.vmem_to_smem %s63, 16, [#allocation8], [#allocation7]
    $region13: #{seq2seq_forward.1} parent=1 // pred_fallthru
      _
    // Predicated region
    $region14: #{seq2seq_forward.1} parent=1 // pred_check
      _
    $region15: #{seq2seq_forward.1} parent=1 // pred_check_branch
      %67 = sbr.rel (0) target = $region17
    $region16: #{seq2seq_forward.1} parent=1 // pred_region
      %s69 = ssub.s32 256, 256
      %70 = vsyncadd [#allocation3], %s69
      %s71 = sshll.u32 [#allocation9], 4
      %s72 = int_to_ptr.vmem [resolvable:$true] %s71
      %77 = dma.hbm_to_vmem [thread:$0]  %s3, 256, %s72, [#allocation3], 128, 128, 8
    $region17: #{seq2seq_forward.1} parent=1 // pred_fallthru
      _
    // Predicated region
    $region18: #{seq2seq_forward.1} parent=1 // pred_check
      _
    $region19: #{seq2seq_forward.1} parent=1 // pred_check_branch
      %79 = sbr.rel (0) target = $region21
    $region20: #{seq2seq_forward.1} parent=1 // pred_region
      %s81 = ssub.s32 256, 256
      %82 = vsyncadd [#allocation11], %s81
      %s83 = sshll.u32 [#allocation10], 4
      %s84 = int_to_ptr.vmem [resolvable:$true] %s83
      %89 = dma.hbm_to_vmem [thread:$0]  %s4, 256, %s84, [#allocation11], 128, 128, 8
    $region21: #{seq2seq_forward.1} parent=1 // pred_fallthru
      _
    // Predicated region
    $region22: #{seq2seq_forward.1} parent=1 // pred_check
      _
    $region23: #{seq2seq_forward.1} parent=1 // pred_check_branch
      %91 = sbr.rel (0) target = $region25
    $region24: #{seq2seq_forward.1} parent=1 // pred_region
      %s93 = ssub.s32 512, 512
      %94 = vsyncadd [#allocation11], %s93
      %s95 = sshll.u32 [#allocation12], 4
      %s96 = int_to_ptr.vmem [resolvable:$true] %s95
      %101 = dma.hbm_to_vmem [thread:$0]  %s5, 512, %s96, [#allocation11], 128, 128, 8
    $region25: #{seq2seq_forward.1} parent=1 // pred_fallthru
      _
    // Predicated region
    $region26: #{seq2seq_forward.1} parent=1 // pred_check
      _
    $region27: #{seq2seq_forward.1} parent=1 // pred_check_branch
      %103 = sbr.rel (0) target = $region29
    $region28: #{seq2seq_forward.1} parent=1 // pred_region
      %s105 = ssub.s32 512, 512
      %106 = vsyncadd [#allocation14], %s105
      %s107 = sshll.u32 [#allocation13], 4
      %s108 = int_to_ptr.vmem [resolvable:$true] %s107
      %113 = dma.hbm_to_vmem [thread:$0]  %s6, 512, %s108, [#allocation14], 128, 128, 8
    $region29: #{seq2seq_forward.1} parent=1 // pred_fallthru
      _
    // Predicated region
    $region30: #{seq2seq_forward.1} parent=1 // pred_check
      _
    $region31: #{seq2seq_forward.1} parent=1 // pred_check_branch
      %115 = sbr.rel (0) target = $region33
    $region32: #{seq2seq_forward.1} parent=1 // pred_region
      _
    $region33: #{seq2seq_forward.1} parent=1 // pred_fallthru
      _
    // Predicated region
    $region34: #{seq2seq_forward.1} parent=1 // pred_check
      _
    $region35: #{seq2seq_forward.1} parent=1 // pred_check_branch
      %117 = sbr.rel (0) target = $region37
    $region36: #{seq2seq_forward.1} parent=1 // pred_region
      %s119 = ssub.s32 16, 16
      %120 = vsyncadd [#allocation14], %s119
      %s122 = sshll.u32 [#allocation15], 4
      %s123 = int_to_ptr.vmem [resolvable:$true] %s122
      %125 = dma.hbm_to_vmem [thread:$0]  %s8, 16, %s123, [#allocation14]
    $region37: #{seq2seq_forward.1} parent=1 // pred_fallthru
      _
    // Predicated region
    $region38: #{seq2seq_forward.1} parent=1 // pred_check
      _
    $region39: #{seq2seq_forward.1} parent=1 // pred_check_branch
      %127 = sbr.rel (0) target = $region41
    $region40: #{seq2seq_forward.1} parent=1 // pred_region
      %s129 = ssub.s32 512, 512
      %130 = vsyncadd [#allocation17], %s129
      %s131 = sshll.u32 [#allocation16], 4
      %s132 = int_to_ptr.vmem [resolvable:$true] %s131
      %137 = dma.hbm_to_vmem [thread:$0]  %s9, 512, %s132, [#allocation17], 128, 128, 8
    $region41: #{seq2seq_forward.1} parent=1 // pred_fallthru
      _
    // Predicated region
    $region42: #{seq2seq_forward.1} parent=1 // pred_check
      _
    $region43: #{seq2seq_forward.1} parent=1 // pred_check_branch
      %139 = sbr.rel (0) target = $region45
    $region44: #{seq2seq_forward.1} parent=1 // pred_region
      %s141 = ssub.s32 512, 512
      %142 = vsyncadd [#allocation17], %s141
      %s143 = sshll.u32 [#allocation18], 4
      %s144 = int_to_ptr.vmem [resolvable:$true] %s143
      %149 = dma.hbm_to_vmem [thread:$0]  %s10, 512, %s144, [#allocation17], 128, 128, 8
    $region45: #{seq2seq_forward.1} parent=1 // pred_fallthru
      _
    // Predicated region
    $region46: #{seq2seq_forward.1} parent=1 // pred_check
      _
    $region47: #{seq2seq_forward.1} parent=1 // pred_check_branch
      %151 = sbr.rel (0) target = $region49
    $region48: #{seq2seq_forward.1} parent=1 // pred_region
      %s153 = ssub.s32 16, 16
      %154 = vsyncadd [#allocation20], %s153
      %s156 = sshll.u32 [#allocation19], 4
      %s157 = int_to_ptr.vmem [resolvable:$true] %s156
      %159 = dma.hbm_to_vmem [thread:$0]  %s11, 16, %s157, [#allocation20]
    $region49: #{seq2seq_forward.1} parent=1 // pred_fallthru
      _
    // Predicated region
    $region50: #{seq2seq_forward.1} parent=1 // pred_check
      _
    $region51: #{seq2seq_forward.1} parent=1 // pred_check_branch
      %161 = sbr.rel (0) target = $region53
    $region52: #{seq2seq_forward.1} parent=1 // pred_region
      %s163 = ssub.s32 16, 16
      %164 = vsyncadd [#allocation20], %s163
      %s166 = sshll.u32 [#allocation21], 4
      %s167 = int_to_ptr.vmem [resolvable:$true] %s166
      %169 = dma.hbm_to_vmem [thread:$0]  %s12, 16, %s167, [#allocation20]
    $region53: #{seq2seq_forward.1} parent=1 // pred_fallthru
      _
    // Predicated region
    $region54: #{seq2seq_forward.1} parent=1 // pred_check
      _
    $region55: #{seq2seq_forward.1} parent=1 // pred_check_branch
      %171 = sbr.rel (0) target = $region57
    $region56: #{seq2seq_forward.1} parent=1 // pred_region
      _
    $region57: #{seq2seq_forward.1} parent=1 // pred_fallthru
      _
    // Predicated region
    $region58: #{seq2seq_forward.1} parent=1 // pred_check
      _
    $region59: #{seq2seq_forward.1} parent=1 // pred_check_branch
      %173 = sbr.rel (0) target = $region61
    $region60: #{seq2seq_forward.1} parent=1 // pred_region
      _
    $region61: #{seq2seq_forward.1} parent=1 // pred_fallthru
      _
    // Predicated region
    $region62: #{seq2seq_forward.1} parent=1 // pred_check
      _
    $region63: #{seq2seq_forward.1} parent=1 // pred_check_branch
      %175 = sbr.rel (0) target = $region65
    $region64: #{seq2seq_forward.1} parent=1 // pred_region
      _
    $region65: #{seq2seq_forward.1} parent=1 // pred_fallthru
      _
    // Predicated region
    $region66: #{seq2seq_forward.1} parent=1 // pred_check
      _
    $region67: #{seq2seq_forward.1} parent=1 // pred_check_branch
      %177 = sbr.rel (0) target = $region69
    $region68: #{seq2seq_forward.1} parent=1 // pred_region
      _
    $region69: #{seq2seq_forward.1} parent=1 // pred_fallthru
      _
    // Predicated region
    $region70: #{seq2seq_forward.1} parent=1 // pred_check
      _
    $region71: #{seq2seq_forward.1} parent=1 // pred_check_branch
      %179 = sbr.rel (0) target = $region73
    $region72: #{seq2seq_forward.1} parent=1 // pred_region
      _
    $region73: #{seq2seq_forward.1} parent=1 // pred_fallthru
      _
    // Predicated region
    $region74: #{seq2seq_forward.1} parent=1 // pred_check
      _
    $region75: #{seq2seq_forward.1} parent=1 // pred_check_branch
      %181 = sbr.rel (0) target = $region77
    $region76: #{seq2seq_forward.1} parent=1 // pred_region
      _
    $region77: #{seq2seq_forward.1} parent=1 // pred_fallthru
      _
    // Predicated region
    $region78: #{seq2seq_forward.1} parent=1 // pred_check
      _
    $region79: #{seq2seq_forward.1} parent=1 // pred_check_branch
      %183 = sbr.rel (0) target = $region81
    $region80: #{seq2seq_forward.1} parent=1 // pred_region
      _
    $region81: #{seq2seq_forward.1} parent=1 // pred_fallthru
      _
    // Predicated region
    $region82: #{seq2seq_forward.1} parent=1 // pred_check
      _
    $region83: #{seq2seq_forward.1} parent=1 // pred_check_branch
      %185 = sbr.rel (0) target = $region85
    $region84: #{seq2seq_forward.1} parent=1 // pred_region
      _
    $region85: #{seq2seq_forward.1} parent=1 // pred_fallthru
      _
    // Predicated region
    $region86: #{seq2seq_forward.1} parent=1 // pred_check
      _
    $region87: #{seq2seq_forward.1} parent=1 // pred_check_branch
      %187 = sbr.rel (0) target = $region89
    $region88: #{seq2seq_forward.1} parent=1 // pred_region
      _
    $region89: #{seq2seq_forward.1} parent=1 // pred_fallthru
      _
    // Predicated region
    $region90: #{seq2seq_forward.1} parent=1 // pred_check
      _
    $region91: #{seq2seq_forward.1} parent=1 // pred_check_branch
      %189 = sbr.rel (0) target = $region93
    $region92: #{seq2seq_forward.1} parent=1 // pred_region
      _
    $region93: #{seq2seq_forward.1} parent=1 // pred_fallthru
      _
    // Predicated region
    $region94: #{seq2seq_forward.1} parent=1 // pred_check
      _
    $region95: #{seq2seq_forward.1} parent=1 // pred_check_branch
      %191 = sbr.rel (0) target = $region97
    $region96: #{seq2seq_forward.1} parent=1 // pred_region
      %192 = dma.done [#allocation5], 128
    $region97: #{seq2seq_forward.1} parent=1 // pred_fallthru
      _
    // Predicated region
    $region98: #{seq2seq_forward.1} parent=1 // pred_check
      _
    $region99: #{seq2seq_forward.1} parent=1 // pred_check_branch
      %194 = sbr.rel (0) target = $region101
    $region100: #{seq2seq_forward.1} parent=1 // pred_region
      %195 = dma.done [#allocation7], 128
    $region101: #{seq2seq_forward.1} parent=1 // pred_fallthru
      _
    // Predicated region
    $region102: #{seq2seq_forward.1} parent=1 // pred_check
      _
    $region103: #{seq2seq_forward.1} parent=1 // pred_check_branch
      %197 = sbr.rel (0) target = $region105
    $region104: #{seq2seq_forward.1} parent=1 // pred_region
      %198 = dma.done [#allocation7], 16
    $region105: #{seq2seq_forward.1} parent=1 // pred_fallthru
      _
    // Predicated region
    $region106: #{seq2seq_forward.1} parent=1 // pred_check
      _
    $region107: #{seq2seq_forward.1} parent=1 // pred_check_branch
      %200 = sbr.rel (0) target = $region109
    $region108: #{seq2seq_forward.1} parent=1 // pred_region
      %201 = dma.done [#allocation3], 256
    $region109: #{seq2seq_forward.1} parent=1 // pred_fallthru
      _
    // Predicated region
    $region110: #{seq2seq_forward.1} parent=1 // pred_check
      _
    $region111: #{seq2seq_forward.1} parent=1 // pred_check_branch
      %203 = sbr.rel (0) target = $region113
    $region112: #{seq2seq_forward.1} parent=1 // pred_region
      %204 = dma.done [#allocation11], 256
    $region113: #{seq2seq_forward.1} parent=1 // pred_fallthru
      _
    // Predicated region
    $region114: #{seq2seq_forward.1} parent=1 // pred_check
      _
    $region115: #{seq2seq_forward.1} parent=1 // pred_check_branch
      %206 = sbr.rel (0) target = $region117
    $region116: #{seq2seq_forward.1} parent=1 // pred_region
      %207 = dma.done [#allocation11], 512
    $region117: #{seq2seq_forward.1} parent=1 // pred_fallthru
      _
    // Predicated region
    $region118: #{seq2seq_forward.1} parent=1 // pred_check
      _
    $region119: #{seq2seq_forward.1} parent=1 // pred_check_branch
      %209 = sbr.rel (0) target = $region121
    $region120: #{seq2seq_forward.1} parent=1 // pred_region
      %210 = dma.done [#allocation14], 512
    $region121: #{seq2seq_forward.1} parent=1 // pred_fallthru
      _
    // Predicated region
    $region122: #{seq2seq_forward.1} parent=1 // pred_check
      _
    $region123: #{seq2seq_forward.1} parent=1 // pred_check_branch
      %212 = sbr.rel (0) target = $region125
    $region124: #{seq2seq_forward.1} parent=1 // pred_region
      %213 = dma.done [#allocation14], 16
    $region125: #{seq2seq_forward.1} parent=1 // pred_fallthru
      _
    // Predicated region
    $region126: #{seq2seq_forward.1} parent=1 // pred_check
      _
    $region127: #{seq2seq_forward.1} parent=1 // pred_check_branch
      %215 = sbr.rel (0) target = $region129
    $region128: #{seq2seq_forward.1} parent=1 // pred_region
      %216 = dma.done [#allocation17], 512
    $region129: #{seq2seq_forward.1} parent=1 // pred_fallthru
      _
    // Predicated region
    $region130: #{seq2seq_forward.1} parent=1 // pred_check
      _
    $region131: #{seq2seq_forward.1} parent=1 // pred_check_branch
      %218 = sbr.rel (0) target = $region133
    $region132: #{seq2seq_forward.1} parent=1 // pred_region
      %219 = dma.done [#allocation17], 512
    $region133: #{seq2seq_forward.1} parent=1 // pred_fallthru
      _
    // Predicated region
    $region134: #{seq2seq_forward.1} parent=1 // pred_check
      _
    $region135: #{seq2seq_forward.1} parent=1 // pred_check_branch
      %221 = sbr.rel (0) target = $region137
    $region136: #{seq2seq_forward.1} parent=1 // pred_region
      %222 = dma.done [#allocation20], 16
    $region137: #{seq2seq_forward.1} parent=1 // pred_fallthru
      _
    // Predicated region
    $region138: #{seq2seq_forward.1} parent=1 // pred_check
      _
    $region139: #{seq2seq_forward.1} parent=1 // pred_check_branch
      %224 = sbr.rel (0) target = $region141
    $region140: #{seq2seq_forward.1} parent=1 // pred_region
      %225 = dma.done [#allocation20], 16
    $region141: #{seq2seq_forward.1} parent=1 // pred_fallthru
      _
    %226 = sfence
    %v227 = vlaneseq
    %v228 = vand.u32 %v227, 127
    %s229 = sld [smem:[#allocation2]]
    %v230 = vstv %s229
    %vm231 = vcmp.eq.s32.totalorder %v228, %v230
    %v232 = vsel %vm231, 1, 0
    %v233 = vcvt.s32.f32 %v232
    %s234 = sld [smem:[#allocation2 + $0x1]]
    %v235 = vstv %s234
    %vm236 = vcmp.eq.s32.totalorder %v228, %v235
    %v237 = vsel %vm236, 1, 0
    %v238 = vcvt.s32.f32 %v237
    %s239 = sld [smem:[#allocation2 + $0x80]]
    %v240 = vstv %s239
    %vm241 = vcmp.eq.s32.totalorder %v228, %v240
    %v242 = vsel %vm241, 1, 0
    %v243 = vcvt.s32.f32 %v242
    %s244 = sld [smem:[#allocation2 + $0x81]]
    %v245 = vstv %s244
    %vm246 = vcmp.eq.s32.totalorder %v228, %v245
    %v247 = vsel %vm246, 1, 0
    %v248 = vcvt.s32.f32 %v247
    %s249 = sld [smem:[#allocation2 + $0x100]]
    %v250 = vstv %s249
    %vm251 = vcmp.eq.s32.totalorder %v228, %v250
    %v252 = vsel %vm251, 1, 0
    %v253 = vcvt.s32.f32 %v252
    %s254 = sld [smem:[#allocation2 + $0x101]]
    %v255 = vstv %s254
    %vm256 = vcmp.eq.s32.totalorder %v228, %v255
    %v257 = vsel %vm256, 1, 0
    %v258 = vcvt.s32.f32 %v257
    %s259 = sld [smem:[#allocation2 + $0x180]]
    %v260 = vstv %s259
    %vm261 = vcmp.eq.s32.totalorder %v228, %v260
    %v262 = vsel %vm261, 1, 0
    %v263 = vcvt.s32.f32 %v262
    %s264 = sld [smem:[#allocation2 + $0x181]]
    %v265 = vstv %s264
    %vm266 = vcmp.eq.s32.totalorder %v228, %v265
    %v267 = vsel %vm266, 1, 0
    %v268 = vcvt.s32.f32 %v267
    %s269 = sld [smem:[#allocation2 + $0x200]]
    %v270 = vstv %s269
    %vm271 = vcmp.eq.s32.totalorder %v228, %v270
    %v272 = vsel %vm271, 1, 0
    %v273 = vcvt.s32.f32 %v272
    %s274 = sld [smem:[#allocation2 + $0x201]]
    %v275 = vstv %s274
    %vm276 = vcmp.eq.s32.totalorder %v228, %v275
    %v277 = vsel %vm276, 1, 0
    %v278 = vcvt.s32.f32 %v277
    %s279 = sld [smem:[#allocation2 + $0x280]]
    %v280 = vstv %s279
    %vm281 = vcmp.eq.s32.totalorder %v228, %v280
    %v282 = vsel %vm281, 1, 0
    %v283 = vcvt.s32.f32 %v282
    %s284 = sld [smem:[#allocation2 + $0x281]]
    %v285 = vstv %s284
    %vm286 = vcmp.eq.s32.totalorder %v228, %v285
    %v287 = vsel %vm286, 1, 0
    %v288 = vcvt.s32.f32 %v287
    %s289 = sld [smem:[#allocation2 + $0x300]]
    %v290 = vstv %s289
    %vm291 = vcmp.eq.s32.totalorder %v228, %v290
    %v292 = vsel %vm291, 1, 0
    %v293 = vcvt.s32.f32 %v292
    %s294 = sld [smem:[#allocation2 + $0x301]]
    %v295 = vstv %s294
    %vm296 = vcmp.eq.s32.totalorder %v228, %v295
    %v297 = vsel %vm296, 1, 0
    %v298 = vcvt.s32.f32 %v297
    %s299 = sld [smem:[#allocation2 + $0x380]]
    %v300 = vstv %s299
    %vm301 = vcmp.eq.s32.totalorder %v228, %v300
    %v302 = vsel %vm301, 1, 0
    %v303 = vcvt.s32.f32 %v302
    %s304 = sld [smem:[#allocation2 + $0x381]]
    %v305 = vstv %s304
    %vm306 = vcmp.eq.s32.totalorder %v228, %v305
    %v307 = vsel %vm306, 1, 0
    %v308 = vcvt.s32.f32 %v307
    %vm309 = vcmask 1040384
    %v310 = vsel %vm309, %v233, %v238
    %vm311 = vcmask 1041408
    %v312 = vsel %vm311, %v310, %v243
    %vm313 = vcmask 1042432
    %v314 = vsel %vm313, %v312, %v248
    %vm315 = vcmask 1043456
    %v316 = vsel %vm315, %v314, %v253
    %vm317 = vcmask 1044480
    %v318 = vsel %vm317, %v316, %v258
    %vm319 = vcmask 1045504
    %v320 = vsel %vm319, %v318, %v263
    %vm321 = vcmask 1046528
    %v322 = vsel %vm321, %v320, %v268
    %v323 = vsel %vm309, %v273, %v278
    %v324 = vsel %vm311, %v323, %v283
    %v325 = vsel %vm313, %v324, %v288
    %v326 = vsel %vm315, %v325, %v293
    %v327 = vsel %vm317, %v326, %v298
    %v328 = vsel %vm319, %v327, %v303
    %v329 = vsel %vm321, %v328, %v308
    %v330 = vld [vmem:[#allocation9] sm:$0xff]
    %v331 = vld [vmem:[#allocation9 + $0x8] sm:$0xff]
    %vm332 = vcmask 130048
    %v334 = vsel %vm332, %v322, 0
    %v337 = vsel %vm332, %v329, 0
    %339 = vmatprep.subr.mxu0 0.0
    %340 = vmatpush1.msra.mxu0 %v330
    %341 = vmatprep.subr.mxu0 0.0
    %342 = vmatpush1.msra.mxu0 %v331
    %343 = vmatprep.subr.mxu0 0.0
    %344 = vmatpush1.msra.mxu0 0.0
    %345 = vmatprep.subr.mxu0 0.0
    %346 = vmatpush1.msra.mxu0 0.0
    %347 = vmatprep.subr.mxu0 0.0
    %348 = vmatpush1.msra.mxu0 0.0
    %349 = vmatprep.subr.mxu0 0.0
    %350 = vmatpush1.msra.mxu0 0.0
    %351 = vmatprep.subr.mxu0 0.0
    %352 = vmatpush1.msra.mxu0 0.0
    %353 = vmatprep.subr.mxu0 0.0
    %354 = vmatpush1.msra.mxu0 0.0
    %355 = vmatprep.subr.mxu0 0.0
    %356 = vmatpush1.msra.mxu0 0.0
    %357 = vmatprep.subr.mxu0 0.0
    %358 = vmatpush1.msra.mxu0 0.0
    %359 = vmatprep.subr.mxu0 0.0
    %360 = vmatpush1.msra.mxu0 0.0
    %361 = vmatprep.subr.mxu0 0.0
    %362 = vmatpush1.msra.mxu0 0.0
    %363 = vmatprep.subr.mxu0 0.0
    %364 = vmatpush1.msra.mxu0 0.0
    %365 = vmatprep.subr.mxu0 0.0
    %366 = vmatpush1.msra.mxu0 0.0
    %367 = vmatprep.subr.mxu0 0.0
    %368 = vmatpush1.msra.mxu0 0.0
    %369 = vmatprep.subr.mxu0 0.0
    %370 = vmatpush1.msra.mxu0 0.0
    %371 = vmatprep.subr.mxu0 0.0
    %372 = vmatpush1.msra.mxu0 0.0
    %373 = vmatprep.subr.mxu0 0.0
    %374 = vmatpush1.msra.mxu0 0.0
    %375 = vmatprep.subr.mxu0 0.0
    %376 = vmatpush1.msra.mxu0 0.0
    %377 = vmatprep.subr.mxu0 0.0
    %378 = vmatpush1.msra.mxu0 0.0
    %379 = vmatprep.subr.mxu0 0.0
    %380 = vmatpush1.msra.mxu0 0.0
    %381 = vmatprep.subr.mxu0 0.0
    %382 = vmatpush1.msra.mxu0 0.0
    %383 = vmatprep.subr.mxu0 0.0
    %384 = vmatpush1.msra.mxu0 0.0
    %385 = vmatprep.subr.mxu0 0.0
    %386 = vmatpush1.msra.mxu0 0.0
    %387 = vmatprep.subr.mxu0 0.0
    %388 = vmatpush1.msra.mxu0 0.0
    %389 = vmatprep.subr.mxu0 0.0
    %390 = vmatpush1.msra.mxu0 0.0
    %391 = vmatprep.subr.mxu0 0.0
    %392 = vmatpush1.msra.mxu0 0.0
    %393 = vmatprep.subr.mxu0 0.0
    %394 = vmatpush1.msra.mxu0 0.0
    %395 = vmatprep.subr.mxu0 0.0
    %396 = vmatpush1.msra.mxu0 0.0
    %397 = vmatprep.subr.mxu0 0.0
    %398 = vmatpush1.msra.mxu0 0.0
    %399 = vmatprep.subr.mxu0 0.0
    %400 = vmatpush1.msra.mxu0 0.0
    %401 = vmatprep.subr.mxu0 0.0
    %402 = vmatpush1.msra.mxu0 0.0
    %403 = vmatprep.mubr.f32.mxu0 0.0
    %404 = vmatmul.mubr.f32.gmra.mrb[0].mxu0 %v334
    %v405 = vpop.f32.mrb[0].mxu0
    %v406 = vadd.f32 0.0, %v405
    %v407 = vpop.f32.mrb[0].mxu0
    %408 = vmatprep.mubr.f32.mxu0 0.0
    %409 = vmatmul.mubr.f32.gmra.mrb[0].mxu0 %v337
    %v410 = vpop.f32.mrb[0].mxu0
    %v411 = vadd.f32 0.0, %v410
    %v412 = vpop.f32.mrb[0].mxu0
    %413 = vdwg.mxu0
    %s414 = sld [smem:[#allocation6]]
    %v415 = vstv %s414
    %vm416 = vcmp.eq.s32.totalorder %v228, %v415
    %v417 = vsel %vm416, 1, 0
    %v418 = vcvt.s32.f32 %v417
    %s419 = sld [smem:[#allocation6 + $0x1]]
    %v420 = vstv %s419
    %vm421 = vcmp.eq.s32.totalorder %v228, %v420
    %v422 = vsel %vm421, 1, 0
    %v423 = vcvt.s32.f32 %v422
    %s424 = sld [smem:[#allocation6 + $0x80]]
    %v425 = vstv %s424
    %vm426 = vcmp.eq.s32.totalorder %v228, %v425
    %v427 = vsel %vm426, 1, 0
    %v428 = vcvt.s32.f32 %v427
    %s429 = sld [smem:[#allocation6 + $0x81]]
    %v430 = vstv %s429
    %vm431 = vcmp.eq.s32.totalorder %v228, %v430
    %v432 = vsel %vm431, 1, 0
    %v433 = vcvt.s32.f32 %v432
    %s434 = sld [smem:[#allocation6 + $0x100]]
    %v435 = vstv %s434
    %vm436 = vcmp.eq.s32.totalorder %v228, %v435
    %v437 = vsel %vm436, 1, 0
    %v438 = vcvt.s32.f32 %v437
    %s439 = sld [smem:[#allocation6 + $0x101]]
    %v440 = vstv %s439
    %vm441 = vcmp.eq.s32.totalorder %v228, %v440
    %v442 = vsel %vm441, 1, 0
    %v443 = vcvt.s32.f32 %v442
    %s444 = sld [smem:[#allocation6 + $0x180]]
    %v445 = vstv %s444
    %vm446 = vcmp.eq.s32.totalorder %v228, %v445
    %v447 = vsel %vm446, 1, 0
    %v448 = vcvt.s32.f32 %v447
    %s449 = sld [smem:[#allocation6 + $0x181]]
    %v450 = vstv %s449
    %vm451 = vcmp.eq.s32.totalorder %v228, %v450
    %v452 = vsel %vm451, 1, 0
    %v453 = vcvt.s32.f32 %v452
    %s454 = sld [smem:[#allocation6 + $0x200]]
    %v455 = vstv %s454
    %vm456 = vcmp.eq.s32.totalorder %v228, %v455
    %v457 = vsel %vm456, 1, 0
    %v458 = vcvt.s32.f32 %v457
    %s459 = sld [smem:[#allocation6 + $0x201]]
    %v460 = vstv %s459
    %vm461 = vcmp.eq.s32.totalorder %v228, %v460
    %v462 = vsel %vm461, 1, 0
    %v463 = vcvt.s32.f32 %v462
    %s464 = sld [smem:[#allocation6 + $0x280]]
    %v465 = vstv %s464
    %vm466 = vcmp.eq.s32.totalorder %v228, %v465
    %v467 = vsel %vm466, 1, 0
    %v468 = vcvt.s32.f32 %v467
    %s469 = sld [smem:[#allocation6 + $0x281]]
    %v470 = vstv %s469
    %vm471 = vcmp.eq.s32.totalorder %v228, %v470
    %v472 = vsel %vm471, 1, 0
    %v473 = vcvt.s32.f32 %v472
    %s474 = sld [smem:[#allocation6 + $0x300]]
    %v475 = vstv %s474
    %vm476 = vcmp.eq.s32.totalorder %v228, %v475
    %v477 = vsel %vm476, 1, 0
    %v478 = vcvt.s32.f32 %v477
    %s479 = sld [smem:[#allocation6 + $0x301]]
    %v480 = vstv %s479
    %vm481 = vcmp.eq.s32.totalorder %v228, %v480
    %v482 = vsel %vm481, 1, 0
    %v483 = vcvt.s32.f32 %v482
    %s484 = sld [smem:[#allocation6 + $0x380]]
    %v485 = vstv %s484
    %vm486 = vcmp.eq.s32.totalorder %v228, %v485
    %v487 = vsel %vm486, 1, 0
    %v488 = vcvt.s32.f32 %v487
    %s489 = sld [smem:[#allocation6 + $0x381]]
    %v490 = vstv %s489
    %vm491 = vcmp.eq.s32.totalorder %v228, %v490
    %v492 = vsel %vm491, 1, 0
    %v493 = vcvt.s32.f32 %v492
    %v494 = vsel %vm309, %v418, %v423
    %v495 = vsel %vm311, %v494, %v428
    %v496 = vsel %vm313, %v495, %v433
    %v497 = vsel %vm315, %v496, %v438
    %v498 = vsel %vm317, %v497, %v443
    %v499 = vsel %vm319, %v498, %v448
    %v500 = vsel %vm321, %v499, %v453
    %v501 = vsel %vm309, %v458, %v463
    %v502 = vsel %vm311, %v501, %v468
    %v503 = vsel %vm313, %v502, %v473
    %v504 = vsel %vm315, %v503, %v478
    %v505 = vsel %vm317, %v504, %v483
    %v506 = vsel %vm319, %v505, %v488
    %v507 = vsel %vm321, %v506, %v493
    %v508 = vld [vmem:[#allocation10] sm:$0xff]
    %v509 = vld [vmem:[#allocation10 + $0x8] sm:$0xff]
    %v511 = vsel %vm332, %v500, 0
    %v514 = vsel %vm332, %v507, 0
    %516 = vmatprep.subr.mxu0 0.0
    %517 = vmatpush1.msra.mxu0 %v508
    %518 = vmatprep.subr.mxu0 0.0
    %519 = vmatpush1.msra.mxu0 %v509
    %520 = vmatprep.subr.mxu0 0.0
    %521 = vmatpush1.msra.mxu0 0.0
    %522 = vmatprep.subr.mxu0 0.0
    %523 = vmatpush1.msra.mxu0 0.0
    %524 = vmatprep.subr.mxu0 0.0
    %525 = vmatpush1.msra.mxu0 0.0
    %526 = vmatprep.subr.mxu0 0.0
    %527 = vmatpush1.msra.mxu0 0.0
    %528 = vmatprep.subr.mxu0 0.0
    %529 = vmatpush1.msra.mxu0 0.0
    %530 = vmatprep.subr.mxu0 0.0
    %531 = vmatpush1.msra.mxu0 0.0
    %532 = vmatprep.subr.mxu0 0.0
    %533 = vmatpush1.msra.mxu0 0.0
    %534 = vmatprep.subr.mxu0 0.0
    %535 = vmatpush1.msra.mxu0 0.0
    %536 = vmatprep.subr.mxu0 0.0
    %537 = vmatpush1.msra.mxu0 0.0
    %538 = vmatprep.subr.mxu0 0.0
    %539 = vmatpush1.msra.mxu0 0.0
    %540 = vmatprep.subr.mxu0 0.0
    %541 = vmatpush1.msra.mxu0 0.0
    %542 = vmatprep.subr.mxu0 0.0
    %543 = vmatpush1.msra.mxu0 0.0
    %544 = vmatprep.subr.mxu0 0.0
    %545 = vmatpush1.msra.mxu0 0.0
    %546 = vmatprep.subr.mxu0 0.0
    %547 = vmatpush1.msra.mxu0 0.0
    %548 = vmatprep.subr.mxu0 0.0
    %549 = vmatpush1.msra.mxu0 0.0
    %550 = vmatprep.subr.mxu0 0.0
    %551 = vmatpush1.msra.mxu0 0.0
    %552 = vmatprep.subr.mxu0 0.0
    %553 = vmatpush1.msra.mxu0 0.0
    %554 = vmatprep.subr.mxu0 0.0
    %555 = vmatpush1.msra.mxu0 0.0
    %556 = vmatprep.subr.mxu0 0.0
    %557 = vmatpush1.msra.mxu0 0.0
    %558 = vmatprep.subr.mxu0 0.0
    %559 = vmatpush1.msra.mxu0 0.0
    %560 = vmatprep.subr.mxu0 0.0
    %561 = vmatpush1.msra.mxu0 0.0
    %562 = vmatprep.subr.mxu0 0.0
    %563 = vmatpush1.msra.mxu0 0.0
    %564 = vmatprep.subr.mxu0 0.0
    %565 = vmatpush1.msra.mxu0 0.0
    %566 = vmatprep.subr.mxu0 0.0
    %567 = vmatpush1.msra.mxu0 0.0
    %568 = vmatprep.subr.mxu0 0.0
    %569 = vmatpush1.msra.mxu0 0.0
    %570 = vmatprep.subr.mxu0 0.0
    %571 = vmatpush1.msra.mxu0 0.0
    %572 = vmatprep.subr.mxu0 0.0
    %573 = vmatpush1.msra.mxu0 0.0
    %574 = vmatprep.subr.mxu0 0.0
    %575 = vmatpush1.msra.mxu0 0.0
    %576 = vmatprep.subr.mxu0 0.0
    %577 = vmatpush1.msra.mxu0 0.0
    %578 = vmatprep.subr.mxu0 0.0
    %579 = vmatpush1.msra.mxu0 0.0
    %580 = vmatprep.mubr.f32.mxu0 0.0
    %581 = vmatmul.mubr.f32.gmra.mrb[0].mxu0 %v511
    %v582 = vpop.f32.mrb[0].mxu0
    %v583 = vadd.f32 0.0, %v582
    %v584 = vpop.f32.mrb[0].mxu0
    %585 = vmatprep.mubr.f32.mxu0 0.0
    %586 = vmatmul.mubr.f32.gmra.mrb[0].mxu0 %v514
    %v587 = vpop.f32.mrb[0].mxu0
    %v588 = vadd.f32 0.0, %v587
    %v589 = vpop.f32.mrb[0].mxu0
    %590 = vdwg.mxu0
    %v591 = vld [vmem:[#allocation12] sm:$0xff]
    %v592 = vld [vmem:[#allocation12 + $0x8] sm:$0xff]
    %v593 = vld [vmem:[#allocation12 + $0x10] sm:$0xff]
    %v594 = vld [vmem:[#allocation12 + $0x18] sm:$0xff]
    %v595 = vld [vmem:[#allocation13] sm:$0xff]
    %v596 = vld [vmem:[#allocation13 + $0x8] sm:$0xff]
    %v597 = vld [vmem:[#allocation13 + $0x10] sm:$0xff]
    %v598 = vld [vmem:[#allocation13 + $0x18] sm:$0xff]
    %v599 = vld [vmem:[%s7] sm:$0x1]
    %v600 = vld [vmem:[#allocation15] sm:$0x1]
    %v601 = vld [vmem:[#allocation16] sm:$0xff]
    %v602 = vld [vmem:[#allocation16 + $0x8] sm:$0xff]
    %v603 = vld [vmem:[#allocation16 + $0x10] sm:$0xff]
    %v604 = vld [vmem:[#allocation16 + $0x18] sm:$0xff]
    %v605 = vld [vmem:[#allocation18] sm:$0xff]
    %v606 = vld [vmem:[#allocation18 + $0x8] sm:$0xff]
    %v607 = vld [vmem:[#allocation18 + $0x10] sm:$0xff]
    %v608 = vld [vmem:[#allocation18 + $0x18] sm:$0xff]
    %v609 = vld [vmem:[#allocation19] sm:$0x1]
    %v610 = vld [vmem:[#allocation21] sm:$0x1]
    %v612 = vlaneseq
    %v613 = vshrl.u32 %v612, 7
    %v614 = vsub.s32 0, %v613
    %v615 = vrot.slane %v599, %v614
    %vm617 = vcmask 261120
    %v619 = vsel %vm617, %v406, 0
    %621 = vmatprep.subr.mxu0 0.0
    %622 = vmatpush1.msra.mxu0 %v591
    %623 = vmatprep.subr.mxu0 0.0
    %624 = vmatpush1.msra.mxu0 %v592
    %625 = vmatprep.subr.mxu0 0.0
    %626 = vmatpush1.msra.mxu0 %v593
    %627 = vmatprep.subr.mxu0 0.0
    %628 = vmatpush1.msra.mxu0 %v594
    %629 = vmatprep.subr.mxu0 0.0
    %630 = vmatpush1.msra.mxu0 0.0
    %631 = vmatprep.subr.mxu0 0.0
    %632 = vmatpush1.msra.mxu0 0.0
    %633 = vmatprep.subr.mxu0 0.0
    %634 = vmatpush1.msra.mxu0 0.0
    %635 = vmatprep.subr.mxu0 0.0
    %636 = vmatpush1.msra.mxu0 0.0
    %637 = vmatprep.subr.mxu0 0.0
    %638 = vmatpush1.msra.mxu0 0.0
    %639 = vmatprep.subr.mxu0 0.0
    %640 = vmatpush1.msra.mxu0 0.0
    %641 = vmatprep.subr.mxu0 0.0
    %642 = vmatpush1.msra.mxu0 0.0
    %643 = vmatprep.subr.mxu0 0.0
    %644 = vmatpush1.msra.mxu0 0.0
    %645 = vmatprep.subr.mxu0 0.0
    %646 = vmatpush1.msra.mxu0 0.0
    %647 = vmatprep.subr.mxu0 0.0
    %648 = vmatpush1.msra.mxu0 0.0
    %649 = vmatprep.subr.mxu0 0.0
    %650 = vmatpush1.msra.mxu0 0.0
    %651 = vmatprep.subr.mxu0 0.0
    %652 = vmatpush1.msra.mxu0 0.0
    %653 = vmatprep.subr.mxu0 0.0
    %654 = vmatpush1.msra.mxu0 0.0
    %655 = vmatprep.subr.mxu0 0.0
    %656 = vmatpush1.msra.mxu0 0.0
    %657 = vmatprep.subr.mxu0 0.0
    %658 = vmatpush1.msra.mxu0 0.0
    %659 = vmatprep.subr.mxu0 0.0
    %660 = vmatpush1.msra.mxu0 0.0
    %661 = vmatprep.subr.mxu0 0.0
    %662 = vmatpush1.msra.mxu0 0.0
    %663 = vmatprep.subr.mxu0 0.0
    %664 = vmatpush1.msra.mxu0 0.0
    %665 = vmatprep.subr.mxu0 0.0
    %666 = vmatpush1.msra.mxu0 0.0
    %667 = vmatprep.subr.mxu0 0.0
    %668 = vmatpush1.msra.mxu0 0.0
    %669 = vmatprep.subr.mxu0 0.0
    %670 = vmatpush1.msra.mxu0 0.0
    %671 = vmatprep.subr.mxu0 0.0
    %672 = vmatpush1.msra.mxu0 0.0
    %673 = vmatprep.subr.mxu0 0.0
    %674 = vmatpush1.msra.mxu0 0.0
    %675 = vmatprep.subr.mxu0 0.0
    %676 = vmatpush1.msra.mxu0 0.0
    %677 = vmatprep.subr.mxu0 0.0
    %678 = vmatpush1.msra.mxu0 0.0
    %679 = vmatprep.subr.mxu0 0.0
    %680 = vmatpush1.msra.mxu0 0.0
    %681 = vmatprep.subr.mxu0 0.0
    %682 = vmatpush1.msra.mxu0 0.0
    %683 = vmatprep.subr.mxu0 0.0
    %684 = vmatpush1.msra.mxu0 0.0
    %685 = vmatprep.mubr.f32.mxu0 0.0
    %686 = vmatmul.mubr.f32.gmra.mrb[0].mxu0 %v619
    %v687 = vpop.f32.mrb[0].mxu0
    %v688 = vadd.f32 %v615, %v687
    %v689 = vpop.f32.mrb[0].mxu0
    %690 = vdwg.mxu0
    %v692 = vlaneseq
    %v693 = vshrl.u32 %v692, 7
    %v694 = vsub.s32 0, %v693
    %v695 = vrot.slane %v600, %v694
    %v698 = vsel %vm617, 0.0, 0
    %700 = vmatprep.subr.mxu0 0.0
    %701 = vmatpush1.msra.mxu0 %v595
    %702 = vmatprep.subr.mxu0 0.0
    %703 = vmatpush1.msra.mxu0 %v596
    %704 = vmatprep.subr.mxu0 0.0
    %705 = vmatpush1.msra.mxu0 %v597
    %706 = vmatprep.subr.mxu0 0.0
    %707 = vmatpush1.msra.mxu0 %v598
    %708 = vmatprep.subr.mxu0 0.0
    %709 = vmatpush1.msra.mxu0 0.0
    %710 = vmatprep.subr.mxu0 0.0
    %711 = vmatpush1.msra.mxu0 0.0
    %712 = vmatprep.subr.mxu0 0.0
    %713 = vmatpush1.msra.mxu0 0.0
    %714 = vmatprep.subr.mxu0 0.0
    %715 = vmatpush1.msra.mxu0 0.0
    %716 = vmatprep.subr.mxu0 0.0
    %717 = vmatpush1.msra.mxu0 0.0
    %718 = vmatprep.subr.mxu0 0.0
    %719 = vmatpush1.msra.mxu0 0.0
    %720 = vmatprep.subr.mxu0 0.0
    %721 = vmatpush1.msra.mxu0 0.0
    %722 = vmatprep.subr.mxu0 0.0
    %723 = vmatpush1.msra.mxu0 0.0
    %724 = vmatprep.subr.mxu0 0.0
    %725 = vmatpush1.msra.mxu0 0.0
    %726 = vmatprep.subr.mxu0 0.0
    %727 = vmatpush1.msra.mxu0 0.0
    %728 = vmatprep.subr.mxu0 0.0
    %729 = vmatpush1.msra.mxu0 0.0
    %730 = vmatprep.subr.mxu0 0.0
    %731 = vmatpush1.msra.mxu0 0.0
    %732 = vmatprep.subr.mxu0 0.0
    %733 = vmatpush1.msra.mxu0 0.0
    %734 = vmatprep.subr.mxu0 0.0
    %735 = vmatpush1.msra.mxu0 0.0
    %736 = vmatprep.subr.mxu0 0.0
    %737 = vmatpush1.msra.mxu0 0.0
    %738 = vmatprep.subr.mxu0 0.0
    %739 = vmatpush1.msra.mxu0 0.0
    %740 = vmatprep.subr.mxu0 0.0
    %741 = vmatpush1.msra.mxu0 0.0
    %742 = vmatprep.subr.mxu0 0.0
    %743 = vmatpush1.msra.mxu0 0.0
    %744 = vmatprep.subr.mxu0 0.0
    %745 = vmatpush1.msra.mxu0 0.0
    %746 = vmatprep.subr.mxu0 0.0
    %747 = vmatpush1.msra.mxu0 0.0
    %748 = vmatprep.subr.mxu0 0.0
    %749 = vmatpush1.msra.mxu0 0.0
    %750 = vmatprep.subr.mxu0 0.0
    %751 = vmatpush1.msra.mxu0 0.0
    %752 = vmatprep.subr.mxu0 0.0
    %753 = vmatpush1.msra.mxu0 0.0
    %754 = vmatprep.subr.mxu0 0.0
    %755 = vmatpush1.msra.mxu0 0.0
    %756 = vmatprep.subr.mxu0 0.0
    %757 = vmatpush1.msra.mxu0 0.0
    %758 = vmatprep.subr.mxu0 0.0
    %759 = vmatpush1.msra.mxu0 0.0
    %760 = vmatprep.subr.mxu0 0.0
    %761 = vmatpush1.msra.mxu0 0.0
    %762 = vmatprep.subr.mxu0 0.0
    %763 = vmatpush1.msra.mxu0 0.0
    %764 = vmatprep.mubr.f32.mxu0 0.0
    %765 = vmatmul.mubr.f32.gmra.mrb[0].mxu0 %v698
    %v766 = vpop.f32.mrb[0].mxu0
    %v767 = vadd.f32 %v695, %v766
    %v768 = vpop.f32.mrb[0].mxu0
    %769 = vdwg.mxu0
    %v770 = vadd.f32 %v688, %v767
    %v771 = vxor.u32 %v770, 2147483648
    %v772 = vmul.f32 %v771, 1.442695
    %v773 = vpow.pop %v772
    %v774 = vadd.f32 %v773, 1.0
    %v775 = vrcp.pop %v774
    %v776 = vmul.f32 1.0, %v775
    %778 = vrot.lane.b32.xlu0 %v767, 64
    %v779 = vpop.permute.xlu0 %778
    %v781 = vmul.f32 %v776, %v779
    %783 = vrot.lane.b32.xlu0 %v781, 64
    %v784 = vpop.permute.xlu0 %783
    %v786 = vadd.f32 %v688, %v784
    %v787 = vtanh.pop %v786
    %v788 = vsub.f32 1.0, %v776
    %790 = vrot.lane.b32.xlu0 %v787, 96
    %v791 = vpop.permute.xlu0 %790
    %v793 = vmul.f32 %v788, %v791
    %v794 = vmul.f32 %v776, 0.0
    %v795 = vadd.f32 %v793, %v794
    %v797 = vlaneseq
    %v798 = vshrl.u32 %v797, 7
    %v799 = vsub.s32 0, %v798
    %v800 = vrot.slane %v609, %v799
    %v803 = vrot.slane %v411, 6
    %v804 = vsel %vm617, %v803, 0
    %806 = vmatprep.subr.mxu0 0.0
    %807 = vmatpush1.msra.mxu0 %v601
    %808 = vmatprep.subr.mxu0 0.0
    %809 = vmatpush1.msra.mxu0 %v602
    %810 = vmatprep.subr.mxu0 0.0
    %811 = vmatpush1.msra.mxu0 %v603
    %812 = vmatprep.subr.mxu0 0.0
    %813 = vmatpush1.msra.mxu0 %v604
    %814 = vmatprep.subr.mxu0 0.0
    %815 = vmatpush1.msra.mxu0 0.0
    %816 = vmatprep.subr.mxu0 0.0
    %817 = vmatpush1.msra.mxu0 0.0
    %818 = vmatprep.subr.mxu0 0.0
    %819 = vmatpush1.msra.mxu0 0.0
    %820 = vmatprep.subr.mxu0 0.0
    %821 = vmatpush1.msra.mxu0 0.0
    %822 = vmatprep.subr.mxu0 0.0
    %823 = vmatpush1.msra.mxu0 0.0
    %824 = vmatprep.subr.mxu0 0.0
    %825 = vmatpush1.msra.mxu0 0.0
    %826 = vmatprep.subr.mxu0 0.0
    %827 = vmatpush1.msra.mxu0 0.0
    %828 = vmatprep.subr.mxu0 0.0
    %829 = vmatpush1.msra.mxu0 0.0
    %830 = vmatprep.subr.mxu0 0.0
    %831 = vmatpush1.msra.mxu0 0.0
    %832 = vmatprep.subr.mxu0 0.0
    %833 = vmatpush1.msra.mxu0 0.0
    %834 = vmatprep.subr.mxu0 0.0
    %835 = vmatpush1.msra.mxu0 0.0
    %836 = vmatprep.subr.mxu0 0.0
    %837 = vmatpush1.msra.mxu0 0.0
    %838 = vmatprep.subr.mxu0 0.0
    %839 = vmatpush1.msra.mxu0 0.0
    %840 = vmatprep.subr.mxu0 0.0
    %841 = vmatpush1.msra.mxu0 0.0
    %842 = vmatprep.subr.mxu0 0.0
    %843 = vmatpush1.msra.mxu0 0.0
    %844 = vmatprep.subr.mxu0 0.0
    %845 = vmatpush1.msra.mxu0 0.0
    %846 = vmatprep.subr.mxu0 0.0
    %847 = vmatpush1.msra.mxu0 0.0
    %848 = vmatprep.subr.mxu0 0.0
    %849 = vmatpush1.msra.mxu0 0.0
    %850 = vmatprep.subr.mxu0 0.0
    %851 = vmatpush1.msra.mxu0 0.0
    %852 = vmatprep.subr.mxu0 0.0
    %853 = vmatpush1.msra.mxu0 0.0
    %854 = vmatprep.subr.mxu0 0.0
    %855 = vmatpush1.msra.mxu0 0.0
    %856 = vmatprep.subr.mxu0 0.0
    %857 = vmatpush1.msra.mxu0 0.0
    %858 = vmatprep.subr.mxu0 0.0
    %859 = vmatpush1.msra.mxu0 0.0
    %860 = vmatprep.subr.mxu0 0.0
    %861 = vmatpush1.msra.mxu0 0.0
    %862 = vmatprep.subr.mxu0 0.0
    %863 = vmatpush1.msra.mxu0 0.0
    %864 = vmatprep.subr.mxu0 0.0
    %865 = vmatpush1.msra.mxu0 0.0
    %866 = vmatprep.subr.mxu0 0.0
    %867 = vmatpush1.msra.mxu0 0.0
    %868 = vmatprep.subr.mxu0 0.0
    %869 = vmatpush1.msra.mxu0 0.0
    %870 = vmatprep.mubr.f32.mxu0 0.0
    %871 = vmatmul.mubr.f32.gmra.mrb[0].mxu0 %v804
    %v872 = vpop.f32.mrb[0].mxu0
    %v873 = vadd.f32 %v800, %v872
    %v874 = vpop.f32.mrb[0].mxu0
    %875 = vdwg.mxu0
    %v877 = vlaneseq
    %v878 = vshrl.u32 %v877, 7
    %v879 = vsub.s32 0, %v878
    %v880 = vrot.slane %v610, %v879
    %882 = vmatprep.subr.mxu0 0.0
    %883 = vmatpush1.msra.mxu0 %v605
    %884 = vmatprep.subr.mxu0 0.0
    %885 = vmatpush1.msra.mxu0 %v606
    %886 = vmatprep.subr.mxu0 0.0
    %887 = vmatpush1.msra.mxu0 %v607
    %888 = vmatprep.subr.mxu0 0.0
    %889 = vmatpush1.msra.mxu0 %v608
    %890 = vmatprep.subr.mxu0 0.0
    %891 = vmatpush1.msra.mxu0 0.0
    %892 = vmatprep.subr.mxu0 0.0
    %893 = vmatpush1.msra.mxu0 0.0
    %894 = vmatprep.subr.mxu0 0.0
    %895 = vmatpush1.msra.mxu0 0.0
    %896 = vmatprep.subr.mxu0 0.0
    %897 = vmatpush1.msra.mxu0 0.0
    %898 = vmatprep.subr.mxu0 0.0
    %899 = vmatpush1.msra.mxu0 0.0
    %900 = vmatprep.subr.mxu0 0.0
    %901 = vmatpush1.msra.mxu0 0.0
    %902 = vmatprep.subr.mxu0 0.0
    %903 = vmatpush1.msra.mxu0 0.0
    %904 = vmatprep.subr.mxu0 0.0
    %905 = vmatpush1.msra.mxu0 0.0
    %906 = vmatprep.subr.mxu0 0.0
    %907 = vmatpush1.msra.mxu0 0.0
    %908 = vmatprep.subr.mxu0 0.0
    %909 = vmatpush1.msra.mxu0 0.0
    %910 = vmatprep.subr.mxu0 0.0
    %911 = vmatpush1.msra.mxu0 0.0
    %912 = vmatprep.subr.mxu0 0.0
    %913 = vmatpush1.msra.mxu0 0.0
    %914 = vmatprep.subr.mxu0 0.0
    %915 = vmatpush1.msra.mxu0 0.0
    %916 = vmatprep.subr.mxu0 0.0
    %917 = vmatpush1.msra.mxu0 0.0
    %918 = vmatprep.subr.mxu0 0.0
    %919 = vmatpush1.msra.mxu0 0.0
    %920 = vmatprep.subr.mxu0 0.0
    %921 = vmatpush1.msra.mxu0 0.0
    %922 = vmatprep.subr.mxu0 0.0
    %923 = vmatpush1.msra.mxu0 0.0
    %924 = vmatprep.subr.mxu0 0.0
    %925 = vmatpush1.msra.mxu0 0.0
    %926 = vmatprep.subr.mxu0 0.0
    %927 = vmatpush1.msra.mxu0 0.0
    %928 = vmatprep.subr.mxu0 0.0
    %929 = vmatpush1.msra.mxu0 0.0
    %930 = vmatprep.subr.mxu0 0.0
    %931 = vmatpush1.msra.mxu0 0.0
    %932 = vmatprep.subr.mxu0 0.0
    %933 = vmatpush1.msra.mxu0 0.0
    %934 = vmatprep.subr.mxu0 0.0
    %935 = vmatpush1.msra.mxu0 0.0
    %936 = vmatprep.subr.mxu0 0.0
    %937 = vmatpush1.msra.mxu0 0.0
    %938 = vmatprep.subr.mxu0 0.0
    %939 = vmatpush1.msra.mxu0 0.0
    %940 = vmatprep.subr.mxu0 0.0
    %941 = vmatpush1.msra.mxu0 0.0
    %942 = vmatprep.subr.mxu0 0.0
    %943 = vmatpush1.msra.mxu0 0.0
    %944 = vmatprep.subr.mxu0 0.0
    %945 = vmatpush1.msra.mxu0 0.0
    %946 = vmatprep.mubr.f32.mxu0 0.0
    %947 = vmatmul.mubr.f32.gmra.mrb[0].mxu0 %v698
    %v948 = vpop.f32.mrb[0].mxu0
    %v949 = vadd.f32 %v880, %v948
    %v950 = vpop.f32.mrb[0].mxu0
    %951 = vdwg.mxu0
    %v952 = vadd.f32 %v873, %v949
    %v953 = vxor.u32 %v952, 2147483648
    %v954 = vmul.f32 %v953, 1.442695
    %v955 = vpow.pop %v954
    %v956 = vadd.f32 %v955, 1.0
    %v957 = vrcp.pop %v956
    %v958 = vmul.f32 1.0, %v957
    %960 = vrot.lane.b32.xlu0 %v949, 64
    %v961 = vpop.permute.xlu0 %960
    %v963 = vmul.f32 %v958, %v961
    %965 = vrot.lane.b32.xlu0 %v963, 64
    %v966 = vpop.permute.xlu0 %965
    %v968 = vadd.f32 %v873, %v966
    %v969 = vtanh.pop %v968
    %v970 = vsub.f32 1.0, %v958
    %972 = vrot.lane.b32.xlu0 %v969, 96
    %v973 = vpop.permute.xlu0 %972
    %v975 = vmul.f32 %v970, %v973
    %v976 = vmul.f32 %v958, 0.0
    %v977 = vadd.f32 %v975, %v976
    %v978 = vrot.slane %v406, 2
    %v979 = vsel %vm617, %v978, 0
    %981 = vmatprep.subr.mxu0 0.0
    %982 = vmatpush1.msra.mxu0 %v591
    %983 = vmatprep.subr.mxu0 0.0
    %984 = vmatpush1.msra.mxu0 %v592
    %985 = vmatprep.subr.mxu0 0.0
    %986 = vmatpush1.msra.mxu0 %v593
    %987 = vmatprep.subr.mxu0 0.0
    %988 = vmatpush1.msra.mxu0 %v594
    %989 = vmatprep.subr.mxu0 0.0
    %990 = vmatpush1.msra.mxu0 0.0
    %991 = vmatprep.subr.mxu0 0.0
    %992 = vmatpush1.msra.mxu0 0.0
    %993 = vmatprep.subr.mxu0 0.0
    %994 = vmatpush1.msra.mxu0 0.0
    %995 = vmatprep.subr.mxu0 0.0
    %996 = vmatpush1.msra.mxu0 0.0
    %997 = vmatprep.subr.mxu0 0.0
    %998 = vmatpush1.msra.mxu0 0.0
    %999 = vmatprep.subr.mxu0 0.0
    %1000 = vmatpush1.msra.mxu0 0.0
    %1001 = vmatprep.subr.mxu0 0.0
    %1002 = vmatpush1.msra.mxu0 0.0
    %1003 = vmatprep.subr.mxu0 0.0
    %1004 = vmatpush1.msra.mxu0 0.0
    %1005 = vmatprep.subr.mxu0 0.0
    %1006 = vmatpush1.msra.mxu0 0.0
    %1007 = vmatprep.subr.mxu0 0.0
    %1008 = vmatpush1.msra.mxu0 0.0
    %1009 = vmatprep.subr.mxu0 0.0
    %1010 = vmatpush1.msra.mxu0 0.0
    %1011 = vmatprep.subr.mxu0 0.0
    %1012 = vmatpush1.msra.mxu0 0.0
    %1013 = vmatprep.subr.mxu0 0.0
    %1014 = vmatpush1.msra.mxu0 0.0
    %1015 = vmatprep.subr.mxu0 0.0
    %1016 = vmatpush1.msra.mxu0 0.0
    %1017 = vmatprep.subr.mxu0 0.0
    %1018 = vmatpush1.msra.mxu0 0.0
    %1019 = vmatprep.subr.mxu0 0.0
    %1020 = vmatpush1.msra.mxu0 0.0
    %1021 = vmatprep.subr.mxu0 0.0
    %1022 = vmatpush1.msra.mxu0 0.0
    %1023 = vmatprep.subr.mxu0 0.0
    %1024 = vmatpush1.msra.mxu0 0.0
    %1025 = vmatprep.subr.mxu0 0.0
    %1026 = vmatpush1.msra.mxu0 0.0
    %1027 = vmatprep.subr.mxu0 0.0
    %1028 = vmatpush1.msra.mxu0 0.0
    %1029 = vmatprep.subr.mxu0 0.0
    %1030 = vmatpush1.msra.mxu0 0.0
    %1031 = vmatprep.subr.mxu0 0.0
    %1032 = vmatpush1.msra.mxu0 0.0
    %1033 = vmatprep.subr.mxu0 0.0
    %1034 = vmatpush1.msra.mxu0 0.0
    %1035 = vmatprep.subr.mxu0 0.0
    %1036 = vmatpush1.msra.mxu0 0.0
    %1037 = vmatprep.subr.mxu0 0.0
    %1038 = vmatpush1.msra.mxu0 0.0
    %1039 = vmatprep.subr.mxu0 0.0
    %1040 = vmatpush1.msra.mxu0 0.0
    %1041 = vmatprep.subr.mxu0 0.0
    %1042 = vmatpush1.msra.mxu0 0.0
    %1043 = vmatprep.subr.mxu0 0.0
    %1044 = vmatpush1.msra.mxu0 0.0
    %1045 = vmatprep.mubr.f32.mxu0 0.0
    %1046 = vmatmul.mubr.f32.gmra.mrb[0].mxu0 %v979
    %v1047 = vpop.f32.mrb[0].mxu0
    %v1048 = vadd.f32 %v615, %v1047
    %v1049 = vpop.f32.mrb[0].mxu0
    %1050 = vdwg.mxu0
    %1052 = vrot.lane.b32.xlu0 %v795, 96
    %v1053 = vpop.permute.xlu0 %1052
    %v1054 = vsel %vm617, %v1053, 0
    %1056 = vmatprep.subr.mxu0 0.0
    %1057 = vmatpush1.msra.mxu0 %v595
    %1058 = vmatprep.subr.mxu0 0.0
    %1059 = vmatpush1.msra.mxu0 %v596
    %1060 = vmatprep.subr.mxu0 0.0
    %1061 = vmatpush1.msra.mxu0 %v597
    %1062 = vmatprep.subr.mxu0 0.0
    %1063 = vmatpush1.msra.mxu0 %v598
    %1064 = vmatprep.subr.mxu0 0.0
    %1065 = vmatpush1.msra.mxu0 0.0
    %1066 = vmatprep.subr.mxu0 0.0
    %1067 = vmatpush1.msra.mxu0 0.0
    %1068 = vmatprep.subr.mxu0 0.0
    %1069 = vmatpush1.msra.mxu0 0.0
    %1070 = vmatprep.subr.mxu0 0.0
    %1071 = vmatpush1.msra.mxu0 0.0
    %1072 = vmatprep.subr.mxu0 0.0
    %1073 = vmatpush1.msra.mxu0 0.0
    %1074 = vmatprep.subr.mxu0 0.0
    %1075 = vmatpush1.msra.mxu0 0.0
    %1076 = vmatprep.subr.mxu0 0.0
    %1077 = vmatpush1.msra.mxu0 0.0
    %1078 = vmatprep.subr.mxu0 0.0
    %1079 = vmatpush1.msra.mxu0 0.0
    %1080 = vmatprep.subr.mxu0 0.0
    %1081 = vmatpush1.msra.mxu0 0.0
    %1082 = vmatprep.subr.mxu0 0.0
    %1083 = vmatpush1.msra.mxu0 0.0
    %1084 = vmatprep.subr.mxu0 0.0
    %1085 = vmatpush1.msra.mxu0 0.0
    %1086 = vmatprep.subr.mxu0 0.0
    %1087 = vmatpush1.msra.mxu0 0.0
    %1088 = vmatprep.subr.mxu0 0.0
    %1089 = vmatpush1.msra.mxu0 0.0
    %1090 = vmatprep.subr.mxu0 0.0
    %1091 = vmatpush1.msra.mxu0 0.0
    %1092 = vmatprep.subr.mxu0 0.0
    %1093 = vmatpush1.msra.mxu0 0.0
    %1094 = vmatprep.subr.mxu0 0.0
    %1095 = vmatpush1.msra.mxu0 0.0
    %1096 = vmatprep.subr.mxu0 0.0
    %1097 = vmatpush1.msra.mxu0 0.0
    %1098 = vmatprep.subr.mxu0 0.0
    %1099 = vmatpush1.msra.mxu0 0.0
    %1100 = vmatprep.subr.mxu0 0.0
    %1101 = vmatpush1.msra.mxu0 0.0
    %1102 = vmatprep.subr.mxu0 0.0
    %1103 = vmatpush1.msra.mxu0 0.0
    %1104 = vmatprep.subr.mxu0 0.0
    %1105 = vmatpush1.msra.mxu0 0.0
    %1106 = vmatprep.subr.mxu0 0.0
    %1107 = vmatpush1.msra.mxu0 0.0
    %1108 = vmatprep.subr.mxu0 0.0
    %1109 = vmatpush1.msra.mxu0 0.0
    %1110 = vmatprep.subr.mxu0 0.0
    %1111 = vmatpush1.msra.mxu0 0.0
    %1112 = vmatprep.subr.mxu0 0.0
    %1113 = vmatpush1.msra.mxu0 0.0
    %1114 = vmatprep.subr.mxu0 0.0
    %1115 = vmatpush1.msra.mxu0 0.0
    %1116 = vmatprep.subr.mxu0 0.0
    %1117 = vmatpush1.msra.mxu0 0.0
    %1118 = vmatprep.subr.mxu0 0.0
    %1119 = vmatpush1.msra.mxu0 0.0
    %1120 = vmatprep.mubr.f32.mxu0 0.0
    %1121 = vmatmul.mubr.f32.gmra.mrb[0].mxu0 %v1054
    %v1122 = vpop.f32.mrb[0].mxu0
    %v1123 = vadd.f32 %v695, %v1122
    %v1124 = vpop.f32.mrb[0].mxu0
    %1125 = vdwg.mxu0
    %v1126 = vadd.f32 %v1048, %v1123
    %v1127 = vxor.u32 %v1126, 2147483648
    %v1128 = vmul.f32 %v1127, 1.442695
    %v1129 = vpow.pop %v1128
    %v1130 = vadd.f32 %v1129, 1.0
    %v1131 = vrcp.pop %v1130
    %v1132 = vmul.f32 1.0, %v1131
    %1134 = vrot.lane.b32.xlu0 %v1123, 64
    %v1135 = vpop.permute.xlu0 %1134
    %v1137 = vmul.f32 %v1132, %v1135
    %1139 = vrot.lane.b32.xlu0 %v1137, 64
    %v1140 = vpop.permute.xlu0 %1139
    %v1142 = vadd.f32 %v1048, %v1140
    %v1143 = vtanh.pop %v1142
    %v1144 = vsub.f32 1.0, %v1132
    %1146 = vrot.lane.b32.xlu0 %v1143, 96
    %v1147 = vpop.permute.xlu0 %1146
    %v1149 = vmul.f32 %v1144, %v1147
    %v1150 = vmul.f32 %v1132, %v795
    %v1151 = vadd.f32 %v1149, %v1150
    %v1152 = vrot.slane %v411, 4
    %v1153 = vsel %vm617, %v1152, 0
    %1155 = vmatprep.subr.mxu0 0.0
    %1156 = vmatpush1.msra.mxu0 %v601
    %1157 = vmatprep.subr.mxu0 0.0
    %1158 = vmatpush1.msra.mxu0 %v602
    %1159 = vmatprep.subr.mxu0 0.0
    %1160 = vmatpush1.msra.mxu0 %v603
    %1161 = vmatprep.subr.mxu0 0.0
    %1162 = vmatpush1.msra.mxu0 %v604
    %1163 = vmatprep.subr.mxu0 0.0
    %1164 = vmatpush1.msra.mxu0 0.0
    %1165 = vmatprep.subr.mxu0 0.0
    %1166 = vmatpush1.msra.mxu0 0.0
    %1167 = vmatprep.subr.mxu0 0.0
    %1168 = vmatpush1.msra.mxu0 0.0
    %1169 = vmatprep.subr.mxu0 0.0
    %1170 = vmatpush1.msra.mxu0 0.0
    %1171 = vmatprep.subr.mxu0 0.0
    %1172 = vmatpush1.msra.mxu0 0.0
    %1173 = vmatprep.subr.mxu0 0.0
    %1174 = vmatpush1.msra.mxu0 0.0
    %1175 = vmatprep.subr.mxu0 0.0
    %1176 = vmatpush1.msra.mxu0 0.0
    %1177 = vmatprep.subr.mxu0 0.0
    %1178 = vmatpush1.msra.mxu0 0.0
    %1179 = vmatprep.subr.mxu0 0.0
    %1180 = vmatpush1.msra.mxu0 0.0
    %1181 = vmatprep.subr.mxu0 0.0
    %1182 = vmatpush1.msra.mxu0 0.0
    %1183 = vmatprep.subr.mxu0 0.0
    %1184 = vmatpush1.msra.mxu0 0.0
    %1185 = vmatprep.subr.mxu0 0.0
    %1186 = vmatpush1.msra.mxu0 0.0
    %1187 = vmatprep.subr.mxu0 0.0
    %1188 = vmatpush1.msra.mxu0 0.0
    %1189 = vmatprep.subr.mxu0 0.0
    %1190 = vmatpush1.msra.mxu0 0.0
    %1191 = vmatprep.subr.mxu0 0.0
    %1192 = vmatpush1.msra.mxu0 0.0
    %1193 = vmatprep.subr.mxu0 0.0
    %1194 = vmatpush1.msra.mxu0 0.0
    %1195 = vmatprep.subr.mxu0 0.0
    %1196 = vmatpush1.msra.mxu0 0.0
    %1197 = vmatprep.subr.mxu0 0.0
    %1198 = vmatpush1.msra.mxu0 0.0
    %1199 = vmatprep.subr.mxu0 0.0
    %1200 = vmatpush1.msra.mxu0 0.0
    %1201 = vmatprep.subr.mxu0 0.0
    %1202 = vmatpush1.msra.mxu0 0.0
    %1203 = vmatprep.subr.mxu0 0.0
    %1204 = vmatpush1.msra.mxu0 0.0
    %1205 = vmatprep.subr.mxu0 0.0
    %1206 = vmatpush1.msra.mxu0 0.0
    %1207 = vmatprep.subr.mxu0 0.0
    %1208 = vmatpush1.msra.mxu0 0.0
    %1209 = vmatprep.subr.mxu0 0.0
    %1210 = vmatpush1.msra.mxu0 0.0
    %1211 = vmatprep.subr.mxu0 0.0
    %1212 = vmatpush1.msra.mxu0 0.0
    %1213 = vmatprep.subr.mxu0 0.0
    %1214 = vmatpush1.msra.mxu0 0.0
    %1215 = vmatprep.subr.mxu0 0.0
    %1216 = vmatpush1.msra.mxu0 0.0
    %1217 = vmatprep.subr.mxu0 0.0
    %1218 = vmatpush1.msra.mxu0 0.0
    %1219 = vmatprep.mubr.f32.mxu0 0.0
    %1220 = vmatmul.mubr.f32.gmra.mrb[0].mxu0 %v1153
    %v1221 = vpop.f32.mrb[0].mxu0
    %v1222 = vadd.f32 %v800, %v1221
    %v1223 = vpop.f32.mrb[0].mxu0
    %1224 = vdwg.mxu0
    %1226 = vrot.lane.b32.xlu0 %v977, 96
    %v1227 = vpop.permute.xlu0 %1226
    %v1228 = vsel %vm617, %v1227, 0
    %1230 = vmatprep.subr.mxu0 0.0
    %1231 = vmatpush1.msra.mxu0 %v605
    %1232 = vmatprep.subr.mxu0 0.0
    %1233 = vmatpush1.msra.mxu0 %v606
    %1234 = vmatprep.subr.mxu0 0.0
    %1235 = vmatpush1.msra.mxu0 %v607
    %1236 = vmatprep.subr.mxu0 0.0
    %1237 = vmatpush1.msra.mxu0 %v608
    %1238 = vmatprep.subr.mxu0 0.0
    %1239 = vmatpush1.msra.mxu0 0.0
    %1240 = vmatprep.subr.mxu0 0.0
    %1241 = vmatpush1.msra.mxu0 0.0
    %1242 = vmatprep.subr.mxu0 0.0
    %1243 = vmatpush1.msra.mxu0 0.0
    %1244 = vmatprep.subr.mxu0 0.0
    %1245 = vmatpush1.msra.mxu0 0.0
    %1246 = vmatprep.subr.mxu0 0.0
    %1247 = vmatpush1.msra.mxu0 0.0
    %1248 = vmatprep.subr.mxu0 0.0
    %1249 = vmatpush1.msra.mxu0 0.0
    %1250 = vmatprep.subr.mxu0 0.0
    %1251 = vmatpush1.msra.mxu0 0.0
    %1252 = vmatprep.subr.mxu0 0.0
    %1253 = vmatpush1.msra.mxu0 0.0
    %1254 = vmatprep.subr.mxu0 0.0
    %1255 = vmatpush1.msra.mxu0 0.0
    %1256 = vmatprep.subr.mxu0 0.0
    %1257 = vmatpush1.msra.mxu0 0.0
    %1258 = vmatprep.subr.mxu0 0.0
    %1259 = vmatpush1.msra.mxu0 0.0
    %1260 = vmatprep.subr.mxu0 0.0
    %1261 = vmatpush1.msra.mxu0 0.0
    %1262 = vmatprep.subr.mxu0 0.0
    %1263 = vmatpush1.msra.mxu0 0.0
    %1264 = vmatprep.subr.mxu0 0.0
    %1265 = vmatpush1.msra.mxu0 0.0
    %1266 = vmatprep.subr.mxu0 0.0
    %1267 = vmatpush1.msra.mxu0 0.0
    %1268 = vmatprep.subr.mxu0 0.0
    %1269 = vmatpush1.msra.mxu0 0.0
    %1270 = vmatprep.subr.mxu0 0.0
    %1271 = vmatpush1.msra.mxu0 0.0
    %1272 = vmatprep.subr.mxu0 0.0
    %1273 = vmatpush1.msra.mxu0 0.0
    %1274 = vmatprep.subr.mxu0 0.0
    %1275 = vmatpush1.msra.mxu0 0.0
    %1276 = vmatprep.subr.mxu0 0.0
    %1277 = vmatpush1.msra.mxu0 0.0
    %1278 = vmatprep.subr.mxu0 0.0
    %1279 = vmatpush1.msra.mxu0 0.0
    %1280 = vmatprep.subr.mxu0 0.0
    %1281 = vmatpush1.msra.mxu0 0.0
    %1282 = vmatprep.subr.mxu0 0.0
    %1283 = vmatpush1.msra.mxu0 0.0
    %1284 = vmatprep.subr.mxu0 0.0
    %1285 = vmatpush1.msra.mxu0 0.0
    %1286 = vmatprep.subr.mxu0 0.0
    %1287 = vmatpush1.msra.mxu0 0.0
    %1288 = vmatprep.subr.mxu0 0.0
    %1289 = vmatpush1.msra.mxu0 0.0
    %1290 = vmatprep.subr.mxu0 0.0
    %1291 = vmatpush1.msra.mxu0 0.0
    %1292 = vmatprep.subr.mxu0 0.0
    %1293 = vmatpush1.msra.mxu0 0.0
    %1294 = vmatprep.mubr.f32.mxu0 0.0
    %1295 = vmatmul.mubr.f32.gmra.mrb[0].mxu0 %v1228
    %v1296 = vpop.f32.mrb[0].mxu0
    %v1297 = vadd.f32 %v880, %v1296
    %v1298 = vpop.f32.mrb[0].mxu0
    %1299 = vdwg.mxu0
    %v1300 = vadd.f32 %v1222, %v1297
    %v1301 = vxor.u32 %v1300, 2147483648
    %v1302 = vmul.f32 %v1301, 1.442695
    %v1303 = vpow.pop %v1302
    %v1304 = vadd.f32 %v1303, 1.0
    %v1305 = vrcp.pop %v1304
    %v1306 = vmul.f32 1.0, %v1305
    %1308 = vrot.lane.b32.xlu0 %v1297, 64
    %v1309 = vpop.permute.xlu0 %1308
    %v1311 = vmul.f32 %v1306, %v1309
    %1313 = vrot.lane.b32.xlu0 %v1311, 64
    %v1314 = vpop.permute.xlu0 %1313
    %v1316 = vadd.f32 %v1222, %v1314
    %v1317 = vtanh.pop %v1316
    %v1318 = vsub.f32 1.0, %v1306
    %1320 = vrot.lane.b32.xlu0 %v1317, 96
    %v1321 = vpop.permute.xlu0 %1320
    %v1323 = vmul.f32 %v1318, %v1321
    %v1324 = vmul.f32 %v1306, %v977
    %v1325 = vadd.f32 %v1323, %v1324
    %v1326 = vrot.slane %v406, 4
    %v1327 = vsel %vm617, %v1326, 0
    %1329 = vmatprep.subr.mxu0 0.0
    %1330 = vmatpush1.msra.mxu0 %v591
    %1331 = vmatprep.subr.mxu0 0.0
    %1332 = vmatpush1.msra.mxu0 %v592
    %1333 = vmatprep.subr.mxu0 0.0
    %1334 = vmatpush1.msra.mxu0 %v593
    %1335 = vmatprep.subr.mxu0 0.0
    %1336 = vmatpush1.msra.mxu0 %v594
    %1337 = vmatprep.subr.mxu0 0.0
    %1338 = vmatpush1.msra.mxu0 0.0
    %1339 = vmatprep.subr.mxu0 0.0
    %1340 = vmatpush1.msra.mxu0 0.0
    %1341 = vmatprep.subr.mxu0 0.0
    %1342 = vmatpush1.msra.mxu0 0.0
    %1343 = vmatprep.subr.mxu0 0.0
    %1344 = vmatpush1.msra.mxu0 0.0
    %1345 = vmatprep.subr.mxu0 0.0
    %1346 = vmatpush1.msra.mxu0 0.0
    %1347 = vmatprep.subr.mxu0 0.0
    %1348 = vmatpush1.msra.mxu0 0.0
    %1349 = vmatprep.subr.mxu0 0.0
    %1350 = vmatpush1.msra.mxu0 0.0
    %1351 = vmatprep.subr.mxu0 0.0
    %1352 = vmatpush1.msra.mxu0 0.0
    %1353 = vmatprep.subr.mxu0 0.0
    %1354 = vmatpush1.msra.mxu0 0.0
    %1355 = vmatprep.subr.mxu0 0.0
    %1356 = vmatpush1.msra.mxu0 0.0
    %1357 = vmatprep.subr.mxu0 0.0
    %1358 = vmatpush1.msra.mxu0 0.0
    %1359 = vmatprep.subr.mxu0 0.0
    %1360 = vmatpush1.msra.mxu0 0.0
    %1361 = vmatprep.subr.mxu0 0.0
    %1362 = vmatpush1.msra.mxu0 0.0
    %1363 = vmatprep.subr.mxu0 0.0
    %1364 = vmatpush1.msra.mxu0 0.0
    %1365 = vmatprep.subr.mxu0 0.0
    %1366 = vmatpush1.msra.mxu0 0.0
    %1367 = vmatprep.subr.mxu0 0.0
    %1368 = vmatpush1.msra.mxu0 0.0
    %1369 = vmatprep.subr.mxu0 0.0
    %1370 = vmatpush1.msra.mxu0 0.0
    %1371 = vmatprep.subr.mxu0 0.0
    %1372 = vmatpush1.msra.mxu0 0.0
    %1373 = vmatprep.subr.mxu0 0.0
    %1374 = vmatpush1.msra.mxu0 0.0
    %1375 = vmatprep.subr.mxu0 0.0
    %1376 = vmatpush1.msra.mxu0 0.0
    %1377 = vmatprep.subr.mxu0 0.0
    %1378 = vmatpush1.msra.mxu0 0.0
    %1379 = vmatprep.subr.mxu0 0.0
    %1380 = vmatpush1.msra.mxu0 0.0
    %1381 = vmatprep.subr.mxu0 0.0
    %1382 = vmatpush1.msra.mxu0 0.0
    %1383 = vmatprep.subr.mxu0 0.0
    %1384 = vmatpush1.msra.mxu0 0.0
    %1385 = vmatprep.subr.mxu0 0.0
    %1386 = vmatpush1.msra.mxu0 0.0
    %1387 = vmatprep.subr.mxu0 0.0
    %1388 = vmatpush1.msra.mxu0 0.0
    %1389 = vmatprep.subr.mxu0 0.0
    %1390 = vmatpush1.msra.mxu0 0.0
    %1391 = vmatprep.subr.mxu0 0.0
    %1392 = vmatpush1.msra.mxu0 0.0
    %1393 = vmatprep.mubr.f32.mxu0 0.0
    %1394 = vmatmul.mubr.f32.gmra.mrb[0].mxu0 %v1327
    %v1395 = vpop.f32.mrb[0].mxu0
    %v1396 = vadd.f32 %v615, %v1395
    %v1397 = vpop.f32.mrb[0].mxu0
    %1398 = vdwg.mxu0
    %1400 = vrot.lane.b32.xlu0 %v1151, 96
    %v1401 = vpop.permute.xlu0 %1400
    %v1402 = vsel %vm617, %v1401, 0
    %1404 = vmatprep.subr.mxu0 0.0
    %1405 = vmatpush1.msra.mxu0 %v595
    %1406 = vmatprep.subr.mxu0 0.0
    %1407 = vmatpush1.msra.mxu0 %v596
    %1408 = vmatprep.subr.mxu0 0.0
    %1409 = vmatpush1.msra.mxu0 %v597
    %1410 = vmatprep.subr.mxu0 0.0
    %1411 = vmatpush1.msra.mxu0 %v598
    %1412 = vmatprep.subr.mxu0 0.0
    %1413 = vmatpush1.msra.mxu0 0.0
    %1414 = vmatprep.subr.mxu0 0.0
    %1415 = vmatpush1.msra.mxu0 0.0
    %1416 = vmatprep.subr.mxu0 0.0
    %1417 = vmatpush1.msra.mxu0 0.0
    %1418 = vmatprep.subr.mxu0 0.0
    %1419 = vmatpush1.msra.mxu0 0.0
    %1420 = vmatprep.subr.mxu0 0.0
    %1421 = vmatpush1.msra.mxu0 0.0
    %1422 = vmatprep.subr.mxu0 0.0
    %1423 = vmatpush1.msra.mxu0 0.0
    %1424 = vmatprep.subr.mxu0 0.0
    %1425 = vmatpush1.msra.mxu0 0.0
    %1426 = vmatprep.subr.mxu0 0.0
    %1427 = vmatpush1.msra.mxu0 0.0
    %1428 = vmatprep.subr.mxu0 0.0
    %1429 = vmatpush1.msra.mxu0 0.0
    %1430 = vmatprep.subr.mxu0 0.0
    %1431 = vmatpush1.msra.mxu0 0.0
    %1432 = vmatprep.subr.mxu0 0.0
    %1433 = vmatpush1.msra.mxu0 0.0
    %1434 = vmatprep.subr.mxu0 0.0
    %1435 = vmatpush1.msra.mxu0 0.0
    %1436 = vmatprep.subr.mxu0 0.0
    %1437 = vmatpush1.msra.mxu0 0.0
    %1438 = vmatprep.subr.mxu0 0.0
    %1439 = vmatpush1.msra.mxu0 0.0
    %1440 = vmatprep.subr.mxu0 0.0
    %1441 = vmatpush1.msra.mxu0 0.0
    %1442 = vmatprep.subr.mxu0 0.0
    %1443 = vmatpush1.msra.mxu0 0.0
    %1444 = vmatprep.subr.mxu0 0.0
    %1445 = vmatpush1.msra.mxu0 0.0
    %1446 = vmatprep.subr.mxu0 0.0
    %1447 = vmatpush1.msra.mxu0 0.0
    %1448 = vmatprep.subr.mxu0 0.0
    %1449 = vmatpush1.msra.mxu0 0.0
    %1450 = vmatprep.subr.mxu0 0.0
    %1451 = vmatpush1.msra.mxu0 0.0
    %1452 = vmatprep.subr.mxu0 0.0
    %1453 = vmatpush1.msra.mxu0 0.0
    %1454 = vmatprep.subr.mxu0 0.0
    %1455 = vmatpush1.msra.mxu0 0.0
    %1456 = vmatprep.subr.mxu0 0.0
    %1457 = vmatpush1.msra.mxu0 0.0
    %1458 = vmatprep.subr.mxu0 0.0
    %1459 = vmatpush1.msra.mxu0 0.0
    %1460 = vmatprep.subr.mxu0 0.0
    %1461 = vmatpush1.msra.mxu0 0.0
    %1462 = vmatprep.subr.mxu0 0.0
    %1463 = vmatpush1.msra.mxu0 0.0
    %1464 = vmatprep.subr.mxu0 0.0
    %1465 = vmatpush1.msra.mxu0 0.0
    %1466 = vmatprep.subr.mxu0 0.0
    %1467 = vmatpush1.msra.mxu0 0.0
    %1468 = vmatprep.mubr.f32.mxu0 0.0
    %1469 = vmatmul.mubr.f32.gmra.mrb[0].mxu0 %v1402
    %v1470 = vpop.f32.mrb[0].mxu0
    %v1471 = vadd.f32 %v695, %v1470
    %v1472 = vpop.f32.mrb[0].mxu0
    %1473 = vdwg.mxu0
    %v1474 = vadd.f32 %v1396, %v1471
    %v1475 = vxor.u32 %v1474, 2147483648
    %v1476 = vmul.f32 %v1475, 1.442695
    %v1477 = vpow.pop %v1476
    %v1478 = vadd.f32 %v1477, 1.0
    %v1479 = vrcp.pop %v1478
    %v1480 = vmul.f32 1.0, %v1479
    %1482 = vrot.lane.b32.xlu0 %v1471, 64
    %v1483 = vpop.permute.xlu0 %1482
    %v1485 = vmul.f32 %v1480, %v1483
    %1487 = vrot.lane.b32.xlu0 %v1485, 64
    %v1488 = vpop.permute.xlu0 %1487
    %v1490 = vadd.f32 %v1396, %v1488
    %v1491 = vtanh.pop %v1490
    %v1492 = vsub.f32 1.0, %v1480
    %1494 = vrot.lane.b32.xlu0 %v1491, 96
    %v1495 = vpop.permute.xlu0 %1494
    %v1497 = vmul.f32 %v1492, %v1495
    %v1498 = vmul.f32 %v1480, %v1151
    %v1499 = vadd.f32 %v1497, %v1498
    %v1500 = vrot.slane %v411, 2
    %v1501 = vsel %vm617, %v1500, 0
    %1503 = vmatprep.subr.mxu0 0.0
    %1504 = vmatpush1.msra.mxu0 %v601
    %1505 = vmatprep.subr.mxu0 0.0
    %1506 = vmatpush1.msra.mxu0 %v602
    %1507 = vmatprep.subr.mxu0 0.0
    %1508 = vmatpush1.msra.mxu0 %v603
    %1509 = vmatprep.subr.mxu0 0.0
    %1510 = vmatpush1.msra.mxu0 %v604
    %1511 = vmatprep.subr.mxu0 0.0
    %1512 = vmatpush1.msra.mxu0 0.0
    %1513 = vmatprep.subr.mxu0 0.0
    %1514 = vmatpush1.msra.mxu0 0.0
    %1515 = vmatprep.subr.mxu0 0.0
    %1516 = vmatpush1.msra.mxu0 0.0
    %1517 = vmatprep.subr.mxu0 0.0
    %1518 = vmatpush1.msra.mxu0 0.0
    %1519 = vmatprep.subr.mxu0 0.0
    %1520 = vmatpush1.msra.mxu0 0.0
    %1521 = vmatprep.subr.mxu0 0.0
    %1522 = vmatpush1.msra.mxu0 0.0
    %1523 = vmatprep.subr.mxu0 0.0
    %1524 = vmatpush1.msra.mxu0 0.0
    %1525 = vmatprep.subr.mxu0 0.0
    %1526 = vmatpush1.msra.mxu0 0.0
    %1527 = vmatprep.subr.mxu0 0.0
    %1528 = vmatpush1.msra.mxu0 0.0
    %1529 = vmatprep.subr.mxu0 0.0
    %1530 = vmatpush1.msra.mxu0 0.0
    %1531 = vmatprep.subr.mxu0 0.0
    %1532 = vmatpush1.msra.mxu0 0.0
    %1533 = vmatprep.subr.mxu0 0.0
    %1534 = vmatpush1.msra.mxu0 0.0
    %1535 = vmatprep.subr.mxu0 0.0
    %1536 = vmatpush1.msra.mxu0 0.0
    %1537 = vmatprep.subr.mxu0 0.0
    %1538 = vmatpush1.msra.mxu0 0.0
    %1539 = vmatprep.subr.mxu0 0.0
    %1540 = vmatpush1.msra.mxu0 0.0
    %1541 = vmatprep.subr.mxu0 0.0
    %1542 = vmatpush1.msra.mxu0 0.0
    %1543 = vmatprep.subr.mxu0 0.0
    %1544 = vmatpush1.msra.mxu0 0.0
    %1545 = vmatprep.subr.mxu0 0.0
    %1546 = vmatpush1.msra.mxu0 0.0
    %1547 = vmatprep.subr.mxu0 0.0
    %1548 = vmatpush1.msra.mxu0 0.0
    %1549 = vmatprep.subr.mxu0 0.0
    %1550 = vmatpush1.msra.mxu0 0.0
    %1551 = vmatprep.subr.mxu0 0.0
    %1552 = vmatpush1.msra.mxu0 0.0
    %1553 = vmatprep.subr.mxu0 0.0
    %1554 = vmatpush1.msra.mxu0 0.0
    %1555 = vmatprep.subr.mxu0 0.0
    %1556 = vmatpush1.msra.mxu0 0.0
    %1557 = vmatprep.subr.mxu0 0.0
    %1558 = vmatpush1.msra.mxu0 0.0
    %1559 = vmatprep.subr.mxu0 0.0
    %1560 = vmatpush1.msra.mxu0 0.0
    %1561 = vmatprep.subr.mxu0 0.0
    %1562 = vmatpush1.msra.mxu0 0.0
    %1563 = vmatprep.subr.mxu0 0.0
    %1564 = vmatpush1.msra.mxu0 0.0
    %1565 = vmatprep.subr.mxu0 0.0
    %1566 = vmatpush1.msra.mxu0 0.0
    %1567 = vmatprep.mubr.f32.mxu0 0.0
    %1568 = vmatmul.mubr.f32.gmra.mrb[0].mxu0 %v1501
    %v1569 = vpop.f32.mrb[0].mxu0
    %v1570 = vadd.f32 %v800, %v1569
    %v1571 = vpop.f32.mrb[0].mxu0
    %1572 = vdwg.mxu0
    %1574 = vrot.lane.b32.xlu0 %v1325, 96
    %v1575 = vpop.permute.xlu0 %1574
    %v1576 = vsel %vm617, %v1575, 0
    %1578 = vmatprep.subr.mxu0 0.0
    %1579 = vmatpush1.msra.mxu0 %v605
    %1580 = vmatprep.subr.mxu0 0.0
    %1581 = vmatpush1.msra.mxu0 %v606
    %1582 = vmatprep.subr.mxu0 0.0
    %1583 = vmatpush1.msra.mxu0 %v607
    %1584 = vmatprep.subr.mxu0 0.0
    %1585 = vmatpush1.msra.mxu0 %v608
    %1586 = vmatprep.subr.mxu0 0.0
    %1587 = vmatpush1.msra.mxu0 0.0
    %1588 = vmatprep.subr.mxu0 0.0
    %1589 = vmatpush1.msra.mxu0 0.0
    %1590 = vmatprep.subr.mxu0 0.0
    %1591 = vmatpush1.msra.mxu0 0.0
    %1592 = vmatprep.subr.mxu0 0.0
    %1593 = vmatpush1.msra.mxu0 0.0
    %1594 = vmatprep.subr.mxu0 0.0
    %1595 = vmatpush1.msra.mxu0 0.0
    %1596 = vmatprep.subr.mxu0 0.0
    %1597 = vmatpush1.msra.mxu0 0.0
    %1598 = vmatprep.subr.mxu0 0.0
    %1599 = vmatpush1.msra.mxu0 0.0
    %1600 = vmatprep.subr.mxu0 0.0
    %1601 = vmatpush1.msra.mxu0 0.0
    %1602 = vmatprep.subr.mxu0 0.0
    %1603 = vmatpush1.msra.mxu0 0.0
    %1604 = vmatprep.subr.mxu0 0.0
    %1605 = vmatpush1.msra.mxu0 0.0
    %1606 = vmatprep.subr.mxu0 0.0
    %1607 = vmatpush1.msra.mxu0 0.0
    %1608 = vmatprep.subr.mxu0 0.0
    %1609 = vmatpush1.msra.mxu0 0.0
    %1610 = vmatprep.subr.mxu0 0.0
    %1611 = vmatpush1.msra.mxu0 0.0
    %1612 = vmatprep.subr.mxu0 0.0
    %1613 = vmatpush1.msra.mxu0 0.0
    %1614 = vmatprep.subr.mxu0 0.0
    %1615 = vmatpush1.msra.mxu0 0.0
    %1616 = vmatprep.subr.mxu0 0.0
    %1617 = vmatpush1.msra.mxu0 0.0
    %1618 = vmatprep.subr.mxu0 0.0
    %1619 = vmatpush1.msra.mxu0 0.0
    %1620 = vmatprep.subr.mxu0 0.0
    %1621 = vmatpush1.msra.mxu0 0.0
    %1622 = vmatprep.subr.mxu0 0.0
    %1623 = vmatpush1.msra.mxu0 0.0
    %1624 = vmatprep.subr.mxu0 0.0
    %1625 = vmatpush1.msra.mxu0 0.0
    %1626 = vmatprep.subr.mxu0 0.0
    %1627 = vmatpush1.msra.mxu0 0.0
    %1628 = vmatprep.subr.mxu0 0.0
    %1629 = vmatpush1.msra.mxu0 0.0
    %1630 = vmatprep.subr.mxu0 0.0
    %1631 = vmatpush1.msra.mxu0 0.0
    %1632 = vmatprep.subr.mxu0 0.0
    %1633 = vmatpush1.msra.mxu0 0.0
    %1634 = vmatprep.subr.mxu0 0.0
    %1635 = vmatpush1.msra.mxu0 0.0
    %1636 = vmatprep.subr.mxu0 0.0
    %1637 = vmatpush1.msra.mxu0 0.0
    %1638 = vmatprep.subr.mxu0 0.0
    %1639 = vmatpush1.msra.mxu0 0.0
    %1640 = vmatprep.subr.mxu0 0.0
    %1641 = vmatpush1.msra.mxu0 0.0
    %1642 = vmatprep.mubr.f32.mxu0 0.0
    %1643 = vmatmul.mubr.f32.gmra.mrb[0].mxu0 %v1576
    %v1644 = vpop.f32.mrb[0].mxu0
    %v1645 = vadd.f32 %v880, %v1644
    %v1646 = vpop.f32.mrb[0].mxu0
    %1647 = vdwg.mxu0
    %v1648 = vadd.f32 %v1570, %v1645
    %v1649 = vxor.u32 %v1648, 2147483648
    %v1650 = vmul.f32 %v1649, 1.442695
    %v1651 = vpow.pop %v1650
    %v1652 = vadd.f32 %v1651, 1.0
    %v1653 = vrcp.pop %v1652
    %v1654 = vmul.f32 1.0, %v1653
    %1656 = vrot.lane.b32.xlu0 %v1645, 64
    %v1657 = vpop.permute.xlu0 %1656
    %v1659 = vmul.f32 %v1654, %v1657
    %1661 = vrot.lane.b32.xlu0 %v1659, 64
    %v1662 = vpop.permute.xlu0 %1661
    %v1664 = vadd.f32 %v1570, %v1662
    %v1665 = vtanh.pop %v1664
    %v1666 = vsub.f32 1.0, %v1654
    %1668 = vrot.lane.b32.xlu0 %v1665, 96
    %v1669 = vpop.permute.xlu0 %1668
    %v1671 = vmul.f32 %v1666, %v1669
    %v1672 = vmul.f32 %v1654, %v1325
    %v1673 = vadd.f32 %v1671, %v1672
    %v1674 = vrot.slane %v406, 6
    %v1675 = vsel %vm617, %v1674, 0
    %1677 = vmatprep.subr.mxu0 0.0
    %1678 = vmatpush1.msra.mxu0 %v591
    %1679 = vmatprep.subr.mxu0 0.0
    %1680 = vmatpush1.msra.mxu0 %v592
    %1681 = vmatprep.subr.mxu0 0.0
    %1682 = vmatpush1.msra.mxu0 %v593
    %1683 = vmatprep.subr.mxu0 0.0
    %1684 = vmatpush1.msra.mxu0 %v594
    %1685 = vmatprep.subr.mxu0 0.0
    %1686 = vmatpush1.msra.mxu0 0.0
    %1687 = vmatprep.subr.mxu0 0.0
    %1688 = vmatpush1.msra.mxu0 0.0
    %1689 = vmatprep.subr.mxu0 0.0
    %1690 = vmatpush1.msra.mxu0 0.0
    %1691 = vmatprep.subr.mxu0 0.0
    %1692 = vmatpush1.msra.mxu0 0.0
    %1693 = vmatprep.subr.mxu0 0.0
    %1694 = vmatpush1.msra.mxu0 0.0
    %1695 = vmatprep.subr.mxu0 0.0
    %1696 = vmatpush1.msra.mxu0 0.0
    %1697 = vmatprep.subr.mxu0 0.0
    %1698 = vmatpush1.msra.mxu0 0.0
    %1699 = vmatprep.subr.mxu0 0.0
    %1700 = vmatpush1.msra.mxu0 0.0
    %1701 = vmatprep.subr.mxu0 0.0
    %1702 = vmatpush1.msra.mxu0 0.0
    %1703 = vmatprep.subr.mxu0 0.0
    %1704 = vmatpush1.msra.mxu0 0.0
    %1705 = vmatprep.subr.mxu0 0.0
    %1706 = vmatpush1.msra.mxu0 0.0
    %1707 = vmatprep.subr.mxu0 0.0
    %1708 = vmatpush1.msra.mxu0 0.0
    %1709 = vmatprep.subr.mxu0 0.0
    %1710 = vmatpush1.msra.mxu0 0.0
    %1711 = vmatprep.subr.mxu0 0.0
    %1712 = vmatpush1.msra.mxu0 0.0
    %1713 = vmatprep.subr.mxu0 0.0
    %1714 = vmatpush1.msra.mxu0 0.0
    %1715 = vmatprep.subr.mxu0 0.0
    %1716 = vmatpush1.msra.mxu0 0.0
    %1717 = vmatprep.subr.mxu0 0.0
    %1718 = vmatpush1.msra.mxu0 0.0
    %1719 = vmatprep.subr.mxu0 0.0
    %1720 = vmatpush1.msra.mxu0 0.0
    %1721 = vmatprep.subr.mxu0 0.0
    %1722 = vmatpush1.msra.mxu0 0.0
    %1723 = vmatprep.subr.mxu0 0.0
    %1724 = vmatpush1.msra.mxu0 0.0
    %1725 = vmatprep.subr.mxu0 0.0
    %1726 = vmatpush1.msra.mxu0 0.0
    %1727 = vmatprep.subr.mxu0 0.0
    %1728 = vmatpush1.msra.mxu0 0.0
    %1729 = vmatprep.subr.mxu0 0.0
    %1730 = vmatpush1.msra.mxu0 0.0
    %1731 = vmatprep.subr.mxu0 0.0
    %1732 = vmatpush1.msra.mxu0 0.0
    %1733 = vmatprep.subr.mxu0 0.0
    %1734 = vmatpush1.msra.mxu0 0.0
    %1735 = vmatprep.subr.mxu0 0.0
    %1736 = vmatpush1.msra.mxu0 0.0
    %1737 = vmatprep.subr.mxu0 0.0
    %1738 = vmatpush1.msra.mxu0 0.0
    %1739 = vmatprep.subr.mxu0 0.0
    %1740 = vmatpush1.msra.mxu0 0.0
    %1741 = vmatprep.mubr.f32.mxu0 0.0
    %1742 = vmatmul.mubr.f32.gmra.mrb[0].mxu0 %v1675
    %v1743 = vpop.f32.mrb[0].mxu0
    %v1744 = vadd.f32 %v615, %v1743
    %v1745 = vpop.f32.mrb[0].mxu0
    %1746 = vdwg.mxu0
    %1748 = vrot.lane.b32.xlu0 %v1499, 96
    %v1749 = vpop.permute.xlu0 %1748
    %v1750 = vsel %vm617, %v1749, 0
    %1752 = vmatprep.subr.mxu0 0.0
    %1753 = vmatpush1.msra.mxu0 %v595
    %1754 = vmatprep.subr.mxu0 0.0
    %1755 = vmatpush1.msra.mxu0 %v596
    %1756 = vmatprep.subr.mxu0 0.0
    %1757 = vmatpush1.msra.mxu0 %v597
    %1758 = vmatprep.subr.mxu0 0.0
    %1759 = vmatpush1.msra.mxu0 %v598
    %1760 = vmatprep.subr.mxu0 0.0
    %1761 = vmatpush1.msra.mxu0 0.0
    %1762 = vmatprep.subr.mxu0 0.0
    %1763 = vmatpush1.msra.mxu0 0.0
    %1764 = vmatprep.subr.mxu0 0.0
    %1765 = vmatpush1.msra.mxu0 0.0
    %1766 = vmatprep.subr.mxu0 0.0
    %1767 = vmatpush1.msra.mxu0 0.0
    %1768 = vmatprep.subr.mxu0 0.0
    %1769 = vmatpush1.msra.mxu0 0.0
    %1770 = vmatprep.subr.mxu0 0.0
    %1771 = vmatpush1.msra.mxu0 0.0
    %1772 = vmatprep.subr.mxu0 0.0
    %1773 = vmatpush1.msra.mxu0 0.0
    %1774 = vmatprep.subr.mxu0 0.0
    %1775 = vmatpush1.msra.mxu0 0.0
    %1776 = vmatprep.subr.mxu0 0.0
    %1777 = vmatpush1.msra.mxu0 0.0
    %1778 = vmatprep.subr.mxu0 0.0
    %1779 = vmatpush1.msra.mxu0 0.0
    %1780 = vmatprep.subr.mxu0 0.0
    %1781 = vmatpush1.msra.mxu0 0.0
    %1782 = vmatprep.subr.mxu0 0.0
    %1783 = vmatpush1.msra.mxu0 0.0
    %1784 = vmatprep.subr.mxu0 0.0
    %1785 = vmatpush1.msra.mxu0 0.0
    %1786 = vmatprep.subr.mxu0 0.0
    %1787 = vmatpush1.msra.mxu0 0.0
    %1788 = vmatprep.subr.mxu0 0.0
    %1789 = vmatpush1.msra.mxu0 0.0
    %1790 = vmatprep.subr.mxu0 0.0
    %1791 = vmatpush1.msra.mxu0 0.0
    %1792 = vmatprep.subr.mxu0 0.0
    %1793 = vmatpush1.msra.mxu0 0.0
    %1794 = vmatprep.subr.mxu0 0.0
    %1795 = vmatpush1.msra.mxu0 0.0
    %1796 = vmatprep.subr.mxu0 0.0
    %1797 = vmatpush1.msra.mxu0 0.0
    %1798 = vmatprep.subr.mxu0 0.0
    %1799 = vmatpush1.msra.mxu0 0.0
    %1800 = vmatprep.subr.mxu0 0.0
    %1801 = vmatpush1.msra.mxu0 0.0
    %1802 = vmatprep.subr.mxu0 0.0
    %1803 = vmatpush1.msra.mxu0 0.0
    %1804 = vmatprep.subr.mxu0 0.0
    %1805 = vmatpush1.msra.mxu0 0.0
    %1806 = vmatprep.subr.mxu0 0.0
    %1807 = vmatpush1.msra.mxu0 0.0
    %1808 = vmatprep.subr.mxu0 0.0
    %1809 = vmatpush1.msra.mxu0 0.0
    %1810 = vmatprep.subr.mxu0 0.0
    %1811 = vmatpush1.msra.mxu0 0.0
    %1812 = vmatprep.subr.mxu0 0.0
    %1813 = vmatpush1.msra.mxu0 0.0
    %1814 = vmatprep.subr.mxu0 0.0
    %1815 = vmatpush1.msra.mxu0 0.0
    %1816 = vmatprep.mubr.f32.mxu0 0.0
    %1817 = vmatmul.mubr.f32.gmra.mrb[0].mxu0 %v1750
    %v1818 = vpop.f32.mrb[0].mxu0
    %v1819 = vadd.f32 %v695, %v1818
    %v1820 = vpop.f32.mrb[0].mxu0
    %1821 = vdwg.mxu0
    %v1822 = vadd.f32 %v1744, %v1819
    %v1823 = vxor.u32 %v1822, 2147483648
    %v1824 = vmul.f32 %v1823, 1.442695
    %v1825 = vpow.pop %v1824
    %v1826 = vadd.f32 %v1825, 1.0
    %v1827 = vrcp.pop %v1826
    %v1828 = vmul.f32 1.0, %v1827
    %1830 = vrot.lane.b32.xlu0 %v1819, 64
    %v1831 = vpop.permute.xlu0 %1830
    %v1833 = vmul.f32 %v1828, %v1831
    %1835 = vrot.lane.b32.xlu0 %v1833, 64
    %v1836 = vpop.permute.xlu0 %1835
    %v1838 = vadd.f32 %v1744, %v1836
    %v1839 = vtanh.pop %v1838
    %v1840 = vsub.f32 1.0, %v1828
    %1842 = vrot.lane.b32.xlu0 %v1839, 96
    %v1843 = vpop.permute.xlu0 %1842
    %v1845 = vmul.f32 %v1840, %v1843
    %v1846 = vmul.f32 %v1828, %v1499
    %v1847 = vadd.f32 %v1845, %v1846
    %v1848 = vsel %vm617, %v411, 0
    %1850 = vmatprep.subr.mxu0 0.0
    %1851 = vmatpush1.msra.mxu0 %v601
    %1852 = vmatprep.subr.mxu0 0.0
    %1853 = vmatpush1.msra.mxu0 %v602
    %1854 = vmatprep.subr.mxu0 0.0
    %1855 = vmatpush1.msra.mxu0 %v603
    %1856 = vmatprep.subr.mxu0 0.0
    %1857 = vmatpush1.msra.mxu0 %v604
    %1858 = vmatprep.subr.mxu0 0.0
    %1859 = vmatpush1.msra.mxu0 0.0
    %1860 = vmatprep.subr.mxu0 0.0
    %1861 = vmatpush1.msra.mxu0 0.0
    %1862 = vmatprep.subr.mxu0 0.0
    %1863 = vmatpush1.msra.mxu0 0.0
    %1864 = vmatprep.subr.mxu0 0.0
    %1865 = vmatpush1.msra.mxu0 0.0
    %1866 = vmatprep.subr.mxu0 0.0
    %1867 = vmatpush1.msra.mxu0 0.0
    %1868 = vmatprep.subr.mxu0 0.0
    %1869 = vmatpush1.msra.mxu0 0.0
    %1870 = vmatprep.subr.mxu0 0.0
    %1871 = vmatpush1.msra.mxu0 0.0
    %1872 = vmatprep.subr.mxu0 0.0
    %1873 = vmatpush1.msra.mxu0 0.0
    %1874 = vmatprep.subr.mxu0 0.0
    %1875 = vmatpush1.msra.mxu0 0.0
    %1876 = vmatprep.subr.mxu0 0.0
    %1877 = vmatpush1.msra.mxu0 0.0
    %1878 = vmatprep.subr.mxu0 0.0
    %1879 = vmatpush1.msra.mxu0 0.0
    %1880 = vmatprep.subr.mxu0 0.0
    %1881 = vmatpush1.msra.mxu0 0.0
    %1882 = vmatprep.subr.mxu0 0.0
    %1883 = vmatpush1.msra.mxu0 0.0
    %1884 = vmatprep.subr.mxu0 0.0
    %1885 = vmatpush1.msra.mxu0 0.0
    %1886 = vmatprep.subr.mxu0 0.0
    %1887 = vmatpush1.msra.mxu0 0.0
    %1888 = vmatprep.subr.mxu0 0.0
    %1889 = vmatpush1.msra.mxu0 0.0
    %1890 = vmatprep.subr.mxu0 0.0
    %1891 = vmatpush1.msra.mxu0 0.0
    %1892 = vmatprep.subr.mxu0 0.0
    %1893 = vmatpush1.msra.mxu0 0.0
    %1894 = vmatprep.subr.mxu0 0.0
    %1895 = vmatpush1.msra.mxu0 0.0
    %1896 = vmatprep.subr.mxu0 0.0
    %1897 = vmatpush1.msra.mxu0 0.0
    %1898 = vmatprep.subr.mxu0 0.0
    %1899 = vmatpush1.msra.mxu0 0.0
    %1900 = vmatprep.subr.mxu0 0.0
    %1901 = vmatpush1.msra.mxu0 0.0
    %1902 = vmatprep.subr.mxu0 0.0
    %1903 = vmatpush1.msra.mxu0 0.0
    %1904 = vmatprep.subr.mxu0 0.0
    %1905 = vmatpush1.msra.mxu0 0.0
    %1906 = vmatprep.subr.mxu0 0.0
    %1907 = vmatpush1.msra.mxu0 0.0
    %1908 = vmatprep.subr.mxu0 0.0
    %1909 = vmatpush1.msra.mxu0 0.0
    %1910 = vmatprep.subr.mxu0 0.0
    %1911 = vmatpush1.msra.mxu0 0.0
    %1912 = vmatprep.subr.mxu0 0.0
    %1913 = vmatpush1.msra.mxu0 0.0
    %1914 = vmatprep.mubr.f32.mxu0 0.0
    %1915 = vmatmul.mubr.f32.gmra.mrb[0].mxu0 %v1848
    %v1916 = vpop.f32.mrb[0].mxu0
    %v1917 = vadd.f32 %v800, %v1916
    %v1918 = vpop.f32.mrb[0].mxu0
    %1919 = vdwg.mxu0
    %1921 = vrot.lane.b32.xlu0 %v1673, 96
    %v1922 = vpop.permute.xlu0 %1921
    %v1923 = vsel %vm617, %v1922, 0
    %1925 = vmatprep.subr.mxu0 0.0
    %1926 = vmatpush1.msra.mxu0 %v605
    %1927 = vmatprep.subr.mxu0 0.0
    %1928 = vmatpush1.msra.mxu0 %v606
    %1929 = vmatprep.subr.mxu0 0.0
    %1930 = vmatpush1.msra.mxu0 %v607
    %1931 = vmatprep.subr.mxu0 0.0
    %1932 = vmatpush1.msra.mxu0 %v608
    %1933 = vmatprep.subr.mxu0 0.0
    %1934 = vmatpush1.msra.mxu0 0.0
    %1935 = vmatprep.subr.mxu0 0.0
    %1936 = vmatpush1.msra.mxu0 0.0
    %1937 = vmatprep.subr.mxu0 0.0
    %1938 = vmatpush1.msra.mxu0 0.0
    %1939 = vmatprep.subr.mxu0 0.0
    %1940 = vmatpush1.msra.mxu0 0.0
    %1941 = vmatprep.subr.mxu0 0.0
    %1942 = vmatpush1.msra.mxu0 0.0
    %1943 = vmatprep.subr.mxu0 0.0
    %1944 = vmatpush1.msra.mxu0 0.0
    %1945 = vmatprep.subr.mxu0 0.0
    %1946 = vmatpush1.msra.mxu0 0.0
    %1947 = vmatprep.subr.mxu0 0.0
    %1948 = vmatpush1.msra.mxu0 0.0
    %1949 = vmatprep.subr.mxu0 0.0
    %1950 = vmatpush1.msra.mxu0 0.0
    %1951 = vmatprep.subr.mxu0 0.0
    %1952 = vmatpush1.msra.mxu0 0.0
    %1953 = vmatprep.subr.mxu0 0.0
    %1954 = vmatpush1.msra.mxu0 0.0
    %1955 = vmatprep.subr.mxu0 0.0
    %1956 = vmatpush1.msra.mxu0 0.0
    %1957 = vmatprep.subr.mxu0 0.0
    %1958 = vmatpush1.msra.mxu0 0.0
    %1959 = vmatprep.subr.mxu0 0.0
    %1960 = vmatpush1.msra.mxu0 0.0
    %1961 = vmatprep.subr.mxu0 0.0
    %1962 = vmatpush1.msra.mxu0 0.0
    %1963 = vmatprep.subr.mxu0 0.0
    %1964 = vmatpush1.msra.mxu0 0.0
    %1965 = vmatprep.subr.mxu0 0.0
    %1966 = vmatpush1.msra.mxu0 0.0
    %1967 = vmatprep.subr.mxu0 0.0
    %1968 = vmatpush1.msra.mxu0 0.0
    %1969 = vmatprep.subr.mxu0 0.0
    %1970 = vmatpush1.msra.mxu0 0.0
    %1971 = vmatprep.subr.mxu0 0.0
    %1972 = vmatpush1.msra.mxu0 0.0
    %1973 = vmatprep.subr.mxu0 0.0
    %1974 = vmatpush1.msra.mxu0 0.0
    %1975 = vmatprep.subr.mxu0 0.0
    %1976 = vmatpush1.msra.mxu0 0.0
    %1977 = vmatprep.subr.mxu0 0.0
    %1978 = vmatpush1.msra.mxu0 0.0
    %1979 = vmatprep.subr.mxu0 0.0
    %1980 = vmatpush1.msra.mxu0 0.0
    %1981 = vmatprep.subr.mxu0 0.0
    %1982 = vmatpush1.msra.mxu0 0.0
    %1983 = vmatprep.subr.mxu0 0.0
    %1984 = vmatpush1.msra.mxu0 0.0
    %1985 = vmatprep.subr.mxu0 0.0
    %1986 = vmatpush1.msra.mxu0 0.0
    %1987 = vmatprep.subr.mxu0 0.0
    %1988 = vmatpush1.msra.mxu0 0.0
    %1989 = vmatprep.mubr.f32.mxu0 0.0
    %1990 = vmatmul.mubr.f32.gmra.mrb[0].mxu0 %v1923
    %v1991 = vpop.f32.mrb[0].mxu0
    %v1992 = vadd.f32 %v880, %v1991
    %v1993 = vpop.f32.mrb[0].mxu0
    %1994 = vdwg.mxu0
    %v1995 = vadd.f32 %v1917, %v1992
    %v1996 = vxor.u32 %v1995, 2147483648
    %v1997 = vmul.f32 %v1996, 1.442695
    %v1998 = vpow.pop %v1997
    %v1999 = vadd.f32 %v1998, 1.0
    %v2000 = vrcp.pop %v1999
    %v2001 = vmul.f32 1.0, %v2000
    %2003 = vrot.lane.b32.xlu0 %v1992, 64
    %v2004 = vpop.permute.xlu0 %2003
    %v2006 = vmul.f32 %v2001, %v2004
    %2008 = vrot.lane.b32.xlu0 %v2006, 64
    %v2009 = vpop.permute.xlu0 %2008
    %v2011 = vadd.f32 %v1917, %v2009
    %v2012 = vtanh.pop %v2011
    %v2013 = vsub.f32 1.0, %v2001
    %2015 = vrot.lane.b32.xlu0 %v2012, 96
    %v2016 = vpop.permute.xlu0 %2015
    %v2018 = vmul.f32 %v2013, %v2016
    %v2019 = vmul.f32 %v2001, %v1673
    %v2020 = vadd.f32 %v2018, %v2019
    %2021 = vmatprep.subr.mxu0 0.0
    %2022 = vmatpush1.msra.mxu0 %v591
    %2023 = vmatprep.subr.mxu0 0.0
    %2024 = vmatpush1.msra.mxu0 %v592
    %2025 = vmatprep.subr.mxu0 0.0
    %2026 = vmatpush1.msra.mxu0 %v593
    %2027 = vmatprep.subr.mxu0 0.0
    %2028 = vmatpush1.msra.mxu0 %v594
    %2029 = vmatprep.subr.mxu0 0.0
    %2030 = vmatpush1.msra.mxu0 0.0
    %2031 = vmatprep.subr.mxu0 0.0
    %2032 = vmatpush1.msra.mxu0 0.0
    %2033 = vmatprep.subr.mxu0 0.0
    %2034 = vmatpush1.msra.mxu0 0.0
    %2035 = vmatprep.subr.mxu0 0.0
    %2036 = vmatpush1.msra.mxu0 0.0
    %2037 = vmatprep.subr.mxu0 0.0
    %2038 = vmatpush1.msra.mxu0 0.0
    %2039 = vmatprep.subr.mxu0 0.0
    %2040 = vmatpush1.msra.mxu0 0.0
    %2041 = vmatprep.subr.mxu0 0.0
    %2042 = vmatpush1.msra.mxu0 0.0
    %2043 = vmatprep.subr.mxu0 0.0
    %2044 = vmatpush1.msra.mxu0 0.0
    %2045 = vmatprep.subr.mxu0 0.0
    %2046 = vmatpush1.msra.mxu0 0.0
    %2047 = vmatprep.subr.mxu0 0.0
    %2048 = vmatpush1.msra.mxu0 0.0
    %2049 = vmatprep.subr.mxu0 0.0
    %2050 = vmatpush1.msra.mxu0 0.0
    %2051 = vmatprep.subr.mxu0 0.0
    %2052 = vmatpush1.msra.mxu0 0.0
    %2053 = vmatprep.subr.mxu0 0.0
    %2054 = vmatpush1.msra.mxu0 0.0
    %2055 = vmatprep.subr.mxu0 0.0
    %2056 = vmatpush1.msra.mxu0 0.0
    %2057 = vmatprep.subr.mxu0 0.0
    %2058 = vmatpush1.msra.mxu0 0.0
    %2059 = vmatprep.subr.mxu0 0.0
    %2060 = vmatpush1.msra.mxu0 0.0
    %2061 = vmatprep.subr.mxu0 0.0
    %2062 = vmatpush1.msra.mxu0 0.0
    %2063 = vmatprep.subr.mxu0 0.0
    %2064 = vmatpush1.msra.mxu0 0.0
    %2065 = vmatprep.subr.mxu0 0.0
    %2066 = vmatpush1.msra.mxu0 0.0
    %2067 = vmatprep.subr.mxu0 0.0
    %2068 = vmatpush1.msra.mxu0 0.0
    %2069 = vmatprep.subr.mxu0 0.0
    %2070 = vmatpush1.msra.mxu0 0.0
    %2071 = vmatprep.subr.mxu0 0.0
    %2072 = vmatpush1.msra.mxu0 0.0
    %2073 = vmatprep.subr.mxu0 0.0
    %2074 = vmatpush1.msra.mxu0 0.0
    %2075 = vmatprep.subr.mxu0 0.0
    %2076 = vmatpush1.msra.mxu0 0.0
    %2077 = vmatprep.subr.mxu0 0.0
    %2078 = vmatpush1.msra.mxu0 0.0
    %2079 = vmatprep.subr.mxu0 0.0
    %2080 = vmatpush1.msra.mxu0 0.0
    %2081 = vmatprep.subr.mxu0 0.0
    %2082 = vmatpush1.msra.mxu0 0.0
    %2083 = vmatprep.subr.mxu0 0.0
    %2084 = vmatpush1.msra.mxu0 0.0
    %2085 = vmatprep.mubr.f32.mxu0 0.0
    %2086 = vmatmul.mubr.f32.gmra.mrb[0].mxu0 %v1848
    %v2087 = vpop.f32.mrb[0].mxu0
    %v2088 = vadd.f32 %v615, %v2087
    %v2089 = vpop.f32.mrb[0].mxu0
    %2090 = vdwg.mxu0
    %2092 = vrot.lane.b32.xlu0 %v1847, 96
    %v2093 = vpop.permute.xlu0 %2092
    %v2094 = vsel %vm617, %v2093, 0
    %2096 = vmatprep.subr.mxu0 0.0
    %2097 = vmatpush1.msra.mxu0 %v595
    %2098 = vmatprep.subr.mxu0 0.0
    %2099 = vmatpush1.msra.mxu0 %v596
    %2100 = vmatprep.subr.mxu0 0.0
    %2101 = vmatpush1.msra.mxu0 %v597
    %2102 = vmatprep.subr.mxu0 0.0
    %2103 = vmatpush1.msra.mxu0 %v598
    %2104 = vmatprep.subr.mxu0 0.0
    %2105 = vmatpush1.msra.mxu0 0.0
    %2106 = vmatprep.subr.mxu0 0.0
    %2107 = vmatpush1.msra.mxu0 0.0
    %2108 = vmatprep.subr.mxu0 0.0
    %2109 = vmatpush1.msra.mxu0 0.0
    %2110 = vmatprep.subr.mxu0 0.0
    %2111 = vmatpush1.msra.mxu0 0.0
    %2112 = vmatprep.subr.mxu0 0.0
    %2113 = vmatpush1.msra.mxu0 0.0
    %2114 = vmatprep.subr.mxu0 0.0
    %2115 = vmatpush1.msra.mxu0 0.0
    %2116 = vmatprep.subr.mxu0 0.0
    %2117 = vmatpush1.msra.mxu0 0.0
    %2118 = vmatprep.subr.mxu0 0.0
    %2119 = vmatpush1.msra.mxu0 0.0
    %2120 = vmatprep.subr.mxu0 0.0
    %2121 = vmatpush1.msra.mxu0 0.0
    %2122 = vmatprep.subr.mxu0 0.0
    %2123 = vmatpush1.msra.mxu0 0.0
    %2124 = vmatprep.subr.mxu0 0.0
    %2125 = vmatpush1.msra.mxu0 0.0
    %2126 = vmatprep.subr.mxu0 0.0
    %2127 = vmatpush1.msra.mxu0 0.0
    %2128 = vmatprep.subr.mxu0 0.0
    %2129 = vmatpush1.msra.mxu0 0.0
    %2130 = vmatprep.subr.mxu0 0.0
    %2131 = vmatpush1.msra.mxu0 0.0
    %2132 = vmatprep.subr.mxu0 0.0
    %2133 = vmatpush1.msra.mxu0 0.0
    %2134 = vmatprep.subr.mxu0 0.0
    %2135 = vmatpush1.msra.mxu0 0.0
    %2136 = vmatprep.subr.mxu0 0.0
    %2137 = vmatpush1.msra.mxu0 0.0
    %2138 = vmatprep.subr.mxu0 0.0
    %2139 = vmatpush1.msra.mxu0 0.0
    %2140 = vmatprep.subr.mxu0 0.0
    %2141 = vmatpush1.msra.mxu0 0.0
    %2142 = vmatprep.subr.mxu0 0.0
    %2143 = vmatpush1.msra.mxu0 0.0
    %2144 = vmatprep.subr.mxu0 0.0
    %2145 = vmatpush1.msra.mxu0 0.0
    %2146 = vmatprep.subr.mxu0 0.0
    %2147 = vmatpush1.msra.mxu0 0.0
    %2148 = vmatprep.subr.mxu0 0.0
    %2149 = vmatpush1.msra.mxu0 0.0
    %2150 = vmatprep.subr.mxu0 0.0
    %2151 = vmatpush1.msra.mxu0 0.0
    %2152 = vmatprep.subr.mxu0 0.0
    %2153 = vmatpush1.msra.mxu0 0.0
    %2154 = vmatprep.subr.mxu0 0.0
    %2155 = vmatpush1.msra.mxu0 0.0
    %2156 = vmatprep.subr.mxu0 0.0
    %2157 = vmatpush1.msra.mxu0 0.0
    %2158 = vmatprep.subr.mxu0 0.0
    %2159 = vmatpush1.msra.mxu0 0.0
    %2160 = vmatprep.mubr.f32.mxu0 0.0
    %2161 = vmatmul.mubr.f32.gmra.mrb[0].mxu0 %v2094
    %v2162 = vpop.f32.mrb[0].mxu0
    %v2163 = vadd.f32 %v695, %v2162
    %v2164 = vpop.f32.mrb[0].mxu0
    %2165 = vdwg.mxu0
    %v2166 = vadd.f32 %v2088, %v2163
    %v2167 = vxor.u32 %v2166, 2147483648
    %v2168 = vmul.f32 %v2167, 1.442695
    %v2169 = vpow.pop %v2168
    %v2170 = vadd.f32 %v2169, 1.0
    %v2171 = vrcp.pop %v2170
    %v2172 = vmul.f32 1.0, %v2171
    %2174 = vrot.lane.b32.xlu0 %v2163, 64
    %v2175 = vpop.permute.xlu0 %2174
    %v2177 = vmul.f32 %v2172, %v2175
    %2179 = vrot.lane.b32.xlu0 %v2177, 64
    %v2180 = vpop.permute.xlu0 %2179
    %v2182 = vadd.f32 %v2088, %v2180
    %v2183 = vtanh.pop %v2182
    %v2184 = vsub.f32 1.0, %v2172
    %2186 = vrot.lane.b32.xlu0 %v2183, 96
    %v2187 = vpop.permute.xlu0 %2186
    %v2189 = vmul.f32 %v2184, %v2187
    %v2190 = vmul.f32 %v2172, %v1847
    %v2191 = vadd.f32 %v2189, %v2190
    %2192 = vmatprep.subr.mxu0 0.0
    %2193 = vmatpush1.msra.mxu0 %v601
    %2194 = vmatprep.subr.mxu0 0.0
    %2195 = vmatpush1.msra.mxu0 %v602
    %2196 = vmatprep.subr.mxu0 0.0
    %2197 = vmatpush1.msra.mxu0 %v603
    %2198 = vmatprep.subr.mxu0 0.0
    %2199 = vmatpush1.msra.mxu0 %v604
    %2200 = vmatprep.subr.mxu0 0.0
    %2201 = vmatpush1.msra.mxu0 0.0
    %2202 = vmatprep.subr.mxu0 0.0
    %2203 = vmatpush1.msra.mxu0 0.0
    %2204 = vmatprep.subr.mxu0 0.0
    %2205 = vmatpush1.msra.mxu0 0.0
    %2206 = vmatprep.subr.mxu0 0.0
    %2207 = vmatpush1.msra.mxu0 0.0
    %2208 = vmatprep.subr.mxu0 0.0
    %2209 = vmatpush1.msra.mxu0 0.0
    %2210 = vmatprep.subr.mxu0 0.0
    %2211 = vmatpush1.msra.mxu0 0.0
    %2212 = vmatprep.subr.mxu0 0.0
    %2213 = vmatpush1.msra.mxu0 0.0
    %2214 = vmatprep.subr.mxu0 0.0
    %2215 = vmatpush1.msra.mxu0 0.0
    %2216 = vmatprep.subr.mxu0 0.0
    %2217 = vmatpush1.msra.mxu0 0.0
    %2218 = vmatprep.subr.mxu0 0.0
    %2219 = vmatpush1.msra.mxu0 0.0
    %2220 = vmatprep.subr.mxu0 0.0
    %2221 = vmatpush1.msra.mxu0 0.0
    %2222 = vmatprep.subr.mxu0 0.0
    %2223 = vmatpush1.msra.mxu0 0.0
    %2224 = vmatprep.subr.mxu0 0.0
    %2225 = vmatpush1.msra.mxu0 0.0
    %2226 = vmatprep.subr.mxu0 0.0
    %2227 = vmatpush1.msra.mxu0 0.0
    %2228 = vmatprep.subr.mxu0 0.0
    %2229 = vmatpush1.msra.mxu0 0.0
    %2230 = vmatprep.subr.mxu0 0.0
    %2231 = vmatpush1.msra.mxu0 0.0
    %2232 = vmatprep.subr.mxu0 0.0
    %2233 = vmatpush1.msra.mxu0 0.0
    %2234 = vmatprep.subr.mxu0 0.0
    %2235 = vmatpush1.msra.mxu0 0.0
    %2236 = vmatprep.subr.mxu0 0.0
    %2237 = vmatpush1.msra.mxu0 0.0
    %2238 = vmatprep.subr.mxu0 0.0
    %2239 = vmatpush1.msra.mxu0 0.0
    %2240 = vmatprep.subr.mxu0 0.0
    %2241 = vmatpush1.msra.mxu0 0.0
    %2242 = vmatprep.subr.mxu0 0.0
    %2243 = vmatpush1.msra.mxu0 0.0
    %2244 = vmatprep.subr.mxu0 0.0
    %2245 = vmatpush1.msra.mxu0 0.0
    %2246 = vmatprep.subr.mxu0 0.0
    %2247 = vmatpush1.msra.mxu0 0.0
    %2248 = vmatprep.subr.mxu0 0.0
    %2249 = vmatpush1.msra.mxu0 0.0
    %2250 = vmatprep.subr.mxu0 0.0
    %2251 = vmatpush1.msra.mxu0 0.0
    %2252 = vmatprep.subr.mxu0 0.0
    %2253 = vmatpush1.msra.mxu0 0.0
    %2254 = vmatprep.subr.mxu0 0.0
    %2255 = vmatpush1.msra.mxu0 0.0
    %2256 = vmatprep.mubr.f32.mxu0 0.0
    %2257 = vmatmul.mubr.f32.gmra.mrb[0].mxu0 %v1675
    %v2258 = vpop.f32.mrb[0].mxu0
    %v2259 = vadd.f32 %v800, %v2258
    %v2260 = vpop.f32.mrb[0].mxu0
    %2261 = vdwg.mxu0
    %2263 = vrot.lane.b32.xlu0 %v2020, 96
    %v2264 = vpop.permute.xlu0 %2263
    %v2265 = vsel %vm617, %v2264, 0
    %2267 = vmatprep.subr.mxu0 0.0
    %2268 = vmatpush1.msra.mxu0 %v605
    %2269 = vmatprep.subr.mxu0 0.0
    %2270 = vmatpush1.msra.mxu0 %v606
    %2271 = vmatprep.subr.mxu0 0.0
    %2272 = vmatpush1.msra.mxu0 %v607
    %2273 = vmatprep.subr.mxu0 0.0
    %2274 = vmatpush1.msra.mxu0 %v608
    %2275 = vmatprep.subr.mxu0 0.0
    %2276 = vmatpush1.msra.mxu0 0.0
    %2277 = vmatprep.subr.mxu0 0.0
    %2278 = vmatpush1.msra.mxu0 0.0
    %2279 = vmatprep.subr.mxu0 0.0
    %2280 = vmatpush1.msra.mxu0 0.0
    %2281 = vmatprep.subr.mxu0 0.0
    %2282 = vmatpush1.msra.mxu0 0.0
    %2283 = vmatprep.subr.mxu0 0.0
    %2284 = vmatpush1.msra.mxu0 0.0
    %2285 = vmatprep.subr.mxu0 0.0
    %2286 = vmatpush1.msra.mxu0 0.0
    %2287 = vmatprep.subr.mxu0 0.0
    %2288 = vmatpush1.msra.mxu0 0.0
    %2289 = vmatprep.subr.mxu0 0.0
    %2290 = vmatpush1.msra.mxu0 0.0
    %2291 = vmatprep.subr.mxu0 0.0
    %2292 = vmatpush1.msra.mxu0 0.0
    %2293 = vmatprep.subr.mxu0 0.0
    %2294 = vmatpush1.msra.mxu0 0.0
    %2295 = vmatprep.subr.mxu0 0.0
    %2296 = vmatpush1.msra.mxu0 0.0
    %2297 = vmatprep.subr.mxu0 0.0
    %2298 = vmatpush1.msra.mxu0 0.0
    %2299 = vmatprep.subr.mxu0 0.0
    %2300 = vmatpush1.msra.mxu0 0.0
    %2301 = vmatprep.subr.mxu0 0.0
    %2302 = vmatpush1.msra.mxu0 0.0
    %2303 = vmatprep.subr.mxu0 0.0
    %2304 = vmatpush1.msra.mxu0 0.0
    %2305 = vmatprep.subr.mxu0 0.0
    %2306 = vmatpush1.msra.mxu0 0.0
    %2307 = vmatprep.subr.mxu0 0.0
    %2308 = vmatpush1.msra.mxu0 0.0
    %2309 = vmatprep.subr.mxu0 0.0
    %2310 = vmatpush1.msra.mxu0 0.0
    %2311 = vmatprep.subr.mxu0 0.0
    %2312 = vmatpush1.msra.mxu0 0.0
    %2313 = vmatprep.subr.mxu0 0.0
    %2314 = vmatpush1.msra.mxu0 0.0
    %2315 = vmatprep.subr.mxu0 0.0
    %2316 = vmatpush1.msra.mxu0 0.0
    %2317 = vmatprep.subr.mxu0 0.0
    %2318 = vmatpush1.msra.mxu0 0.0
    %2319 = vmatprep.subr.mxu0 0.0
    %2320 = vmatpush1.msra.mxu0 0.0
    %2321 = vmatprep.subr.mxu0 0.0
    %2322 = vmatpush1.msra.mxu0 0.0
    %2323 = vmatprep.subr.mxu0 0.0
    %2324 = vmatpush1.msra.mxu0 0.0
    %2325 = vmatprep.subr.mxu0 0.0
    %2326 = vmatpush1.msra.mxu0 0.0
    %2327 = vmatprep.subr.mxu0 0.0
    %2328 = vmatpush1.msra.mxu0 0.0
    %2329 = vmatprep.subr.mxu0 0.0
    %2330 = vmatpush1.msra.mxu0 0.0
    %2331 = vmatprep.mubr.f32.mxu0 0.0
    %2332 = vmatmul.mubr.f32.gmra.mrb[0].mxu0 %v2265
    %v2333 = vpop.f32.mrb[0].mxu0
    %v2334 = vadd.f32 %v880, %v2333
    %v2335 = vpop.f32.mrb[0].mxu0
    %2336 = vdwg.mxu0
    %v2337 = vadd.f32 %v2259, %v2334
    %v2338 = vxor.u32 %v2337, 2147483648
    %v2339 = vmul.f32 %v2338, 1.442695
    %v2340 = vpow.pop %v2339
    %v2341 = vadd.f32 %v2340, 1.0
    %v2342 = vrcp.pop %v2341
    %v2343 = vmul.f32 1.0, %v2342
    %2345 = vrot.lane.b32.xlu0 %v2334, 64
    %v2346 = vpop.permute.xlu0 %2345
    %v2348 = vmul.f32 %v2343, %v2346
    %2350 = vrot.lane.b32.xlu0 %v2348, 64
    %v2351 = vpop.permute.xlu0 %2350
    %v2353 = vadd.f32 %v2259, %v2351
    %v2354 = vtanh.pop %v2353
    %v2355 = vsub.f32 1.0, %v2343
    %2357 = vrot.lane.b32.xlu0 %v2354, 96
    %v2358 = vpop.permute.xlu0 %2357
    %v2360 = vmul.f32 %v2355, %v2358
    %v2361 = vmul.f32 %v2343, %v2020
    %v2362 = vadd.f32 %v2360, %v2361
    %2363 = vmatprep.subr.mxu0 0.0
    %2364 = vmatpush1.msra.mxu0 %v591
    %2365 = vmatprep.subr.mxu0 0.0
    %2366 = vmatpush1.msra.mxu0 %v592
    %2367 = vmatprep.subr.mxu0 0.0
    %2368 = vmatpush1.msra.mxu0 %v593
    %2369 = vmatprep.subr.mxu0 0.0
    %2370 = vmatpush1.msra.mxu0 %v594
    %2371 = vmatprep.subr.mxu0 0.0
    %2372 = vmatpush1.msra.mxu0 0.0
    %2373 = vmatprep.subr.mxu0 0.0
    %2374 = vmatpush1.msra.mxu0 0.0
    %2375 = vmatprep.subr.mxu0 0.0
    %2376 = vmatpush1.msra.mxu0 0.0
    %2377 = vmatprep.subr.mxu0 0.0
    %2378 = vmatpush1.msra.mxu0 0.0
    %2379 = vmatprep.subr.mxu0 0.0
    %2380 = vmatpush1.msra.mxu0 0.0
    %2381 = vmatprep.subr.mxu0 0.0
    %2382 = vmatpush1.msra.mxu0 0.0
    %2383 = vmatprep.subr.mxu0 0.0
    %2384 = vmatpush1.msra.mxu0 0.0
    %2385 = vmatprep.subr.mxu0 0.0
    %2386 = vmatpush1.msra.mxu0 0.0
    %2387 = vmatprep.subr.mxu0 0.0
    %2388 = vmatpush1.msra.mxu0 0.0
    %2389 = vmatprep.subr.mxu0 0.0
    %2390 = vmatpush1.msra.mxu0 0.0
    %2391 = vmatprep.subr.mxu0 0.0
    %2392 = vmatpush1.msra.mxu0 0.0
    %2393 = vmatprep.subr.mxu0 0.0
    %2394 = vmatpush1.msra.mxu0 0.0
    %2395 = vmatprep.subr.mxu0 0.0
    %2396 = vmatpush1.msra.mxu0 0.0
    %2397 = vmatprep.subr.mxu0 0.0
    %2398 = vmatpush1.msra.mxu0 0.0
    %2399 = vmatprep.subr.mxu0 0.0
    %2400 = vmatpush1.msra.mxu0 0.0
    %2401 = vmatprep.subr.mxu0 0.0
    %2402 = vmatpush1.msra.mxu0 0.0
    %2403 = vmatprep.subr.mxu0 0.0
    %2404 = vmatpush1.msra.mxu0 0.0
    %2405 = vmatprep.subr.mxu0 0.0
    %2406 = vmatpush1.msra.mxu0 0.0
    %2407 = vmatprep.subr.mxu0 0.0
    %2408 = vmatpush1.msra.mxu0 0.0
    %2409 = vmatprep.subr.mxu0 0.0
    %2410 = vmatpush1.msra.mxu0 0.0
    %2411 = vmatprep.subr.mxu0 0.0
    %2412 = vmatpush1.msra.mxu0 0.0
    %2413 = vmatprep.subr.mxu0 0.0
    %2414 = vmatpush1.msra.mxu0 0.0
    %2415 = vmatprep.subr.mxu0 0.0
    %2416 = vmatpush1.msra.mxu0 0.0
    %2417 = vmatprep.subr.mxu0 0.0
    %2418 = vmatpush1.msra.mxu0 0.0
    %2419 = vmatprep.subr.mxu0 0.0
    %2420 = vmatpush1.msra.mxu0 0.0
    %2421 = vmatprep.subr.mxu0 0.0
    %2422 = vmatpush1.msra.mxu0 0.0
    %2423 = vmatprep.subr.mxu0 0.0
    %2424 = vmatpush1.msra.mxu0 0.0
    %2425 = vmatprep.subr.mxu0 0.0
    %2426 = vmatpush1.msra.mxu0 0.0
    %2427 = vmatprep.mubr.f32.mxu0 0.0
    %2428 = vmatmul.mubr.f32.gmra.mrb[0].mxu0 %v1501
    %v2429 = vpop.f32.mrb[0].mxu0
    %v2430 = vadd.f32 %v615, %v2429
    %v2431 = vpop.f32.mrb[0].mxu0
    %2432 = vdwg.mxu0
    %2434 = vrot.lane.b32.xlu0 %v2191, 96
    %v2435 = vpop.permute.xlu0 %2434
    %v2436 = vsel %vm617, %v2435, 0
    %2438 = vmatprep.subr.mxu0 0.0
    %2439 = vmatpush1.msra.mxu0 %v595
    %2440 = vmatprep.subr.mxu0 0.0
    %2441 = vmatpush1.msra.mxu0 %v596
    %2442 = vmatprep.subr.mxu0 0.0
    %2443 = vmatpush1.msra.mxu0 %v597
    %2444 = vmatprep.subr.mxu0 0.0
    %2445 = vmatpush1.msra.mxu0 %v598
    %2446 = vmatprep.subr.mxu0 0.0
    %2447 = vmatpush1.msra.mxu0 0.0
    %2448 = vmatprep.subr.mxu0 0.0
    %2449 = vmatpush1.msra.mxu0 0.0
    %2450 = vmatprep.subr.mxu0 0.0
    %2451 = vmatpush1.msra.mxu0 0.0
    %2452 = vmatprep.subr.mxu0 0.0
    %2453 = vmatpush1.msra.mxu0 0.0
    %2454 = vmatprep.subr.mxu0 0.0
    %2455 = vmatpush1.msra.mxu0 0.0
    %2456 = vmatprep.subr.mxu0 0.0
    %2457 = vmatpush1.msra.mxu0 0.0
    %2458 = vmatprep.subr.mxu0 0.0
    %2459 = vmatpush1.msra.mxu0 0.0
    %2460 = vmatprep.subr.mxu0 0.0
    %2461 = vmatpush1.msra.mxu0 0.0
    %2462 = vmatprep.subr.mxu0 0.0
    %2463 = vmatpush1.msra.mxu0 0.0
    %2464 = vmatprep.subr.mxu0 0.0
    %2465 = vmatpush1.msra.mxu0 0.0
    %2466 = vmatprep.subr.mxu0 0.0
    %2467 = vmatpush1.msra.mxu0 0.0
    %2468 = vmatprep.subr.mxu0 0.0
    %2469 = vmatpush1.msra.mxu0 0.0
    %2470 = vmatprep.subr.mxu0 0.0
    %2471 = vmatpush1.msra.mxu0 0.0
    %2472 = vmatprep.subr.mxu0 0.0
    %2473 = vmatpush1.msra.mxu0 0.0
    %2474 = vmatprep.subr.mxu0 0.0
    %2475 = vmatpush1.msra.mxu0 0.0
    %2476 = vmatprep.subr.mxu0 0.0
    %2477 = vmatpush1.msra.mxu0 0.0
    %2478 = vmatprep.subr.mxu0 0.0
    %2479 = vmatpush1.msra.mxu0 0.0
    %2480 = vmatprep.subr.mxu0 0.0
    %2481 = vmatpush1.msra.mxu0 0.0
    %2482 = vmatprep.subr.mxu0 0.0
    %2483 = vmatpush1.msra.mxu0 0.0
    %2484 = vmatprep.subr.mxu0 0.0
    %2485 = vmatpush1.msra.mxu0 0.0
    %2486 = vmatprep.subr.mxu0 0.0
    %2487 = vmatpush1.msra.mxu0 0.0
    %2488 = vmatprep.subr.mxu0 0.0
    %2489 = vmatpush1.msra.mxu0 0.0
    %2490 = vmatprep.subr.mxu0 0.0
    %2491 = vmatpush1.msra.mxu0 0.0
    %2492 = vmatprep.subr.mxu0 0.0
    %2493 = vmatpush1.msra.mxu0 0.0
    %2494 = vmatprep.subr.mxu0 0.0
    %2495 = vmatpush1.msra.mxu0 0.0
    %2496 = vmatprep.subr.mxu0 0.0
    %2497 = vmatpush1.msra.mxu0 0.0
    %2498 = vmatprep.subr.mxu0 0.0
    %2499 = vmatpush1.msra.mxu0 0.0
    %2500 = vmatprep.subr.mxu0 0.0
    %2501 = vmatpush1.msra.mxu0 0.0
    %2502 = vmatprep.mubr.f32.mxu0 0.0
    %2503 = vmatmul.mubr.f32.gmra.mrb[0].mxu0 %v2436
    %v2504 = vpop.f32.mrb[0].mxu0
    %v2505 = vadd.f32 %v695, %v2504
    %v2506 = vpop.f32.mrb[0].mxu0
    %2507 = vdwg.mxu0
    %v2508 = vadd.f32 %v2430, %v2505
    %v2509 = vxor.u32 %v2508, 2147483648
    %v2510 = vmul.f32 %v2509, 1.442695
    %v2511 = vpow.pop %v2510
    %v2512 = vadd.f32 %v2511, 1.0
    %v2513 = vrcp.pop %v2512
    %v2514 = vmul.f32 1.0, %v2513
    %2516 = vrot.lane.b32.xlu0 %v2505, 64
    %v2517 = vpop.permute.xlu0 %2516
    %v2519 = vmul.f32 %v2514, %v2517
    %2521 = vrot.lane.b32.xlu0 %v2519, 64
    %v2522 = vpop.permute.xlu0 %2521
    %v2524 = vadd.f32 %v2430, %v2522
    %v2525 = vtanh.pop %v2524
    %v2526 = vsub.f32 1.0, %v2514
    %2528 = vrot.lane.b32.xlu0 %v2525, 96
    %v2529 = vpop.permute.xlu0 %2528
    %v2531 = vmul.f32 %v2526, %v2529
    %v2532 = vmul.f32 %v2514, %v2191
    %v2533 = vadd.f32 %v2531, %v2532
    %2534 = vmatprep.subr.mxu0 0.0
    %2535 = vmatpush1.msra.mxu0 %v601
    %2536 = vmatprep.subr.mxu0 0.0
    %2537 = vmatpush1.msra.mxu0 %v602
    %2538 = vmatprep.subr.mxu0 0.0
    %2539 = vmatpush1.msra.mxu0 %v603
    %2540 = vmatprep.subr.mxu0 0.0
    %2541 = vmatpush1.msra.mxu0 %v604
    %2542 = vmatprep.subr.mxu0 0.0
    %2543 = vmatpush1.msra.mxu0 0.0
    %2544 = vmatprep.subr.mxu0 0.0
    %2545 = vmatpush1.msra.mxu0 0.0
    %2546 = vmatprep.subr.mxu0 0.0
    %2547 = vmatpush1.msra.mxu0 0.0
    %2548 = vmatprep.subr.mxu0 0.0
    %2549 = vmatpush1.msra.mxu0 0.0
    %2550 = vmatprep.subr.mxu0 0.0
    %2551 = vmatpush1.msra.mxu0 0.0
    %2552 = vmatprep.subr.mxu0 0.0
    %2553 = vmatpush1.msra.mxu0 0.0
    %2554 = vmatprep.subr.mxu0 0.0
    %2555 = vmatpush1.msra.mxu0 0.0
    %2556 = vmatprep.subr.mxu0 0.0
    %2557 = vmatpush1.msra.mxu0 0.0
    %2558 = vmatprep.subr.mxu0 0.0
    %2559 = vmatpush1.msra.mxu0 0.0
    %2560 = vmatprep.subr.mxu0 0.0
    %2561 = vmatpush1.msra.mxu0 0.0
    %2562 = vmatprep.subr.mxu0 0.0
    %2563 = vmatpush1.msra.mxu0 0.0
    %2564 = vmatprep.subr.mxu0 0.0
    %2565 = vmatpush1.msra.mxu0 0.0
    %2566 = vmatprep.subr.mxu0 0.0
    %2567 = vmatpush1.msra.mxu0 0.0
    %2568 = vmatprep.subr.mxu0 0.0
    %2569 = vmatpush1.msra.mxu0 0.0
    %2570 = vmatprep.subr.mxu0 0.0
    %2571 = vmatpush1.msra.mxu0 0.0
    %2572 = vmatprep.subr.mxu0 0.0
    %2573 = vmatpush1.msra.mxu0 0.0
    %2574 = vmatprep.subr.mxu0 0.0
    %2575 = vmatpush1.msra.mxu0 0.0
    %2576 = vmatprep.subr.mxu0 0.0
    %2577 = vmatpush1.msra.mxu0 0.0
    %2578 = vmatprep.subr.mxu0 0.0
    %2579 = vmatpush1.msra.mxu0 0.0
    %2580 = vmatprep.subr.mxu0 0.0
    %2581 = vmatpush1.msra.mxu0 0.0
    %2582 = vmatprep.subr.mxu0 0.0
    %2583 = vmatpush1.msra.mxu0 0.0
    %2584 = vmatprep.subr.mxu0 0.0
    %2585 = vmatpush1.msra.mxu0 0.0
    %2586 = vmatprep.subr.mxu0 0.0
    %2587 = vmatpush1.msra.mxu0 0.0
    %2588 = vmatprep.subr.mxu0 0.0
    %2589 = vmatpush1.msra.mxu0 0.0
    %2590 = vmatprep.subr.mxu0 0.0
    %2591 = vmatpush1.msra.mxu0 0.0
    %2592 = vmatprep.subr.mxu0 0.0
    %2593 = vmatpush1.msra.mxu0 0.0
    %2594 = vmatprep.subr.mxu0 0.0
    %2595 = vmatpush1.msra.mxu0 0.0
    %2596 = vmatprep.subr.mxu0 0.0
    %2597 = vmatpush1.msra.mxu0 0.0
    %2598 = vmatprep.mubr.f32.mxu0 0.0
    %2599 = vmatmul.mubr.f32.gmra.mrb[0].mxu0 %v1327
    %v2600 = vpop.f32.mrb[0].mxu0
    %v2601 = vadd.f32 %v800, %v2600
    %v2602 = vpop.f32.mrb[0].mxu0
    %2603 = vdwg.mxu0
    %2605 = vrot.lane.b32.xlu0 %v2362, 96
    %v2606 = vpop.permute.xlu0 %2605
    %v2607 = vsel %vm617, %v2606, 0
    %2609 = vmatprep.subr.mxu0 0.0
    %2610 = vmatpush1.msra.mxu0 %v605
    %2611 = vmatprep.subr.mxu0 0.0
    %2612 = vmatpush1.msra.mxu0 %v606
    %2613 = vmatprep.subr.mxu0 0.0
    %2614 = vmatpush1.msra.mxu0 %v607
    %2615 = vmatprep.subr.mxu0 0.0
    %2616 = vmatpush1.msra.mxu0 %v608
    %2617 = vmatprep.subr.mxu0 0.0
    %2618 = vmatpush1.msra.mxu0 0.0
    %2619 = vmatprep.subr.mxu0 0.0
    %2620 = vmatpush1.msra.mxu0 0.0
    %2621 = vmatprep.subr.mxu0 0.0
    %2622 = vmatpush1.msra.mxu0 0.0
    %2623 = vmatprep.subr.mxu0 0.0
    %2624 = vmatpush1.msra.mxu0 0.0
    %2625 = vmatprep.subr.mxu0 0.0
    %2626 = vmatpush1.msra.mxu0 0.0
    %2627 = vmatprep.subr.mxu0 0.0
    %2628 = vmatpush1.msra.mxu0 0.0
    %2629 = vmatprep.subr.mxu0 0.0
    %2630 = vmatpush1.msra.mxu0 0.0
    %2631 = vmatprep.subr.mxu0 0.0
    %2632 = vmatpush1.msra.mxu0 0.0
    %2633 = vmatprep.subr.mxu0 0.0
    %2634 = vmatpush1.msra.mxu0 0.0
    %2635 = vmatprep.subr.mxu0 0.0
    %2636 = vmatpush1.msra.mxu0 0.0
    %2637 = vmatprep.subr.mxu0 0.0
    %2638 = vmatpush1.msra.mxu0 0.0
    %2639 = vmatprep.subr.mxu0 0.0
    %2640 = vmatpush1.msra.mxu0 0.0
    %2641 = vmatprep.subr.mxu0 0.0
    %2642 = vmatpush1.msra.mxu0 0.0
    %2643 = vmatprep.subr.mxu0 0.0
    %2644 = vmatpush1.msra.mxu0 0.0
    %2645 = vmatprep.subr.mxu0 0.0
    %2646 = vmatpush1.msra.mxu0 0.0
    %2647 = vmatprep.subr.mxu0 0.0
    %2648 = vmatpush1.msra.mxu0 0.0
    %2649 = vmatprep.subr.mxu0 0.0
    %2650 = vmatpush1.msra.mxu0 0.0
    %2651 = vmatprep.subr.mxu0 0.0
    %2652 = vmatpush1.msra.mxu0 0.0
    %2653 = vmatprep.subr.mxu0 0.0
    %2654 = vmatpush1.msra.mxu0 0.0
    %2655 = vmatprep.subr.mxu0 0.0
    %2656 = vmatpush1.msra.mxu0 0.0
    %2657 = vmatprep.subr.mxu0 0.0
    %2658 = vmatpush1.msra.mxu0 0.0
    %2659 = vmatprep.subr.mxu0 0.0
    %2660 = vmatpush1.msra.mxu0 0.0
    %2661 = vmatprep.subr.mxu0 0.0
    %2662 = vmatpush1.msra.mxu0 0.0
    %2663 = vmatprep.subr.mxu0 0.0
    %2664 = vmatpush1.msra.mxu0 0.0
    %2665 = vmatprep.subr.mxu0 0.0
    %2666 = vmatpush1.msra.mxu0 0.0
    %2667 = vmatprep.subr.mxu0 0.0
    %2668 = vmatpush1.msra.mxu0 0.0
    %2669 = vmatprep.subr.mxu0 0.0
    %2670 = vmatpush1.msra.mxu0 0.0
    %2671 = vmatprep.subr.mxu0 0.0
    %2672 = vmatpush1.msra.mxu0 0.0
    %2673 = vmatprep.mubr.f32.mxu0 0.0
    %2674 = vmatmul.mubr.f32.gmra.mrb[0].mxu0 %v2607
    %v2675 = vpop.f32.mrb[0].mxu0
    %v2676 = vadd.f32 %v880, %v2675
    %v2677 = vpop.f32.mrb[0].mxu0
    %2678 = vdwg.mxu0
    %v2679 = vadd.f32 %v2601, %v2676
    %v2680 = vxor.u32 %v2679, 2147483648
    %v2681 = vmul.f32 %v2680, 1.442695
    %v2682 = vpow.pop %v2681
    %v2683 = vadd.f32 %v2682, 1.0
    %v2684 = vrcp.pop %v2683
    %v2685 = vmul.f32 1.0, %v2684
    %2687 = vrot.lane.b32.xlu0 %v2676, 64
    %v2688 = vpop.permute.xlu0 %2687
    %v2690 = vmul.f32 %v2685, %v2688
    %2692 = vrot.lane.b32.xlu0 %v2690, 64
    %v2693 = vpop.permute.xlu0 %2692
    %v2695 = vadd.f32 %v2601, %v2693
    %v2696 = vtanh.pop %v2695
    %v2697 = vsub.f32 1.0, %v2685
    %2699 = vrot.lane.b32.xlu0 %v2696, 96
    %v2700 = vpop.permute.xlu0 %2699
    %v2702 = vmul.f32 %v2697, %v2700
    %v2703 = vmul.f32 %v2685, %v2362
    %v2704 = vadd.f32 %v2702, %v2703
    %2705 = vmatprep.subr.mxu0 0.0
    %2706 = vmatpush1.msra.mxu0 %v591
    %2707 = vmatprep.subr.mxu0 0.0
    %2708 = vmatpush1.msra.mxu0 %v592
    %2709 = vmatprep.subr.mxu0 0.0
    %2710 = vmatpush1.msra.mxu0 %v593
    %2711 = vmatprep.subr.mxu0 0.0
    %2712 = vmatpush1.msra.mxu0 %v594
    %2713 = vmatprep.subr.mxu0 0.0
    %2714 = vmatpush1.msra.mxu0 0.0
    %2715 = vmatprep.subr.mxu0 0.0
    %2716 = vmatpush1.msra.mxu0 0.0
    %2717 = vmatprep.subr.mxu0 0.0
    %2718 = vmatpush1.msra.mxu0 0.0
    %2719 = vmatprep.subr.mxu0 0.0
    %2720 = vmatpush1.msra.mxu0 0.0
    %2721 = vmatprep.subr.mxu0 0.0
    %2722 = vmatpush1.msra.mxu0 0.0
    %2723 = vmatprep.subr.mxu0 0.0
    %2724 = vmatpush1.msra.mxu0 0.0
    %2725 = vmatprep.subr.mxu0 0.0
    %2726 = vmatpush1.msra.mxu0 0.0
    %2727 = vmatprep.subr.mxu0 0.0
    %2728 = vmatpush1.msra.mxu0 0.0
    %2729 = vmatprep.subr.mxu0 0.0
    %2730 = vmatpush1.msra.mxu0 0.0
    %2731 = vmatprep.subr.mxu0 0.0
    %2732 = vmatpush1.msra.mxu0 0.0
    %2733 = vmatprep.subr.mxu0 0.0
    %2734 = vmatpush1.msra.mxu0 0.0
    %2735 = vmatprep.subr.mxu0 0.0
    %2736 = vmatpush1.msra.mxu0 0.0
    %2737 = vmatprep.subr.mxu0 0.0
    %2738 = vmatpush1.msra.mxu0 0.0
    %2739 = vmatprep.subr.mxu0 0.0
    %2740 = vmatpush1.msra.mxu0 0.0
    %2741 = vmatprep.subr.mxu0 0.0
    %2742 = vmatpush1.msra.mxu0 0.0
    %2743 = vmatprep.subr.mxu0 0.0
    %2744 = vmatpush1.msra.mxu0 0.0
    %2745 = vmatprep.subr.mxu0 0.0
    %2746 = vmatpush1.msra.mxu0 0.0
    %2747 = vmatprep.subr.mxu0 0.0
    %2748 = vmatpush1.msra.mxu0 0.0
    %2749 = vmatprep.subr.mxu0 0.0
    %2750 = vmatpush1.msra.mxu0 0.0
    %2751 = vmatprep.subr.mxu0 0.0
    %2752 = vmatpush1.msra.mxu0 0.0
    %2753 = vmatprep.subr.mxu0 0.0
    %2754 = vmatpush1.msra.mxu0 0.0
    %2755 = vmatprep.subr.mxu0 0.0
    %2756 = vmatpush1.msra.mxu0 0.0
    %2757 = vmatprep.subr.mxu0 0.0
    %2758 = vmatpush1.msra.mxu0 0.0
    %2759 = vmatprep.subr.mxu0 0.0
    %2760 = vmatpush1.msra.mxu0 0.0
    %2761 = vmatprep.subr.mxu0 0.0
    %2762 = vmatpush1.msra.mxu0 0.0
    %2763 = vmatprep.subr.mxu0 0.0
    %2764 = vmatpush1.msra.mxu0 0.0
    %2765 = vmatprep.subr.mxu0 0.0
    %2766 = vmatpush1.msra.mxu0 0.0
    %2767 = vmatprep.subr.mxu0 0.0
    %2768 = vmatpush1.msra.mxu0 0.0
    %2769 = vmatprep.mubr.f32.mxu0 0.0
    %2770 = vmatmul.mubr.f32.gmra.mrb[0].mxu0 %v1153
    %v2771 = vpop.f32.mrb[0].mxu0
    %v2772 = vadd.f32 %v615, %v2771
    %v2773 = vpop.f32.mrb[0].mxu0
    %2774 = vdwg.mxu0
    %2776 = vrot.lane.b32.xlu0 %v2533, 96
    %v2777 = vpop.permute.xlu0 %2776
    %v2778 = vsel %vm617, %v2777, 0
    %2780 = vmatprep.subr.mxu0 0.0
    %2781 = vmatpush1.msra.mxu0 %v595
    %2782 = vmatprep.subr.mxu0 0.0
    %2783 = vmatpush1.msra.mxu0 %v596
    %2784 = vmatprep.subr.mxu0 0.0
    %2785 = vmatpush1.msra.mxu0 %v597
    %2786 = vmatprep.subr.mxu0 0.0
    %2787 = vmatpush1.msra.mxu0 %v598
    %2788 = vmatprep.subr.mxu0 0.0
    %2789 = vmatpush1.msra.mxu0 0.0
    %2790 = vmatprep.subr.mxu0 0.0
    %2791 = vmatpush1.msra.mxu0 0.0
    %2792 = vmatprep.subr.mxu0 0.0
    %2793 = vmatpush1.msra.mxu0 0.0
    %2794 = vmatprep.subr.mxu0 0.0
    %2795 = vmatpush1.msra.mxu0 0.0
    %2796 = vmatprep.subr.mxu0 0.0
    %2797 = vmatpush1.msra.mxu0 0.0
    %2798 = vmatprep.subr.mxu0 0.0
    %2799 = vmatpush1.msra.mxu0 0.0
    %2800 = vmatprep.subr.mxu0 0.0
    %2801 = vmatpush1.msra.mxu0 0.0
    %2802 = vmatprep.subr.mxu0 0.0
    %2803 = vmatpush1.msra.mxu0 0.0
    %2804 = vmatprep.subr.mxu0 0.0
    %2805 = vmatpush1.msra.mxu0 0.0
    %2806 = vmatprep.subr.mxu0 0.0
    %2807 = vmatpush1.msra.mxu0 0.0
    %2808 = vmatprep.subr.mxu0 0.0
    %2809 = vmatpush1.msra.mxu0 0.0
    %2810 = vmatprep.subr.mxu0 0.0
    %2811 = vmatpush1.msra.mxu0 0.0
    %2812 = vmatprep.subr.mxu0 0.0
    %2813 = vmatpush1.msra.mxu0 0.0
    %2814 = vmatprep.subr.mxu0 0.0
    %2815 = vmatpush1.msra.mxu0 0.0
    %2816 = vmatprep.subr.mxu0 0.0
    %2817 = vmatpush1.msra.mxu0 0.0
    %2818 = vmatprep.subr.mxu0 0.0
    %2819 = vmatpush1.msra.mxu0 0.0
    %2820 = vmatprep.subr.mxu0 0.0
    %2821 = vmatpush1.msra.mxu0 0.0
    %2822 = vmatprep.subr.mxu0 0.0
    %2823 = vmatpush1.msra.mxu0 0.0
    %2824 = vmatprep.subr.mxu0 0.0
    %2825 = vmatpush1.msra.mxu0 0.0
    %2826 = vmatprep.subr.mxu0 0.0
    %2827 = vmatpush1.msra.mxu0 0.0
    %2828 = vmatprep.subr.mxu0 0.0
    %2829 = vmatpush1.msra.mxu0 0.0
    %2830 = vmatprep.subr.mxu0 0.0
    %2831 = vmatpush1.msra.mxu0 0.0
    %2832 = vmatprep.subr.mxu0 0.0
    %2833 = vmatpush1.msra.mxu0 0.0
    %2834 = vmatprep.subr.mxu0 0.0
    %2835 = vmatpush1.msra.mxu0 0.0
    %2836 = vmatprep.subr.mxu0 0.0
    %2837 = vmatpush1.msra.mxu0 0.0
    %2838 = vmatprep.subr.mxu0 0.0
    %2839 = vmatpush1.msra.mxu0 0.0
    %2840 = vmatprep.subr.mxu0 0.0
    %2841 = vmatpush1.msra.mxu0 0.0
    %2842 = vmatprep.subr.mxu0 0.0
    %2843 = vmatpush1.msra.mxu0 0.0
    %2844 = vmatprep.mubr.f32.mxu0 0.0
    %2845 = vmatmul.mubr.f32.gmra.mrb[0].mxu0 %v2778
    %v2846 = vpop.f32.mrb[0].mxu0
    %v2847 = vadd.f32 %v695, %v2846
    %v2848 = vpop.f32.mrb[0].mxu0
    %2849 = vdwg.mxu0
    %v2850 = vadd.f32 %v2772, %v2847
    %v2851 = vxor.u32 %v2850, 2147483648
    %v2852 = vmul.f32 %v2851, 1.442695
    %v2853 = vpow.pop %v2852
    %v2854 = vadd.f32 %v2853, 1.0
    %v2855 = vrcp.pop %v2854
    %v2856 = vmul.f32 1.0, %v2855
    %2858 = vrot.lane.b32.xlu0 %v2847, 64
    %v2859 = vpop.permute.xlu0 %2858
    %v2861 = vmul.f32 %v2856, %v2859
    %2863 = vrot.lane.b32.xlu0 %v2861, 64
    %v2864 = vpop.permute.xlu0 %2863
    %v2866 = vadd.f32 %v2772, %v2864
    %v2867 = vtanh.pop %v2866
    %v2868 = vsub.f32 1.0, %v2856
    %2870 = vrot.lane.b32.xlu0 %v2867, 96
    %v2871 = vpop.permute.xlu0 %2870
    %v2873 = vmul.f32 %v2868, %v2871
    %v2874 = vmul.f32 %v2856, %v2533
    %v2875 = vadd.f32 %v2873, %v2874
    %2876 = vmatprep.subr.mxu0 0.0
    %2877 = vmatpush1.msra.mxu0 %v601
    %2878 = vmatprep.subr.mxu0 0.0
    %2879 = vmatpush1.msra.mxu0 %v602
    %2880 = vmatprep.subr.mxu0 0.0
    %2881 = vmatpush1.msra.mxu0 %v603
    %2882 = vmatprep.subr.mxu0 0.0
    %2883 = vmatpush1.msra.mxu0 %v604
    %2884 = vmatprep.subr.mxu0 0.0
    %2885 = vmatpush1.msra.mxu0 0.0
    %2886 = vmatprep.subr.mxu0 0.0
    %2887 = vmatpush1.msra.mxu0 0.0
    %2888 = vmatprep.subr.mxu0 0.0
    %2889 = vmatpush1.msra.mxu0 0.0
    %2890 = vmatprep.subr.mxu0 0.0
    %2891 = vmatpush1.msra.mxu0 0.0
    %2892 = vmatprep.subr.mxu0 0.0
    %2893 = vmatpush1.msra.mxu0 0.0
    %2894 = vmatprep.subr.mxu0 0.0
    %2895 = vmatpush1.msra.mxu0 0.0
    %2896 = vmatprep.subr.mxu0 0.0
    %2897 = vmatpush1.msra.mxu0 0.0
    %2898 = vmatprep.subr.mxu0 0.0
    %2899 = vmatpush1.msra.mxu0 0.0
    %2900 = vmatprep.subr.mxu0 0.0
    %2901 = vmatpush1.msra.mxu0 0.0
    %2902 = vmatprep.subr.mxu0 0.0
    %2903 = vmatpush1.msra.mxu0 0.0
    %2904 = vmatprep.subr.mxu0 0.0
    %2905 = vmatpush1.msra.mxu0 0.0
    %2906 = vmatprep.subr.mxu0 0.0
    %2907 = vmatpush1.msra.mxu0 0.0
    %2908 = vmatprep.subr.mxu0 0.0
    %2909 = vmatpush1.msra.mxu0 0.0
    %2910 = vmatprep.subr.mxu0 0.0
    %2911 = vmatpush1.msra.mxu0 0.0
    %2912 = vmatprep.subr.mxu0 0.0
    %2913 = vmatpush1.msra.mxu0 0.0
    %2914 = vmatprep.subr.mxu0 0.0
    %2915 = vmatpush1.msra.mxu0 0.0
    %2916 = vmatprep.subr.mxu0 0.0
    %2917 = vmatpush1.msra.mxu0 0.0
    %2918 = vmatprep.subr.mxu0 0.0
    %2919 = vmatpush1.msra.mxu0 0.0
    %2920 = vmatprep.subr.mxu0 0.0
    %2921 = vmatpush1.msra.mxu0 0.0
    %2922 = vmatprep.subr.mxu0 0.0
    %2923 = vmatpush1.msra.mxu0 0.0
    %2924 = vmatprep.subr.mxu0 0.0
    %2925 = vmatpush1.msra.mxu0 0.0
    %2926 = vmatprep.subr.mxu0 0.0
    %2927 = vmatpush1.msra.mxu0 0.0
    %2928 = vmatprep.subr.mxu0 0.0
    %2929 = vmatpush1.msra.mxu0 0.0
    %2930 = vmatprep.subr.mxu0 0.0
    %2931 = vmatpush1.msra.mxu0 0.0
    %2932 = vmatprep.subr.mxu0 0.0
    %2933 = vmatpush1.msra.mxu0 0.0
    %2934 = vmatprep.subr.mxu0 0.0
    %2935 = vmatpush1.msra.mxu0 0.0
    %2936 = vmatprep.subr.mxu0 0.0
    %2937 = vmatpush1.msra.mxu0 0.0
    %2938 = vmatprep.subr.mxu0 0.0
    %2939 = vmatpush1.msra.mxu0 0.0
    %2940 = vmatprep.mubr.f32.mxu0 0.0
    %2941 = vmatmul.mubr.f32.gmra.mrb[0].mxu0 %v979
    %v2942 = vpop.f32.mrb[0].mxu0
    %v2943 = vadd.f32 %v800, %v2942
    %v2944 = vpop.f32.mrb[0].mxu0
    %2945 = vdwg.mxu0
    %2947 = vrot.lane.b32.xlu0 %v2704, 96
    %v2948 = vpop.permute.xlu0 %2947
    %v2949 = vsel %vm617, %v2948, 0
    %2951 = vmatprep.subr.mxu0 0.0
    %2952 = vmatpush1.msra.mxu0 %v605
    %2953 = vmatprep.subr.mxu0 0.0
    %2954 = vmatpush1.msra.mxu0 %v606
    %2955 = vmatprep.subr.mxu0 0.0
    %2956 = vmatpush1.msra.mxu0 %v607
    %2957 = vmatprep.subr.mxu0 0.0
    %2958 = vmatpush1.msra.mxu0 %v608
    %2959 = vmatprep.subr.mxu0 0.0
    %2960 = vmatpush1.msra.mxu0 0.0
    %2961 = vmatprep.subr.mxu0 0.0
    %2962 = vmatpush1.msra.mxu0 0.0
    %2963 = vmatprep.subr.mxu0 0.0
    %2964 = vmatpush1.msra.mxu0 0.0
    %2965 = vmatprep.subr.mxu0 0.0
    %2966 = vmatpush1.msra.mxu0 0.0
    %2967 = vmatprep.subr.mxu0 0.0
    %2968 = vmatpush1.msra.mxu0 0.0
    %2969 = vmatprep.subr.mxu0 0.0
    %2970 = vmatpush1.msra.mxu0 0.0
    %2971 = vmatprep.subr.mxu0 0.0
    %2972 = vmatpush1.msra.mxu0 0.0
    %2973 = vmatprep.subr.mxu0 0.0
    %2974 = vmatpush1.msra.mxu0 0.0
    %2975 = vmatprep.subr.mxu0 0.0
    %2976 = vmatpush1.msra.mxu0 0.0
    %2977 = vmatprep.subr.mxu0 0.0
    %2978 = vmatpush1.msra.mxu0 0.0
    %2979 = vmatprep.subr.mxu0 0.0
    %2980 = vmatpush1.msra.mxu0 0.0
    %2981 = vmatprep.subr.mxu0 0.0
    %2982 = vmatpush1.msra.mxu0 0.0
    %2983 = vmatprep.subr.mxu0 0.0
    %2984 = vmatpush1.msra.mxu0 0.0
    %2985 = vmatprep.subr.mxu0 0.0
    %2986 = vmatpush1.msra.mxu0 0.0
    %2987 = vmatprep.subr.mxu0 0.0
    %2988 = vmatpush1.msra.mxu0 0.0
    %2989 = vmatprep.subr.mxu0 0.0
    %2990 = vmatpush1.msra.mxu0 0.0
    %2991 = vmatprep.subr.mxu0 0.0
    %2992 = vmatpush1.msra.mxu0 0.0
    %2993 = vmatprep.subr.mxu0 0.0
    %2994 = vmatpush1.msra.mxu0 0.0
    %2995 = vmatprep.subr.mxu0 0.0
    %2996 = vmatpush1.msra.mxu0 0.0
    %2997 = vmatprep.subr.mxu0 0.0
    %2998 = vmatpush1.msra.mxu0 0.0
    %2999 = vmatprep.subr.mxu0 0.0
    %3000 = vmatpush1.msra.mxu0 0.0
    %3001 = vmatprep.subr.mxu0 0.0
    %3002 = vmatpush1.msra.mxu0 0.0
    %3003 = vmatprep.subr.mxu0 0.0
    %3004 = vmatpush1.msra.mxu0 0.0
    %3005 = vmatprep.subr.mxu0 0.0
    %3006 = vmatpush1.msra.mxu0 0.0
    %3007 = vmatprep.subr.mxu0 0.0
    %3008 = vmatpush1.msra.mxu0 0.0
    %3009 = vmatprep.subr.mxu0 0.0
    %3010 = vmatpush1.msra.mxu0 0.0
    %3011 = vmatprep.subr.mxu0 0.0
    %3012 = vmatpush1.msra.mxu0 0.0
    %3013 = vmatprep.subr.mxu0 0.0
    %3014 = vmatpush1.msra.mxu0 0.0
    %3015 = vmatprep.mubr.f32.mxu0 0.0
    %3016 = vmatmul.mubr.f32.gmra.mrb[0].mxu0 %v2949
    %v3017 = vpop.f32.mrb[0].mxu0
    %v3018 = vadd.f32 %v880, %v3017
    %v3019 = vpop.f32.mrb[0].mxu0
    %3020 = vdwg.mxu0
    %v3021 = vadd.f32 %v2943, %v3018
    %v3022 = vxor.u32 %v3021, 2147483648
    %v3023 = vmul.f32 %v3022, 1.442695
    %v3024 = vpow.pop %v3023
    %v3025 = vadd.f32 %v3024, 1.0
    %v3026 = vrcp.pop %v3025
    %v3027 = vmul.f32 1.0, %v3026
    %3029 = vrot.lane.b32.xlu0 %v3018, 64
    %v3030 = vpop.permute.xlu0 %3029
    %v3032 = vmul.f32 %v3027, %v3030
    %3034 = vrot.lane.b32.xlu0 %v3032, 64
    %v3035 = vpop.permute.xlu0 %3034
    %v3037 = vadd.f32 %v2943, %v3035
    %v3038 = vtanh.pop %v3037
    %v3039 = vsub.f32 1.0, %v3027
    %3041 = vrot.lane.b32.xlu0 %v3038, 96
    %v3042 = vpop.permute.xlu0 %3041
    %v3044 = vmul.f32 %v3039, %v3042
    %v3045 = vmul.f32 %v3027, %v2704
    %v3046 = vadd.f32 %v3044, %v3045
    %3047 = vmatprep.subr.mxu0 0.0
    %3048 = vmatpush1.msra.mxu0 %v591
    %3049 = vmatprep.subr.mxu0 0.0
    %3050 = vmatpush1.msra.mxu0 %v592
    %3051 = vmatprep.subr.mxu0 0.0
    %3052 = vmatpush1.msra.mxu0 %v593
    %3053 = vmatprep.subr.mxu0 0.0
    %3054 = vmatpush1.msra.mxu0 %v594
    %3055 = vmatprep.subr.mxu0 0.0
    %3056 = vmatpush1.msra.mxu0 0.0
    %3057 = vmatprep.subr.mxu0 0.0
    %3058 = vmatpush1.msra.mxu0 0.0
    %3059 = vmatprep.subr.mxu0 0.0
    %3060 = vmatpush1.msra.mxu0 0.0
    %3061 = vmatprep.subr.mxu0 0.0
    %3062 = vmatpush1.msra.mxu0 0.0
    %3063 = vmatprep.subr.mxu0 0.0
    %3064 = vmatpush1.msra.mxu0 0.0
    %3065 = vmatprep.subr.mxu0 0.0
    %3066 = vmatpush1.msra.mxu0 0.0
    %3067 = vmatprep.subr.mxu0 0.0
    %3068 = vmatpush1.msra.mxu0 0.0
    %3069 = vmatprep.subr.mxu0 0.0
    %3070 = vmatpush1.msra.mxu0 0.0
    %3071 = vmatprep.subr.mxu0 0.0
    %3072 = vmatpush1.msra.mxu0 0.0
    %3073 = vmatprep.subr.mxu0 0.0
    %3074 = vmatpush1.msra.mxu0 0.0
    %3075 = vmatprep.subr.mxu0 0.0
    %3076 = vmatpush1.msra.mxu0 0.0
    %3077 = vmatprep.subr.mxu0 0.0
    %3078 = vmatpush1.msra.mxu0 0.0
    %3079 = vmatprep.subr.mxu0 0.0
    %3080 = vmatpush1.msra.mxu0 0.0
    %3081 = vmatprep.subr.mxu0 0.0
    %3082 = vmatpush1.msra.mxu0 0.0
    %3083 = vmatprep.subr.mxu0 0.0
    %3084 = vmatpush1.msra.mxu0 0.0
    %3085 = vmatprep.subr.mxu0 0.0
    %3086 = vmatpush1.msra.mxu0 0.0
    %3087 = vmatprep.subr.mxu0 0.0
    %3088 = vmatpush1.msra.mxu0 0.0
    %3089 = vmatprep.subr.mxu0 0.0
    %3090 = vmatpush1.msra.mxu0 0.0
    %3091 = vmatprep.subr.mxu0 0.0
    %3092 = vmatpush1.msra.mxu0 0.0
    %3093 = vmatprep.subr.mxu0 0.0
    %3094 = vmatpush1.msra.mxu0 0.0
    %3095 = vmatprep.subr.mxu0 0.0
    %3096 = vmatpush1.msra.mxu0 0.0
    %3097 = vmatprep.subr.mxu0 0.0
    %3098 = vmatpush1.msra.mxu0 0.0
    %3099 = vmatprep.subr.mxu0 0.0
    %3100 = vmatpush1.msra.mxu0 0.0
    %3101 = vmatprep.subr.mxu0 0.0
    %3102 = vmatpush1.msra.mxu0 0.0
    %3103 = vmatprep.subr.mxu0 0.0
    %3104 = vmatpush1.msra.mxu0 0.0
    %3105 = vmatprep.subr.mxu0 0.0
    %3106 = vmatpush1.msra.mxu0 0.0
    %3107 = vmatprep.subr.mxu0 0.0
    %3108 = vmatpush1.msra.mxu0 0.0
    %3109 = vmatprep.subr.mxu0 0.0
    %3110 = vmatpush1.msra.mxu0 0.0
    %3111 = vmatprep.mubr.f32.mxu0 0.0
    %3112 = vmatmul.mubr.f32.gmra.mrb[0].mxu0 %v804
    %v3113 = vpop.f32.mrb[0].mxu0
    %v3114 = vadd.f32 %v615, %v3113
    %v3115 = vpop.f32.mrb[0].mxu0
    %3116 = vdwg.mxu0
    %3118 = vrot.lane.b32.xlu0 %v2875, 96
    %v3119 = vpop.permute.xlu0 %3118
    %v3120 = vsel %vm617, %v3119, 0
    %3122 = vmatprep.subr.mxu0 0.0
    %3123 = vmatpush1.msra.mxu0 %v595
    %3124 = vmatprep.subr.mxu0 0.0
    %3125 = vmatpush1.msra.mxu0 %v596
    %3126 = vmatprep.subr.mxu0 0.0
    %3127 = vmatpush1.msra.mxu0 %v597
    %3128 = vmatprep.subr.mxu0 0.0
    %3129 = vmatpush1.msra.mxu0 %v598
    %3130 = vmatprep.subr.mxu0 0.0
    %3131 = vmatpush1.msra.mxu0 0.0
    %3132 = vmatprep.subr.mxu0 0.0
    %3133 = vmatpush1.msra.mxu0 0.0
    %3134 = vmatprep.subr.mxu0 0.0
    %3135 = vmatpush1.msra.mxu0 0.0
    %3136 = vmatprep.subr.mxu0 0.0
    %3137 = vmatpush1.msra.mxu0 0.0
    %3138 = vmatprep.subr.mxu0 0.0
    %3139 = vmatpush1.msra.mxu0 0.0
    %3140 = vmatprep.subr.mxu0 0.0
    %3141 = vmatpush1.msra.mxu0 0.0
    %3142 = vmatprep.subr.mxu0 0.0
    %3143 = vmatpush1.msra.mxu0 0.0
    %3144 = vmatprep.subr.mxu0 0.0
    %3145 = vmatpush1.msra.mxu0 0.0
    %3146 = vmatprep.subr.mxu0 0.0
    %3147 = vmatpush1.msra.mxu0 0.0
    %3148 = vmatprep.subr.mxu0 0.0
    %3149 = vmatpush1.msra.mxu0 0.0
    %3150 = vmatprep.subr.mxu0 0.0
    %3151 = vmatpush1.msra.mxu0 0.0
    %3152 = vmatprep.subr.mxu0 0.0
    %3153 = vmatpush1.msra.mxu0 0.0
    %3154 = vmatprep.subr.mxu0 0.0
    %3155 = vmatpush1.msra.mxu0 0.0
    %3156 = vmatprep.subr.mxu0 0.0
    %3157 = vmatpush1.msra.mxu0 0.0
    %3158 = vmatprep.subr.mxu0 0.0
    %3159 = vmatpush1.msra.mxu0 0.0
    %3160 = vmatprep.subr.mxu0 0.0
    %3161 = vmatpush1.msra.mxu0 0.0
    %3162 = vmatprep.subr.mxu0 0.0
    %3163 = vmatpush1.msra.mxu0 0.0
    %3164 = vmatprep.subr.mxu0 0.0
    %3165 = vmatpush1.msra.mxu0 0.0
    %3166 = vmatprep.subr.mxu0 0.0
    %3167 = vmatpush1.msra.mxu0 0.0
    %3168 = vmatprep.subr.mxu0 0.0
    %3169 = vmatpush1.msra.mxu0 0.0
    %3170 = vmatprep.subr.mxu0 0.0
    %3171 = vmatpush1.msra.mxu0 0.0
    %3172 = vmatprep.subr.mxu0 0.0
    %3173 = vmatpush1.msra.mxu0 0.0
    %3174 = vmatprep.subr.mxu0 0.0
    %3175 = vmatpush1.msra.mxu0 0.0
    %3176 = vmatprep.subr.mxu0 0.0
    %3177 = vmatpush1.msra.mxu0 0.0
    %3178 = vmatprep.subr.mxu0 0.0
    %3179 = vmatpush1.msra.mxu0 0.0
    %3180 = vmatprep.subr.mxu0 0.0
    %3181 = vmatpush1.msra.mxu0 0.0
    %3182 = vmatprep.subr.mxu0 0.0
    %3183 = vmatpush1.msra.mxu0 0.0
    %3184 = vmatprep.subr.mxu0 0.0
    %3185 = vmatpush1.msra.mxu0 0.0
    %3186 = vmatprep.mubr.f32.mxu0 0.0
    %3187 = vmatmul.mubr.f32.gmra.mrb[0].mxu0 %v3120
    %v3188 = vpop.f32.mrb[0].mxu0
    %v3189 = vadd.f32 %v695, %v3188
    %v3190 = vpop.f32.mrb[0].mxu0
    %3191 = vdwg.mxu0
    %v3192 = vadd.f32 %v3114, %v3189
    %v3193 = vxor.u32 %v3192, 2147483648
    %v3194 = vmul.f32 %v3193, 1.442695
    %v3195 = vpow.pop %v3194
    %v3196 = vadd.f32 %v3195, 1.0
    %v3197 = vrcp.pop %v3196
    %v3198 = vmul.f32 1.0, %v3197
    %3200 = vrot.lane.b32.xlu0 %v3189, 64
    %v3201 = vpop.permute.xlu0 %3200
    %v3203 = vmul.f32 %v3198, %v3201
    %3205 = vrot.lane.b32.xlu0 %v3203, 64
    %v3206 = vpop.permute.xlu0 %3205
    %v3208 = vadd.f32 %v3114, %v3206
    %v3209 = vtanh.pop %v3208
    %v3210 = vsub.f32 1.0, %v3198
    %3212 = vrot.lane.b32.xlu0 %v3209, 96
    %v3213 = vpop.permute.xlu0 %3212
    %v3215 = vmul.f32 %v3210, %v3213
    %v3216 = vmul.f32 %v3198, %v2875
    %v3217 = vadd.f32 %v3215, %v3216
    %3218 = vmatprep.subr.mxu0 0.0
    %3219 = vmatpush1.msra.mxu0 %v601
    %3220 = vmatprep.subr.mxu0 0.0
    %3221 = vmatpush1.msra.mxu0 %v602
    %3222 = vmatprep.subr.mxu0 0.0
    %3223 = vmatpush1.msra.mxu0 %v603
    %3224 = vmatprep.subr.mxu0 0.0
    %3225 = vmatpush1.msra.mxu0 %v604
    %3226 = vmatprep.subr.mxu0 0.0
    %3227 = vmatpush1.msra.mxu0 0.0
    %3228 = vmatprep.subr.mxu0 0.0
    %3229 = vmatpush1.msra.mxu0 0.0
    %3230 = vmatprep.subr.mxu0 0.0
    %3231 = vmatpush1.msra.mxu0 0.0
    %3232 = vmatprep.subr.mxu0 0.0
    %3233 = vmatpush1.msra.mxu0 0.0
    %3234 = vmatprep.subr.mxu0 0.0
    %3235 = vmatpush1.msra.mxu0 0.0
    %3236 = vmatprep.subr.mxu0 0.0
    %3237 = vmatpush1.msra.mxu0 0.0
    %3238 = vmatprep.subr.mxu0 0.0
    %3239 = vmatpush1.msra.mxu0 0.0
    %3240 = vmatprep.subr.mxu0 0.0
    %3241 = vmatpush1.msra.mxu0 0.0
    %3242 = vmatprep.subr.mxu0 0.0
    %3243 = vmatpush1.msra.mxu0 0.0
    %3244 = vmatprep.subr.mxu0 0.0
    %3245 = vmatpush1.msra.mxu0 0.0
    %3246 = vmatprep.subr.mxu0 0.0
    %3247 = vmatpush1.msra.mxu0 0.0
    %3248 = vmatprep.subr.mxu0 0.0
    %3249 = vmatpush1.msra.mxu0 0.0
    %3250 = vmatprep.subr.mxu0 0.0
    %3251 = vmatpush1.msra.mxu0 0.0
    %3252 = vmatprep.subr.mxu0 0.0
    %3253 = vmatpush1.msra.mxu0 0.0
    %3254 = vmatprep.subr.mxu0 0.0
    %3255 = vmatpush1.msra.mxu0 0.0
    %3256 = vmatprep.subr.mxu0 0.0
    %3257 = vmatpush1.msra.mxu0 0.0
    %3258 = vmatprep.subr.mxu0 0.0
    %3259 = vmatpush1.msra.mxu0 0.0
    %3260 = vmatprep.subr.mxu0 0.0
    %3261 = vmatpush1.msra.mxu0 0.0
    %3262 = vmatprep.subr.mxu0 0.0
    %3263 = vmatpush1.msra.mxu0 0.0
    %3264 = vmatprep.subr.mxu0 0.0
    %3265 = vmatpush1.msra.mxu0 0.0
    %3266 = vmatprep.subr.mxu0 0.0
    %3267 = vmatpush1.msra.mxu0 0.0
    %3268 = vmatprep.subr.mxu0 0.0
    %3269 = vmatpush1.msra.mxu0 0.0
    %3270 = vmatprep.subr.mxu0 0.0
    %3271 = vmatpush1.msra.mxu0 0.0
    %3272 = vmatprep.subr.mxu0 0.0
    %3273 = vmatpush1.msra.mxu0 0.0
    %3274 = vmatprep.subr.mxu0 0.0
    %3275 = vmatpush1.msra.mxu0 0.0
    %3276 = vmatprep.subr.mxu0 0.0
    %3277 = vmatpush1.msra.mxu0 0.0
    %3278 = vmatprep.subr.mxu0 0.0
    %3279 = vmatpush1.msra.mxu0 0.0
    %3280 = vmatprep.subr.mxu0 0.0
    %3281 = vmatpush1.msra.mxu0 0.0
    %3282 = vmatprep.mubr.f32.mxu0 0.0
    %3283 = vmatmul.mubr.f32.gmra.mrb[0].mxu0 %v619
    %v3284 = vpop.f32.mrb[0].mxu0
    %v3285 = vadd.f32 %v800, %v3284
    %v3286 = vpop.f32.mrb[0].mxu0
    %3287 = vdwg.mxu0
    %3289 = vrot.lane.b32.xlu0 %v3046, 96
    %v3290 = vpop.permute.xlu0 %3289
    %v3291 = vsel %vm617, %v3290, 0
    %3293 = vmatprep.subr.mxu0 0.0
    %3294 = vmatpush1.msra.mxu0 %v605
    %3295 = vmatprep.subr.mxu0 0.0
    %3296 = vmatpush1.msra.mxu0 %v606
    %3297 = vmatprep.subr.mxu0 0.0
    %3298 = vmatpush1.msra.mxu0 %v607
    %3299 = vmatprep.subr.mxu0 0.0
    %3300 = vmatpush1.msra.mxu0 %v608
    %3301 = vmatprep.subr.mxu0 0.0
    %3302 = vmatpush1.msra.mxu0 0.0
    %3303 = vmatprep.subr.mxu0 0.0
    %3304 = vmatpush1.msra.mxu0 0.0
    %3305 = vmatprep.subr.mxu0 0.0
    %3306 = vmatpush1.msra.mxu0 0.0
    %3307 = vmatprep.subr.mxu0 0.0
    %3308 = vmatpush1.msra.mxu0 0.0
    %3309 = vmatprep.subr.mxu0 0.0
    %3310 = vmatpush1.msra.mxu0 0.0
    %3311 = vmatprep.subr.mxu0 0.0
    %3312 = vmatpush1.msra.mxu0 0.0
    %3313 = vmatprep.subr.mxu0 0.0
    %3314 = vmatpush1.msra.mxu0 0.0
    %3315 = vmatprep.subr.mxu0 0.0
    %3316 = vmatpush1.msra.mxu0 0.0
    %3317 = vmatprep.subr.mxu0 0.0
    %3318 = vmatpush1.msra.mxu0 0.0
    %3319 = vmatprep.subr.mxu0 0.0
    %3320 = vmatpush1.msra.mxu0 0.0
    %3321 = vmatprep.subr.mxu0 0.0
    %3322 = vmatpush1.msra.mxu0 0.0
    %3323 = vmatprep.subr.mxu0 0.0
    %3324 = vmatpush1.msra.mxu0 0.0
    %3325 = vmatprep.subr.mxu0 0.0
    %3326 = vmatpush1.msra.mxu0 0.0
    %3327 = vmatprep.subr.mxu0 0.0
    %3328 = vmatpush1.msra.mxu0 0.0
    %3329 = vmatprep.subr.mxu0 0.0
    %3330 = vmatpush1.msra.mxu0 0.0
    %3331 = vmatprep.subr.mxu0 0.0
    %3332 = vmatpush1.msra.mxu0 0.0
    %3333 = vmatprep.subr.mxu0 0.0
    %3334 = vmatpush1.msra.mxu0 0.0
    %3335 = vmatprep.subr.mxu0 0.0
    %3336 = vmatpush1.msra.mxu0 0.0
    %3337 = vmatprep.subr.mxu0 0.0
    %3338 = vmatpush1.msra.mxu0 0.0
    %3339 = vmatprep.subr.mxu0 0.0
    %3340 = vmatpush1.msra.mxu0 0.0
    %3341 = vmatprep.subr.mxu0 0.0
    %3342 = vmatpush1.msra.mxu0 0.0
    %3343 = vmatprep.subr.mxu0 0.0
    %3344 = vmatpush1.msra.mxu0 0.0
    %3345 = vmatprep.subr.mxu0 0.0
    %3346 = vmatpush1.msra.mxu0 0.0
    %3347 = vmatprep.subr.mxu0 0.0
    %3348 = vmatpush1.msra.mxu0 0.0
    %3349 = vmatprep.subr.mxu0 0.0
    %3350 = vmatpush1.msra.mxu0 0.0
    %3351 = vmatprep.subr.mxu0 0.0
    %3352 = vmatpush1.msra.mxu0 0.0
    %3353 = vmatprep.subr.mxu0 0.0
    %3354 = vmatpush1.msra.mxu0 0.0
    %3355 = vmatprep.subr.mxu0 0.0
    %3356 = vmatpush1.msra.mxu0 0.0
    %3357 = vmatprep.mubr.f32.mxu0 0.0
    %3358 = vmatmul.mubr.f32.gmra.mrb[0].mxu0 %v3291
    %v3359 = vpop.f32.mrb[0].mxu0
    %v3360 = vadd.f32 %v880, %v3359
    %v3361 = vpop.f32.mrb[0].mxu0
    %3362 = vdwg.mxu0
    %v3363 = vadd.f32 %v3285, %v3360
    %v3364 = vxor.u32 %v3363, 2147483648
    %v3365 = vmul.f32 %v3364, 1.442695
    %v3366 = vpow.pop %v3365
    %v3367 = vadd.f32 %v3366, 1.0
    %v3368 = vrcp.pop %v3367
    %v3369 = vmul.f32 1.0, %v3368
    %3371 = vrot.lane.b32.xlu0 %v3360, 64
    %v3372 = vpop.permute.xlu0 %3371
    %v3374 = vmul.f32 %v3369, %v3372
    %3376 = vrot.lane.b32.xlu0 %v3374, 64
    %v3377 = vpop.permute.xlu0 %3376
    %v3379 = vadd.f32 %v3285, %v3377
    %v3380 = vtanh.pop %v3379
    %v3381 = vsub.f32 1.0, %v3369
    %3383 = vrot.lane.b32.xlu0 %v3380, 96
    %v3384 = vpop.permute.xlu0 %3383
    %v3386 = vmul.f32 %v3381, %v3384
    %v3387 = vmul.f32 %v3369, %v3046
    %v3388 = vadd.f32 %v3386, %v3387
    %3390 = vrot.lane.b32.xlu0 %v3217, 96
    %v3391 = vpop.permute.xlu0 %3390
    %v3393 = vsel %vm617, %v3391, %v3388
    %v3394 = vld [vmem:[%s13] sm:$0xff]
    %v3395 = vld [vmem:[%s13 + $0x8] sm:$0xff]
    %v3396 = vld [vmem:[%s13 + $0x10] sm:$0xff]
    %v3397 = vld [vmem:[%s13 + $0x18] sm:$0xff]
    %v3398 = vld [vmem:[%s13 + $0x20] sm:$0xff]
    %v3399 = vld [vmem:[%s13 + $0x28] sm:$0xff]
    %v3400 = vld [vmem:[%s13 + $0x30] sm:$0xff]
    %v3401 = vld [vmem:[%s13 + $0x38] sm:$0xff]
    %v3402 = vld [vmem:[%s14] sm:$0x1]
    %v3404 = vlaneseq
    %v3405 = vshrl.u32 %v3404, 7
    %v3406 = vsub.s32 0, %v3405
    %v3407 = vrot.slane %v3402, %v3406
    %vm3409 = vcmask 523264
    %v3411 = vsel %vm3409, %v3393, 0
    %3413 = vmatprep.subr.mxu0 0.0
    %3414 = vmatpush1.msra.mxu0 %v3394
    %3415 = vmatprep.subr.mxu0 0.0
    %3416 = vmatpush1.msra.mxu0 %v3395
    %3417 = vmatprep.subr.mxu0 0.0
    %3418 = vmatpush1.msra.mxu0 %v3396
    %3419 = vmatprep.subr.mxu0 0.0
    %3420 = vmatpush1.msra.mxu0 %v3397
    %3421 = vmatprep.subr.mxu0 0.0
    %3422 = vmatpush1.msra.mxu0 %v3398
    %3423 = vmatprep.subr.mxu0 0.0
    %3424 = vmatpush1.msra.mxu0 %v3399
    %3425 = vmatprep.subr.mxu0 0.0
    %3426 = vmatpush1.msra.mxu0 %v3400
    %3427 = vmatprep.subr.mxu0 0.0
    %3428 = vmatpush1.msra.mxu0 %v3401
    %3429 = vmatprep.subr.mxu0 0.0
    %3430 = vmatpush1.msra.mxu0 0.0
    %3431 = vmatprep.subr.mxu0 0.0
    %3432 = vmatpush1.msra.mxu0 0.0
    %3433 = vmatprep.subr.mxu0 0.0
    %3434 = vmatpush1.msra.mxu0 0.0
    %3435 = vmatprep.subr.mxu0 0.0
    %3436 = vmatpush1.msra.mxu0 0.0
    %3437 = vmatprep.subr.mxu0 0.0
    %3438 = vmatpush1.msra.mxu0 0.0
    %3439 = vmatprep.subr.mxu0 0.0
    %3440 = vmatpush1.msra.mxu0 0.0
    %3441 = vmatprep.subr.mxu0 0.0
    %3442 = vmatpush1.msra.mxu0 0.0
    %3443 = vmatprep.subr.mxu0 0.0
    %3444 = vmatpush1.msra.mxu0 0.0
    %3445 = vmatprep.subr.mxu0 0.0
    %3446 = vmatpush1.msra.mxu0 0.0
    %3447 = vmatprep.subr.mxu0 0.0
    %3448 = vmatpush1.msra.mxu0 0.0
    %3449 = vmatprep.subr.mxu0 0.0
    %3450 = vmatpush1.msra.mxu0 0.0
    %3451 = vmatprep.subr.mxu0 0.0
    %3452 = vmatpush1.msra.mxu0 0.0
    %3453 = vmatprep.subr.mxu0 0.0
    %3454 = vmatpush1.msra.mxu0 0.0
    %3455 = vmatprep.subr.mxu0 0.0
    %3456 = vmatpush1.msra.mxu0 0.0
    %3457 = vmatprep.subr.mxu0 0.0
    %3458 = vmatpush1.msra.mxu0 0.0
    %3459 = vmatprep.subr.mxu0 0.0
    %3460 = vmatpush1.msra.mxu0 0.0
    %3461 = vmatprep.subr.mxu0 0.0
    %3462 = vmatpush1.msra.mxu0 0.0
    %3463 = vmatprep.subr.mxu0 0.0
    %3464 = vmatpush1.msra.mxu0 0.0
    %3465 = vmatprep.subr.mxu0 0.0
    %3466 = vmatpush1.msra.mxu0 0.0
    %3467 = vmatprep.subr.mxu0 0.0
    %3468 = vmatpush1.msra.mxu0 0.0
    %3469 = vmatprep.subr.mxu0 0.0
    %3470 = vmatpush1.msra.mxu0 0.0
    %3471 = vmatprep.subr.mxu0 0.0
    %3472 = vmatpush1.msra.mxu0 0.0
    %3473 = vmatprep.subr.mxu0 0.0
    %3474 = vmatpush1.msra.mxu0 0.0
    %3475 = vmatprep.subr.mxu0 0.0
    %3476 = vmatpush1.msra.mxu0 0.0
    %3477 = vmatprep.mubr.f32.mxu0 0.0
    %3478 = vmatmul.mubr.f32.gmra.mrb[0].mxu0 %v3411
    %v3479 = vpop.f32.mrb[0].mxu0
    %v3480 = vadd.f32 %v3407, %v3479
    %v3481 = vpop.f32.mrb[0].mxu0
    %3482 = vdwg.mxu0
    %v3483 = vtanh.pop %v3480
    %v3485 = vsel %vm617, %v1053, %v3388
    %v3487 = vsel %vm617, %v1401, %v3046
    %v3489 = vsel %vm617, %v1749, %v2704
    %v3491 = vsel %vm617, %v2093, %v2362
    %v3493 = vsel %vm617, %v2435, %v2020
    %v3495 = vsel %vm617, %v2777, %v1673
    %v3497 = vsel %vm617, %v3119, %v1325
    %v3498 = vsel %vm617, %v3391, %v977
    %v3501 = vunpack.c.l.s4 1966171168
    %v3502 = vunpack.c.0.s8 %v3501
    %v3503 = vlaneseq
    %v3504 = vshrl.u32 %v3503, 7
    %v3505 = vsub.s32 %v3502, %v3504
    %v3506 = vrot.slane %v3485, %v3505
    %v3507 = vcombine.high %v3506, %v3506
    %v3509 = vunpack.c.l.s4 1966171168
    %v3510 = vunpack.c.0.s8 %v3509
    %v3511 = vlaneseq
    %v3512 = vshrl.u32 %v3511, 7
    %v3513 = vsub.s32 %v3510, %v3512
    %v3514 = vrot.slane %v3506, %v3513
    %v3516 = vunpack.c.l.s4 1966171168
    %v3517 = vunpack.c.0.s8 %v3516
    %v3518 = vlaneseq
    %v3519 = vshrl.u32 %v3518, 7
    %v3520 = vsub.s32 %v3517, %v3519
    %v3521 = vrot.slane %v3507, %v3520
    %v3526 = vunpack.c.l.s4 1966171168
    %v3527 = vunpack.c.0.s8 %v3526
    %v3528 = vlaneseq
    %v3529 = vshrl.u32 %v3528, 7
    %v3530 = vsub.s32 %v3527, %v3529
    %v3531 = vrot.slane %v3487, %v3530
    %v3532 = vcombine.high %v3531, %v3531
    %v3534 = vunpack.c.l.s4 1966171168
    %v3535 = vunpack.c.0.s8 %v3534
    %v3536 = vlaneseq
    %v3537 = vshrl.u32 %v3536, 7
    %v3538 = vsub.s32 %v3535, %v3537
    %v3539 = vrot.slane %v3531, %v3538
    %v3541 = vunpack.c.l.s4 1966171168
    %v3542 = vunpack.c.0.s8 %v3541
    %v3543 = vlaneseq
    %v3544 = vshrl.u32 %v3543, 7
    %v3545 = vsub.s32 %v3542, %v3544
    %v3546 = vrot.slane %v3532, %v3545
    %v3549 = vunpack.c.l.s4 1966171168
    %v3550 = vunpack.c.0.s8 %v3549
    %v3551 = vlaneseq
    %v3552 = vshrl.u32 %v3551, 7
    %v3553 = vsub.s32 %v3550, %v3552
    %v3554 = vrot.slane %v3489, %v3553
    %v3555 = vcombine.high %v3554, %v3554
    %v3557 = vunpack.c.l.s4 1966171168
    %v3558 = vunpack.c.0.s8 %v3557
    %v3559 = vlaneseq
    %v3560 = vshrl.u32 %v3559, 7
    %v3561 = vsub.s32 %v3558, %v3560
    %v3562 = vrot.slane %v3554, %v3561
    %v3564 = vunpack.c.l.s4 1966171168
    %v3565 = vunpack.c.0.s8 %v3564
    %v3566 = vlaneseq
    %v3567 = vshrl.u32 %v3566, 7
    %v3568 = vsub.s32 %v3565, %v3567
    %v3569 = vrot.slane %v3555, %v3568
    %v3572 = vunpack.c.l.s4 1966171168
    %v3573 = vunpack.c.0.s8 %v3572
    %v3574 = vlaneseq
    %v3575 = vshrl.u32 %v3574, 7
    %v3576 = vsub.s32 %v3573, %v3575
    %v3577 = vrot.slane %v3491, %v3576
    %v3578 = vcombine.high %v3577, %v3577
    %v3580 = vunpack.c.l.s4 1966171168
    %v3581 = vunpack.c.0.s8 %v3580
    %v3582 = vlaneseq
    %v3583 = vshrl.u32 %v3582, 7
    %v3584 = vsub.s32 %v3581, %v3583
    %v3585 = vrot.slane %v3577, %v3584
    %v3587 = vunpack.c.l.s4 1966171168
    %v3588 = vunpack.c.0.s8 %v3587
    %v3589 = vlaneseq
    %v3590 = vshrl.u32 %v3589, 7
    %v3591 = vsub.s32 %v3588, %v3590
    %v3592 = vrot.slane %v3578, %v3591
    %v3595 = vunpack.c.l.s4 1966171168
    %v3596 = vunpack.c.0.s8 %v3595
    %v3597 = vlaneseq
    %v3598 = vshrl.u32 %v3597, 7
    %v3599 = vsub.s32 %v3596, %v3598
    %v3600 = vrot.slane %v3493, %v3599
    %v3601 = vcombine.high %v3600, %v3600
    %v3603 = vunpack.c.l.s4 1966171168
    %v3604 = vunpack.c.0.s8 %v3603
    %v3605 = vlaneseq
    %v3606 = vshrl.u32 %v3605, 7
    %v3607 = vsub.s32 %v3604, %v3606
    %v3608 = vrot.slane %v3600, %v3607
    %v3610 = vunpack.c.l.s4 1966171168
    %v3611 = vunpack.c.0.s8 %v3610
    %v3612 = vlaneseq
    %v3613 = vshrl.u32 %v3612, 7
    %v3614 = vsub.s32 %v3611, %v3613
    %v3615 = vrot.slane %v3601, %v3614
    %v3618 = vunpack.c.l.s4 1966171168
    %v3619 = vunpack.c.0.s8 %v3618
    %v3620 = vlaneseq
    %v3621 = vshrl.u32 %v3620, 7
    %v3622 = vsub.s32 %v3619, %v3621
    %v3623 = vrot.slane %v3495, %v3622
    %v3624 = vcombine.high %v3623, %v3623
    %v3626 = vunpack.c.l.s4 1966171168
    %v3627 = vunpack.c.0.s8 %v3626
    %v3628 = vlaneseq
    %v3629 = vshrl.u32 %v3628, 7
    %v3630 = vsub.s32 %v3627, %v3629
    %v3631 = vrot.slane %v3623, %v3630
    %v3633 = vunpack.c.l.s4 1966171168
    %v3634 = vunpack.c.0.s8 %v3633
    %v3635 = vlaneseq
    %v3636 = vshrl.u32 %v3635, 7
    %v3637 = vsub.s32 %v3634, %v3636
    %v3638 = vrot.slane %v3624, %v3637
    %v3641 = vunpack.c.l.s4 1966171168
    %v3642 = vunpack.c.0.s8 %v3641
    %v3643 = vlaneseq
    %v3644 = vshrl.u32 %v3643, 7
    %v3645 = vsub.s32 %v3642, %v3644
    %v3646 = vrot.slane %v3497, %v3645
    %v3647 = vcombine.high %v3646, %v3646
    %v3649 = vunpack.c.l.s4 1966171168
    %v3650 = vunpack.c.0.s8 %v3649
    %v3651 = vlaneseq
    %v3652 = vshrl.u32 %v3651, 7
    %v3653 = vsub.s32 %v3650, %v3652
    %v3654 = vrot.slane %v3646, %v3653
    %v3656 = vunpack.c.l.s4 1966171168
    %v3657 = vunpack.c.0.s8 %v3656
    %v3658 = vlaneseq
    %v3659 = vshrl.u32 %v3658, 7
    %v3660 = vsub.s32 %v3657, %v3659
    %v3661 = vrot.slane %v3647, %v3660
    %v3664 = vunpack.c.l.s4 1966171168
    %v3665 = vunpack.c.0.s8 %v3664
    %v3666 = vlaneseq
    %v3667 = vshrl.u32 %v3666, 7
    %v3668 = vsub.s32 %v3665, %v3667
    %v3669 = vrot.slane %v3498, %v3668
    %v3670 = vcombine.high %v3669, %v3669
    %v3672 = vunpack.c.l.s4 1966171168
    %v3673 = vunpack.c.0.s8 %v3672
    %v3674 = vlaneseq
    %v3675 = vshrl.u32 %v3674, 7
    %v3676 = vsub.s32 %v3673, %v3675
    %v3677 = vrot.slane %v3669, %v3676
    %v3679 = vunpack.c.l.s4 1966171168
    %v3680 = vunpack.c.0.s8 %v3679
    %v3681 = vlaneseq
    %v3682 = vshrl.u32 %v3681, 7
    %v3683 = vsub.s32 %v3680, %v3682
    %v3684 = vrot.slane %v3670, %v3683
    %v3685 = vlaneseq
    %v3686 = vshrl.u32 %v3685, 7
    %v3687 = vsub.s32 0, %v3686
    %v3688 = vrot.slane %v3539, %v3687
    %v3689 = vlaneseq
    %v3690 = vshrl.u32 %v3689, 7
    %v3691 = vsub.s32 0, %v3690
    %v3692 = vrot.slane %v3546, %v3691
    %v3695 = vlaneseq
    %v3696 = vshrl.u32 %v3695, 7
    %v3697 = vsub.s32 0, %v3696
    %v3698 = vrot.slane %v3562, %v3697
    %v3699 = vlaneseq
    %v3700 = vshrl.u32 %v3699, 7
    %v3701 = vsub.s32 0, %v3700
    %v3702 = vrot.slane %v3569, %v3701
    %v3705 = vlaneseq
    %v3706 = vshrl.u32 %v3705, 7
    %v3707 = vsub.s32 0, %v3706
    %v3708 = vrot.slane %v3585, %v3707
    %v3709 = vlaneseq
    %v3710 = vshrl.u32 %v3709, 7
    %v3711 = vsub.s32 0, %v3710
    %v3712 = vrot.slane %v3592, %v3711
    %v3715 = vlaneseq
    %v3716 = vshrl.u32 %v3715, 7
    %v3717 = vsub.s32 0, %v3716
    %v3718 = vrot.slane %v3608, %v3717
    %v3719 = vlaneseq
    %v3720 = vshrl.u32 %v3719, 7
    %v3721 = vsub.s32 0, %v3720
    %v3722 = vrot.slane %v3615, %v3721
    %v3725 = vlaneseq
    %v3726 = vshrl.u32 %v3725, 7
    %v3727 = vsub.s32 0, %v3726
    %v3728 = vrot.slane %v3631, %v3727
    %v3729 = vlaneseq
    %v3730 = vshrl.u32 %v3729, 7
    %v3731 = vsub.s32 0, %v3730
    %v3732 = vrot.slane %v3638, %v3731
    %v3735 = vlaneseq
    %v3736 = vshrl.u32 %v3735, 7
    %v3737 = vsub.s32 0, %v3736
    %v3738 = vrot.slane %v3654, %v3737
    %v3739 = vlaneseq
    %v3740 = vshrl.u32 %v3739, 7
    %v3741 = vsub.s32 0, %v3740
    %v3742 = vrot.slane %v3661, %v3741
    %v3745 = vlaneseq
    %v3746 = vshrl.u32 %v3745, 7
    %v3747 = vsub.s32 0, %v3746
    %v3748 = vrot.slane %v3677, %v3747
    %v3749 = vlaneseq
    %v3750 = vshrl.u32 %v3749, 7
    %v3751 = vsub.s32 0, %v3750
    %v3752 = vrot.slane %v3684, %v3751
    %v3755 = vsel %vm309, %v3514, %v3688
    %v3756 = vsel %vm309, %v3521, %v3692
    %v3757 = vsel %vm311, %v3755, %v3698
    %v3758 = vsel %vm311, %v3756, %v3702
    %v3759 = vsel %vm313, %v3757, %v3708
    %v3760 = vsel %vm313, %v3758, %v3712
    %v3761 = vsel %vm315, %v3759, %v3718
    %v3762 = vsel %vm315, %v3760, %v3722
    %v3763 = vsel %vm317, %v3761, %v3728
    %v3764 = vsel %vm317, %v3762, %v3732
    %v3765 = vsel %vm319, %v3763, %v3738
    %v3766 = vsel %vm319, %v3764, %v3742
    %v3767 = vsel %vm321, %v3765, %v3748
    %v3768 = vsel %vm321, %v3766, %v3752
    %v3769 = vld [vmem:[%s15] sm:$0xff]
    %v3770 = vld [vmem:[%s15 + $0x8] sm:$0xff]
    %v3771 = vld [vmem:[%s15 + $0x10] sm:$0xff]
    %v3772 = vld [vmem:[%s15 + $0x18] sm:$0xff]
    %v3773 = vld [vmem:[%s15 + $0x20] sm:$0xff]
    %v3774 = vld [vmem:[%s15 + $0x28] sm:$0xff]
    %v3775 = vld [vmem:[%s15 + $0x30] sm:$0xff]
    %v3776 = vld [vmem:[%s15 + $0x38] sm:$0xff]
    %v3778 = vsel %vm3409, %v3767, 0
    %v3781 = vsel %vm3409, %v3768, 0
    %3783 = vmatprep.subr.mxu0 0.0
    %3784 = vmatpush1.msra.mxu0 %v3769
    %3785 = vmatprep.subr.mxu0 0.0
    %3786 = vmatpush1.msra.mxu0 %v3770
    %3787 = vmatprep.subr.mxu0 0.0
    %3788 = vmatpush1.msra.mxu0 %v3771
    %3789 = vmatprep.subr.mxu0 0.0
    %3790 = vmatpush1.msra.mxu0 %v3772
    %3791 = vmatprep.subr.mxu0 0.0
    %3792 = vmatpush1.msra.mxu0 %v3773
    %3793 = vmatprep.subr.mxu0 0.0
    %3794 = vmatpush1.msra.mxu0 %v3774
    %3795 = vmatprep.subr.mxu0 0.0
    %3796 = vmatpush1.msra.mxu0 %v3775
    %3797 = vmatprep.subr.mxu0 0.0
    %3798 = vmatpush1.msra.mxu0 %v3776
    %3799 = vmatprep.subr.mxu0 0.0
    %3800 = vmatpush1.msra.mxu0 0.0
    %3801 = vmatprep.subr.mxu0 0.0
    %3802 = vmatpush1.msra.mxu0 0.0
    %3803 = vmatprep.subr.mxu0 0.0
    %3804 = vmatpush1.msra.mxu0 0.0
    %3805 = vmatprep.subr.mxu0 0.0
    %3806 = vmatpush1.msra.mxu0 0.0
    %3807 = vmatprep.subr.mxu0 0.0
    %3808 = vmatpush1.msra.mxu0 0.0
    %3809 = vmatprep.subr.mxu0 0.0
    %3810 = vmatpush1.msra.mxu0 0.0
    %3811 = vmatprep.subr.mxu0 0.0
    %3812 = vmatpush1.msra.mxu0 0.0
    %3813 = vmatprep.subr.mxu0 0.0
    %3814 = vmatpush1.msra.mxu0 0.0
    %3815 = vmatprep.subr.mxu0 0.0
    %3816 = vmatpush1.msra.mxu0 0.0
    %3817 = vmatprep.subr.mxu0 0.0
    %3818 = vmatpush1.msra.mxu0 0.0
    %3819 = vmatprep.subr.mxu0 0.0
    %3820 = vmatpush1.msra.mxu0 0.0
    %3821 = vmatprep.subr.mxu0 0.0
    %3822 = vmatpush1.msra.mxu0 0.0
    %3823 = vmatprep.subr.mxu0 0.0
    %3824 = vmatpush1.msra.mxu0 0.0
    %3825 = vmatprep.subr.mxu0 0.0
    %3826 = vmatpush1.msra.mxu0 0.0
    %3827 = vmatprep.subr.mxu0 0.0
    %3828 = vmatpush1.msra.mxu0 0.0
    %3829 = vmatprep.subr.mxu0 0.0
    %3830 = vmatpush1.msra.mxu0 0.0
    %3831 = vmatprep.subr.mxu0 0.0
    %3832 = vmatpush1.msra.mxu0 0.0
    %3833 = vmatprep.subr.mxu0 0.0
    %3834 = vmatpush1.msra.mxu0 0.0
    %3835 = vmatprep.subr.mxu0 0.0
    %3836 = vmatpush1.msra.mxu0 0.0
    %3837 = vmatprep.subr.mxu0 0.0
    %3838 = vmatpush1.msra.mxu0 0.0
    %3839 = vmatprep.subr.mxu0 0.0
    %3840 = vmatpush1.msra.mxu0 0.0
    %3841 = vmatprep.subr.mxu0 0.0
    %3842 = vmatpush1.msra.mxu0 0.0
    %3843 = vmatprep.subr.mxu0 0.0
    %3844 = vmatpush1.msra.mxu0 0.0
    %3845 = vmatprep.subr.mxu0 0.0
    %3846 = vmatpush1.msra.mxu0 0.0
    %3847 = vmatprep.mubr.f32.mxu0 0.0
    %3848 = vmatmul.mubr.f32.gmra.mrb[0].mxu0 %v3778
    %v3849 = vpop.f32.mrb[0].mxu0
    %v3850 = vadd.f32 0.0, %v3849
    %v3851 = vpop.f32.mrb[0].mxu0
    %3852 = vmatprep.mubr.f32.mxu0 0.0
    %3853 = vmatmul.mubr.f32.gmra.mrb[0].mxu0 %v3781
    %v3854 = vpop.f32.mrb[0].mxu0
    %v3855 = vadd.f32 0.0, %v3854
    %v3856 = vpop.f32.mrb[0].mxu0
    %3857 = vdwg.mxu0
    %v3858 = vld [vmem:[%s16] sm:$0xff]
    %v3859 = vld [vmem:[%s16 + $0x8] sm:$0xff]
    %v3860 = vld [vmem:[%s16 + $0x10] sm:$0xff]
    %v3861 = vld [vmem:[%s16 + $0x18] sm:$0xff]
    %3863 = vset.pattern.permute.xlu0 0
    %3864 = vperm.xlu0 %3863, %v3858
    %v3865 = vpop.permute.xlu0 %3864
    %3868 = vset.pattern.permute.xlu0 0
    %3869 = vperm.xlu0 %3868, %v3859
    %v3870 = vpop.permute.xlu0 %3869
    %3873 = vset.pattern.permute.xlu0 0
    %3874 = vperm.xlu0 %3873, %v3860
    %v3875 = vpop.permute.xlu0 %3874
    %3878 = vset.pattern.permute.xlu0 0
    %3879 = vperm.xlu0 %3878, %v3861
    %v3880 = vpop.permute.xlu0 %3879
    %v3882 = vlaneseq
    %v3883 = vshrl.u32 %v3882, 7
    %vm3884 = vcmp.eq.s32.totalorder %v3883, %v228
    %v3885 = vsel %vm3884, 1, 0
    %v3886 = vcvt.s32.f32 %v3885
    %v3887 = vmul.u32 %v3883, 8
    %vm3888 = vcmp.ge.s32.totalorder %v228, %v3887
    %v3889 = vadd.s32 %v3883, 1
    %v3890 = vmul.u32 %v3889, 8
    %vm3891 = vcmp.lt.s32.totalorder %v228, %v3890
    %vm3892 = vmand %vm3888, %vm3891
    %v3893 = vsel %vm3892, 1, 0
    %v3894 = vcvt.s32.f32 %v3893
    %v3895 = vld [vmem:[%s17] sm:$0xff]
    %v3896 = vld [vmem:[%s17 + $0x8] sm:$0xff]
    %v3897 = vld [vmem:[%s17 + $0x10] sm:$0xff]
    %v3898 = vld [vmem:[%s17 + $0x18] sm:$0xff]
    %v3899 = vld [vmem:[%s18] sm:$0x1]
    %v3900 = vld [vmem:[%s19] sm:$0xff]
    %v3901 = vld [vmem:[%s19 + $0x8] sm:$0xff]
    %v3902 = vld [vmem:[%s19 + $0x10] sm:$0xff]
    %v3903 = vld [vmem:[%s19 + $0x18] sm:$0xff]
    %v3904 = vld [vmem:[%s19 + $0x20] sm:$0xff]
    %v3905 = vld [vmem:[%s19 + $0x28] sm:$0xff]
    %v3906 = vld [vmem:[%s19 + $0x30] sm:$0xff]
    %v3907 = vld [vmem:[%s19 + $0x38] sm:$0xff]
    %v3908 = vld [vmem:[%s19 + $0x40] sm:$0xff]
    %v3909 = vld [vmem:[%s19 + $0x48] sm:$0xff]
    %v3910 = vld [vmem:[%s19 + $0x50] sm:$0xff]
    %v3911 = vld [vmem:[%s19 + $0x58] sm:$0xff]
    %v3912 = vld [vmem:[%s20] sm:$0x1]
    %v3913 = vld [vmem:[%s21] sm:$0xff]
    %v3914 = vld [vmem:[%s21 + $0x8] sm:$0xff]
    %v3915 = vld [vmem:[%s21 + $0x10] sm:$0xff]
    %v3916 = vld [vmem:[%s21 + $0x18] sm:$0xff]
    %v3917 = vld [vmem:[%s21 + $0x20] sm:$0xff]
    %v3918 = vld [vmem:[%s21 + $0x28] sm:$0xff]
    %v3919 = vld [vmem:[%s21 + $0x30] sm:$0xff]
    %v3920 = vld [vmem:[%s21 + $0x38] sm:$0xff]
    %v3921 = vld [vmem:[%s21 + $0x40] sm:$0xff]
    %v3922 = vld [vmem:[%s21 + $0x48] sm:$0xff]
    %v3923 = vld [vmem:[%s21 + $0x50] sm:$0xff]
    %v3924 = vld [vmem:[%s21 + $0x58] sm:$0xff]
    %v3925 = vld [vmem:[%s21 + $0x60] sm:$0xff]
    %v3926 = vld [vmem:[%s21 + $0x68] sm:$0xff]
    %v3927 = vld [vmem:[%s21 + $0x70] sm:$0xff]
    %v3928 = vld [vmem:[%s21 + $0x78] sm:$0xff]
    %v3929 = vld [vmem:[%s22] sm:$0x1]
    %v3931 = vlaneseq
    %v3932 = vshrl.u32 %v3931, 7
    %v3933 = vsub.s32 0, %v3932
    %v3934 = vrot.slane %v3899, %v3933
    %v3937 = vsel %vm617, %v3483, 0
    %3939 = vmatprep.subr.mxu0 0.0
    %3940 = vmatpush1.msra.mxu0 %v3895
    %3941 = vmatprep.subr.mxu0 0.0
    %3942 = vmatpush1.msra.mxu0 %v3896
    %3943 = vmatprep.subr.mxu0 0.0
    %3944 = vmatpush1.msra.mxu0 %v3897
    %3945 = vmatprep.subr.mxu0 0.0
    %3946 = vmatpush1.msra.mxu0 %v3898
    %3947 = vmatprep.subr.mxu0 0.0
    %3948 = vmatpush1.msra.mxu0 0.0
    %3949 = vmatprep.subr.mxu0 0.0
    %3950 = vmatpush1.msra.mxu0 0.0
    %3951 = vmatprep.subr.mxu0 0.0
    %3952 = vmatpush1.msra.mxu0 0.0
    %3953 = vmatprep.subr.mxu0 0.0
    %3954 = vmatpush1.msra.mxu0 0.0
    %3955 = vmatprep.subr.mxu0 0.0
    %3956 = vmatpush1.msra.mxu0 0.0
    %3957 = vmatprep.subr.mxu0 0.0
    %3958 = vmatpush1.msra.mxu0 0.0
    %3959 = vmatprep.subr.mxu0 0.0
    %3960 = vmatpush1.msra.mxu0 0.0
    %3961 = vmatprep.subr.mxu0 0.0
    %3962 = vmatpush1.msra.mxu0 0.0
    %3963 = vmatprep.subr.mxu0 0.0
    %3964 = vmatpush1.msra.mxu0 0.0
    %3965 = vmatprep.subr.mxu0 0.0
    %3966 = vmatpush1.msra.mxu0 0.0
    %3967 = vmatprep.subr.mxu0 0.0
    %3968 = vmatpush1.msra.mxu0 0.0
    %3969 = vmatprep.subr.mxu0 0.0
    %3970 = vmatpush1.msra.mxu0 0.0
    %3971 = vmatprep.subr.mxu0 0.0
    %3972 = vmatpush1.msra.mxu0 0.0
    %3973 = vmatprep.subr.mxu0 0.0
    %3974 = vmatpush1.msra.mxu0 0.0
    %3975 = vmatprep.subr.mxu0 0.0
    %3976 = vmatpush1.msra.mxu0 0.0
    %3977 = vmatprep.subr.mxu0 0.0
    %3978 = vmatpush1.msra.mxu0 0.0
    %3979 = vmatprep.subr.mxu0 0.0
    %3980 = vmatpush1.msra.mxu0 0.0
    %3981 = vmatprep.subr.mxu0 0.0
    %3982 = vmatpush1.msra.mxu0 0.0
    %3983 = vmatprep.subr.mxu0 0.0
    %3984 = vmatpush1.msra.mxu0 0.0
    %3985 = vmatprep.subr.mxu0 0.0
    %3986 = vmatpush1.msra.mxu0 0.0
    %3987 = vmatprep.subr.mxu0 0.0
    %3988 = vmatpush1.msra.mxu0 0.0
    %3989 = vmatprep.subr.mxu0 0.0
    %3990 = vmatpush1.msra.mxu0 0.0
    %3991 = vmatprep.subr.mxu0 0.0
    %3992 = vmatpush1.msra.mxu0 0.0
    %3993 = vmatprep.subr.mxu0 0.0
    %3994 = vmatpush1.msra.mxu0 0.0
    %3995 = vmatprep.subr.mxu0 0.0
    %3996 = vmatpush1.msra.mxu0 0.0
    %3997 = vmatprep.subr.mxu0 0.0
    %3998 = vmatpush1.msra.mxu0 0.0
    %3999 = vmatprep.subr.mxu0 0.0
    %4000 = vmatpush1.msra.mxu0 0.0
    %4001 = vmatprep.subr.mxu0 0.0
    %4002 = vmatpush1.msra.mxu0 0.0
    %4003 = vmatprep.mubr.f32.mxu0 0.0
    %4004 = vmatmul.mubr.f32.gmra.mrb[0].mxu0 %v3937
    %v4005 = vpop.f32.mrb[0].mxu0
    %v4006 = vadd.f32 %v3934, %v4005
    %v4007 = vpop.f32.mrb[0].mxu0
    %4008 = vdwg.mxu0
    %v4011 = vunpack.c.l.s4 1966171168
    %v4012 = vunpack.c.0.s8 %v4011
    %v4013 = vlaneseq
    %v4014 = vshrl.u32 %v4013, 7
    %v4015 = vsub.s32 %v4012, %v4014
    %v4016 = vrot.slane %v4006, %v4015
    %v4017 = vcombine.high %v4016, %v4016
    %v4019 = vunpack.c.l.s4 1966171168
    %v4020 = vunpack.c.0.s8 %v4019
    %v4021 = vlaneseq
    %v4022 = vshrl.u32 %v4021, 7
    %v4023 = vsub.s32 %v4020, %v4022
    %v4024 = vrot.slane %v4016, %v4023
    %v4026 = vunpack.c.l.s4 1966171168
    %v4027 = vunpack.c.0.s8 %v4026
    %v4028 = vlaneseq
    %v4029 = vshrl.u32 %v4028, 7
    %v4030 = vsub.s32 %v4027, %v4029
    %v4031 = vrot.slane %v4017, %v4030
    %v4032 = vlaneseq
    %v4033 = vshrl.u32 %v4032, 7
    %v4034 = vsub.s32 0, %v4033
    %v4035 = vrot.slane %v4024, %v4034
    %v4036 = vlaneseq
    %v4037 = vshrl.u32 %v4036, 7
    %v4038 = vsub.s32 0, %v4037
    %v4039 = vrot.slane %v4031, %v4038
    %v4042 = vadd.f32 %v4035, %v3850
    %v4043 = vadd.f32 %v4039, %v3855
    %v4044 = vtanh.pop %v4042
    %v4045 = vtanh.pop %v4043
    %v4047 = vsel %vm617, %v4044, 0
    %v4050 = vsel %vm617, %v4045, 0
    %4052 = vmatprep.subr.mxu0 0.0
    %4053 = vmatpush1.msra.mxu0 %v3865
    %4054 = vmatprep.subr.mxu0 0.0
    %4055 = vmatpush1.msra.mxu0 %v3870
    %4056 = vmatprep.subr.mxu0 0.0
    %4057 = vmatpush1.msra.mxu0 %v3875
    %4058 = vmatprep.subr.mxu0 0.0
    %4059 = vmatpush1.msra.mxu0 %v3880
    %4060 = vmatprep.subr.mxu0 0.0
    %4061 = vmatpush1.msra.mxu0 0.0
    %4062 = vmatprep.subr.mxu0 0.0
    %4063 = vmatpush1.msra.mxu0 0.0
    %4064 = vmatprep.subr.mxu0 0.0
    %4065 = vmatpush1.msra.mxu0 0.0
    %4066 = vmatprep.subr.mxu0 0.0
    %4067 = vmatpush1.msra.mxu0 0.0
    %4068 = vmatprep.subr.mxu0 0.0
    %4069 = vmatpush1.msra.mxu0 0.0
    %4070 = vmatprep.subr.mxu0 0.0
    %4071 = vmatpush1.msra.mxu0 0.0
    %4072 = vmatprep.subr.mxu0 0.0
    %4073 = vmatpush1.msra.mxu0 0.0
    %4074 = vmatprep.subr.mxu0 0.0
    %4075 = vmatpush1.msra.mxu0 0.0
    %4076 = vmatprep.subr.mxu0 0.0
    %4077 = vmatpush1.msra.mxu0 0.0
    %4078 = vmatprep.subr.mxu0 0.0
    %4079 = vmatpush1.msra.mxu0 0.0
    %4080 = vmatprep.subr.mxu0 0.0
    %4081 = vmatpush1.msra.mxu0 0.0
    %4082 = vmatprep.subr.mxu0 0.0
    %4083 = vmatpush1.msra.mxu0 0.0
    %4084 = vmatprep.subr.mxu0 0.0
    %4085 = vmatpush1.msra.mxu0 0.0
    %4086 = vmatprep.subr.mxu0 0.0
    %4087 = vmatpush1.msra.mxu0 0.0
    %4088 = vmatprep.subr.mxu0 0.0
    %4089 = vmatpush1.msra.mxu0 0.0
    %4090 = vmatprep.subr.mxu0 0.0
    %4091 = vmatpush1.msra.mxu0 0.0
    %4092 = vmatprep.subr.mxu0 0.0
    %4093 = vmatpush1.msra.mxu0 0.0
    %4094 = vmatprep.subr.mxu0 0.0
    %4095 = vmatpush1.msra.mxu0 0.0
    %4096 = vmatprep.subr.mxu0 0.0
    %4097 = vmatpush1.msra.mxu0 0.0
    %4098 = vmatprep.subr.mxu0 0.0
    %4099 = vmatpush1.msra.mxu0 0.0
    %4100 = vmatprep.subr.mxu0 0.0
    %4101 = vmatpush1.msra.mxu0 0.0
    %4102 = vmatprep.subr.mxu0 0.0
    %4103 = vmatpush1.msra.mxu0 0.0
    %4104 = vmatprep.subr.mxu0 0.0
    %4105 = vmatpush1.msra.mxu0 0.0
    %4106 = vmatprep.subr.mxu0 0.0
    %4107 = vmatpush1.msra.mxu0 0.0
    %4108 = vmatprep.subr.mxu0 0.0
    %4109 = vmatpush1.msra.mxu0 0.0
    %4110 = vmatprep.subr.mxu0 0.0
    %4111 = vmatpush1.msra.mxu0 0.0
    %4112 = vmatprep.subr.mxu0 0.0
    %4113 = vmatpush1.msra.mxu0 0.0
    %4114 = vmatprep.subr.mxu0 0.0
    %4115 = vmatpush1.msra.mxu0 0.0
    %4116 = vmatprep.mubr.f32.mxu0 0.0
    %4117 = vmatmul.mubr.f32.gmra.mrb[0].mxu0 %v4047
    %v4118 = vpop.f32.mrb[0].mxu0
    %v4119 = vadd.f32 0.0, %v4118
    %v4120 = vpop.f32.mrb[0].mxu0
    %4121 = vmatprep.mubr.f32.mxu0 0.0
    %4122 = vmatmul.mubr.f32.gmra.mrb[0].mxu0 %v4050
    %v4123 = vpop.f32.mrb[0].mxu0
    %v4124 = vadd.f32 0.0, %v4123
    %v4125 = vpop.f32.mrb[0].mxu0
    %4126 = vdwg.mxu0
    %v4127 = vmul.f32 %v4119, %v3886
    %v4128 = vmul.f32 %v4124, %v3886
    %v4130 = vsel %vm332, %v3894, 0
    %4132 = vmatprep.subr.mxu0 0.0
    %4133 = vmatpush1.msra.mxu0 %v4127
    %4134 = vmatprep.subr.mxu0 0.0
    %4135 = vmatpush1.msra.mxu0 %v4128
    %4136 = vmatprep.subr.mxu0 0.0
    %4137 = vmatpush1.msra.mxu0 0.0
    %4138 = vmatprep.subr.mxu0 0.0
    %4139 = vmatpush1.msra.mxu0 0.0
    %4140 = vmatprep.subr.mxu0 0.0
    %4141 = vmatpush1.msra.mxu0 0.0
    %4142 = vmatprep.subr.mxu0 0.0
    %4143 = vmatpush1.msra.mxu0 0.0
    %4144 = vmatprep.subr.mxu0 0.0
    %4145 = vmatpush1.msra.mxu0 0.0
    %4146 = vmatprep.subr.mxu0 0.0
    %4147 = vmatpush1.msra.mxu0 0.0
    %4148 = vmatprep.subr.mxu0 0.0
    %4149 = vmatpush1.msra.mxu0 0.0
    %4150 = vmatprep.subr.mxu0 0.0
    %4151 = vmatpush1.msra.mxu0 0.0
    %4152 = vmatprep.subr.mxu0 0.0
    %4153 = vmatpush1.msra.mxu0 0.0
    %4154 = vmatprep.subr.mxu0 0.0
    %4155 = vmatpush1.msra.mxu0 0.0
    %4156 = vmatprep.subr.mxu0 0.0
    %4157 = vmatpush1.msra.mxu0 0.0
    %4158 = vmatprep.subr.mxu0 0.0
    %4159 = vmatpush1.msra.mxu0 0.0
    %4160 = vmatprep.subr.mxu0 0.0
    %4161 = vmatpush1.msra.mxu0 0.0
    %4162 = vmatprep.subr.mxu0 0.0
    %4163 = vmatpush1.msra.mxu0 0.0
    %4164 = vmatprep.subr.mxu0 0.0
    %4165 = vmatpush1.msra.mxu0 0.0
    %4166 = vmatprep.subr.mxu0 0.0
    %4167 = vmatpush1.msra.mxu0 0.0
    %4168 = vmatprep.subr.mxu0 0.0
    %4169 = vmatpush1.msra.mxu0 0.0
    %4170 = vmatprep.subr.mxu0 0.0
    %4171 = vmatpush1.msra.mxu0 0.0
    %4172 = vmatprep.subr.mxu0 0.0
    %4173 = vmatpush1.msra.mxu0 0.0
    %4174 = vmatprep.subr.mxu0 0.0
    %4175 = vmatpush1.msra.mxu0 0.0
    %4176 = vmatprep.subr.mxu0 0.0
    %4177 = vmatpush1.msra.mxu0 0.0
    %4178 = vmatprep.subr.mxu0 0.0
    %4179 = vmatpush1.msra.mxu0 0.0
    %4180 = vmatprep.subr.mxu0 0.0
    %4181 = vmatpush1.msra.mxu0 0.0
    %4182 = vmatprep.subr.mxu0 0.0
    %4183 = vmatpush1.msra.mxu0 0.0
    %4184 = vmatprep.subr.mxu0 0.0
    %4185 = vmatpush1.msra.mxu0 0.0
    %4186 = vmatprep.subr.mxu0 0.0
    %4187 = vmatpush1.msra.mxu0 0.0
    %4188 = vmatprep.subr.mxu0 0.0
    %4189 = vmatpush1.msra.mxu0 0.0
    %4190 = vmatprep.subr.mxu0 0.0
    %4191 = vmatpush1.msra.mxu0 0.0
    %4192 = vmatprep.subr.mxu0 0.0
    %4193 = vmatpush1.msra.mxu0 0.0
    %4194 = vmatprep.subr.mxu0 0.0
    %4195 = vmatpush1.msra.mxu0 0.0
    %4196 = vmatprep.mubr.f32.mxu0 0.0
    %4197 = vmatmul.mubr.f32.gmra.mrb[0].mxu0 %v4130
    %v4198 = vpop.f32.mrb[0].mxu0
    %v4199 = vadd.f32 0.0, %v4198
    %v4200 = vpop.f32.mrb[0].mxu0
    %4201 = vdwg.mxu0
    %vm4202 = vcmask 58368
    %v4203 = vsel %vm4202, %v4199, -inf
    %4204 = vmax.xlane.f32.xlu0 %v4203
    %v4205 = vpop.xlane.xlu0 %4204
    %v4206 = vsub.f32 %v4199, %v4205
    %v4207 = vmul.f32 %v4206, 1.442695
    %v4208 = vpow.pop %v4207
    %v4209 = vsel %vm4202, %v4208, 0.0
    %4210 = vadd.xlane.f32.xlu0 %v4209
    %v4211 = vpop.xlane.xlu0 %4210
    %v4212 = vrcp.pop %v4211
    %v4213 = vmul.f32 %v4208, %v4212
    %4215 = vrot.lane.b32.xlu0 %v4213, 8
    %v4216 = vpop.permute.xlu0 %4215
    %vm4218 = vcmask 64512
    %v4219 = vsel %vm4218, %v4213, %v4216
    %v4220 = vmul.f32 %v4219, %v3894
    %v4222 = vsel %vm332, %v4220, 0
    %4224 = vmatprep.subr.mxu0 0.0
    %4225 = vmatpush1.msra.mxu0 %v3767
    %4226 = vmatprep.subr.mxu0 0.0
    %4227 = vmatpush1.msra.mxu0 %v3768
    %4228 = vmatprep.subr.mxu0 0.0
    %4229 = vmatpush1.msra.mxu0 0.0
    %4230 = vmatprep.subr.mxu0 0.0
    %4231 = vmatpush1.msra.mxu0 0.0
    %4232 = vmatprep.subr.mxu0 0.0
    %4233 = vmatpush1.msra.mxu0 0.0
    %4234 = vmatprep.subr.mxu0 0.0
    %4235 = vmatpush1.msra.mxu0 0.0
    %4236 = vmatprep.subr.mxu0 0.0
    %4237 = vmatpush1.msra.mxu0 0.0
    %4238 = vmatprep.subr.mxu0 0.0
    %4239 = vmatpush1.msra.mxu0 0.0
    %4240 = vmatprep.subr.mxu0 0.0
    %4241 = vmatpush1.msra.mxu0 0.0
    %4242 = vmatprep.subr.mxu0 0.0
    %4243 = vmatpush1.msra.mxu0 0.0
    %4244 = vmatprep.subr.mxu0 0.0
    %4245 = vmatpush1.msra.mxu0 0.0
    %4246 = vmatprep.subr.mxu0 0.0
    %4247 = vmatpush1.msra.mxu0 0.0
    %4248 = vmatprep.subr.mxu0 0.0
    %4249 = vmatpush1.msra.mxu0 0.0
    %4250 = vmatprep.subr.mxu0 0.0
    %4251 = vmatpush1.msra.mxu0 0.0
    %4252 = vmatprep.subr.mxu0 0.0
    %4253 = vmatpush1.msra.mxu0 0.0
    %4254 = vmatprep.subr.mxu0 0.0
    %4255 = vmatpush1.msra.mxu0 0.0
    %4256 = vmatprep.subr.mxu0 0.0
    %4257 = vmatpush1.msra.mxu0 0.0
    %4258 = vmatprep.subr.mxu0 0.0
    %4259 = vmatpush1.msra.mxu0 0.0
    %4260 = vmatprep.subr.mxu0 0.0
    %4261 = vmatpush1.msra.mxu0 0.0
    %4262 = vmatprep.subr.mxu0 0.0
    %4263 = vmatpush1.msra.mxu0 0.0
    %4264 = vmatprep.subr.mxu0 0.0
    %4265 = vmatpush1.msra.mxu0 0.0
    %4266 = vmatprep.subr.mxu0 0.0
    %4267 = vmatpush1.msra.mxu0 0.0
    %4268 = vmatprep.subr.mxu0 0.0
    %4269 = vmatpush1.msra.mxu0 0.0
    %4270 = vmatprep.subr.mxu0 0.0
    %4271 = vmatpush1.msra.mxu0 0.0
    %4272 = vmatprep.subr.mxu0 0.0
    %4273 = vmatpush1.msra.mxu0 0.0
    %4274 = vmatprep.subr.mxu0 0.0
    %4275 = vmatpush1.msra.mxu0 0.0
    %4276 = vmatprep.subr.mxu0 0.0
    %4277 = vmatpush1.msra.mxu0 0.0
    %4278 = vmatprep.subr.mxu0 0.0
    %4279 = vmatpush1.msra.mxu0 0.0
    %4280 = vmatprep.subr.mxu0 0.0
    %4281 = vmatpush1.msra.mxu0 0.0
    %4282 = vmatprep.subr.mxu0 0.0
    %4283 = vmatpush1.msra.mxu0 0.0
    %4284 = vmatprep.subr.mxu0 0.0
    %4285 = vmatpush1.msra.mxu0 0.0
    %4286 = vmatprep.subr.mxu0 0.0
    %4287 = vmatpush1.msra.mxu0 0.0
    %4288 = vmatprep.mubr.f32.mxu0 0.0
    %4289 = vmatmul.mubr.f32.gmra.mrb[0].mxu0 %v4222
    %v4290 = vpop.f32.mrb[0].mxu0
    %v4291 = vadd.f32 0.0, %v4290
    %v4292 = vpop.f32.mrb[0].mxu0
    %4293 = vdwg.mxu0
    %4295 = vrot.lane.b32.xlu0 %v4291, 32
    %v4296 = vpop.permute.xlu0 %4295
    %v4298 = vsel %vm617, %v583, %v4296
    %v4300 = vlaneseq
    %v4301 = vshrl.u32 %v4300, 7
    %v4302 = vsub.s32 0, %v4301
    %v4303 = vrot.slane %v3912, %v4302
    %vm4305 = vcmask 785408
    %v4307 = vsel %vm4305, %v4298, 0
    %4309 = vmatprep.subr.mxu0 0.0
    %4310 = vmatpush1.msra.mxu0 %v3900
    %4311 = vmatprep.subr.mxu0 0.0
    %4312 = vmatpush1.msra.mxu0 %v3901
    %4313 = vmatprep.subr.mxu0 0.0
    %4314 = vmatpush1.msra.mxu0 %v3902
    %4315 = vmatprep.subr.mxu0 0.0
    %4316 = vmatpush1.msra.mxu0 %v3903
    %4317 = vmatprep.subr.mxu0 0.0
    %4318 = vmatpush1.msra.mxu0 %v3904
    %4319 = vmatprep.subr.mxu0 0.0
    %4320 = vmatpush1.msra.mxu0 %v3905
    %4321 = vmatprep.subr.mxu0 0.0
    %4322 = vmatpush1.msra.mxu0 %v3906
    %4323 = vmatprep.subr.mxu0 0.0
    %4324 = vmatpush1.msra.mxu0 %v3907
    %4325 = vmatprep.subr.mxu0 0.0
    %4326 = vmatpush1.msra.mxu0 %v3908
    %4327 = vmatprep.subr.mxu0 0.0
    %4328 = vmatpush1.msra.mxu0 %v3909
    %4329 = vmatprep.subr.mxu0 0.0
    %4330 = vmatpush1.msra.mxu0 %v3910
    %4331 = vmatprep.subr.mxu0 0.0
    %4332 = vmatpush1.msra.mxu0 %v3911
    %4333 = vmatprep.subr.mxu0 0.0
    %4334 = vmatpush1.msra.mxu0 0.0
    %4335 = vmatprep.subr.mxu0 0.0
    %4336 = vmatpush1.msra.mxu0 0.0
    %4337 = vmatprep.subr.mxu0 0.0
    %4338 = vmatpush1.msra.mxu0 0.0
    %4339 = vmatprep.subr.mxu0 0.0
    %4340 = vmatpush1.msra.mxu0 0.0
    %4341 = vmatprep.subr.mxu0 0.0
    %4342 = vmatpush1.msra.mxu0 0.0
    %4343 = vmatprep.subr.mxu0 0.0
    %4344 = vmatpush1.msra.mxu0 0.0
    %4345 = vmatprep.subr.mxu0 0.0
    %4346 = vmatpush1.msra.mxu0 0.0
    %4347 = vmatprep.subr.mxu0 0.0
    %4348 = vmatpush1.msra.mxu0 0.0
    %4349 = vmatprep.subr.mxu0 0.0
    %4350 = vmatpush1.msra.mxu0 0.0
    %4351 = vmatprep.subr.mxu0 0.0
    %4352 = vmatpush1.msra.mxu0 0.0
    %4353 = vmatprep.subr.mxu0 0.0
    %4354 = vmatpush1.msra.mxu0 0.0
    %4355 = vmatprep.subr.mxu0 0.0
    %4356 = vmatpush1.msra.mxu0 0.0
    %4357 = vmatprep.subr.mxu0 0.0
    %4358 = vmatpush1.msra.mxu0 0.0
    %4359 = vmatprep.subr.mxu0 0.0
    %4360 = vmatpush1.msra.mxu0 0.0
    %4361 = vmatprep.subr.mxu0 0.0
    %4362 = vmatpush1.msra.mxu0 0.0
    %4363 = vmatprep.subr.mxu0 0.0
    %4364 = vmatpush1.msra.mxu0 0.0
    %4365 = vmatprep.subr.mxu0 0.0
    %4366 = vmatpush1.msra.mxu0 0.0
    %4367 = vmatprep.subr.mxu0 0.0
    %4368 = vmatpush1.msra.mxu0 0.0
    %4369 = vmatprep.subr.mxu0 0.0
    %4370 = vmatpush1.msra.mxu0 0.0
    %4371 = vmatprep.subr.mxu0 0.0
    %4372 = vmatpush1.msra.mxu0 0.0
    %4373 = vmatprep.mubr.f32.mxu0 0.0
    %4374 = vmatmul.mubr.f32.gmra.mrb[0].mxu0 %v4307
    %v4375 = vpop.f32.mrb[0].mxu0
    %v4376 = vadd.f32 %v4303, %v4375
    %v4377 = vpop.f32.mrb[0].mxu0
    %4378 = vdwg.mxu0
    %4379 = vrot.lane.b32.xlu0 %v4006, 96
    %v4380 = vpop.permute.xlu0 %4379
    %v4382 = vadd.f32 %v4376, %v4380
    %v4383 = vxor.u32 %v4382, 2147483648
    %v4384 = vmul.f32 %v4383, 1.442695
    %v4385 = vpow.pop %v4384
    %v4386 = vadd.f32 %v4385, 1.0
    %v4387 = vrcp.pop %v4386
    %v4388 = vmul.f32 1.0, %v4387
    %4389 = vrot.lane.b32.xlu0 %v4006, 32
    %v4390 = vpop.permute.xlu0 %4389
    %v4392 = vmul.f32 %v4388, %v4390
    %4394 = vrot.lane.b32.xlu0 %v4392, 64
    %v4395 = vpop.permute.xlu0 %4394
    %v4397 = vadd.f32 %v4376, %v4395
    %v4398 = vtanh.pop %v4397
    %v4399 = vsub.f32 1.0, %v4388
    %4401 = vrot.lane.b32.xlu0 %v4398, 96
    %v4402 = vpop.permute.xlu0 %4401
    %v4404 = vmul.f32 %v4399, %v4402
    %4405 = vrot.lane.b32.xlu0 %v3483, 32
    %v4406 = vpop.permute.xlu0 %4405
    %v4408 = vmul.f32 %v4388, %v4406
    %v4409 = vadd.f32 %v4404, %v4408
    %4411 = vrot.lane.b32.xlu0 %v4409, 96
    %v4412 = vpop.permute.xlu0 %4411
    %4415 = vrot.lane.b32.xlu0 %v583, 96
    %v4416 = vpop.permute.xlu0 %4415
    %v4418 = vsel %vm617, %v4412, %v4296
    %v4419 = vsel %vm4305, %v4418, %v4416
    %v4421 = vlaneseq
    %v4422 = vshrl.u32 %v4421, 7
    %v4423 = vsub.s32 0, %v4422
    %v4424 = vrot.slane %v3929, %v4423
    %4426 = vmatprep.subr.mxu0 0.0
    %4427 = vmatpush1.msra.mxu0 %v3913
    %4428 = vmatprep.subr.mxu0 0.0
    %4429 = vmatpush1.msra.mxu0 %v3914
    %4430 = vmatprep.subr.mxu0 0.0
    %4431 = vmatpush1.msra.mxu0 %v3915
    %4432 = vmatprep.subr.mxu0 0.0
    %4433 = vmatpush1.msra.mxu0 %v3916
    %4434 = vmatprep.subr.mxu0 0.0
    %4435 = vmatpush1.msra.mxu0 %v3917
    %4436 = vmatprep.subr.mxu0 0.0
    %4437 = vmatpush1.msra.mxu0 %v3918
    %4438 = vmatprep.subr.mxu0 0.0
    %4439 = vmatpush1.msra.mxu0 %v3919
    %4440 = vmatprep.subr.mxu0 0.0
    %4441 = vmatpush1.msra.mxu0 %v3920
    %4442 = vmatprep.subr.mxu0 0.0
    %4443 = vmatpush1.msra.mxu0 %v3921
    %4444 = vmatprep.subr.mxu0 0.0
    %4445 = vmatpush1.msra.mxu0 %v3922
    %4446 = vmatprep.subr.mxu0 0.0
    %4447 = vmatpush1.msra.mxu0 %v3923
    %4448 = vmatprep.subr.mxu0 0.0
    %4449 = vmatpush1.msra.mxu0 %v3924
    %4450 = vmatprep.subr.mxu0 0.0
    %4451 = vmatpush1.msra.mxu0 %v3925
    %4452 = vmatprep.subr.mxu0 0.0
    %4453 = vmatpush1.msra.mxu0 %v3926
    %4454 = vmatprep.subr.mxu0 0.0
    %4455 = vmatpush1.msra.mxu0 %v3927
    %4456 = vmatprep.subr.mxu0 0.0
    %4457 = vmatpush1.msra.mxu0 %v3928
    %4458 = vmatprep.subr.mxu0 0.0
    %4459 = vmatpush1.msra.mxu0 0.0
    %4460 = vmatprep.subr.mxu0 0.0
    %4461 = vmatpush1.msra.mxu0 0.0
    %4462 = vmatprep.subr.mxu0 0.0
    %4463 = vmatpush1.msra.mxu0 0.0
    %4464 = vmatprep.subr.mxu0 0.0
    %4465 = vmatpush1.msra.mxu0 0.0
    %4466 = vmatprep.subr.mxu0 0.0
    %4467 = vmatpush1.msra.mxu0 0.0
    %4468 = vmatprep.subr.mxu0 0.0
    %4469 = vmatpush1.msra.mxu0 0.0
    %4470 = vmatprep.subr.mxu0 0.0
    %4471 = vmatpush1.msra.mxu0 0.0
    %4472 = vmatprep.subr.mxu0 0.0
    %4473 = vmatpush1.msra.mxu0 0.0
    %4474 = vmatprep.subr.mxu0 0.0
    %4475 = vmatpush1.msra.mxu0 0.0
    %4476 = vmatprep.subr.mxu0 0.0
    %4477 = vmatpush1.msra.mxu0 0.0
    %4478 = vmatprep.subr.mxu0 0.0
    %4479 = vmatpush1.msra.mxu0 0.0
    %4480 = vmatprep.subr.mxu0 0.0
    %4481 = vmatpush1.msra.mxu0 0.0
    %4482 = vmatprep.subr.mxu0 0.0
    %4483 = vmatpush1.msra.mxu0 0.0
    %4484 = vmatprep.subr.mxu0 0.0
    %4485 = vmatpush1.msra.mxu0 0.0
    %4486 = vmatprep.subr.mxu0 0.0
    %4487 = vmatpush1.msra.mxu0 0.0
    %4488 = vmatprep.subr.mxu0 0.0
    %4489 = vmatpush1.msra.mxu0 0.0
    %4490 = vmatprep.mubr.f32.mxu0 0.0
    %4491 = vmatmul.mubr.f32.gmra.mrb[0].mxu0 %v4419
    %v4492 = vpop.f32.mrb[0].mxu0
    %v4493 = vadd.f32 %v4424, %v4492
    %v4494 = vpop.f32.mrb[0].mxu0
    %4495 = vdwg.mxu0
    %vm4496 = vcmask 123904
    %v4497 = vsel %vm4496, %v4493, -inf
    %4498 = vmax.xlane.f32.xlu0 %v4497
    %v4499 = vpop.xlane.xlu0 %4498
    %vm4500 = vcmp.eq.f32.partialorder %v4493, %v4499
    %v4501 = vsel %vm4500, 1, 0
    %v4502 = vcvt.s32.f32 %v4501
    %v4504 = vsel %vm332, %v4502, 0
    %4506 = vmatprep.subr.mxu0 0.0
    %4507 = vmatpush1.msra.mxu0 %v508
    %4508 = vmatprep.subr.mxu0 0.0
    %4509 = vmatpush1.msra.mxu0 %v509
    %4510 = vmatprep.subr.mxu0 0.0
    %4511 = vmatpush1.msra.mxu0 0.0
    %4512 = vmatprep.subr.mxu0 0.0
    %4513 = vmatpush1.msra.mxu0 0.0
    %4514 = vmatprep.subr.mxu0 0.0
    %4515 = vmatpush1.msra.mxu0 0.0
    %4516 = vmatprep.subr.mxu0 0.0
    %4517 = vmatpush1.msra.mxu0 0.0
    %4518 = vmatprep.subr.mxu0 0.0
    %4519 = vmatpush1.msra.mxu0 0.0
    %4520 = vmatprep.subr.mxu0 0.0
    %4521 = vmatpush1.msra.mxu0 0.0
    %4522 = vmatprep.subr.mxu0 0.0
    %4523 = vmatpush1.msra.mxu0 0.0
    %4524 = vmatprep.subr.mxu0 0.0
    %4525 = vmatpush1.msra.mxu0 0.0
    %4526 = vmatprep.subr.mxu0 0.0
    %4527 = vmatpush1.msra.mxu0 0.0
    %4528 = vmatprep.subr.mxu0 0.0
    %4529 = vmatpush1.msra.mxu0 0.0
    %4530 = vmatprep.subr.mxu0 0.0
    %4531 = vmatpush1.msra.mxu0 0.0
    %4532 = vmatprep.subr.mxu0 0.0
    %4533 = vmatpush1.msra.mxu0 0.0
    %4534 = vmatprep.subr.mxu0 0.0
    %4535 = vmatpush1.msra.mxu0 0.0
    %4536 = vmatprep.subr.mxu0 0.0
    %4537 = vmatpush1.msra.mxu0 0.0
    %4538 = vmatprep.subr.mxu0 0.0
    %4539 = vmatpush1.msra.mxu0 0.0
    %4540 = vmatprep.subr.mxu0 0.0
    %4541 = vmatpush1.msra.mxu0 0.0
    %4542 = vmatprep.subr.mxu0 0.0
    %4543 = vmatpush1.msra.mxu0 0.0
    %4544 = vmatprep.subr.mxu0 0.0
    %4545 = vmatpush1.msra.mxu0 0.0
    %4546 = vmatprep.subr.mxu0 0.0
    %4547 = vmatpush1.msra.mxu0 0.0
    %4548 = vmatprep.subr.mxu0 0.0
    %4549 = vmatpush1.msra.mxu0 0.0
    %4550 = vmatprep.subr.mxu0 0.0
    %4551 = vmatpush1.msra.mxu0 0.0
    %4552 = vmatprep.subr.mxu0 0.0
    %4553 = vmatpush1.msra.mxu0 0.0
    %4554 = vmatprep.subr.mxu0 0.0
    %4555 = vmatpush1.msra.mxu0 0.0
    %4556 = vmatprep.subr.mxu0 0.0
    %4557 = vmatpush1.msra.mxu0 0.0
    %4558 = vmatprep.subr.mxu0 0.0
    %4559 = vmatpush1.msra.mxu0 0.0
    %4560 = vmatprep.subr.mxu0 0.0
    %4561 = vmatpush1.msra.mxu0 0.0
    %4562 = vmatprep.subr.mxu0 0.0
    %4563 = vmatpush1.msra.mxu0 0.0
    %4564 = vmatprep.subr.mxu0 0.0
    %4565 = vmatpush1.msra.mxu0 0.0
    %4566 = vmatprep.subr.mxu0 0.0
    %4567 = vmatpush1.msra.mxu0 0.0
    %4568 = vmatprep.subr.mxu0 0.0
    %4569 = vmatpush1.msra.mxu0 0.0
    %4570 = vmatprep.mubr.f32.mxu0 0.0
    %4571 = vmatmul.mubr.f32.gmra.mrb[0].mxu0 %v4504
    %v4572 = vpop.f32.mrb[0].mxu0
    %v4573 = vadd.f32 0.0, %v4572
    %v4574 = vpop.f32.mrb[0].mxu0
    %4575 = vdwg.mxu0
    %s4576 = sld [smem:[#allocation8 + $0x1]]
    %p4577 = scmp.gt.s32.totalorder %s4576, 0
    %s4578 = scalar_select %p4577, 1, 0
    %s4579 = scvt.s32.f32 %s4578
    %v4580 = vstv %s4579
    %v4581 = vmul.f32 %v4580, %v583
    %s4582 = ssub.f32 1.0, %s4579
    %v4583 = vstv %s4582
    %v4584 = vmul.f32 %v4583, %v4573
    %v4586 = vrot.slane %v4584, 6
    %v4588 = vadd.f32 %v4581, %v4586
    %v4589 = vsel %vm617, %v4412, 0
    %4591 = vmatprep.subr.mxu0 0.0
    %4592 = vmatpush1.msra.mxu0 %v3895
    %4593 = vmatprep.subr.mxu0 0.0
    %4594 = vmatpush1.msra.mxu0 %v3896
    %4595 = vmatprep.subr.mxu0 0.0
    %4596 = vmatpush1.msra.mxu0 %v3897
    %4597 = vmatprep.subr.mxu0 0.0
    %4598 = vmatpush1.msra.mxu0 %v3898
    %4599 = vmatprep.subr.mxu0 0.0
    %4600 = vmatpush1.msra.mxu0 0.0
    %4601 = vmatprep.subr.mxu0 0.0
    %4602 = vmatpush1.msra.mxu0 0.0
    %4603 = vmatprep.subr.mxu0 0.0
    %4604 = vmatpush1.msra.mxu0 0.0
    %4605 = vmatprep.subr.mxu0 0.0
    %4606 = vmatpush1.msra.mxu0 0.0
    %4607 = vmatprep.subr.mxu0 0.0
    %4608 = vmatpush1.msra.mxu0 0.0
    %4609 = vmatprep.subr.mxu0 0.0
    %4610 = vmatpush1.msra.mxu0 0.0
    %4611 = vmatprep.subr.mxu0 0.0
    %4612 = vmatpush1.msra.mxu0 0.0
    %4613 = vmatprep.subr.mxu0 0.0
    %4614 = vmatpush1.msra.mxu0 0.0
    %4615 = vmatprep.subr.mxu0 0.0
    %4616 = vmatpush1.msra.mxu0 0.0
    %4617 = vmatprep.subr.mxu0 0.0
    %4618 = vmatpush1.msra.mxu0 0.0
    %4619 = vmatprep.subr.mxu0 0.0
    %4620 = vmatpush1.msra.mxu0 0.0
    %4621 = vmatprep.subr.mxu0 0.0
    %4622 = vmatpush1.msra.mxu0 0.0
    %4623 = vmatprep.subr.mxu0 0.0
    %4624 = vmatpush1.msra.mxu0 0.0
    %4625 = vmatprep.subr.mxu0 0.0
    %4626 = vmatpush1.msra.mxu0 0.0
    %4627 = vmatprep.subr.mxu0 0.0
    %4628 = vmatpush1.msra.mxu0 0.0
    %4629 = vmatprep.subr.mxu0 0.0
    %4630 = vmatpush1.msra.mxu0 0.0
    %4631 = vmatprep.subr.mxu0 0.0
    %4632 = vmatpush1.msra.mxu0 0.0
    %4633 = vmatprep.subr.mxu0 0.0
    %4634 = vmatpush1.msra.mxu0 0.0
    %4635 = vmatprep.subr.mxu0 0.0
    %4636 = vmatpush1.msra.mxu0 0.0
    %4637 = vmatprep.subr.mxu0 0.0
    %4638 = vmatpush1.msra.mxu0 0.0
    %4639 = vmatprep.subr.mxu0 0.0
    %4640 = vmatpush1.msra.mxu0 0.0
    %4641 = vmatprep.subr.mxu0 0.0
    %4642 = vmatpush1.msra.mxu0 0.0
    %4643 = vmatprep.subr.mxu0 0.0
    %4644 = vmatpush1.msra.mxu0 0.0
    %4645 = vmatprep.subr.mxu0 0.0
    %4646 = vmatpush1.msra.mxu0 0.0
    %4647 = vmatprep.subr.mxu0 0.0
    %4648 = vmatpush1.msra.mxu0 0.0
    %4649 = vmatprep.subr.mxu0 0.0
    %4650 = vmatpush1.msra.mxu0 0.0
    %4651 = vmatprep.subr.mxu0 0.0
    %4652 = vmatpush1.msra.mxu0 0.0
    %4653 = vmatprep.subr.mxu0 0.0
    %4654 = vmatpush1.msra.mxu0 0.0
    %4655 = vmatprep.mubr.f32.mxu0 0.0
    %4656 = vmatmul.mubr.f32.gmra.mrb[0].mxu0 %v4589
    %v4657 = vpop.f32.mrb[0].mxu0
    %v4658 = vadd.f32 %v3934, %v4657
    %v4659 = vpop.f32.mrb[0].mxu0
    %4660 = vdwg.mxu0
    %v4663 = vunpack.c.l.s4 1966171168
    %v4664 = vunpack.c.0.s8 %v4663
    %v4665 = vlaneseq
    %v4666 = vshrl.u32 %v4665, 7
    %v4667 = vsub.s32 %v4664, %v4666
    %v4668 = vrot.slane %v4658, %v4667
    %v4669 = vcombine.high %v4668, %v4668
    %v4671 = vunpack.c.l.s4 1966171168
    %v4672 = vunpack.c.0.s8 %v4671
    %v4673 = vlaneseq
    %v4674 = vshrl.u32 %v4673, 7
    %v4675 = vsub.s32 %v4672, %v4674
    %v4676 = vrot.slane %v4668, %v4675
    %v4678 = vunpack.c.l.s4 1966171168
    %v4679 = vunpack.c.0.s8 %v4678
    %v4680 = vlaneseq
    %v4681 = vshrl.u32 %v4680, 7
    %v4682 = vsub.s32 %v4679, %v4681
    %v4683 = vrot.slane %v4669, %v4682
    %v4684 = vlaneseq
    %v4685 = vshrl.u32 %v4684, 7
    %v4686 = vsub.s32 0, %v4685
    %v4687 = vrot.slane %v4676, %v4686
    %v4688 = vlaneseq
    %v4689 = vshrl.u32 %v4688, 7
    %v4690 = vsub.s32 0, %v4689
    %v4691 = vrot.slane %v4683, %v4690
    %v4694 = vadd.f32 %v4687, %v3850
    %v4695 = vadd.f32 %v4691, %v3855
    %v4696 = vtanh.pop %v4694
    %v4697 = vtanh.pop %v4695
    %v4699 = vsel %vm617, %v4696, 0
    %v4702 = vsel %vm617, %v4697, 0
    %4704 = vmatprep.subr.mxu0 0.0
    %4705 = vmatpush1.msra.mxu0 %v3865
    %4706 = vmatprep.subr.mxu0 0.0
    %4707 = vmatpush1.msra.mxu0 %v3870
    %4708 = vmatprep.subr.mxu0 0.0
    %4709 = vmatpush1.msra.mxu0 %v3875
    %4710 = vmatprep.subr.mxu0 0.0
    %4711 = vmatpush1.msra.mxu0 %v3880
    %4712 = vmatprep.subr.mxu0 0.0
    %4713 = vmatpush1.msra.mxu0 0.0
    %4714 = vmatprep.subr.mxu0 0.0
    %4715 = vmatpush1.msra.mxu0 0.0
    %4716 = vmatprep.subr.mxu0 0.0
    %4717 = vmatpush1.msra.mxu0 0.0
    %4718 = vmatprep.subr.mxu0 0.0
    %4719 = vmatpush1.msra.mxu0 0.0
    %4720 = vmatprep.subr.mxu0 0.0
    %4721 = vmatpush1.msra.mxu0 0.0
    %4722 = vmatprep.subr.mxu0 0.0
    %4723 = vmatpush1.msra.mxu0 0.0
    %4724 = vmatprep.subr.mxu0 0.0
    %4725 = vmatpush1.msra.mxu0 0.0
    %4726 = vmatprep.subr.mxu0 0.0
    %4727 = vmatpush1.msra.mxu0 0.0
    %4728 = vmatprep.subr.mxu0 0.0
    %4729 = vmatpush1.msra.mxu0 0.0
    %4730 = vmatprep.subr.mxu0 0.0
    %4731 = vmatpush1.msra.mxu0 0.0
    %4732 = vmatprep.subr.mxu0 0.0
    %4733 = vmatpush1.msra.mxu0 0.0
    %4734 = vmatprep.subr.mxu0 0.0
    %4735 = vmatpush1.msra.mxu0 0.0
    %4736 = vmatprep.subr.mxu0 0.0
    %4737 = vmatpush1.msra.mxu0 0.0
    %4738 = vmatprep.subr.mxu0 0.0
    %4739 = vmatpush1.msra.mxu0 0.0
    %4740 = vmatprep.subr.mxu0 0.0
    %4741 = vmatpush1.msra.mxu0 0.0
    %4742 = vmatprep.subr.mxu0 0.0
    %4743 = vmatpush1.msra.mxu0 0.0
    %4744 = vmatprep.subr.mxu0 0.0
    %4745 = vmatpush1.msra.mxu0 0.0
    %4746 = vmatprep.subr.mxu0 0.0
    %4747 = vmatpush1.msra.mxu0 0.0
    %4748 = vmatprep.subr.mxu0 0.0
    %4749 = vmatpush1.msra.mxu0 0.0
    %4750 = vmatprep.subr.mxu0 0.0
    %4751 = vmatpush1.msra.mxu0 0.0
    %4752 = vmatprep.subr.mxu0 0.0
    %4753 = vmatpush1.msra.mxu0 0.0
    %4754 = vmatprep.subr.mxu0 0.0
    %4755 = vmatpush1.msra.mxu0 0.0
    %4756 = vmatprep.subr.mxu0 0.0
    %4757 = vmatpush1.msra.mxu0 0.0
    %4758 = vmatprep.subr.mxu0 0.0
    %4759 = vmatpush1.msra.mxu0 0.0
    %4760 = vmatprep.subr.mxu0 0.0
    %4761 = vmatpush1.msra.mxu0 0.0
    %4762 = vmatprep.subr.mxu0 0.0
    %4763 = vmatpush1.msra.mxu0 0.0
    %4764 = vmatprep.subr.mxu0 0.0
    %4765 = vmatpush1.msra.mxu0 0.0
    %4766 = vmatprep.subr.mxu0 0.0
    %4767 = vmatpush1.msra.mxu0 0.0
    %4768 = vmatprep.mubr.f32.mxu0 0.0
    %4769 = vmatmul.mubr.f32.gmra.mrb[0].mxu0 %v4699
    %v4770 = vpop.f32.mrb[0].mxu0
    %v4771 = vadd.f32 0.0, %v4770
    %v4772 = vpop.f32.mrb[0].mxu0
    %4773 = vmatprep.mubr.f32.mxu0 0.0
    %4774 = vmatmul.mubr.f32.gmra.mrb[0].mxu0 %v4702
    %v4775 = vpop.f32.mrb[0].mxu0
    %v4776 = vadd.f32 0.0, %v4775
    %v4777 = vpop.f32.mrb[0].mxu0
    %4778 = vdwg.mxu0
    %v4779 = vmul.f32 %v4771, %v3886
    %v4780 = vmul.f32 %v4776, %v3886
    %4781 = vmatprep.subr.mxu0 0.0
    %4782 = vmatpush1.msra.mxu0 %v4779
    %4783 = vmatprep.subr.mxu0 0.0
    %4784 = vmatpush1.msra.mxu0 %v4780
    %4785 = vmatprep.subr.mxu0 0.0
    %4786 = vmatpush1.msra.mxu0 0.0
    %4787 = vmatprep.subr.mxu0 0.0
    %4788 = vmatpush1.msra.mxu0 0.0
    %4789 = vmatprep.subr.mxu0 0.0
    %4790 = vmatpush1.msra.mxu0 0.0
    %4791 = vmatprep.subr.mxu0 0.0
    %4792 = vmatpush1.msra.mxu0 0.0
    %4793 = vmatprep.subr.mxu0 0.0
    %4794 = vmatpush1.msra.mxu0 0.0
    %4795 = vmatprep.subr.mxu0 0.0
    %4796 = vmatpush1.msra.mxu0 0.0
    %4797 = vmatprep.subr.mxu0 0.0
    %4798 = vmatpush1.msra.mxu0 0.0
    %4799 = vmatprep.subr.mxu0 0.0
    %4800 = vmatpush1.msra.mxu0 0.0
    %4801 = vmatprep.subr.mxu0 0.0
    %4802 = vmatpush1.msra.mxu0 0.0
    %4803 = vmatprep.subr.mxu0 0.0
    %4804 = vmatpush1.msra.mxu0 0.0
    %4805 = vmatprep.subr.mxu0 0.0
    %4806 = vmatpush1.msra.mxu0 0.0
    %4807 = vmatprep.subr.mxu0 0.0
    %4808 = vmatpush1.msra.mxu0 0.0
    %4809 = vmatprep.subr.mxu0 0.0
    %4810 = vmatpush1.msra.mxu0 0.0
    %4811 = vmatprep.subr.mxu0 0.0
    %4812 = vmatpush1.msra.mxu0 0.0
    %4813 = vmatprep.subr.mxu0 0.0
    %4814 = vmatpush1.msra.mxu0 0.0
    %4815 = vmatprep.subr.mxu0 0.0
    %4816 = vmatpush1.msra.mxu0 0.0
    %4817 = vmatprep.subr.mxu0 0.0
    %4818 = vmatpush1.msra.mxu0 0.0
    %4819 = vmatprep.subr.mxu0 0.0
    %4820 = vmatpush1.msra.mxu0 0.0
    %4821 = vmatprep.subr.mxu0 0.0
    %4822 = vmatpush1.msra.mxu0 0.0
    %4823 = vmatprep.subr.mxu0 0.0
    %4824 = vmatpush1.msra.mxu0 0.0
    %4825 = vmatprep.subr.mxu0 0.0
    %4826 = vmatpush1.msra.mxu0 0.0
    %4827 = vmatprep.subr.mxu0 0.0
    %4828 = vmatpush1.msra.mxu0 0.0
    %4829 = vmatprep.subr.mxu0 0.0
    %4830 = vmatpush1.msra.mxu0 0.0
    %4831 = vmatprep.subr.mxu0 0.0
    %4832 = vmatpush1.msra.mxu0 0.0
    %4833 = vmatprep.subr.mxu0 0.0
    %4834 = vmatpush1.msra.mxu0 0.0
    %4835 = vmatprep.subr.mxu0 0.0
    %4836 = vmatpush1.msra.mxu0 0.0
    %4837 = vmatprep.subr.mxu0 0.0
    %4838 = vmatpush1.msra.mxu0 0.0
    %4839 = vmatprep.subr.mxu0 0.0
    %4840 = vmatpush1.msra.mxu0 0.0
    %4841 = vmatprep.subr.mxu0 0.0
    %4842 = vmatpush1.msra.mxu0 0.0
    %4843 = vmatprep.subr.mxu0 0.0
    %4844 = vmatpush1.msra.mxu0 0.0
    %4845 = vmatprep.mubr.f32.mxu0 0.0
    %4846 = vmatmul.mubr.f32.gmra.mrb[0].mxu0 %v4130
    %v4847 = vpop.f32.mrb[0].mxu0
    %v4848 = vadd.f32 0.0, %v4847
    %v4849 = vpop.f32.mrb[0].mxu0
    %4850 = vdwg.mxu0
    %v4851 = vsel %vm4202, %v4848, -inf
    %4852 = vmax.xlane.f32.xlu0 %v4851
    %v4853 = vpop.xlane.xlu0 %4852
    %v4854 = vsub.f32 %v4848, %v4853
    %v4855 = vmul.f32 %v4854, 1.442695
    %v4856 = vpow.pop %v4855
    %v4857 = vsel %vm4202, %v4856, 0.0
    %4858 = vadd.xlane.f32.xlu0 %v4857
    %v4859 = vpop.xlane.xlu0 %4858
    %v4860 = vrcp.pop %v4859
    %v4861 = vmul.f32 %v4856, %v4860
    %4863 = vrot.lane.b32.xlu0 %v4861, 8
    %v4864 = vpop.permute.xlu0 %4863
    %v4866 = vsel %vm4218, %v4861, %v4864
    %v4867 = vmul.f32 %v4866, %v3894
    %v4869 = vsel %vm332, %v4867, 0
    %4871 = vmatprep.subr.mxu0 0.0
    %4872 = vmatpush1.msra.mxu0 %v3767
    %4873 = vmatprep.subr.mxu0 0.0
    %4874 = vmatpush1.msra.mxu0 %v3768
    %4875 = vmatprep.subr.mxu0 0.0
    %4876 = vmatpush1.msra.mxu0 0.0
    %4877 = vmatprep.subr.mxu0 0.0
    %4878 = vmatpush1.msra.mxu0 0.0
    %4879 = vmatprep.subr.mxu0 0.0
    %4880 = vmatpush1.msra.mxu0 0.0
    %4881 = vmatprep.subr.mxu0 0.0
    %4882 = vmatpush1.msra.mxu0 0.0
    %4883 = vmatprep.subr.mxu0 0.0
    %4884 = vmatpush1.msra.mxu0 0.0
    %4885 = vmatprep.subr.mxu0 0.0
    %4886 = vmatpush1.msra.mxu0 0.0
    %4887 = vmatprep.subr.mxu0 0.0
    %4888 = vmatpush1.msra.mxu0 0.0
    %4889 = vmatprep.subr.mxu0 0.0
    %4890 = vmatpush1.msra.mxu0 0.0
    %4891 = vmatprep.subr.mxu0 0.0
    %4892 = vmatpush1.msra.mxu0 0.0
    %4893 = vmatprep.subr.mxu0 0.0
    %4894 = vmatpush1.msra.mxu0 0.0
    %4895 = vmatprep.subr.mxu0 0.0
    %4896 = vmatpush1.msra.mxu0 0.0
    %4897 = vmatprep.subr.mxu0 0.0
    %4898 = vmatpush1.msra.mxu0 0.0
    %4899 = vmatprep.subr.mxu0 0.0
    %4900 = vmatpush1.msra.mxu0 0.0
    %4901 = vmatprep.subr.mxu0 0.0
    %4902 = vmatpush1.msra.mxu0 0.0
    %4903 = vmatprep.subr.mxu0 0.0
    %4904 = vmatpush1.msra.mxu0 0.0
    %4905 = vmatprep.subr.mxu0 0.0
    %4906 = vmatpush1.msra.mxu0 0.0
    %4907 = vmatprep.subr.mxu0 0.0
    %4908 = vmatpush1.msra.mxu0 0.0
    %4909 = vmatprep.subr.mxu0 0.0
    %4910 = vmatpush1.msra.mxu0 0.0
    %4911 = vmatprep.subr.mxu0 0.0
    %4912 = vmatpush1.msra.mxu0 0.0
    %4913 = vmatprep.subr.mxu0 0.0
    %4914 = vmatpush1.msra.mxu0 0.0
    %4915 = vmatprep.subr.mxu0 0.0
    %4916 = vmatpush1.msra.mxu0 0.0
    %4917 = vmatprep.subr.mxu0 0.0
    %4918 = vmatpush1.msra.mxu0 0.0
    %4919 = vmatprep.subr.mxu0 0.0
    %4920 = vmatpush1.msra.mxu0 0.0
    %4921 = vmatprep.subr.mxu0 0.0
    %4922 = vmatpush1.msra.mxu0 0.0
    %4923 = vmatprep.subr.mxu0 0.0
    %4924 = vmatpush1.msra.mxu0 0.0
    %4925 = vmatprep.subr.mxu0 0.0
    %4926 = vmatpush1.msra.mxu0 0.0
    %4927 = vmatprep.subr.mxu0 0.0
    %4928 = vmatpush1.msra.mxu0 0.0
    %4929 = vmatprep.subr.mxu0 0.0
    %4930 = vmatpush1.msra.mxu0 0.0
    %4931 = vmatprep.subr.mxu0 0.0
    %4932 = vmatpush1.msra.mxu0 0.0
    %4933 = vmatprep.subr.mxu0 0.0
    %4934 = vmatpush1.msra.mxu0 0.0
    %4935 = vmatprep.mubr.f32.mxu0 0.0
    %4936 = vmatmul.mubr.f32.gmra.mrb[0].mxu0 %v4869
    %v4937 = vpop.f32.mrb[0].mxu0
    %v4938 = vadd.f32 0.0, %v4937
    %v4939 = vpop.f32.mrb[0].mxu0
    %4940 = vdwg.mxu0
    %v4942 = vrot.slane %v4938, 6
    %4943 = vrot.lane.b32.xlu0 %v4942, 32
    %v4944 = vpop.permute.xlu0 %4943
    %v4946 = vsel %vm617, %v4588, %v4944
    %v4948 = vrot.slane %v4946, 2
    %v4949 = vsel %vm4305, %v4948, 0
    %4951 = vmatprep.subr.mxu0 0.0
    %4952 = vmatpush1.msra.mxu0 %v3900
    %4953 = vmatprep.subr.mxu0 0.0
    %4954 = vmatpush1.msra.mxu0 %v3901
    %4955 = vmatprep.subr.mxu0 0.0
    %4956 = vmatpush1.msra.mxu0 %v3902
    %4957 = vmatprep.subr.mxu0 0.0
    %4958 = vmatpush1.msra.mxu0 %v3903
    %4959 = vmatprep.subr.mxu0 0.0
    %4960 = vmatpush1.msra.mxu0 %v3904
    %4961 = vmatprep.subr.mxu0 0.0
    %4962 = vmatpush1.msra.mxu0 %v3905
    %4963 = vmatprep.subr.mxu0 0.0
    %4964 = vmatpush1.msra.mxu0 %v3906
    %4965 = vmatprep.subr.mxu0 0.0
    %4966 = vmatpush1.msra.mxu0 %v3907
    %4967 = vmatprep.subr.mxu0 0.0
    %4968 = vmatpush1.msra.mxu0 %v3908
    %4969 = vmatprep.subr.mxu0 0.0
    %4970 = vmatpush1.msra.mxu0 %v3909
    %4971 = vmatprep.subr.mxu0 0.0
    %4972 = vmatpush1.msra.mxu0 %v3910
    %4973 = vmatprep.subr.mxu0 0.0
    %4974 = vmatpush1.msra.mxu0 %v3911
    %4975 = vmatprep.subr.mxu0 0.0
    %4976 = vmatpush1.msra.mxu0 0.0
    %4977 = vmatprep.subr.mxu0 0.0
    %4978 = vmatpush1.msra.mxu0 0.0
    %4979 = vmatprep.subr.mxu0 0.0
    %4980 = vmatpush1.msra.mxu0 0.0
    %4981 = vmatprep.subr.mxu0 0.0
    %4982 = vmatpush1.msra.mxu0 0.0
    %4983 = vmatprep.subr.mxu0 0.0
    %4984 = vmatpush1.msra.mxu0 0.0
    %4985 = vmatprep.subr.mxu0 0.0
    %4986 = vmatpush1.msra.mxu0 0.0
    %4987 = vmatprep.subr.mxu0 0.0
    %4988 = vmatpush1.msra.mxu0 0.0
    %4989 = vmatprep.subr.mxu0 0.0
    %4990 = vmatpush1.msra.mxu0 0.0
    %4991 = vmatprep.subr.mxu0 0.0
    %4992 = vmatpush1.msra.mxu0 0.0
    %4993 = vmatprep.subr.mxu0 0.0
    %4994 = vmatpush1.msra.mxu0 0.0
    %4995 = vmatprep.subr.mxu0 0.0
    %4996 = vmatpush1.msra.mxu0 0.0
    %4997 = vmatprep.subr.mxu0 0.0
    %4998 = vmatpush1.msra.mxu0 0.0
    %4999 = vmatprep.subr.mxu0 0.0
    %5000 = vmatpush1.msra.mxu0 0.0
    %5001 = vmatprep.subr.mxu0 0.0
    %5002 = vmatpush1.msra.mxu0 0.0
    %5003 = vmatprep.subr.mxu0 0.0
    %5004 = vmatpush1.msra.mxu0 0.0
    %5005 = vmatprep.subr.mxu0 0.0
    %5006 = vmatpush1.msra.mxu0 0.0
    %5007 = vmatprep.subr.mxu0 0.0
    %5008 = vmatpush1.msra.mxu0 0.0
    %5009 = vmatprep.subr.mxu0 0.0
    %5010 = vmatpush1.msra.mxu0 0.0
    %5011 = vmatprep.subr.mxu0 0.0
    %5012 = vmatpush1.msra.mxu0 0.0
    %5013 = vmatprep.subr.mxu0 0.0
    %5014 = vmatpush1.msra.mxu0 0.0
    %5015 = vmatprep.mubr.f32.mxu0 0.0
    %5016 = vmatmul.mubr.f32.gmra.mrb[0].mxu0 %v4949
    %v5017 = vpop.f32.mrb[0].mxu0
    %v5018 = vadd.f32 %v4303, %v5017
    %v5019 = vpop.f32.mrb[0].mxu0
    %5020 = vdwg.mxu0
    %5021 = vrot.lane.b32.xlu0 %v4658, 96
    %v5022 = vpop.permute.xlu0 %5021
    %v5024 = vadd.f32 %v5018, %v5022
    %v5025 = vxor.u32 %v5024, 2147483648
    %v5026 = vmul.f32 %v5025, 1.442695
    %v5027 = vpow.pop %v5026
    %v5028 = vadd.f32 %v5027, 1.0
    %v5029 = vrcp.pop %v5028
    %v5030 = vmul.f32 1.0, %v5029
    %5031 = vrot.lane.b32.xlu0 %v4658, 32
    %v5032 = vpop.permute.xlu0 %5031
    %v5034 = vmul.f32 %v5030, %v5032
    %5036 = vrot.lane.b32.xlu0 %v5034, 64
    %v5037 = vpop.permute.xlu0 %5036
    %v5039 = vadd.f32 %v5018, %v5037
    %v5040 = vtanh.pop %v5039
    %v5041 = vsub.f32 1.0, %v5030
    %5043 = vrot.lane.b32.xlu0 %v5040, 96
    %v5044 = vpop.permute.xlu0 %5043
    %v5046 = vmul.f32 %v5041, %v5044
    %v5047 = vmul.f32 %v5030, %v4409
    %v5048 = vadd.f32 %v5046, %v5047
    %5050 = vrot.lane.b32.xlu0 %v5048, 96
    %v5051 = vpop.permute.xlu0 %5050
    %5053 = vrot.lane.b32.xlu0 %v4938, 32
    %v5054 = vpop.permute.xlu0 %5053
    %v5057 = vrot.slane %v4588, 2
    %5058 = vrot.lane.b32.xlu0 %v5057, 96
    %v5059 = vpop.permute.xlu0 %5058
    %v5061 = vsel %vm617, %v5051, %v5054
    %v5062 = vsel %vm4305, %v5061, %v5059
    %5063 = vmatprep.subr.mxu0 0.0
    %5064 = vmatpush1.msra.mxu0 %v3913
    %5065 = vmatprep.subr.mxu0 0.0
    %5066 = vmatpush1.msra.mxu0 %v3914
    %5067 = vmatprep.subr.mxu0 0.0
    %5068 = vmatpush1.msra.mxu0 %v3915
    %5069 = vmatprep.subr.mxu0 0.0
    %5070 = vmatpush1.msra.mxu0 %v3916
    %5071 = vmatprep.subr.mxu0 0.0
    %5072 = vmatpush1.msra.mxu0 %v3917
    %5073 = vmatprep.subr.mxu0 0.0
    %5074 = vmatpush1.msra.mxu0 %v3918
    %5075 = vmatprep.subr.mxu0 0.0
    %5076 = vmatpush1.msra.mxu0 %v3919
    %5077 = vmatprep.subr.mxu0 0.0
    %5078 = vmatpush1.msra.mxu0 %v3920
    %5079 = vmatprep.subr.mxu0 0.0
    %5080 = vmatpush1.msra.mxu0 %v3921
    %5081 = vmatprep.subr.mxu0 0.0
    %5082 = vmatpush1.msra.mxu0 %v3922
    %5083 = vmatprep.subr.mxu0 0.0
    %5084 = vmatpush1.msra.mxu0 %v3923
    %5085 = vmatprep.subr.mxu0 0.0
    %5086 = vmatpush1.msra.mxu0 %v3924
    %5087 = vmatprep.subr.mxu0 0.0
    %5088 = vmatpush1.msra.mxu0 %v3925
    %5089 = vmatprep.subr.mxu0 0.0
    %5090 = vmatpush1.msra.mxu0 %v3926
    %5091 = vmatprep.subr.mxu0 0.0
    %5092 = vmatpush1.msra.mxu0 %v3927
    %5093 = vmatprep.subr.mxu0 0.0
    %5094 = vmatpush1.msra.mxu0 %v3928
    %5095 = vmatprep.subr.mxu0 0.0
    %5096 = vmatpush1.msra.mxu0 0.0
    %5097 = vmatprep.subr.mxu0 0.0
    %5098 = vmatpush1.msra.mxu0 0.0
    %5099 = vmatprep.subr.mxu0 0.0
    %5100 = vmatpush1.msra.mxu0 0.0
    %5101 = vmatprep.subr.mxu0 0.0
    %5102 = vmatpush1.msra.mxu0 0.0
    %5103 = vmatprep.subr.mxu0 0.0
    %5104 = vmatpush1.msra.mxu0 0.0
    %5105 = vmatprep.subr.mxu0 0.0
    %5106 = vmatpush1.msra.mxu0 0.0
    %5107 = vmatprep.subr.mxu0 0.0
    %5108 = vmatpush1.msra.mxu0 0.0
    %5109 = vmatprep.subr.mxu0 0.0
    %5110 = vmatpush1.msra.mxu0 0.0
    %5111 = vmatprep.subr.mxu0 0.0
    %5112 = vmatpush1.msra.mxu0 0.0
    %5113 = vmatprep.subr.mxu0 0.0
    %5114 = vmatpush1.msra.mxu0 0.0
    %5115 = vmatprep.subr.mxu0 0.0
    %5116 = vmatpush1.msra.mxu0 0.0
    %5117 = vmatprep.subr.mxu0 0.0
    %5118 = vmatpush1.msra.mxu0 0.0
    %5119 = vmatprep.subr.mxu0 0.0
    %5120 = vmatpush1.msra.mxu0 0.0
    %5121 = vmatprep.subr.mxu0 0.0
    %5122 = vmatpush1.msra.mxu0 0.0
    %5123 = vmatprep.subr.mxu0 0.0
    %5124 = vmatpush1.msra.mxu0 0.0
    %5125 = vmatprep.subr.mxu0 0.0
    %5126 = vmatpush1.msra.mxu0 0.0
    %5127 = vmatprep.mubr.f32.mxu0 0.0
    %5128 = vmatmul.mubr.f32.gmra.mrb[0].mxu0 %v5062
    %v5129 = vpop.f32.mrb[0].mxu0
    %v5130 = vadd.f32 %v4424, %v5129
    %v5131 = vpop.f32.mrb[0].mxu0
    %5132 = vdwg.mxu0
    %v5133 = vsel %vm4496, %v5130, -inf
    %5134 = vmax.xlane.f32.xlu0 %v5133
    %v5135 = vpop.xlane.xlu0 %5134
    %vm5136 = vcmp.eq.f32.partialorder %v5130, %v5135
    %v5137 = vsel %vm5136, 1, 0
    %v5138 = vcvt.s32.f32 %v5137
    %v5140 = vsel %vm332, %v5138, 0
    %5142 = vmatprep.subr.mxu0 0.0
    %5143 = vmatpush1.msra.mxu0 %v508
    %5144 = vmatprep.subr.mxu0 0.0
    %5145 = vmatpush1.msra.mxu0 %v509
    %5146 = vmatprep.subr.mxu0 0.0
    %5147 = vmatpush1.msra.mxu0 0.0
    %5148 = vmatprep.subr.mxu0 0.0
    %5149 = vmatpush1.msra.mxu0 0.0
    %5150 = vmatprep.subr.mxu0 0.0
    %5151 = vmatpush1.msra.mxu0 0.0
    %5152 = vmatprep.subr.mxu0 0.0
    %5153 = vmatpush1.msra.mxu0 0.0
    %5154 = vmatprep.subr.mxu0 0.0
    %5155 = vmatpush1.msra.mxu0 0.0
    %5156 = vmatprep.subr.mxu0 0.0
    %5157 = vmatpush1.msra.mxu0 0.0
    %5158 = vmatprep.subr.mxu0 0.0
    %5159 = vmatpush1.msra.mxu0 0.0
    %5160 = vmatprep.subr.mxu0 0.0
    %5161 = vmatpush1.msra.mxu0 0.0
    %5162 = vmatprep.subr.mxu0 0.0
    %5163 = vmatpush1.msra.mxu0 0.0
    %5164 = vmatprep.subr.mxu0 0.0
    %5165 = vmatpush1.msra.mxu0 0.0
    %5166 = vmatprep.subr.mxu0 0.0
    %5167 = vmatpush1.msra.mxu0 0.0
    %5168 = vmatprep.subr.mxu0 0.0
    %5169 = vmatpush1.msra.mxu0 0.0
    %5170 = vmatprep.subr.mxu0 0.0
    %5171 = vmatpush1.msra.mxu0 0.0
    %5172 = vmatprep.subr.mxu0 0.0
    %5173 = vmatpush1.msra.mxu0 0.0
    %5174 = vmatprep.subr.mxu0 0.0
    %5175 = vmatpush1.msra.mxu0 0.0
    %5176 = vmatprep.subr.mxu0 0.0
    %5177 = vmatpush1.msra.mxu0 0.0
    %5178 = vmatprep.subr.mxu0 0.0
    %5179 = vmatpush1.msra.mxu0 0.0
    %5180 = vmatprep.subr.mxu0 0.0
    %5181 = vmatpush1.msra.mxu0 0.0
    %5182 = vmatprep.subr.mxu0 0.0
    %5183 = vmatpush1.msra.mxu0 0.0
    %5184 = vmatprep.subr.mxu0 0.0
    %5185 = vmatpush1.msra.mxu0 0.0
    %5186 = vmatprep.subr.mxu0 0.0
    %5187 = vmatpush1.msra.mxu0 0.0
    %5188 = vmatprep.subr.mxu0 0.0
    %5189 = vmatpush1.msra.mxu0 0.0
    %5190 = vmatprep.subr.mxu0 0.0
    %5191 = vmatpush1.msra.mxu0 0.0
    %5192 = vmatprep.subr.mxu0 0.0
    %5193 = vmatpush1.msra.mxu0 0.0
    %5194 = vmatprep.subr.mxu0 0.0
    %5195 = vmatpush1.msra.mxu0 0.0
    %5196 = vmatprep.subr.mxu0 0.0
    %5197 = vmatpush1.msra.mxu0 0.0
    %5198 = vmatprep.subr.mxu0 0.0
    %5199 = vmatpush1.msra.mxu0 0.0
    %5200 = vmatprep.subr.mxu0 0.0
    %5201 = vmatpush1.msra.mxu0 0.0
    %5202 = vmatprep.subr.mxu0 0.0
    %5203 = vmatpush1.msra.mxu0 0.0
    %5204 = vmatprep.subr.mxu0 0.0
    %5205 = vmatpush1.msra.mxu0 0.0
    %5206 = vmatprep.mubr.f32.mxu0 0.0
    %5207 = vmatmul.mubr.f32.gmra.mrb[0].mxu0 %v5140
    %v5208 = vpop.f32.mrb[0].mxu0
    %v5209 = vadd.f32 0.0, %v5208
    %v5210 = vpop.f32.mrb[0].mxu0
    %5211 = vdwg.mxu0
    %s5212 = sld [smem:[#allocation8 + $0x2]]
    %p5213 = scmp.gt.s32.totalorder %s5212, 0
    %s5214 = scalar_select %p5213, 1, 0
    %s5215 = scvt.s32.f32 %s5214
    %v5216 = vstv %s5215
    %v5217 = vmul.f32 %v5216, %v583
    %s5218 = ssub.f32 1.0, %s5215
    %v5219 = vstv %s5218
    %v5220 = vmul.f32 %v5219, %v5209
    %v5222 = vrot.slane %v5220, 4
    %v5224 = vadd.f32 %v5217, %v5222
    %v5225 = vsel %vm617, %v5051, 0
    %5227 = vmatprep.subr.mxu0 0.0
    %5228 = vmatpush1.msra.mxu0 %v3895
    %5229 = vmatprep.subr.mxu0 0.0
    %5230 = vmatpush1.msra.mxu0 %v3896
    %5231 = vmatprep.subr.mxu0 0.0
    %5232 = vmatpush1.msra.mxu0 %v3897
    %5233 = vmatprep.subr.mxu0 0.0
    %5234 = vmatpush1.msra.mxu0 %v3898
    %5235 = vmatprep.subr.mxu0 0.0
    %5236 = vmatpush1.msra.mxu0 0.0
    %5237 = vmatprep.subr.mxu0 0.0
    %5238 = vmatpush1.msra.mxu0 0.0
    %5239 = vmatprep.subr.mxu0 0.0
    %5240 = vmatpush1.msra.mxu0 0.0
    %5241 = vmatprep.subr.mxu0 0.0
    %5242 = vmatpush1.msra.mxu0 0.0
    %5243 = vmatprep.subr.mxu0 0.0
    %5244 = vmatpush1.msra.mxu0 0.0
    %5245 = vmatprep.subr.mxu0 0.0
    %5246 = vmatpush1.msra.mxu0 0.0
    %5247 = vmatprep.subr.mxu0 0.0
    %5248 = vmatpush1.msra.mxu0 0.0
    %5249 = vmatprep.subr.mxu0 0.0
    %5250 = vmatpush1.msra.mxu0 0.0
    %5251 = vmatprep.subr.mxu0 0.0
    %5252 = vmatpush1.msra.mxu0 0.0
    %5253 = vmatprep.subr.mxu0 0.0
    %5254 = vmatpush1.msra.mxu0 0.0
    %5255 = vmatprep.subr.mxu0 0.0
    %5256 = vmatpush1.msra.mxu0 0.0
    %5257 = vmatprep.subr.mxu0 0.0
    %5258 = vmatpush1.msra.mxu0 0.0
    %5259 = vmatprep.subr.mxu0 0.0
    %5260 = vmatpush1.msra.mxu0 0.0
    %5261 = vmatprep.subr.mxu0 0.0
    %5262 = vmatpush1.msra.mxu0 0.0
    %5263 = vmatprep.subr.mxu0 0.0
    %5264 = vmatpush1.msra.mxu0 0.0
    %5265 = vmatprep.subr.mxu0 0.0
    %5266 = vmatpush1.msra.mxu0 0.0
    %5267 = vmatprep.subr.mxu0 0.0
    %5268 = vmatpush1.msra.mxu0 0.0
    %5269 = vmatprep.subr.mxu0 0.0
    %5270 = vmatpush1.msra.mxu0 0.0
    %5271 = vmatprep.subr.mxu0 0.0
    %5272 = vmatpush1.msra.mxu0 0.0
    %5273 = vmatprep.subr.mxu0 0.0
    %5274 = vmatpush1.msra.mxu0 0.0
    %5275 = vmatprep.subr.mxu0 0.0
    %5276 = vmatpush1.msra.mxu0 0.0
    %5277 = vmatprep.subr.mxu0 0.0
    %5278 = vmatpush1.msra.mxu0 0.0
    %5279 = vmatprep.subr.mxu0 0.0
    %5280 = vmatpush1.msra.mxu0 0.0
    %5281 = vmatprep.subr.mxu0 0.0
    %5282 = vmatpush1.msra.mxu0 0.0
    %5283 = vmatprep.subr.mxu0 0.0
    %5284 = vmatpush1.msra.mxu0 0.0
    %5285 = vmatprep.subr.mxu0 0.0
    %5286 = vmatpush1.msra.mxu0 0.0
    %5287 = vmatprep.subr.mxu0 0.0
    %5288 = vmatpush1.msra.mxu0 0.0
    %5289 = vmatprep.subr.mxu0 0.0
    %5290 = vmatpush1.msra.mxu0 0.0
    %5291 = vmatprep.mubr.f32.mxu0 0.0
    %5292 = vmatmul.mubr.f32.gmra.mrb[0].mxu0 %v5225
    %v5293 = vpop.f32.mrb[0].mxu0
    %v5294 = vadd.f32 %v3934, %v5293
    %v5295 = vpop.f32.mrb[0].mxu0
    %5296 = vdwg.mxu0
    %v5299 = vunpack.c.l.s4 1966171168
    %v5300 = vunpack.c.0.s8 %v5299
    %v5301 = vlaneseq
    %v5302 = vshrl.u32 %v5301, 7
    %v5303 = vsub.s32 %v5300, %v5302
    %v5304 = vrot.slane %v5294, %v5303
    %v5305 = vcombine.high %v5304, %v5304
    %v5307 = vunpack.c.l.s4 1966171168
    %v5308 = vunpack.c.0.s8 %v5307
    %v5309 = vlaneseq
    %v5310 = vshrl.u32 %v5309, 7
    %v5311 = vsub.s32 %v5308, %v5310
    %v5312 = vrot.slane %v5304, %v5311
    %v5314 = vunpack.c.l.s4 1966171168
    %v5315 = vunpack.c.0.s8 %v5314
    %v5316 = vlaneseq
    %v5317 = vshrl.u32 %v5316, 7
    %v5318 = vsub.s32 %v5315, %v5317
    %v5319 = vrot.slane %v5305, %v5318
    %v5320 = vlaneseq
    %v5321 = vshrl.u32 %v5320, 7
    %v5322 = vsub.s32 0, %v5321
    %v5323 = vrot.slane %v5312, %v5322
    %v5324 = vlaneseq
    %v5325 = vshrl.u32 %v5324, 7
    %v5326 = vsub.s32 0, %v5325
    %v5327 = vrot.slane %v5319, %v5326
    %v5330 = vadd.f32 %v5323, %v3850
    %v5331 = vadd.f32 %v5327, %v3855
    %v5332 = vtanh.pop %v5330
    %v5333 = vtanh.pop %v5331
    %v5335 = vsel %vm617, %v5332, 0
    %v5338 = vsel %vm617, %v5333, 0
    %5340 = vmatprep.subr.mxu0 0.0
    %5341 = vmatpush1.msra.mxu0 %v3865
    %5342 = vmatprep.subr.mxu0 0.0
    %5343 = vmatpush1.msra.mxu0 %v3870
    %5344 = vmatprep.subr.mxu0 0.0
    %5345 = vmatpush1.msra.mxu0 %v3875
    %5346 = vmatprep.subr.mxu0 0.0
    %5347 = vmatpush1.msra.mxu0 %v3880
    %5348 = vmatprep.subr.mxu0 0.0
    %5349 = vmatpush1.msra.mxu0 0.0
    %5350 = vmatprep.subr.mxu0 0.0
    %5351 = vmatpush1.msra.mxu0 0.0
    %5352 = vmatprep.subr.mxu0 0.0
    %5353 = vmatpush1.msra.mxu0 0.0
    %5354 = vmatprep.subr.mxu0 0.0
    %5355 = vmatpush1.msra.mxu0 0.0
    %5356 = vmatprep.subr.mxu0 0.0
    %5357 = vmatpush1.msra.mxu0 0.0
    %5358 = vmatprep.subr.mxu0 0.0
    %5359 = vmatpush1.msra.mxu0 0.0
    %5360 = vmatprep.subr.mxu0 0.0
    %5361 = vmatpush1.msra.mxu0 0.0
    %5362 = vmatprep.subr.mxu0 0.0
    %5363 = vmatpush1.msra.mxu0 0.0
    %5364 = vmatprep.subr.mxu0 0.0
    %5365 = vmatpush1.msra.mxu0 0.0
    %5366 = vmatprep.subr.mxu0 0.0
    %5367 = vmatpush1.msra.mxu0 0.0
    %5368 = vmatprep.subr.mxu0 0.0
    %5369 = vmatpush1.msra.mxu0 0.0
    %5370 = vmatprep.subr.mxu0 0.0
    %5371 = vmatpush1.msra.mxu0 0.0
    %5372 = vmatprep.subr.mxu0 0.0
    %5373 = vmatpush1.msra.mxu0 0.0
    %5374 = vmatprep.subr.mxu0 0.0
    %5375 = vmatpush1.msra.mxu0 0.0
    %5376 = vmatprep.subr.mxu0 0.0
    %5377 = vmatpush1.msra.mxu0 0.0
    %5378 = vmatprep.subr.mxu0 0.0
    %5379 = vmatpush1.msra.mxu0 0.0
    %5380 = vmatprep.subr.mxu0 0.0
    %5381 = vmatpush1.msra.mxu0 0.0
    %5382 = vmatprep.subr.mxu0 0.0
    %5383 = vmatpush1.msra.mxu0 0.0
    %5384 = vmatprep.subr.mxu0 0.0
    %5385 = vmatpush1.msra.mxu0 0.0
    %5386 = vmatprep.subr.mxu0 0.0
    %5387 = vmatpush1.msra.mxu0 0.0
    %5388 = vmatprep.subr.mxu0 0.0
    %5389 = vmatpush1.msra.mxu0 0.0
    %5390 = vmatprep.subr.mxu0 0.0
    %5391 = vmatpush1.msra.mxu0 0.0
    %5392 = vmatprep.subr.mxu0 0.0
    %5393 = vmatpush1.msra.mxu0 0.0
    %5394 = vmatprep.subr.mxu0 0.0
    %5395 = vmatpush1.msra.mxu0 0.0
    %5396 = vmatprep.subr.mxu0 0.0
    %5397 = vmatpush1.msra.mxu0 0.0
    %5398 = vmatprep.subr.mxu0 0.0
    %5399 = vmatpush1.msra.mxu0 0.0
    %5400 = vmatprep.subr.mxu0 0.0
    %5401 = vmatpush1.msra.mxu0 0.0
    %5402 = vmatprep.subr.mxu0 0.0
    %5403 = vmatpush1.msra.mxu0 0.0
    %5404 = vmatprep.mubr.f32.mxu0 0.0
    %5405 = vmatmul.mubr.f32.gmra.mrb[0].mxu0 %v5335
    %v5406 = vpop.f32.mrb[0].mxu0
    %v5407 = vadd.f32 0.0, %v5406
    %v5408 = vpop.f32.mrb[0].mxu0
    %5409 = vmatprep.mubr.f32.mxu0 0.0
    %5410 = vmatmul.mubr.f32.gmra.mrb[0].mxu0 %v5338
    %v5411 = vpop.f32.mrb[0].mxu0
    %v5412 = vadd.f32 0.0, %v5411
    %v5413 = vpop.f32.mrb[0].mxu0
    %5414 = vdwg.mxu0
    %v5415 = vmul.f32 %v5407, %v3886
    %v5416 = vmul.f32 %v5412, %v3886
    %5417 = vmatprep.subr.mxu0 0.0
    %5418 = vmatpush1.msra.mxu0 %v5415
    %5419 = vmatprep.subr.mxu0 0.0
    %5420 = vmatpush1.msra.mxu0 %v5416
    %5421 = vmatprep.subr.mxu0 0.0
    %5422 = vmatpush1.msra.mxu0 0.0
    %5423 = vmatprep.subr.mxu0 0.0
    %5424 = vmatpush1.msra.mxu0 0.0
    %5425 = vmatprep.subr.mxu0 0.0
    %5426 = vmatpush1.msra.mxu0 0.0
    %5427 = vmatprep.subr.mxu0 0.0
    %5428 = vmatpush1.msra.mxu0 0.0
    %5429 = vmatprep.subr.mxu0 0.0
    %5430 = vmatpush1.msra.mxu0 0.0
    %5431 = vmatprep.subr.mxu0 0.0
    %5432 = vmatpush1.msra.mxu0 0.0
    %5433 = vmatprep.subr.mxu0 0.0
    %5434 = vmatpush1.msra.mxu0 0.0
    %5435 = vmatprep.subr.mxu0 0.0
    %5436 = vmatpush1.msra.mxu0 0.0
    %5437 = vmatprep.subr.mxu0 0.0
    %5438 = vmatpush1.msra.mxu0 0.0
    %5439 = vmatprep.subr.mxu0 0.0
    %5440 = vmatpush1.msra.mxu0 0.0
    %5441 = vmatprep.subr.mxu0 0.0
    %5442 = vmatpush1.msra.mxu0 0.0
    %5443 = vmatprep.subr.mxu0 0.0
    %5444 = vmatpush1.msra.mxu0 0.0
    %5445 = vmatprep.subr.mxu0 0.0
    %5446 = vmatpush1.msra.mxu0 0.0
    %5447 = vmatprep.subr.mxu0 0.0
    %5448 = vmatpush1.msra.mxu0 0.0
    %5449 = vmatprep.subr.mxu0 0.0
    %5450 = vmatpush1.msra.mxu0 0.0
    %5451 = vmatprep.subr.mxu0 0.0
    %5452 = vmatpush1.msra.mxu0 0.0
    %5453 = vmatprep.subr.mxu0 0.0
    %5454 = vmatpush1.msra.mxu0 0.0
    %5455 = vmatprep.subr.mxu0 0.0
    %5456 = vmatpush1.msra.mxu0 0.0
    %5457 = vmatprep.subr.mxu0 0.0
    %5458 = vmatpush1.msra.mxu0 0.0
    %5459 = vmatprep.subr.mxu0 0.0
    %5460 = vmatpush1.msra.mxu0 0.0
    %5461 = vmatprep.subr.mxu0 0.0
    %5462 = vmatpush1.msra.mxu0 0.0
    %5463 = vmatprep.subr.mxu0 0.0
    %5464 = vmatpush1.msra.mxu0 0.0
    %5465 = vmatprep.subr.mxu0 0.0
    %5466 = vmatpush1.msra.mxu0 0.0
    %5467 = vmatprep.subr.mxu0 0.0
    %5468 = vmatpush1.msra.mxu0 0.0
    %5469 = vmatprep.subr.mxu0 0.0
    %5470 = vmatpush1.msra.mxu0 0.0
    %5471 = vmatprep.subr.mxu0 0.0
    %5472 = vmatpush1.msra.mxu0 0.0
    %5473 = vmatprep.subr.mxu0 0.0
    %5474 = vmatpush1.msra.mxu0 0.0
    %5475 = vmatprep.subr.mxu0 0.0
    %5476 = vmatpush1.msra.mxu0 0.0
    %5477 = vmatprep.subr.mxu0 0.0
    %5478 = vmatpush1.msra.mxu0 0.0
    %5479 = vmatprep.subr.mxu0 0.0
    %5480 = vmatpush1.msra.mxu0 0.0
    %5481 = vmatprep.mubr.f32.mxu0 0.0
    %5482 = vmatmul.mubr.f32.gmra.mrb[0].mxu0 %v4130
    %v5483 = vpop.f32.mrb[0].mxu0
    %v5484 = vadd.f32 0.0, %v5483
    %v5485 = vpop.f32.mrb[0].mxu0
    %5486 = vdwg.mxu0
    %v5487 = vsel %vm4202, %v5484, -inf
    %5488 = vmax.xlane.f32.xlu0 %v5487
    %v5489 = vpop.xlane.xlu0 %5488
    %v5490 = vsub.f32 %v5484, %v5489
    %v5491 = vmul.f32 %v5490, 1.442695
    %v5492 = vpow.pop %v5491
    %v5493 = vsel %vm4202, %v5492, 0.0
    %5494 = vadd.xlane.f32.xlu0 %v5493
    %v5495 = vpop.xlane.xlu0 %5494
    %v5496 = vrcp.pop %v5495
    %v5497 = vmul.f32 %v5492, %v5496
    %5499 = vrot.lane.b32.xlu0 %v5497, 8
    %v5500 = vpop.permute.xlu0 %5499
    %v5502 = vsel %vm4218, %v5497, %v5500
    %v5503 = vmul.f32 %v5502, %v3894
    %v5505 = vsel %vm332, %v5503, 0
    %5507 = vmatprep.subr.mxu0 0.0
    %5508 = vmatpush1.msra.mxu0 %v3767
    %5509 = vmatprep.subr.mxu0 0.0
    %5510 = vmatpush1.msra.mxu0 %v3768
    %5511 = vmatprep.subr.mxu0 0.0
    %5512 = vmatpush1.msra.mxu0 0.0
    %5513 = vmatprep.subr.mxu0 0.0
    %5514 = vmatpush1.msra.mxu0 0.0
    %5515 = vmatprep.subr.mxu0 0.0
    %5516 = vmatpush1.msra.mxu0 0.0
    %5517 = vmatprep.subr.mxu0 0.0
    %5518 = vmatpush1.msra.mxu0 0.0
    %5519 = vmatprep.subr.mxu0 0.0
    %5520 = vmatpush1.msra.mxu0 0.0
    %5521 = vmatprep.subr.mxu0 0.0
    %5522 = vmatpush1.msra.mxu0 0.0
    %5523 = vmatprep.subr.mxu0 0.0
    %5524 = vmatpush1.msra.mxu0 0.0
    %5525 = vmatprep.subr.mxu0 0.0
    %5526 = vmatpush1.msra.mxu0 0.0
    %5527 = vmatprep.subr.mxu0 0.0
    %5528 = vmatpush1.msra.mxu0 0.0
    %5529 = vmatprep.subr.mxu0 0.0
    %5530 = vmatpush1.msra.mxu0 0.0
    %5531 = vmatprep.subr.mxu0 0.0
    %5532 = vmatpush1.msra.mxu0 0.0
    %5533 = vmatprep.subr.mxu0 0.0
    %5534 = vmatpush1.msra.mxu0 0.0
    %5535 = vmatprep.subr.mxu0 0.0
    %5536 = vmatpush1.msra.mxu0 0.0
    %5537 = vmatprep.subr.mxu0 0.0
    %5538 = vmatpush1.msra.mxu0 0.0
    %5539 = vmatprep.subr.mxu0 0.0
    %5540 = vmatpush1.msra.mxu0 0.0
    %5541 = vmatprep.subr.mxu0 0.0
    %5542 = vmatpush1.msra.mxu0 0.0
    %5543 = vmatprep.subr.mxu0 0.0
    %5544 = vmatpush1.msra.mxu0 0.0
    %5545 = vmatprep.subr.mxu0 0.0
    %5546 = vmatpush1.msra.mxu0 0.0
    %5547 = vmatprep.subr.mxu0 0.0
    %5548 = vmatpush1.msra.mxu0 0.0
    %5549 = vmatprep.subr.mxu0 0.0
    %5550 = vmatpush1.msra.mxu0 0.0
    %5551 = vmatprep.subr.mxu0 0.0
    %5552 = vmatpush1.msra.mxu0 0.0
    %5553 = vmatprep.subr.mxu0 0.0
    %5554 = vmatpush1.msra.mxu0 0.0
    %5555 = vmatprep.subr.mxu0 0.0
    %5556 = vmatpush1.msra.mxu0 0.0
    %5557 = vmatprep.subr.mxu0 0.0
    %5558 = vmatpush1.msra.mxu0 0.0
    %5559 = vmatprep.subr.mxu0 0.0
    %5560 = vmatpush1.msra.mxu0 0.0
    %5561 = vmatprep.subr.mxu0 0.0
    %5562 = vmatpush1.msra.mxu0 0.0
    %5563 = vmatprep.subr.mxu0 0.0
    %5564 = vmatpush1.msra.mxu0 0.0
    %5565 = vmatprep.subr.mxu0 0.0
    %5566 = vmatpush1.msra.mxu0 0.0
    %5567 = vmatprep.subr.mxu0 0.0
    %5568 = vmatpush1.msra.mxu0 0.0
    %5569 = vmatprep.subr.mxu0 0.0
    %5570 = vmatpush1.msra.mxu0 0.0
    %5571 = vmatprep.mubr.f32.mxu0 0.0
    %5572 = vmatmul.mubr.f32.gmra.mrb[0].mxu0 %v5505
    %v5573 = vpop.f32.mrb[0].mxu0
    %v5574 = vadd.f32 0.0, %v5573
    %v5575 = vpop.f32.mrb[0].mxu0
    %5576 = vdwg.mxu0
    %v5578 = vrot.slane %v5574, 4
    %5579 = vrot.lane.b32.xlu0 %v5578, 32
    %v5580 = vpop.permute.xlu0 %5579
    %v5582 = vsel %vm617, %v5224, %v5580
    %v5584 = vrot.slane %v5582, 4
    %v5585 = vsel %vm4305, %v5584, 0
    %5587 = vmatprep.subr.mxu0 0.0
    %5588 = vmatpush1.msra.mxu0 %v3900
    %5589 = vmatprep.subr.mxu0 0.0
    %5590 = vmatpush1.msra.mxu0 %v3901
    %5591 = vmatprep.subr.mxu0 0.0
    %5592 = vmatpush1.msra.mxu0 %v3902
    %5593 = vmatprep.subr.mxu0 0.0
    %5594 = vmatpush1.msra.mxu0 %v3903
    %5595 = vmatprep.subr.mxu0 0.0
    %5596 = vmatpush1.msra.mxu0 %v3904
    %5597 = vmatprep.subr.mxu0 0.0
    %5598 = vmatpush1.msra.mxu0 %v3905
    %5599 = vmatprep.subr.mxu0 0.0
    %5600 = vmatpush1.msra.mxu0 %v3906
    %5601 = vmatprep.subr.mxu0 0.0
    %5602 = vmatpush1.msra.mxu0 %v3907
    %5603 = vmatprep.subr.mxu0 0.0
    %5604 = vmatpush1.msra.mxu0 %v3908
    %5605 = vmatprep.subr.mxu0 0.0
    %5606 = vmatpush1.msra.mxu0 %v3909
    %5607 = vmatprep.subr.mxu0 0.0
    %5608 = vmatpush1.msra.mxu0 %v3910
    %5609 = vmatprep.subr.mxu0 0.0
    %5610 = vmatpush1.msra.mxu0 %v3911
    %5611 = vmatprep.subr.mxu0 0.0
    %5612 = vmatpush1.msra.mxu0 0.0
    %5613 = vmatprep.subr.mxu0 0.0
    %5614 = vmatpush1.msra.mxu0 0.0
    %5615 = vmatprep.subr.mxu0 0.0
    %5616 = vmatpush1.msra.mxu0 0.0
    %5617 = vmatprep.subr.mxu0 0.0
    %5618 = vmatpush1.msra.mxu0 0.0
    %5619 = vmatprep.subr.mxu0 0.0
    %5620 = vmatpush1.msra.mxu0 0.0
    %5621 = vmatprep.subr.mxu0 0.0
    %5622 = vmatpush1.msra.mxu0 0.0
    %5623 = vmatprep.subr.mxu0 0.0
    %5624 = vmatpush1.msra.mxu0 0.0
    %5625 = vmatprep.subr.mxu0 0.0
    %5626 = vmatpush1.msra.mxu0 0.0
    %5627 = vmatprep.subr.mxu0 0.0
    %5628 = vmatpush1.msra.mxu0 0.0
    %5629 = vmatprep.subr.mxu0 0.0
    %5630 = vmatpush1.msra.mxu0 0.0
    %5631 = vmatprep.subr.mxu0 0.0
    %5632 = vmatpush1.msra.mxu0 0.0
    %5633 = vmatprep.subr.mxu0 0.0
    %5634 = vmatpush1.msra.mxu0 0.0
    %5635 = vmatprep.subr.mxu0 0.0
    %5636 = vmatpush1.msra.mxu0 0.0
    %5637 = vmatprep.subr.mxu0 0.0
    %5638 = vmatpush1.msra.mxu0 0.0
    %5639 = vmatprep.subr.mxu0 0.0
    %5640 = vmatpush1.msra.mxu0 0.0
    %5641 = vmatprep.subr.mxu0 0.0
    %5642 = vmatpush1.msra.mxu0 0.0
    %5643 = vmatprep.subr.mxu0 0.0
    %5644 = vmatpush1.msra.mxu0 0.0
    %5645 = vmatprep.subr.mxu0 0.0
    %5646 = vmatpush1.msra.mxu0 0.0
    %5647 = vmatprep.subr.mxu0 0.0
    %5648 = vmatpush1.msra.mxu0 0.0
    %5649 = vmatprep.subr.mxu0 0.0
    %5650 = vmatpush1.msra.mxu0 0.0
    %5651 = vmatprep.mubr.f32.mxu0 0.0
    %5652 = vmatmul.mubr.f32.gmra.mrb[0].mxu0 %v5585
    %v5653 = vpop.f32.mrb[0].mxu0
    %v5654 = vadd.f32 %v4303, %v5653
    %v5655 = vpop.f32.mrb[0].mxu0
    %5656 = vdwg.mxu0
    %5657 = vrot.lane.b32.xlu0 %v5294, 96
    %v5658 = vpop.permute.xlu0 %5657
    %v5660 = vadd.f32 %v5654, %v5658
    %v5661 = vxor.u32 %v5660, 2147483648
    %v5662 = vmul.f32 %v5661, 1.442695
    %v5663 = vpow.pop %v5662
    %v5664 = vadd.f32 %v5663, 1.0
    %v5665 = vrcp.pop %v5664
    %v5666 = vmul.f32 1.0, %v5665
    %5667 = vrot.lane.b32.xlu0 %v5294, 32
    %v5668 = vpop.permute.xlu0 %5667
    %v5670 = vmul.f32 %v5666, %v5668
    %5672 = vrot.lane.b32.xlu0 %v5670, 64
    %v5673 = vpop.permute.xlu0 %5672
    %v5675 = vadd.f32 %v5654, %v5673
    %v5676 = vtanh.pop %v5675
    %v5677 = vsub.f32 1.0, %v5666
    %5679 = vrot.lane.b32.xlu0 %v5676, 96
    %v5680 = vpop.permute.xlu0 %5679
    %v5682 = vmul.f32 %v5677, %v5680
    %v5683 = vmul.f32 %v5666, %v5048
    %v5684 = vadd.f32 %v5682, %v5683
    %5686 = vrot.lane.b32.xlu0 %v5684, 96
    %v5687 = vpop.permute.xlu0 %5686
    %5689 = vrot.lane.b32.xlu0 %v5574, 32
    %v5690 = vpop.permute.xlu0 %5689
    %v5693 = vrot.slane %v5224, 4
    %5694 = vrot.lane.b32.xlu0 %v5693, 96
    %v5695 = vpop.permute.xlu0 %5694
    %v5697 = vsel %vm617, %v5687, %v5690
    %v5698 = vsel %vm4305, %v5697, %v5695
    %5699 = vmatprep.subr.mxu0 0.0
    %5700 = vmatpush1.msra.mxu0 %v3913
    %5701 = vmatprep.subr.mxu0 0.0
    %5702 = vmatpush1.msra.mxu0 %v3914
    %5703 = vmatprep.subr.mxu0 0.0
    %5704 = vmatpush1.msra.mxu0 %v3915
    %5705 = vmatprep.subr.mxu0 0.0
    %5706 = vmatpush1.msra.mxu0 %v3916
    %5707 = vmatprep.subr.mxu0 0.0
    %5708 = vmatpush1.msra.mxu0 %v3917
    %5709 = vmatprep.subr.mxu0 0.0
    %5710 = vmatpush1.msra.mxu0 %v3918
    %5711 = vmatprep.subr.mxu0 0.0
    %5712 = vmatpush1.msra.mxu0 %v3919
    %5713 = vmatprep.subr.mxu0 0.0
    %5714 = vmatpush1.msra.mxu0 %v3920
    %5715 = vmatprep.subr.mxu0 0.0
    %5716 = vmatpush1.msra.mxu0 %v3921
    %5717 = vmatprep.subr.mxu0 0.0
    %5718 = vmatpush1.msra.mxu0 %v3922
    %5719 = vmatprep.subr.mxu0 0.0
    %5720 = vmatpush1.msra.mxu0 %v3923
    %5721 = vmatprep.subr.mxu0 0.0
    %5722 = vmatpush1.msra.mxu0 %v3924
    %5723 = vmatprep.subr.mxu0 0.0
    %5724 = vmatpush1.msra.mxu0 %v3925
    %5725 = vmatprep.subr.mxu0 0.0
    %5726 = vmatpush1.msra.mxu0 %v3926
    %5727 = vmatprep.subr.mxu0 0.0
    %5728 = vmatpush1.msra.mxu0 %v3927
    %5729 = vmatprep.subr.mxu0 0.0
    %5730 = vmatpush1.msra.mxu0 %v3928
    %5731 = vmatprep.subr.mxu0 0.0
    %5732 = vmatpush1.msra.mxu0 0.0
    %5733 = vmatprep.subr.mxu0 0.0
    %5734 = vmatpush1.msra.mxu0 0.0
    %5735 = vmatprep.subr.mxu0 0.0
    %5736 = vmatpush1.msra.mxu0 0.0
    %5737 = vmatprep.subr.mxu0 0.0
    %5738 = vmatpush1.msra.mxu0 0.0
    %5739 = vmatprep.subr.mxu0 0.0
    %5740 = vmatpush1.msra.mxu0 0.0
    %5741 = vmatprep.subr.mxu0 0.0
    %5742 = vmatpush1.msra.mxu0 0.0
    %5743 = vmatprep.subr.mxu0 0.0
    %5744 = vmatpush1.msra.mxu0 0.0
    %5745 = vmatprep.subr.mxu0 0.0
    %5746 = vmatpush1.msra.mxu0 0.0
    %5747 = vmatprep.subr.mxu0 0.0
    %5748 = vmatpush1.msra.mxu0 0.0
    %5749 = vmatprep.subr.mxu0 0.0
    %5750 = vmatpush1.msra.mxu0 0.0
    %5751 = vmatprep.subr.mxu0 0.0
    %5752 = vmatpush1.msra.mxu0 0.0
    %5753 = vmatprep.subr.mxu0 0.0
    %5754 = vmatpush1.msra.mxu0 0.0
    %5755 = vmatprep.subr.mxu0 0.0
    %5756 = vmatpush1.msra.mxu0 0.0
    %5757 = vmatprep.subr.mxu0 0.0
    %5758 = vmatpush1.msra.mxu0 0.0
    %5759 = vmatprep.subr.mxu0 0.0
    %5760 = vmatpush1.msra.mxu0 0.0
    %5761 = vmatprep.subr.mxu0 0.0
    %5762 = vmatpush1.msra.mxu0 0.0
    %5763 = vmatprep.mubr.f32.mxu0 0.0
    %5764 = vmatmul.mubr.f32.gmra.mrb[0].mxu0 %v5698
    %v5765 = vpop.f32.mrb[0].mxu0
    %v5766 = vadd.f32 %v4424, %v5765
    %v5767 = vpop.f32.mrb[0].mxu0
    %5768 = vdwg.mxu0
    %v5769 = vsel %vm4496, %v5766, -inf
    %5770 = vmax.xlane.f32.xlu0 %v5769
    %v5771 = vpop.xlane.xlu0 %5770
    %vm5772 = vcmp.eq.f32.partialorder %v5766, %v5771
    %v5773 = vsel %vm5772, 1, 0
    %v5774 = vcvt.s32.f32 %v5773
    %v5776 = vsel %vm332, %v5774, 0
    %5778 = vmatprep.subr.mxu0 0.0
    %5779 = vmatpush1.msra.mxu0 %v508
    %5780 = vmatprep.subr.mxu0 0.0
    %5781 = vmatpush1.msra.mxu0 %v509
    %5782 = vmatprep.subr.mxu0 0.0
    %5783 = vmatpush1.msra.mxu0 0.0
    %5784 = vmatprep.subr.mxu0 0.0
    %5785 = vmatpush1.msra.mxu0 0.0
    %5786 = vmatprep.subr.mxu0 0.0
    %5787 = vmatpush1.msra.mxu0 0.0
    %5788 = vmatprep.subr.mxu0 0.0
    %5789 = vmatpush1.msra.mxu0 0.0
    %5790 = vmatprep.subr.mxu0 0.0
    %5791 = vmatpush1.msra.mxu0 0.0
    %5792 = vmatprep.subr.mxu0 0.0
    %5793 = vmatpush1.msra.mxu0 0.0
    %5794 = vmatprep.subr.mxu0 0.0
    %5795 = vmatpush1.msra.mxu0 0.0
    %5796 = vmatprep.subr.mxu0 0.0
    %5797 = vmatpush1.msra.mxu0 0.0
    %5798 = vmatprep.subr.mxu0 0.0
    %5799 = vmatpush1.msra.mxu0 0.0
    %5800 = vmatprep.subr.mxu0 0.0
    %5801 = vmatpush1.msra.mxu0 0.0
    %5802 = vmatprep.subr.mxu0 0.0
    %5803 = vmatpush1.msra.mxu0 0.0
    %5804 = vmatprep.subr.mxu0 0.0
    %5805 = vmatpush1.msra.mxu0 0.0
    %5806 = vmatprep.subr.mxu0 0.0
    %5807 = vmatpush1.msra.mxu0 0.0
    %5808 = vmatprep.subr.mxu0 0.0
    %5809 = vmatpush1.msra.mxu0 0.0
    %5810 = vmatprep.subr.mxu0 0.0
    %5811 = vmatpush1.msra.mxu0 0.0
    %5812 = vmatprep.subr.mxu0 0.0
    %5813 = vmatpush1.msra.mxu0 0.0
    %5814 = vmatprep.subr.mxu0 0.0
    %5815 = vmatpush1.msra.mxu0 0.0
    %5816 = vmatprep.subr.mxu0 0.0
    %5817 = vmatpush1.msra.mxu0 0.0
    %5818 = vmatprep.subr.mxu0 0.0
    %5819 = vmatpush1.msra.mxu0 0.0
    %5820 = vmatprep.subr.mxu0 0.0
    %5821 = vmatpush1.msra.mxu0 0.0
    %5822 = vmatprep.subr.mxu0 0.0
    %5823 = vmatpush1.msra.mxu0 0.0
    %5824 = vmatprep.subr.mxu0 0.0
    %5825 = vmatpush1.msra.mxu0 0.0
    %5826 = vmatprep.subr.mxu0 0.0
    %5827 = vmatpush1.msra.mxu0 0.0
    %5828 = vmatprep.subr.mxu0 0.0
    %5829 = vmatpush1.msra.mxu0 0.0
    %5830 = vmatprep.subr.mxu0 0.0
    %5831 = vmatpush1.msra.mxu0 0.0
    %5832 = vmatprep.subr.mxu0 0.0
    %5833 = vmatpush1.msra.mxu0 0.0
    %5834 = vmatprep.subr.mxu0 0.0
    %5835 = vmatpush1.msra.mxu0 0.0
    %5836 = vmatprep.subr.mxu0 0.0
    %5837 = vmatpush1.msra.mxu0 0.0
    %5838 = vmatprep.subr.mxu0 0.0
    %5839 = vmatpush1.msra.mxu0 0.0
    %5840 = vmatprep.subr.mxu0 0.0
    %5841 = vmatpush1.msra.mxu0 0.0
    %5842 = vmatprep.mubr.f32.mxu0 0.0
    %5843 = vmatmul.mubr.f32.gmra.mrb[0].mxu0 %v5776
    %v5844 = vpop.f32.mrb[0].mxu0
    %v5845 = vadd.f32 0.0, %v5844
    %v5846 = vpop.f32.mrb[0].mxu0
    %5847 = vdwg.mxu0
    %s5848 = sld [smem:[#allocation8 + $0x3]]
    %p5849 = scmp.gt.s32.totalorder %s5848, 0
    %s5850 = scalar_select %p5849, 1, 0
    %s5851 = scvt.s32.f32 %s5850
    %v5852 = vstv %s5851
    %v5853 = vmul.f32 %v5852, %v583
    %s5854 = ssub.f32 1.0, %s5851
    %v5855 = vstv %s5854
    %v5856 = vmul.f32 %v5855, %v5845
    %v5858 = vrot.slane %v5856, 2
    %v5860 = vadd.f32 %v5853, %v5858
    %v5861 = vsel %vm617, %v5687, 0
    %5863 = vmatprep.subr.mxu0 0.0
    %5864 = vmatpush1.msra.mxu0 %v3895
    %5865 = vmatprep.subr.mxu0 0.0
    %5866 = vmatpush1.msra.mxu0 %v3896
    %5867 = vmatprep.subr.mxu0 0.0
    %5868 = vmatpush1.msra.mxu0 %v3897
    %5869 = vmatprep.subr.mxu0 0.0
    %5870 = vmatpush1.msra.mxu0 %v3898
    %5871 = vmatprep.subr.mxu0 0.0
    %5872 = vmatpush1.msra.mxu0 0.0
    %5873 = vmatprep.subr.mxu0 0.0
    %5874 = vmatpush1.msra.mxu0 0.0
    %5875 = vmatprep.subr.mxu0 0.0
    %5876 = vmatpush1.msra.mxu0 0.0
    %5877 = vmatprep.subr.mxu0 0.0
    %5878 = vmatpush1.msra.mxu0 0.0
    %5879 = vmatprep.subr.mxu0 0.0
    %5880 = vmatpush1.msra.mxu0 0.0
    %5881 = vmatprep.subr.mxu0 0.0
    %5882 = vmatpush1.msra.mxu0 0.0
    %5883 = vmatprep.subr.mxu0 0.0
    %5884 = vmatpush1.msra.mxu0 0.0
    %5885 = vmatprep.subr.mxu0 0.0
    %5886 = vmatpush1.msra.mxu0 0.0
    %5887 = vmatprep.subr.mxu0 0.0
    %5888 = vmatpush1.msra.mxu0 0.0
    %5889 = vmatprep.subr.mxu0 0.0
    %5890 = vmatpush1.msra.mxu0 0.0
    %5891 = vmatprep.subr.mxu0 0.0
    %5892 = vmatpush1.msra.mxu0 0.0
    %5893 = vmatprep.subr.mxu0 0.0
    %5894 = vmatpush1.msra.mxu0 0.0
    %5895 = vmatprep.subr.mxu0 0.0
    %5896 = vmatpush1.msra.mxu0 0.0
    %5897 = vmatprep.subr.mxu0 0.0
    %5898 = vmatpush1.msra.mxu0 0.0
    %5899 = vmatprep.subr.mxu0 0.0
    %5900 = vmatpush1.msra.mxu0 0.0
    %5901 = vmatprep.subr.mxu0 0.0
    %5902 = vmatpush1.msra.mxu0 0.0
    %5903 = vmatprep.subr.mxu0 0.0
    %5904 = vmatpush1.msra.mxu0 0.0
    %5905 = vmatprep.subr.mxu0 0.0
    %5906 = vmatpush1.msra.mxu0 0.0
    %5907 = vmatprep.subr.mxu0 0.0
    %5908 = vmatpush1.msra.mxu0 0.0
    %5909 = vmatprep.subr.mxu0 0.0
    %5910 = vmatpush1.msra.mxu0 0.0
    %5911 = vmatprep.subr.mxu0 0.0
    %5912 = vmatpush1.msra.mxu0 0.0
    %5913 = vmatprep.subr.mxu0 0.0
    %5914 = vmatpush1.msra.mxu0 0.0
    %5915 = vmatprep.subr.mxu0 0.0
    %5916 = vmatpush1.msra.mxu0 0.0
    %5917 = vmatprep.subr.mxu0 0.0
    %5918 = vmatpush1.msra.mxu0 0.0
    %5919 = vmatprep.subr.mxu0 0.0
    %5920 = vmatpush1.msra.mxu0 0.0
    %5921 = vmatprep.subr.mxu0 0.0
    %5922 = vmatpush1.msra.mxu0 0.0
    %5923 = vmatprep.subr.mxu0 0.0
    %5924 = vmatpush1.msra.mxu0 0.0
    %5925 = vmatprep.subr.mxu0 0.0
    %5926 = vmatpush1.msra.mxu0 0.0
    %5927 = vmatprep.mubr.f32.mxu0 0.0
    %5928 = vmatmul.mubr.f32.gmra.mrb[0].mxu0 %v5861
    %v5929 = vpop.f32.mrb[0].mxu0
    %v5930 = vadd.f32 %v3934, %v5929
    %v5931 = vpop.f32.mrb[0].mxu0
    %5932 = vdwg.mxu0
    %v5935 = vunpack.c.l.s4 1966171168
    %v5936 = vunpack.c.0.s8 %v5935
    %v5937 = vlaneseq
    %v5938 = vshrl.u32 %v5937, 7
    %v5939 = vsub.s32 %v5936, %v5938
    %v5940 = vrot.slane %v5930, %v5939
    %v5941 = vcombine.high %v5940, %v5940
    %v5943 = vunpack.c.l.s4 1966171168
    %v5944 = vunpack.c.0.s8 %v5943
    %v5945 = vlaneseq
    %v5946 = vshrl.u32 %v5945, 7
    %v5947 = vsub.s32 %v5944, %v5946
    %v5948 = vrot.slane %v5940, %v5947
    %v5950 = vunpack.c.l.s4 1966171168
    %v5951 = vunpack.c.0.s8 %v5950
    %v5952 = vlaneseq
    %v5953 = vshrl.u32 %v5952, 7
    %v5954 = vsub.s32 %v5951, %v5953
    %v5955 = vrot.slane %v5941, %v5954
    %v5956 = vlaneseq
    %v5957 = vshrl.u32 %v5956, 7
    %v5958 = vsub.s32 0, %v5957
    %v5959 = vrot.slane %v5948, %v5958
    %v5960 = vlaneseq
    %v5961 = vshrl.u32 %v5960, 7
    %v5962 = vsub.s32 0, %v5961
    %v5963 = vrot.slane %v5955, %v5962
    %v5966 = vadd.f32 %v5959, %v3850
    %v5967 = vadd.f32 %v5963, %v3855
    %v5968 = vtanh.pop %v5966
    %v5969 = vtanh.pop %v5967
    %v5971 = vsel %vm617, %v5968, 0
    %v5974 = vsel %vm617, %v5969, 0
    %5976 = vmatprep.subr.mxu0 0.0
    %5977 = vmatpush1.msra.mxu0 %v3865
    %5978 = vmatprep.subr.mxu0 0.0
    %5979 = vmatpush1.msra.mxu0 %v3870
    %5980 = vmatprep.subr.mxu0 0.0
    %5981 = vmatpush1.msra.mxu0 %v3875
    %5982 = vmatprep.subr.mxu0 0.0
    %5983 = vmatpush1.msra.mxu0 %v3880
    %5984 = vmatprep.subr.mxu0 0.0
    %5985 = vmatpush1.msra.mxu0 0.0
    %5986 = vmatprep.subr.mxu0 0.0
    %5987 = vmatpush1.msra.mxu0 0.0
    %5988 = vmatprep.subr.mxu0 0.0
    %5989 = vmatpush1.msra.mxu0 0.0
    %5990 = vmatprep.subr.mxu0 0.0
    %5991 = vmatpush1.msra.mxu0 0.0
    %5992 = vmatprep.subr.mxu0 0.0
    %5993 = vmatpush1.msra.mxu0 0.0
    %5994 = vmatprep.subr.mxu0 0.0
    %5995 = vmatpush1.msra.mxu0 0.0
    %5996 = vmatprep.subr.mxu0 0.0
    %5997 = vmatpush1.msra.mxu0 0.0
    %5998 = vmatprep.subr.mxu0 0.0
    %5999 = vmatpush1.msra.mxu0 0.0
    %6000 = vmatprep.subr.mxu0 0.0
    %6001 = vmatpush1.msra.mxu0 0.0
    %6002 = vmatprep.subr.mxu0 0.0
    %6003 = vmatpush1.msra.mxu0 0.0
    %6004 = vmatprep.subr.mxu0 0.0
    %6005 = vmatpush1.msra.mxu0 0.0
    %6006 = vmatprep.subr.mxu0 0.0
    %6007 = vmatpush1.msra.mxu0 0.0
    %6008 = vmatprep.subr.mxu0 0.0
    %6009 = vmatpush1.msra.mxu0 0.0
    %6010 = vmatprep.subr.mxu0 0.0
    %6011 = vmatpush1.msra.mxu0 0.0
    %6012 = vmatprep.subr.mxu0 0.0
    %6013 = vmatpush1.msra.mxu0 0.0
    %6014 = vmatprep.subr.mxu0 0.0
    %6015 = vmatpush1.msra.mxu0 0.0
    %6016 = vmatprep.subr.mxu0 0.0
    %6017 = vmatpush1.msra.mxu0 0.0
    %6018 = vmatprep.subr.mxu0 0.0
    %6019 = vmatpush1.msra.mxu0 0.0
    %6020 = vmatprep.subr.mxu0 0.0
    %6021 = vmatpush1.msra.mxu0 0.0
    %6022 = vmatprep.subr.mxu0 0.0
    %6023 = vmatpush1.msra.mxu0 0.0
    %6024 = vmatprep.subr.mxu0 0.0
    %6025 = vmatpush1.msra.mxu0 0.0
    %6026 = vmatprep.subr.mxu0 0.0
    %6027 = vmatpush1.msra.mxu0 0.0
    %6028 = vmatprep.subr.mxu0 0.0
    %6029 = vmatpush1.msra.mxu0 0.0
    %6030 = vmatprep.subr.mxu0 0.0
    %6031 = vmatpush1.msra.mxu0 0.0
    %6032 = vmatprep.subr.mxu0 0.0
    %6033 = vmatpush1.msra.mxu0 0.0
    %6034 = vmatprep.subr.mxu0 0.0
    %6035 = vmatpush1.msra.mxu0 0.0
    %6036 = vmatprep.subr.mxu0 0.0
    %6037 = vmatpush1.msra.mxu0 0.0
    %6038 = vmatprep.subr.mxu0 0.0
    %6039 = vmatpush1.msra.mxu0 0.0
    %6040 = vmatprep.mubr.f32.mxu0 0.0
    %6041 = vmatmul.mubr.f32.gmra.mrb[0].mxu0 %v5971
    %v6042 = vpop.f32.mrb[0].mxu0
    %v6043 = vadd.f32 0.0, %v6042
    %v6044 = vpop.f32.mrb[0].mxu0
    %6045 = vmatprep.mubr.f32.mxu0 0.0
    %6046 = vmatmul.mubr.f32.gmra.mrb[0].mxu0 %v5974
    %v6047 = vpop.f32.mrb[0].mxu0
    %v6048 = vadd.f32 0.0, %v6047
    %v6049 = vpop.f32.mrb[0].mxu0
    %6050 = vdwg.mxu0
    %v6051 = vmul.f32 %v6043, %v3886
    %v6052 = vmul.f32 %v6048, %v3886
    %6053 = vmatprep.subr.mxu0 0.0
    %6054 = vmatpush1.msra.mxu0 %v6051
    %6055 = vmatprep.subr.mxu0 0.0
    %6056 = vmatpush1.msra.mxu0 %v6052
    %6057 = vmatprep.subr.mxu0 0.0
    %6058 = vmatpush1.msra.mxu0 0.0
    %6059 = vmatprep.subr.mxu0 0.0
    %6060 = vmatpush1.msra.mxu0 0.0
    %6061 = vmatprep.subr.mxu0 0.0
    %6062 = vmatpush1.msra.mxu0 0.0
    %6063 = vmatprep.subr.mxu0 0.0
    %6064 = vmatpush1.msra.mxu0 0.0
    %6065 = vmatprep.subr.mxu0 0.0
    %6066 = vmatpush1.msra.mxu0 0.0
    %6067 = vmatprep.subr.mxu0 0.0
    %6068 = vmatpush1.msra.mxu0 0.0
    %6069 = vmatprep.subr.mxu0 0.0
    %6070 = vmatpush1.msra.mxu0 0.0
    %6071 = vmatprep.subr.mxu0 0.0
    %6072 = vmatpush1.msra.mxu0 0.0
    %6073 = vmatprep.subr.mxu0 0.0
    %6074 = vmatpush1.msra.mxu0 0.0
    %6075 = vmatprep.subr.mxu0 0.0
    %6076 = vmatpush1.msra.mxu0 0.0
    %6077 = vmatprep.subr.mxu0 0.0
    %6078 = vmatpush1.msra.mxu0 0.0
    %6079 = vmatprep.subr.mxu0 0.0
    %6080 = vmatpush1.msra.mxu0 0.0
    %6081 = vmatprep.subr.mxu0 0.0
    %6082 = vmatpush1.msra.mxu0 0.0
    %6083 = vmatprep.subr.mxu0 0.0
    %6084 = vmatpush1.msra.mxu0 0.0
    %6085 = vmatprep.subr.mxu0 0.0
    %6086 = vmatpush1.msra.mxu0 0.0
    %6087 = vmatprep.subr.mxu0 0.0
    %6088 = vmatpush1.msra.mxu0 0.0
    %6089 = vmatprep.subr.mxu0 0.0
    %6090 = vmatpush1.msra.mxu0 0.0
    %6091 = vmatprep.subr.mxu0 0.0
    %6092 = vmatpush1.msra.mxu0 0.0
    %6093 = vmatprep.subr.mxu0 0.0
    %6094 = vmatpush1.msra.mxu0 0.0
    %6095 = vmatprep.subr.mxu0 0.0
    %6096 = vmatpush1.msra.mxu0 0.0
    %6097 = vmatprep.subr.mxu0 0.0
    %6098 = vmatpush1.msra.mxu0 0.0
    %6099 = vmatprep.subr.mxu0 0.0
    %6100 = vmatpush1.msra.mxu0 0.0
    %6101 = vmatprep.subr.mxu0 0.0
    %6102 = vmatpush1.msra.mxu0 0.0
    %6103 = vmatprep.subr.mxu0 0.0
    %6104 = vmatpush1.msra.mxu0 0.0
    %6105 = vmatprep.subr.mxu0 0.0
    %6106 = vmatpush1.msra.mxu0 0.0
    %6107 = vmatprep.subr.mxu0 0.0
    %6108 = vmatpush1.msra.mxu0 0.0
    %6109 = vmatprep.subr.mxu0 0.0
    %6110 = vmatpush1.msra.mxu0 0.0
    %6111 = vmatprep.subr.mxu0 0.0
    %6112 = vmatpush1.msra.mxu0 0.0
    %6113 = vmatprep.subr.mxu0 0.0
    %6114 = vmatpush1.msra.mxu0 0.0
    %6115 = vmatprep.subr.mxu0 0.0
    %6116 = vmatpush1.msra.mxu0 0.0
    %6117 = vmatprep.mubr.f32.mxu0 0.0
    %6118 = vmatmul.mubr.f32.gmra.mrb[0].mxu0 %v4130
    %v6119 = vpop.f32.mrb[0].mxu0
    %v6120 = vadd.f32 0.0, %v6119
    %v6121 = vpop.f32.mrb[0].mxu0
    %6122 = vdwg.mxu0
    %v6123 = vsel %vm4202, %v6120, -inf
    %6124 = vmax.xlane.f32.xlu0 %v6123
    %v6125 = vpop.xlane.xlu0 %6124
    %v6126 = vsub.f32 %v6120, %v6125
    %v6127 = vmul.f32 %v6126, 1.442695
    %v6128 = vpow.pop %v6127
    %v6129 = vsel %vm4202, %v6128, 0.0
    %6130 = vadd.xlane.f32.xlu0 %v6129
    %v6131 = vpop.xlane.xlu0 %6130
    %v6132 = vrcp.pop %v6131
    %v6133 = vmul.f32 %v6128, %v6132
    %6135 = vrot.lane.b32.xlu0 %v6133, 8
    %v6136 = vpop.permute.xlu0 %6135
    %v6138 = vsel %vm4218, %v6133, %v6136
    %v6139 = vmul.f32 %v6138, %v3894
    %v6141 = vsel %vm332, %v6139, 0
    %6143 = vmatprep.subr.mxu0 0.0
    %6144 = vmatpush1.msra.mxu0 %v3767
    %6145 = vmatprep.subr.mxu0 0.0
    %6146 = vmatpush1.msra.mxu0 %v3768
    %6147 = vmatprep.subr.mxu0 0.0
    %6148 = vmatpush1.msra.mxu0 0.0
    %6149 = vmatprep.subr.mxu0 0.0
    %6150 = vmatpush1.msra.mxu0 0.0
    %6151 = vmatprep.subr.mxu0 0.0
    %6152 = vmatpush1.msra.mxu0 0.0
    %6153 = vmatprep.subr.mxu0 0.0
    %6154 = vmatpush1.msra.mxu0 0.0
    %6155 = vmatprep.subr.mxu0 0.0
    %6156 = vmatpush1.msra.mxu0 0.0
    %6157 = vmatprep.subr.mxu0 0.0
    %6158 = vmatpush1.msra.mxu0 0.0
    %6159 = vmatprep.subr.mxu0 0.0
    %6160 = vmatpush1.msra.mxu0 0.0
    %6161 = vmatprep.subr.mxu0 0.0
    %6162 = vmatpush1.msra.mxu0 0.0
    %6163 = vmatprep.subr.mxu0 0.0
    %6164 = vmatpush1.msra.mxu0 0.0
    %6165 = vmatprep.subr.mxu0 0.0
    %6166 = vmatpush1.msra.mxu0 0.0
    %6167 = vmatprep.subr.mxu0 0.0
    %6168 = vmatpush1.msra.mxu0 0.0
    %6169 = vmatprep.subr.mxu0 0.0
    %6170 = vmatpush1.msra.mxu0 0.0
    %6171 = vmatprep.subr.mxu0 0.0
    %6172 = vmatpush1.msra.mxu0 0.0
    %6173 = vmatprep.subr.mxu0 0.0
    %6174 = vmatpush1.msra.mxu0 0.0
    %6175 = vmatprep.subr.mxu0 0.0
    %6176 = vmatpush1.msra.mxu0 0.0
    %6177 = vmatprep.subr.mxu0 0.0
    %6178 = vmatpush1.msra.mxu0 0.0
    %6179 = vmatprep.subr.mxu0 0.0
    %6180 = vmatpush1.msra.mxu0 0.0
    %6181 = vmatprep.subr.mxu0 0.0
    %6182 = vmatpush1.msra.mxu0 0.0
    %6183 = vmatprep.subr.mxu0 0.0
    %6184 = vmatpush1.msra.mxu0 0.0
    %6185 = vmatprep.subr.mxu0 0.0
    %6186 = vmatpush1.msra.mxu0 0.0
    %6187 = vmatprep.subr.mxu0 0.0
    %6188 = vmatpush1.msra.mxu0 0.0
    %6189 = vmatprep.subr.mxu0 0.0
    %6190 = vmatpush1.msra.mxu0 0.0
    %6191 = vmatprep.subr.mxu0 0.0
    %6192 = vmatpush1.msra.mxu0 0.0
    %6193 = vmatprep.subr.mxu0 0.0
    %6194 = vmatpush1.msra.mxu0 0.0
    %6195 = vmatprep.subr.mxu0 0.0
    %6196 = vmatpush1.msra.mxu0 0.0
    %6197 = vmatprep.subr.mxu0 0.0
    %6198 = vmatpush1.msra.mxu0 0.0
    %6199 = vmatprep.subr.mxu0 0.0
    %6200 = vmatpush1.msra.mxu0 0.0
    %6201 = vmatprep.subr.mxu0 0.0
    %6202 = vmatpush1.msra.mxu0 0.0
    %6203 = vmatprep.subr.mxu0 0.0
    %6204 = vmatpush1.msra.mxu0 0.0
    %6205 = vmatprep.subr.mxu0 0.0
    %6206 = vmatpush1.msra.mxu0 0.0
    %6207 = vmatprep.mubr.f32.mxu0 0.0
    %6208 = vmatmul.mubr.f32.gmra.mrb[0].mxu0 %v6141
    %v6209 = vpop.f32.mrb[0].mxu0
    %v6210 = vadd.f32 0.0, %v6209
    %v6211 = vpop.f32.mrb[0].mxu0
    %6212 = vdwg.mxu0
    %v6214 = vrot.slane %v6210, 2
    %6215 = vrot.lane.b32.xlu0 %v6214, 32
    %v6216 = vpop.permute.xlu0 %6215
    %v6218 = vsel %vm617, %v5860, %v6216
    %v6220 = vrot.slane %v6218, 6
    %v6221 = vsel %vm4305, %v6220, 0
    %6223 = vmatprep.subr.mxu0 0.0
    %6224 = vmatpush1.msra.mxu0 %v3900
    %6225 = vmatprep.subr.mxu0 0.0
    %6226 = vmatpush1.msra.mxu0 %v3901
    %6227 = vmatprep.subr.mxu0 0.0
    %6228 = vmatpush1.msra.mxu0 %v3902
    %6229 = vmatprep.subr.mxu0 0.0
    %6230 = vmatpush1.msra.mxu0 %v3903
    %6231 = vmatprep.subr.mxu0 0.0
    %6232 = vmatpush1.msra.mxu0 %v3904
    %6233 = vmatprep.subr.mxu0 0.0
    %6234 = vmatpush1.msra.mxu0 %v3905
    %6235 = vmatprep.subr.mxu0 0.0
    %6236 = vmatpush1.msra.mxu0 %v3906
    %6237 = vmatprep.subr.mxu0 0.0
    %6238 = vmatpush1.msra.mxu0 %v3907
    %6239 = vmatprep.subr.mxu0 0.0
    %6240 = vmatpush1.msra.mxu0 %v3908
    %6241 = vmatprep.subr.mxu0 0.0
    %6242 = vmatpush1.msra.mxu0 %v3909
    %6243 = vmatprep.subr.mxu0 0.0
    %6244 = vmatpush1.msra.mxu0 %v3910
    %6245 = vmatprep.subr.mxu0 0.0
    %6246 = vmatpush1.msra.mxu0 %v3911
    %6247 = vmatprep.subr.mxu0 0.0
    %6248 = vmatpush1.msra.mxu0 0.0
    %6249 = vmatprep.subr.mxu0 0.0
    %6250 = vmatpush1.msra.mxu0 0.0
    %6251 = vmatprep.subr.mxu0 0.0
    %6252 = vmatpush1.msra.mxu0 0.0
    %6253 = vmatprep.subr.mxu0 0.0
    %6254 = vmatpush1.msra.mxu0 0.0
    %6255 = vmatprep.subr.mxu0 0.0
    %6256 = vmatpush1.msra.mxu0 0.0
    %6257 = vmatprep.subr.mxu0 0.0
    %6258 = vmatpush1.msra.mxu0 0.0
    %6259 = vmatprep.subr.mxu0 0.0
    %6260 = vmatpush1.msra.mxu0 0.0
    %6261 = vmatprep.subr.mxu0 0.0
    %6262 = vmatpush1.msra.mxu0 0.0
    %6263 = vmatprep.subr.mxu0 0.0
    %6264 = vmatpush1.msra.mxu0 0.0
    %6265 = vmatprep.subr.mxu0 0.0
    %6266 = vmatpush1.msra.mxu0 0.0
    %6267 = vmatprep.subr.mxu0 0.0
    %6268 = vmatpush1.msra.mxu0 0.0
    %6269 = vmatprep.subr.mxu0 0.0
    %6270 = vmatpush1.msra.mxu0 0.0
    %6271 = vmatprep.subr.mxu0 0.0
    %6272 = vmatpush1.msra.mxu0 0.0
    %6273 = vmatprep.subr.mxu0 0.0
    %6274 = vmatpush1.msra.mxu0 0.0
    %6275 = vmatprep.subr.mxu0 0.0
    %6276 = vmatpush1.msra.mxu0 0.0
    %6277 = vmatprep.subr.mxu0 0.0
    %6278 = vmatpush1.msra.mxu0 0.0
    %6279 = vmatprep.subr.mxu0 0.0
    %6280 = vmatpush1.msra.mxu0 0.0
    %6281 = vmatprep.subr.mxu0 0.0
    %6282 = vmatpush1.msra.mxu0 0.0
    %6283 = vmatprep.subr.mxu0 0.0
    %6284 = vmatpush1.msra.mxu0 0.0
    %6285 = vmatprep.subr.mxu0 0.0
    %6286 = vmatpush1.msra.mxu0 0.0
    %6287 = vmatprep.mubr.f32.mxu0 0.0
    %6288 = vmatmul.mubr.f32.gmra.mrb[0].mxu0 %v6221
    %v6289 = vpop.f32.mrb[0].mxu0
    %v6290 = vadd.f32 %v4303, %v6289
    %v6291 = vpop.f32.mrb[0].mxu0
    %6292 = vdwg.mxu0
    %6293 = vrot.lane.b32.xlu0 %v5930, 96
    %v6294 = vpop.permute.xlu0 %6293
    %v6296 = vadd.f32 %v6290, %v6294
    %v6297 = vxor.u32 %v6296, 2147483648
    %v6298 = vmul.f32 %v6297, 1.442695
    %v6299 = vpow.pop %v6298
    %v6300 = vadd.f32 %v6299, 1.0
    %v6301 = vrcp.pop %v6300
    %v6302 = vmul.f32 1.0, %v6301
    %6303 = vrot.lane.b32.xlu0 %v5930, 32
    %v6304 = vpop.permute.xlu0 %6303
    %v6306 = vmul.f32 %v6302, %v6304
    %6308 = vrot.lane.b32.xlu0 %v6306, 64
    %v6309 = vpop.permute.xlu0 %6308
    %v6311 = vadd.f32 %v6290, %v6309
    %v6312 = vtanh.pop %v6311
    %v6313 = vsub.f32 1.0, %v6302
    %6315 = vrot.lane.b32.xlu0 %v6312, 96
    %v6316 = vpop.permute.xlu0 %6315
    %v6318 = vmul.f32 %v6313, %v6316
    %v6319 = vmul.f32 %v6302, %v5684
    %v6320 = vadd.f32 %v6318, %v6319
    %6322 = vrot.lane.b32.xlu0 %v6320, 96
    %v6323 = vpop.permute.xlu0 %6322
    %6325 = vrot.lane.b32.xlu0 %v6210, 32
    %v6326 = vpop.permute.xlu0 %6325
    %v6329 = vrot.slane %v5860, 6
    %6330 = vrot.lane.b32.xlu0 %v6329, 96
    %v6331 = vpop.permute.xlu0 %6330
    %v6333 = vsel %vm617, %v6323, %v6326
    %v6334 = vsel %vm4305, %v6333, %v6331
    %6335 = vmatprep.subr.mxu0 0.0
    %6336 = vmatpush1.msra.mxu0 %v3913
    %6337 = vmatprep.subr.mxu0 0.0
    %6338 = vmatpush1.msra.mxu0 %v3914
    %6339 = vmatprep.subr.mxu0 0.0
    %6340 = vmatpush1.msra.mxu0 %v3915
    %6341 = vmatprep.subr.mxu0 0.0
    %6342 = vmatpush1.msra.mxu0 %v3916
    %6343 = vmatprep.subr.mxu0 0.0
    %6344 = vmatpush1.msra.mxu0 %v3917
    %6345 = vmatprep.subr.mxu0 0.0
    %6346 = vmatpush1.msra.mxu0 %v3918
    %6347 = vmatprep.subr.mxu0 0.0
    %6348 = vmatpush1.msra.mxu0 %v3919
    %6349 = vmatprep.subr.mxu0 0.0
    %6350 = vmatpush1.msra.mxu0 %v3920
    %6351 = vmatprep.subr.mxu0 0.0
    %6352 = vmatpush1.msra.mxu0 %v3921
    %6353 = vmatprep.subr.mxu0 0.0
    %6354 = vmatpush1.msra.mxu0 %v3922
    %6355 = vmatprep.subr.mxu0 0.0
    %6356 = vmatpush1.msra.mxu0 %v3923
    %6357 = vmatprep.subr.mxu0 0.0
    %6358 = vmatpush1.msra.mxu0 %v3924
    %6359 = vmatprep.subr.mxu0 0.0
    %6360 = vmatpush1.msra.mxu0 %v3925
    %6361 = vmatprep.subr.mxu0 0.0
    %6362 = vmatpush1.msra.mxu0 %v3926
    %6363 = vmatprep.subr.mxu0 0.0
    %6364 = vmatpush1.msra.mxu0 %v3927
    %6365 = vmatprep.subr.mxu0 0.0
    %6366 = vmatpush1.msra.mxu0 %v3928
    %6367 = vmatprep.subr.mxu0 0.0
    %6368 = vmatpush1.msra.mxu0 0.0
    %6369 = vmatprep.subr.mxu0 0.0
    %6370 = vmatpush1.msra.mxu0 0.0
    %6371 = vmatprep.subr.mxu0 0.0
    %6372 = vmatpush1.msra.mxu0 0.0
    %6373 = vmatprep.subr.mxu0 0.0
    %6374 = vmatpush1.msra.mxu0 0.0
    %6375 = vmatprep.subr.mxu0 0.0
    %6376 = vmatpush1.msra.mxu0 0.0
    %6377 = vmatprep.subr.mxu0 0.0
    %6378 = vmatpush1.msra.mxu0 0.0
    %6379 = vmatprep.subr.mxu0 0.0
    %6380 = vmatpush1.msra.mxu0 0.0
    %6381 = vmatprep.subr.mxu0 0.0
    %6382 = vmatpush1.msra.mxu0 0.0
    %6383 = vmatprep.subr.mxu0 0.0
    %6384 = vmatpush1.msra.mxu0 0.0
    %6385 = vmatprep.subr.mxu0 0.0
    %6386 = vmatpush1.msra.mxu0 0.0
    %6387 = vmatprep.subr.mxu0 0.0
    %6388 = vmatpush1.msra.mxu0 0.0
    %6389 = vmatprep.subr.mxu0 0.0
    %6390 = vmatpush1.msra.mxu0 0.0
    %6391 = vmatprep.subr.mxu0 0.0
    %6392 = vmatpush1.msra.mxu0 0.0
    %6393 = vmatprep.subr.mxu0 0.0
    %6394 = vmatpush1.msra.mxu0 0.0
    %6395 = vmatprep.subr.mxu0 0.0
    %6396 = vmatpush1.msra.mxu0 0.0
    %6397 = vmatprep.subr.mxu0 0.0
    %6398 = vmatpush1.msra.mxu0 0.0
    %6399 = vmatprep.mubr.f32.mxu0 0.0
    %6400 = vmatmul.mubr.f32.gmra.mrb[0].mxu0 %v6334
    %v6401 = vpop.f32.mrb[0].mxu0
    %v6402 = vadd.f32 %v4424, %v6401
    %v6403 = vpop.f32.mrb[0].mxu0
    %6404 = vdwg.mxu0
    %v6405 = vsel %vm4496, %v6402, -inf
    %6406 = vmax.xlane.f32.xlu0 %v6405
    %v6407 = vpop.xlane.xlu0 %6406
    %vm6408 = vcmp.eq.f32.partialorder %v6402, %v6407
    %v6409 = vsel %vm6408, 1, 0
    %v6410 = vcvt.s32.f32 %v6409
    %v6412 = vsel %vm332, %v6410, 0
    %6414 = vmatprep.subr.mxu0 0.0
    %6415 = vmatpush1.msra.mxu0 %v508
    %6416 = vmatprep.subr.mxu0 0.0
    %6417 = vmatpush1.msra.mxu0 %v509
    %6418 = vmatprep.subr.mxu0 0.0
    %6419 = vmatpush1.msra.mxu0 0.0
    %6420 = vmatprep.subr.mxu0 0.0
    %6421 = vmatpush1.msra.mxu0 0.0
    %6422 = vmatprep.subr.mxu0 0.0
    %6423 = vmatpush1.msra.mxu0 0.0
    %6424 = vmatprep.subr.mxu0 0.0
    %6425 = vmatpush1.msra.mxu0 0.0
    %6426 = vmatprep.subr.mxu0 0.0
    %6427 = vmatpush1.msra.mxu0 0.0
    %6428 = vmatprep.subr.mxu0 0.0
    %6429 = vmatpush1.msra.mxu0 0.0
    %6430 = vmatprep.subr.mxu0 0.0
    %6431 = vmatpush1.msra.mxu0 0.0
    %6432 = vmatprep.subr.mxu0 0.0
    %6433 = vmatpush1.msra.mxu0 0.0
    %6434 = vmatprep.subr.mxu0 0.0
    %6435 = vmatpush1.msra.mxu0 0.0
    %6436 = vmatprep.subr.mxu0 0.0
    %6437 = vmatpush1.msra.mxu0 0.0
    %6438 = vmatprep.subr.mxu0 0.0
    %6439 = vmatpush1.msra.mxu0 0.0
    %6440 = vmatprep.subr.mxu0 0.0
    %6441 = vmatpush1.msra.mxu0 0.0
    %6442 = vmatprep.subr.mxu0 0.0
    %6443 = vmatpush1.msra.mxu0 0.0
    %6444 = vmatprep.subr.mxu0 0.0
    %6445 = vmatpush1.msra.mxu0 0.0
    %6446 = vmatprep.subr.mxu0 0.0
    %6447 = vmatpush1.msra.mxu0 0.0
    %6448 = vmatprep.subr.mxu0 0.0
    %6449 = vmatpush1.msra.mxu0 0.0
    %6450 = vmatprep.subr.mxu0 0.0
    %6451 = vmatpush1.msra.mxu0 0.0
    %6452 = vmatprep.subr.mxu0 0.0
    %6453 = vmatpush1.msra.mxu0 0.0
    %6454 = vmatprep.subr.mxu0 0.0
    %6455 = vmatpush1.msra.mxu0 0.0
    %6456 = vmatprep.subr.mxu0 0.0
    %6457 = vmatpush1.msra.mxu0 0.0
    %6458 = vmatprep.subr.mxu0 0.0
    %6459 = vmatpush1.msra.mxu0 0.0
    %6460 = vmatprep.subr.mxu0 0.0
    %6461 = vmatpush1.msra.mxu0 0.0
    %6462 = vmatprep.subr.mxu0 0.0
    %6463 = vmatpush1.msra.mxu0 0.0
    %6464 = vmatprep.subr.mxu0 0.0
    %6465 = vmatpush1.msra.mxu0 0.0
    %6466 = vmatprep.subr.mxu0 0.0
    %6467 = vmatpush1.msra.mxu0 0.0
    %6468 = vmatprep.subr.mxu0 0.0
    %6469 = vmatpush1.msra.mxu0 0.0
    %6470 = vmatprep.subr.mxu0 0.0
    %6471 = vmatpush1.msra.mxu0 0.0
    %6472 = vmatprep.subr.mxu0 0.0
    %6473 = vmatpush1.msra.mxu0 0.0
    %6474 = vmatprep.subr.mxu0 0.0
    %6475 = vmatpush1.msra.mxu0 0.0
    %6476 = vmatprep.subr.mxu0 0.0
    %6477 = vmatpush1.msra.mxu0 0.0
    %6478 = vmatprep.mubr.f32.mxu0 0.0
    %6479 = vmatmul.mubr.f32.gmra.mrb[0].mxu0 %v6412
    %v6480 = vpop.f32.mrb[0].mxu0
    %v6481 = vadd.f32 0.0, %v6480
    %v6482 = vpop.f32.mrb[0].mxu0
    %6483 = vdwg.mxu0
    %s6484 = sld [smem:[#allocation8 + $0x4]]
    %p6485 = scmp.gt.s32.totalorder %s6484, 0
    %s6486 = scalar_select %p6485, 1, 0
    %s6487 = scvt.s32.f32 %s6486
    %v6488 = vstv %s6487
    %v6489 = vmul.f32 %v6488, %v588
    %s6490 = ssub.f32 1.0, %s6487
    %v6491 = vstv %s6490
    %v6492 = vmul.f32 %v6491, %v6481
    %v6493 = vadd.f32 %v6489, %v6492
    %v6494 = vsel %vm617, %v6323, 0
    %6496 = vmatprep.subr.mxu0 0.0
    %6497 = vmatpush1.msra.mxu0 %v3895
    %6498 = vmatprep.subr.mxu0 0.0
    %6499 = vmatpush1.msra.mxu0 %v3896
    %6500 = vmatprep.subr.mxu0 0.0
    %6501 = vmatpush1.msra.mxu0 %v3897
    %6502 = vmatprep.subr.mxu0 0.0
    %6503 = vmatpush1.msra.mxu0 %v3898
    %6504 = vmatprep.subr.mxu0 0.0
    %6505 = vmatpush1.msra.mxu0 0.0
    %6506 = vmatprep.subr.mxu0 0.0
    %6507 = vmatpush1.msra.mxu0 0.0
    %6508 = vmatprep.subr.mxu0 0.0
    %6509 = vmatpush1.msra.mxu0 0.0
    %6510 = vmatprep.subr.mxu0 0.0
    %6511 = vmatpush1.msra.mxu0 0.0
    %6512 = vmatprep.subr.mxu0 0.0
    %6513 = vmatpush1.msra.mxu0 0.0
    %6514 = vmatprep.subr.mxu0 0.0
    %6515 = vmatpush1.msra.mxu0 0.0
    %6516 = vmatprep.subr.mxu0 0.0
    %6517 = vmatpush1.msra.mxu0 0.0
    %6518 = vmatprep.subr.mxu0 0.0
    %6519 = vmatpush1.msra.mxu0 0.0
    %6520 = vmatprep.subr.mxu0 0.0
    %6521 = vmatpush1.msra.mxu0 0.0
    %6522 = vmatprep.subr.mxu0 0.0
    %6523 = vmatpush1.msra.mxu0 0.0
    %6524 = vmatprep.subr.mxu0 0.0
    %6525 = vmatpush1.msra.mxu0 0.0
    %6526 = vmatprep.subr.mxu0 0.0
    %6527 = vmatpush1.msra.mxu0 0.0
    %6528 = vmatprep.subr.mxu0 0.0
    %6529 = vmatpush1.msra.mxu0 0.0
    %6530 = vmatprep.subr.mxu0 0.0
    %6531 = vmatpush1.msra.mxu0 0.0
    %6532 = vmatprep.subr.mxu0 0.0
    %6533 = vmatpush1.msra.mxu0 0.0
    %6534 = vmatprep.subr.mxu0 0.0
    %6535 = vmatpush1.msra.mxu0 0.0
    %6536 = vmatprep.subr.mxu0 0.0
    %6537 = vmatpush1.msra.mxu0 0.0
    %6538 = vmatprep.subr.mxu0 0.0
    %6539 = vmatpush1.msra.mxu0 0.0
    %6540 = vmatprep.subr.mxu0 0.0
    %6541 = vmatpush1.msra.mxu0 0.0
    %6542 = vmatprep.subr.mxu0 0.0
    %6543 = vmatpush1.msra.mxu0 0.0
    %6544 = vmatprep.subr.mxu0 0.0
    %6545 = vmatpush1.msra.mxu0 0.0
    %6546 = vmatprep.subr.mxu0 0.0
    %6547 = vmatpush1.msra.mxu0 0.0
    %6548 = vmatprep.subr.mxu0 0.0
    %6549 = vmatpush1.msra.mxu0 0.0
    %6550 = vmatprep.subr.mxu0 0.0
    %6551 = vmatpush1.msra.mxu0 0.0
    %6552 = vmatprep.subr.mxu0 0.0
    %6553 = vmatpush1.msra.mxu0 0.0
    %6554 = vmatprep.subr.mxu0 0.0
    %6555 = vmatpush1.msra.mxu0 0.0
    %6556 = vmatprep.subr.mxu0 0.0
    %6557 = vmatpush1.msra.mxu0 0.0
    %6558 = vmatprep.subr.mxu0 0.0
    %6559 = vmatpush1.msra.mxu0 0.0
    %6560 = vmatprep.mubr.f32.mxu0 0.0
    %6561 = vmatmul.mubr.f32.gmra.mrb[0].mxu0 %v6494
    %v6562 = vpop.f32.mrb[0].mxu0
    %v6563 = vadd.f32 %v3934, %v6562
    %v6564 = vpop.f32.mrb[0].mxu0
    %6565 = vdwg.mxu0
    %v6568 = vunpack.c.l.s4 1966171168
    %v6569 = vunpack.c.0.s8 %v6568
    %v6570 = vlaneseq
    %v6571 = vshrl.u32 %v6570, 7
    %v6572 = vsub.s32 %v6569, %v6571
    %v6573 = vrot.slane %v6563, %v6572
    %v6574 = vcombine.high %v6573, %v6573
    %v6576 = vunpack.c.l.s4 1966171168
    %v6577 = vunpack.c.0.s8 %v6576
    %v6578 = vlaneseq
    %v6579 = vshrl.u32 %v6578, 7
    %v6580 = vsub.s32 %v6577, %v6579
    %v6581 = vrot.slane %v6573, %v6580
    %v6583 = vunpack.c.l.s4 1966171168
    %v6584 = vunpack.c.0.s8 %v6583
    %v6585 = vlaneseq
    %v6586 = vshrl.u32 %v6585, 7
    %v6587 = vsub.s32 %v6584, %v6586
    %v6588 = vrot.slane %v6574, %v6587
    %v6589 = vlaneseq
    %v6590 = vshrl.u32 %v6589, 7
    %v6591 = vsub.s32 0, %v6590
    %v6592 = vrot.slane %v6581, %v6591
    %v6593 = vlaneseq
    %v6594 = vshrl.u32 %v6593, 7
    %v6595 = vsub.s32 0, %v6594
    %v6596 = vrot.slane %v6588, %v6595
    %v6599 = vadd.f32 %v6592, %v3850
    %v6600 = vadd.f32 %v6596, %v3855
    %v6601 = vtanh.pop %v6599
    %v6602 = vtanh.pop %v6600
    %v6604 = vsel %vm617, %v6601, 0
    %v6607 = vsel %vm617, %v6602, 0
    %6609 = vmatprep.subr.mxu0 0.0
    %6610 = vmatpush1.msra.mxu0 %v3865
    %6611 = vmatprep.subr.mxu0 0.0
    %6612 = vmatpush1.msra.mxu0 %v3870
    %6613 = vmatprep.subr.mxu0 0.0
    %6614 = vmatpush1.msra.mxu0 %v3875
    %6615 = vmatprep.subr.mxu0 0.0
    %6616 = vmatpush1.msra.mxu0 %v3880
    %6617 = vmatprep.subr.mxu0 0.0
    %6618 = vmatpush1.msra.mxu0 0.0
    %6619 = vmatprep.subr.mxu0 0.0
    %6620 = vmatpush1.msra.mxu0 0.0
    %6621 = vmatprep.subr.mxu0 0.0
    %6622 = vmatpush1.msra.mxu0 0.0
    %6623 = vmatprep.subr.mxu0 0.0
    %6624 = vmatpush1.msra.mxu0 0.0
    %6625 = vmatprep.subr.mxu0 0.0
    %6626 = vmatpush1.msra.mxu0 0.0
    %6627 = vmatprep.subr.mxu0 0.0
    %6628 = vmatpush1.msra.mxu0 0.0
    %6629 = vmatprep.subr.mxu0 0.0
    %6630 = vmatpush1.msra.mxu0 0.0
    %6631 = vmatprep.subr.mxu0 0.0
    %6632 = vmatpush1.msra.mxu0 0.0
    %6633 = vmatprep.subr.mxu0 0.0
    %6634 = vmatpush1.msra.mxu0 0.0
    %6635 = vmatprep.subr.mxu0 0.0
    %6636 = vmatpush1.msra.mxu0 0.0
    %6637 = vmatprep.subr.mxu0 0.0
    %6638 = vmatpush1.msra.mxu0 0.0
    %6639 = vmatprep.subr.mxu0 0.0
    %6640 = vmatpush1.msra.mxu0 0.0
    %6641 = vmatprep.subr.mxu0 0.0
    %6642 = vmatpush1.msra.mxu0 0.0
    %6643 = vmatprep.subr.mxu0 0.0
    %6644 = vmatpush1.msra.mxu0 0.0
    %6645 = vmatprep.subr.mxu0 0.0
    %6646 = vmatpush1.msra.mxu0 0.0
    %6647 = vmatprep.subr.mxu0 0.0
    %6648 = vmatpush1.msra.mxu0 0.0
    %6649 = vmatprep.subr.mxu0 0.0
    %6650 = vmatpush1.msra.mxu0 0.0
    %6651 = vmatprep.subr.mxu0 0.0
    %6652 = vmatpush1.msra.mxu0 0.0
    %6653 = vmatprep.subr.mxu0 0.0
    %6654 = vmatpush1.msra.mxu0 0.0
    %6655 = vmatprep.subr.mxu0 0.0
    %6656 = vmatpush1.msra.mxu0 0.0
    %6657 = vmatprep.subr.mxu0 0.0
    %6658 = vmatpush1.msra.mxu0 0.0
    %6659 = vmatprep.subr.mxu0 0.0
    %6660 = vmatpush1.msra.mxu0 0.0
    %6661 = vmatprep.subr.mxu0 0.0
    %6662 = vmatpush1.msra.mxu0 0.0
    %6663 = vmatprep.subr.mxu0 0.0
    %6664 = vmatpush1.msra.mxu0 0.0
    %6665 = vmatprep.subr.mxu0 0.0
    %6666 = vmatpush1.msra.mxu0 0.0
    %6667 = vmatprep.subr.mxu0 0.0
    %6668 = vmatpush1.msra.mxu0 0.0
    %6669 = vmatprep.subr.mxu0 0.0
    %6670 = vmatpush1.msra.mxu0 0.0
    %6671 = vmatprep.subr.mxu0 0.0
    %6672 = vmatpush1.msra.mxu0 0.0
    %6673 = vmatprep.mubr.f32.mxu0 0.0
    %6674 = vmatmul.mubr.f32.gmra.mrb[0].mxu0 %v6604
    %v6675 = vpop.f32.mrb[0].mxu0
    %v6676 = vadd.f32 0.0, %v6675
    %v6677 = vpop.f32.mrb[0].mxu0
    %6678 = vmatprep.mubr.f32.mxu0 0.0
    %6679 = vmatmul.mubr.f32.gmra.mrb[0].mxu0 %v6607
    %v6680 = vpop.f32.mrb[0].mxu0
    %v6681 = vadd.f32 0.0, %v6680
    %v6682 = vpop.f32.mrb[0].mxu0
    %6683 = vdwg.mxu0
    %v6684 = vmul.f32 %v6676, %v3886
    %v6685 = vmul.f32 %v6681, %v3886
    %6686 = vmatprep.subr.mxu0 0.0
    %6687 = vmatpush1.msra.mxu0 %v6684
    %6688 = vmatprep.subr.mxu0 0.0
    %6689 = vmatpush1.msra.mxu0 %v6685
    %6690 = vmatprep.subr.mxu0 0.0
    %6691 = vmatpush1.msra.mxu0 0.0
    %6692 = vmatprep.subr.mxu0 0.0
    %6693 = vmatpush1.msra.mxu0 0.0
    %6694 = vmatprep.subr.mxu0 0.0
    %6695 = vmatpush1.msra.mxu0 0.0
    %6696 = vmatprep.subr.mxu0 0.0
    %6697 = vmatpush1.msra.mxu0 0.0
    %6698 = vmatprep.subr.mxu0 0.0
    %6699 = vmatpush1.msra.mxu0 0.0
    %6700 = vmatprep.subr.mxu0 0.0
    %6701 = vmatpush1.msra.mxu0 0.0
    %6702 = vmatprep.subr.mxu0 0.0
    %6703 = vmatpush1.msra.mxu0 0.0
    %6704 = vmatprep.subr.mxu0 0.0
    %6705 = vmatpush1.msra.mxu0 0.0
    %6706 = vmatprep.subr.mxu0 0.0
    %6707 = vmatpush1.msra.mxu0 0.0
    %6708 = vmatprep.subr.mxu0 0.0
    %6709 = vmatpush1.msra.mxu0 0.0
    %6710 = vmatprep.subr.mxu0 0.0
    %6711 = vmatpush1.msra.mxu0 0.0
    %6712 = vmatprep.subr.mxu0 0.0
    %6713 = vmatpush1.msra.mxu0 0.0
    %6714 = vmatprep.subr.mxu0 0.0
    %6715 = vmatpush1.msra.mxu0 0.0
    %6716 = vmatprep.subr.mxu0 0.0
    %6717 = vmatpush1.msra.mxu0 0.0
    %6718 = vmatprep.subr.mxu0 0.0
    %6719 = vmatpush1.msra.mxu0 0.0
    %6720 = vmatprep.subr.mxu0 0.0
    %6721 = vmatpush1.msra.mxu0 0.0
    %6722 = vmatprep.subr.mxu0 0.0
    %6723 = vmatpush1.msra.mxu0 0.0
    %6724 = vmatprep.subr.mxu0 0.0
    %6725 = vmatpush1.msra.mxu0 0.0
    %6726 = vmatprep.subr.mxu0 0.0
    %6727 = vmatpush1.msra.mxu0 0.0
    %6728 = vmatprep.subr.mxu0 0.0
    %6729 = vmatpush1.msra.mxu0 0.0
    %6730 = vmatprep.subr.mxu0 0.0
    %6731 = vmatpush1.msra.mxu0 0.0
    %6732 = vmatprep.subr.mxu0 0.0
    %6733 = vmatpush1.msra.mxu0 0.0
    %6734 = vmatprep.subr.mxu0 0.0
    %6735 = vmatpush1.msra.mxu0 0.0
    %6736 = vmatprep.subr.mxu0 0.0
    %6737 = vmatpush1.msra.mxu0 0.0
    %6738 = vmatprep.subr.mxu0 0.0
    %6739 = vmatpush1.msra.mxu0 0.0
    %6740 = vmatprep.subr.mxu0 0.0
    %6741 = vmatpush1.msra.mxu0 0.0
    %6742 = vmatprep.subr.mxu0 0.0
    %6743 = vmatpush1.msra.mxu0 0.0
    %6744 = vmatprep.subr.mxu0 0.0
    %6745 = vmatpush1.msra.mxu0 0.0
    %6746 = vmatprep.subr.mxu0 0.0
    %6747 = vmatpush1.msra.mxu0 0.0
    %6748 = vmatprep.subr.mxu0 0.0
    %6749 = vmatpush1.msra.mxu0 0.0
    %6750 = vmatprep.mubr.f32.mxu0 0.0
    %6751 = vmatmul.mubr.f32.gmra.mrb[0].mxu0 %v4130
    %v6752 = vpop.f32.mrb[0].mxu0
    %v6753 = vadd.f32 0.0, %v6752
    %v6754 = vpop.f32.mrb[0].mxu0
    %6755 = vdwg.mxu0
    %v6756 = vsel %vm4202, %v6753, -inf
    %6757 = vmax.xlane.f32.xlu0 %v6756
    %v6758 = vpop.xlane.xlu0 %6757
    %v6759 = vsub.f32 %v6753, %v6758
    %v6760 = vmul.f32 %v6759, 1.442695
    %v6761 = vpow.pop %v6760
    %v6762 = vsel %vm4202, %v6761, 0.0
    %6763 = vadd.xlane.f32.xlu0 %v6762
    %v6764 = vpop.xlane.xlu0 %6763
    %v6765 = vrcp.pop %v6764
    %v6766 = vmul.f32 %v6761, %v6765
    %6768 = vrot.lane.b32.xlu0 %v6766, 8
    %v6769 = vpop.permute.xlu0 %6768
    %v6771 = vsel %vm4218, %v6766, %v6769
    %v6772 = vmul.f32 %v6771, %v3894
    %v6774 = vsel %vm332, %v6772, 0
    %6776 = vmatprep.subr.mxu0 0.0
    %6777 = vmatpush1.msra.mxu0 %v3767
    %6778 = vmatprep.subr.mxu0 0.0
    %6779 = vmatpush1.msra.mxu0 %v3768
    %6780 = vmatprep.subr.mxu0 0.0
    %6781 = vmatpush1.msra.mxu0 0.0
    %6782 = vmatprep.subr.mxu0 0.0
    %6783 = vmatpush1.msra.mxu0 0.0
    %6784 = vmatprep.subr.mxu0 0.0
    %6785 = vmatpush1.msra.mxu0 0.0
    %6786 = vmatprep.subr.mxu0 0.0
    %6787 = vmatpush1.msra.mxu0 0.0
    %6788 = vmatprep.subr.mxu0 0.0
    %6789 = vmatpush1.msra.mxu0 0.0
    %6790 = vmatprep.subr.mxu0 0.0
    %6791 = vmatpush1.msra.mxu0 0.0
    %6792 = vmatprep.subr.mxu0 0.0
    %6793 = vmatpush1.msra.mxu0 0.0
    %6794 = vmatprep.subr.mxu0 0.0
    %6795 = vmatpush1.msra.mxu0 0.0
    %6796 = vmatprep.subr.mxu0 0.0
    %6797 = vmatpush1.msra.mxu0 0.0
    %6798 = vmatprep.subr.mxu0 0.0
    %6799 = vmatpush1.msra.mxu0 0.0
    %6800 = vmatprep.subr.mxu0 0.0
    %6801 = vmatpush1.msra.mxu0 0.0
    %6802 = vmatprep.subr.mxu0 0.0
    %6803 = vmatpush1.msra.mxu0 0.0
    %6804 = vmatprep.subr.mxu0 0.0
    %6805 = vmatpush1.msra.mxu0 0.0
    %6806 = vmatprep.subr.mxu0 0.0
    %6807 = vmatpush1.msra.mxu0 0.0
    %6808 = vmatprep.subr.mxu0 0.0
    %6809 = vmatpush1.msra.mxu0 0.0
    %6810 = vmatprep.subr.mxu0 0.0
    %6811 = vmatpush1.msra.mxu0 0.0
    %6812 = vmatprep.subr.mxu0 0.0
    %6813 = vmatpush1.msra.mxu0 0.0
    %6814 = vmatprep.subr.mxu0 0.0
    %6815 = vmatpush1.msra.mxu0 0.0
    %6816 = vmatprep.subr.mxu0 0.0
    %6817 = vmatpush1.msra.mxu0 0.0
    %6818 = vmatprep.subr.mxu0 0.0
    %6819 = vmatpush1.msra.mxu0 0.0
    %6820 = vmatprep.subr.mxu0 0.0
    %6821 = vmatpush1.msra.mxu0 0.0
    %6822 = vmatprep.subr.mxu0 0.0
    %6823 = vmatpush1.msra.mxu0 0.0
    %6824 = vmatprep.subr.mxu0 0.0
    %6825 = vmatpush1.msra.mxu0 0.0
    %6826 = vmatprep.subr.mxu0 0.0
    %6827 = vmatpush1.msra.mxu0 0.0
    %6828 = vmatprep.subr.mxu0 0.0
    %6829 = vmatpush1.msra.mxu0 0.0
    %6830 = vmatprep.subr.mxu0 0.0
    %6831 = vmatpush1.msra.mxu0 0.0
    %6832 = vmatprep.subr.mxu0 0.0
    %6833 = vmatpush1.msra.mxu0 0.0
    %6834 = vmatprep.subr.mxu0 0.0
    %6835 = vmatpush1.msra.mxu0 0.0
    %6836 = vmatprep.subr.mxu0 0.0
    %6837 = vmatpush1.msra.mxu0 0.0
    %6838 = vmatprep.subr.mxu0 0.0
    %6839 = vmatpush1.msra.mxu0 0.0
    %6840 = vmatprep.mubr.f32.mxu0 0.0
    %6841 = vmatmul.mubr.f32.gmra.mrb[0].mxu0 %v6774
    %v6842 = vpop.f32.mrb[0].mxu0
    %v6843 = vadd.f32 0.0, %v6842
    %v6844 = vpop.f32.mrb[0].mxu0
    %6845 = vdwg.mxu0
    %6847 = vrot.lane.b32.xlu0 %v6843, 32
    %v6848 = vpop.permute.xlu0 %6847
    %v6850 = vsel %vm617, %v6493, %v6848
    %v6852 = vsel %vm4305, %v6850, 0
    %6854 = vmatprep.subr.mxu0 0.0
    %6855 = vmatpush1.msra.mxu0 %v3900
    %6856 = vmatprep.subr.mxu0 0.0
    %6857 = vmatpush1.msra.mxu0 %v3901
    %6858 = vmatprep.subr.mxu0 0.0
    %6859 = vmatpush1.msra.mxu0 %v3902
    %6860 = vmatprep.subr.mxu0 0.0
    %6861 = vmatpush1.msra.mxu0 %v3903
    %6862 = vmatprep.subr.mxu0 0.0
    %6863 = vmatpush1.msra.mxu0 %v3904
    %6864 = vmatprep.subr.mxu0 0.0
    %6865 = vmatpush1.msra.mxu0 %v3905
    %6866 = vmatprep.subr.mxu0 0.0
    %6867 = vmatpush1.msra.mxu0 %v3906
    %6868 = vmatprep.subr.mxu0 0.0
    %6869 = vmatpush1.msra.mxu0 %v3907
    %6870 = vmatprep.subr.mxu0 0.0
    %6871 = vmatpush1.msra.mxu0 %v3908
    %6872 = vmatprep.subr.mxu0 0.0
    %6873 = vmatpush1.msra.mxu0 %v3909
    %6874 = vmatprep.subr.mxu0 0.0
    %6875 = vmatpush1.msra.mxu0 %v3910
    %6876 = vmatprep.subr.mxu0 0.0
    %6877 = vmatpush1.msra.mxu0 %v3911
    %6878 = vmatprep.subr.mxu0 0.0
    %6879 = vmatpush1.msra.mxu0 0.0
    %6880 = vmatprep.subr.mxu0 0.0
    %6881 = vmatpush1.msra.mxu0 0.0
    %6882 = vmatprep.subr.mxu0 0.0
    %6883 = vmatpush1.msra.mxu0 0.0
    %6884 = vmatprep.subr.mxu0 0.0
    %6885 = vmatpush1.msra.mxu0 0.0
    %6886 = vmatprep.subr.mxu0 0.0
    %6887 = vmatpush1.msra.mxu0 0.0
    %6888 = vmatprep.subr.mxu0 0.0
    %6889 = vmatpush1.msra.mxu0 0.0
    %6890 = vmatprep.subr.mxu0 0.0
    %6891 = vmatpush1.msra.mxu0 0.0
    %6892 = vmatprep.subr.mxu0 0.0
    %6893 = vmatpush1.msra.mxu0 0.0
    %6894 = vmatprep.subr.mxu0 0.0
    %6895 = vmatpush1.msra.mxu0 0.0
    %6896 = vmatprep.subr.mxu0 0.0
    %6897 = vmatpush1.msra.mxu0 0.0
    %6898 = vmatprep.subr.mxu0 0.0
    %6899 = vmatpush1.msra.mxu0 0.0
    %6900 = vmatprep.subr.mxu0 0.0
    %6901 = vmatpush1.msra.mxu0 0.0
    %6902 = vmatprep.subr.mxu0 0.0
    %6903 = vmatpush1.msra.mxu0 0.0
    %6904 = vmatprep.subr.mxu0 0.0
    %6905 = vmatpush1.msra.mxu0 0.0
    %6906 = vmatprep.subr.mxu0 0.0
    %6907 = vmatpush1.msra.mxu0 0.0
    %6908 = vmatprep.subr.mxu0 0.0
    %6909 = vmatpush1.msra.mxu0 0.0
    %6910 = vmatprep.subr.mxu0 0.0
    %6911 = vmatpush1.msra.mxu0 0.0
    %6912 = vmatprep.subr.mxu0 0.0
    %6913 = vmatpush1.msra.mxu0 0.0
    %6914 = vmatprep.subr.mxu0 0.0
    %6915 = vmatpush1.msra.mxu0 0.0
    %6916 = vmatprep.subr.mxu0 0.0
    %6917 = vmatpush1.msra.mxu0 0.0
    %6918 = vmatprep.mubr.f32.mxu0 0.0
    %6919 = vmatmul.mubr.f32.gmra.mrb[0].mxu0 %v6852
    %v6920 = vpop.f32.mrb[0].mxu0
    %v6921 = vadd.f32 %v4303, %v6920
    %v6922 = vpop.f32.mrb[0].mxu0
    %6923 = vdwg.mxu0
    %6924 = vrot.lane.b32.xlu0 %v6563, 96
    %v6925 = vpop.permute.xlu0 %6924
    %v6927 = vadd.f32 %v6921, %v6925
    %v6928 = vxor.u32 %v6927, 2147483648
    %v6929 = vmul.f32 %v6928, 1.442695
    %v6930 = vpow.pop %v6929
    %v6931 = vadd.f32 %v6930, 1.0
    %v6932 = vrcp.pop %v6931
    %v6933 = vmul.f32 1.0, %v6932
    %6934 = vrot.lane.b32.xlu0 %v6563, 32
    %v6935 = vpop.permute.xlu0 %6934
    %v6937 = vmul.f32 %v6933, %v6935
    %6939 = vrot.lane.b32.xlu0 %v6937, 64
    %v6940 = vpop.permute.xlu0 %6939
    %v6942 = vadd.f32 %v6921, %v6940
    %v6943 = vtanh.pop %v6942
    %v6944 = vsub.f32 1.0, %v6933
    %6946 = vrot.lane.b32.xlu0 %v6943, 96
    %v6947 = vpop.permute.xlu0 %6946
    %v6949 = vmul.f32 %v6944, %v6947
    %v6950 = vmul.f32 %v6933, %v6320
    %v6951 = vadd.f32 %v6949, %v6950
    %6953 = vrot.lane.b32.xlu0 %v6951, 96
    %v6954 = vpop.permute.xlu0 %6953
    %6957 = vrot.lane.b32.xlu0 %v6493, 96
    %v6958 = vpop.permute.xlu0 %6957
    %v6960 = vsel %vm617, %v6954, %v6848
    %v6961 = vsel %vm4305, %v6960, %v6958
    %6962 = vmatprep.subr.mxu0 0.0
    %6963 = vmatpush1.msra.mxu0 %v3913
    %6964 = vmatprep.subr.mxu0 0.0
    %6965 = vmatpush1.msra.mxu0 %v3914
    %6966 = vmatprep.subr.mxu0 0.0
    %6967 = vmatpush1.msra.mxu0 %v3915
    %6968 = vmatprep.subr.mxu0 0.0
    %6969 = vmatpush1.msra.mxu0 %v3916
    %6970 = vmatprep.subr.mxu0 0.0
    %6971 = vmatpush1.msra.mxu0 %v3917
    %6972 = vmatprep.subr.mxu0 0.0
    %6973 = vmatpush1.msra.mxu0 %v3918
    %6974 = vmatprep.subr.mxu0 0.0
    %6975 = vmatpush1.msra.mxu0 %v3919
    %6976 = vmatprep.subr.mxu0 0.0
    %6977 = vmatpush1.msra.mxu0 %v3920
    %6978 = vmatprep.subr.mxu0 0.0
    %6979 = vmatpush1.msra.mxu0 %v3921
    %6980 = vmatprep.subr.mxu0 0.0
    %6981 = vmatpush1.msra.mxu0 %v3922
    %6982 = vmatprep.subr.mxu0 0.0
    %6983 = vmatpush1.msra.mxu0 %v3923
    %6984 = vmatprep.subr.mxu0 0.0
    %6985 = vmatpush1.msra.mxu0 %v3924
    %6986 = vmatprep.subr.mxu0 0.0
    %6987 = vmatpush1.msra.mxu0 %v3925
    %6988 = vmatprep.subr.mxu0 0.0
    %6989 = vmatpush1.msra.mxu0 %v3926
    %6990 = vmatprep.subr.mxu0 0.0
    %6991 = vmatpush1.msra.mxu0 %v3927
    %6992 = vmatprep.subr.mxu0 0.0
    %6993 = vmatpush1.msra.mxu0 %v3928
    %6994 = vmatprep.subr.mxu0 0.0
    %6995 = vmatpush1.msra.mxu0 0.0
    %6996 = vmatprep.subr.mxu0 0.0
    %6997 = vmatpush1.msra.mxu0 0.0
    %6998 = vmatprep.subr.mxu0 0.0
    %6999 = vmatpush1.msra.mxu0 0.0
    %7000 = vmatprep.subr.mxu0 0.0
    %7001 = vmatpush1.msra.mxu0 0.0
    %7002 = vmatprep.subr.mxu0 0.0
    %7003 = vmatpush1.msra.mxu0 0.0
    %7004 = vmatprep.subr.mxu0 0.0
    %7005 = vmatpush1.msra.mxu0 0.0
    %7006 = vmatprep.subr.mxu0 0.0
    %7007 = vmatpush1.msra.mxu0 0.0
    %7008 = vmatprep.subr.mxu0 0.0
    %7009 = vmatpush1.msra.mxu0 0.0
    %7010 = vmatprep.subr.mxu0 0.0
    %7011 = vmatpush1.msra.mxu0 0.0
    %7012 = vmatprep.subr.mxu0 0.0
    %7013 = vmatpush1.msra.mxu0 0.0
    %7014 = vmatprep.subr.mxu0 0.0
    %7015 = vmatpush1.msra.mxu0 0.0
    %7016 = vmatprep.subr.mxu0 0.0
    %7017 = vmatpush1.msra.mxu0 0.0
    %7018 = vmatprep.subr.mxu0 0.0
    %7019 = vmatpush1.msra.mxu0 0.0
    %7020 = vmatprep.subr.mxu0 0.0
    %7021 = vmatpush1.msra.mxu0 0.0
    %7022 = vmatprep.subr.mxu0 0.0
    %7023 = vmatpush1.msra.mxu0 0.0
    %7024 = vmatprep.subr.mxu0 0.0
    %7025 = vmatpush1.msra.mxu0 0.0
    %7026 = vmatprep.mubr.f32.mxu0 0.0
    %7027 = vmatmul.mubr.f32.gmra.mrb[0].mxu0 %v6961
    %v7028 = vpop.f32.mrb[0].mxu0
    %v7029 = vadd.f32 %v4424, %v7028
    %v7030 = vpop.f32.mrb[0].mxu0
    %7031 = vdwg.mxu0
    %v7032 = vsel %vm4496, %v7029, -inf
    %7033 = vmax.xlane.f32.xlu0 %v7032
    %v7034 = vpop.xlane.xlu0 %7033
    %vm7035 = vcmp.eq.f32.partialorder %v7029, %v7034
    %v7036 = vsel %vm7035, 1, 0
    %v7037 = vcvt.s32.f32 %v7036
    %v7039 = vsel %vm332, %v7037, 0
    %7041 = vmatprep.subr.mxu0 0.0
    %7042 = vmatpush1.msra.mxu0 %v508
    %7043 = vmatprep.subr.mxu0 0.0
    %7044 = vmatpush1.msra.mxu0 %v509
    %7045 = vmatprep.subr.mxu0 0.0
    %7046 = vmatpush1.msra.mxu0 0.0
    %7047 = vmatprep.subr.mxu0 0.0
    %7048 = vmatpush1.msra.mxu0 0.0
    %7049 = vmatprep.subr.mxu0 0.0
    %7050 = vmatpush1.msra.mxu0 0.0
    %7051 = vmatprep.subr.mxu0 0.0
    %7052 = vmatpush1.msra.mxu0 0.0
    %7053 = vmatprep.subr.mxu0 0.0
    %7054 = vmatpush1.msra.mxu0 0.0
    %7055 = vmatprep.subr.mxu0 0.0
    %7056 = vmatpush1.msra.mxu0 0.0
    %7057 = vmatprep.subr.mxu0 0.0
    %7058 = vmatpush1.msra.mxu0 0.0
    %7059 = vmatprep.subr.mxu0 0.0
    %7060 = vmatpush1.msra.mxu0 0.0
    %7061 = vmatprep.subr.mxu0 0.0
    %7062 = vmatpush1.msra.mxu0 0.0
    %7063 = vmatprep.subr.mxu0 0.0
    %7064 = vmatpush1.msra.mxu0 0.0
    %7065 = vmatprep.subr.mxu0 0.0
    %7066 = vmatpush1.msra.mxu0 0.0
    %7067 = vmatprep.subr.mxu0 0.0
    %7068 = vmatpush1.msra.mxu0 0.0
    %7069 = vmatprep.subr.mxu0 0.0
    %7070 = vmatpush1.msra.mxu0 0.0
    %7071 = vmatprep.subr.mxu0 0.0
    %7072 = vmatpush1.msra.mxu0 0.0
    %7073 = vmatprep.subr.mxu0 0.0
    %7074 = vmatpush1.msra.mxu0 0.0
    %7075 = vmatprep.subr.mxu0 0.0
    %7076 = vmatpush1.msra.mxu0 0.0
    %7077 = vmatprep.subr.mxu0 0.0
    %7078 = vmatpush1.msra.mxu0 0.0
    %7079 = vmatprep.subr.mxu0 0.0
    %7080 = vmatpush1.msra.mxu0 0.0
    %7081 = vmatprep.subr.mxu0 0.0
    %7082 = vmatpush1.msra.mxu0 0.0
    %7083 = vmatprep.subr.mxu0 0.0
    %7084 = vmatpush1.msra.mxu0 0.0
    %7085 = vmatprep.subr.mxu0 0.0
    %7086 = vmatpush1.msra.mxu0 0.0
    %7087 = vmatprep.subr.mxu0 0.0
    %7088 = vmatpush1.msra.mxu0 0.0
    %7089 = vmatprep.subr.mxu0 0.0
    %7090 = vmatpush1.msra.mxu0 0.0
    %7091 = vmatprep.subr.mxu0 0.0
    %7092 = vmatpush1.msra.mxu0 0.0
    %7093 = vmatprep.subr.mxu0 0.0
    %7094 = vmatpush1.msra.mxu0 0.0
    %7095 = vmatprep.subr.mxu0 0.0
    %7096 = vmatpush1.msra.mxu0 0.0
    %7097 = vmatprep.subr.mxu0 0.0
    %7098 = vmatpush1.msra.mxu0 0.0
    %7099 = vmatprep.subr.mxu0 0.0
    %7100 = vmatpush1.msra.mxu0 0.0
    %7101 = vmatprep.subr.mxu0 0.0
    %7102 = vmatpush1.msra.mxu0 0.0
    %7103 = vmatprep.subr.mxu0 0.0
    %7104 = vmatpush1.msra.mxu0 0.0
    %7105 = vmatprep.mubr.f32.mxu0 0.0
    %7106 = vmatmul.mubr.f32.gmra.mrb[0].mxu0 %v7039
    %v7107 = vpop.f32.mrb[0].mxu0
    %v7108 = vadd.f32 0.0, %v7107
    %v7109 = vpop.f32.mrb[0].mxu0
    %7110 = vdwg.mxu0
    %s7111 = sld [smem:[#allocation8 + $0x5]]
    %p7112 = scmp.gt.s32.totalorder %s7111, 0
    %s7113 = scalar_select %p7112, 1, 0
    %s7114 = scvt.s32.f32 %s7113
    %v7115 = vstv %s7114
    %v7116 = vmul.f32 %v7115, %v588
    %s7117 = ssub.f32 1.0, %s7114
    %v7118 = vstv %s7117
    %v7119 = vmul.f32 %v7118, %v7108
    %v7121 = vrot.slane %v7119, 6
    %v7123 = vadd.f32 %v7116, %v7121
    %v7124 = vsel %vm617, %v6954, 0
    %7126 = vmatprep.subr.mxu0 0.0
    %7127 = vmatpush1.msra.mxu0 %v3895
    %7128 = vmatprep.subr.mxu0 0.0
    %7129 = vmatpush1.msra.mxu0 %v3896
    %7130 = vmatprep.subr.mxu0 0.0
    %7131 = vmatpush1.msra.mxu0 %v3897
    %7132 = vmatprep.subr.mxu0 0.0
    %7133 = vmatpush1.msra.mxu0 %v3898
    %7134 = vmatprep.subr.mxu0 0.0
    %7135 = vmatpush1.msra.mxu0 0.0
    %7136 = vmatprep.subr.mxu0 0.0
    %7137 = vmatpush1.msra.mxu0 0.0
    %7138 = vmatprep.subr.mxu0 0.0
    %7139 = vmatpush1.msra.mxu0 0.0
    %7140 = vmatprep.subr.mxu0 0.0
    %7141 = vmatpush1.msra.mxu0 0.0
    %7142 = vmatprep.subr.mxu0 0.0
    %7143 = vmatpush1.msra.mxu0 0.0
    %7144 = vmatprep.subr.mxu0 0.0
    %7145 = vmatpush1.msra.mxu0 0.0
    %7146 = vmatprep.subr.mxu0 0.0
    %7147 = vmatpush1.msra.mxu0 0.0
    %7148 = vmatprep.subr.mxu0 0.0
    %7149 = vmatpush1.msra.mxu0 0.0
    %7150 = vmatprep.subr.mxu0 0.0
    %7151 = vmatpush1.msra.mxu0 0.0
    %7152 = vmatprep.subr.mxu0 0.0
    %7153 = vmatpush1.msra.mxu0 0.0
    %7154 = vmatprep.subr.mxu0 0.0
    %7155 = vmatpush1.msra.mxu0 0.0
    %7156 = vmatprep.subr.mxu0 0.0
    %7157 = vmatpush1.msra.mxu0 0.0
    %7158 = vmatprep.subr.mxu0 0.0
    %7159 = vmatpush1.msra.mxu0 0.0
    %7160 = vmatprep.subr.mxu0 0.0
    %7161 = vmatpush1.msra.mxu0 0.0
    %7162 = vmatprep.subr.mxu0 0.0
    %7163 = vmatpush1.msra.mxu0 0.0
    %7164 = vmatprep.subr.mxu0 0.0
    %7165 = vmatpush1.msra.mxu0 0.0
    %7166 = vmatprep.subr.mxu0 0.0
    %7167 = vmatpush1.msra.mxu0 0.0
    %7168 = vmatprep.subr.mxu0 0.0
    %7169 = vmatpush1.msra.mxu0 0.0
    %7170 = vmatprep.subr.mxu0 0.0
    %7171 = vmatpush1.msra.mxu0 0.0
    %7172 = vmatprep.subr.mxu0 0.0
    %7173 = vmatpush1.msra.mxu0 0.0
    %7174 = vmatprep.subr.mxu0 0.0
    %7175 = vmatpush1.msra.mxu0 0.0
    %7176 = vmatprep.subr.mxu0 0.0
    %7177 = vmatpush1.msra.mxu0 0.0
    %7178 = vmatprep.subr.mxu0 0.0
    %7179 = vmatpush1.msra.mxu0 0.0
    %7180 = vmatprep.subr.mxu0 0.0
    %7181 = vmatpush1.msra.mxu0 0.0
    %7182 = vmatprep.subr.mxu0 0.0
    %7183 = vmatpush1.msra.mxu0 0.0
    %7184 = vmatprep.subr.mxu0 0.0
    %7185 = vmatpush1.msra.mxu0 0.0
    %7186 = vmatprep.subr.mxu0 0.0
    %7187 = vmatpush1.msra.mxu0 0.0
    %7188 = vmatprep.subr.mxu0 0.0
    %7189 = vmatpush1.msra.mxu0 0.0
    %7190 = vmatprep.mubr.f32.mxu0 0.0
    %7191 = vmatmul.mubr.f32.gmra.mrb[0].mxu0 %v7124
    %v7192 = vpop.f32.mrb[0].mxu0
    %v7193 = vadd.f32 %v3934, %v7192
    %v7194 = vpop.f32.mrb[0].mxu0
    %7195 = vdwg.mxu0
    %v7198 = vunpack.c.l.s4 1966171168
    %v7199 = vunpack.c.0.s8 %v7198
    %v7200 = vlaneseq
    %v7201 = vshrl.u32 %v7200, 7
    %v7202 = vsub.s32 %v7199, %v7201
    %v7203 = vrot.slane %v7193, %v7202
    %v7204 = vcombine.high %v7203, %v7203
    %v7206 = vunpack.c.l.s4 1966171168
    %v7207 = vunpack.c.0.s8 %v7206
    %v7208 = vlaneseq
    %v7209 = vshrl.u32 %v7208, 7
    %v7210 = vsub.s32 %v7207, %v7209
    %v7211 = vrot.slane %v7203, %v7210
    %v7213 = vunpack.c.l.s4 1966171168
    %v7214 = vunpack.c.0.s8 %v7213
    %v7215 = vlaneseq
    %v7216 = vshrl.u32 %v7215, 7
    %v7217 = vsub.s32 %v7214, %v7216
    %v7218 = vrot.slane %v7204, %v7217
    %v7219 = vlaneseq
    %v7220 = vshrl.u32 %v7219, 7
    %v7221 = vsub.s32 0, %v7220
    %v7222 = vrot.slane %v7211, %v7221
    %v7223 = vlaneseq
    %v7224 = vshrl.u32 %v7223, 7
    %v7225 = vsub.s32 0, %v7224
    %v7226 = vrot.slane %v7218, %v7225
    %v7229 = vadd.f32 %v7222, %v3850
    %v7230 = vadd.f32 %v7226, %v3855
    %v7231 = vtanh.pop %v7229
    %v7232 = vtanh.pop %v7230
    %v7234 = vsel %vm617, %v7231, 0
    %v7237 = vsel %vm617, %v7232, 0
    %7239 = vmatprep.subr.mxu0 0.0
    %7240 = vmatpush1.msra.mxu0 %v3865
    %7241 = vmatprep.subr.mxu0 0.0
    %7242 = vmatpush1.msra.mxu0 %v3870
    %7243 = vmatprep.subr.mxu0 0.0
    %7244 = vmatpush1.msra.mxu0 %v3875
    %7245 = vmatprep.subr.mxu0 0.0
    %7246 = vmatpush1.msra.mxu0 %v3880
    %7247 = vmatprep.subr.mxu0 0.0
    %7248 = vmatpush1.msra.mxu0 0.0
    %7249 = vmatprep.subr.mxu0 0.0
    %7250 = vmatpush1.msra.mxu0 0.0
    %7251 = vmatprep.subr.mxu0 0.0
    %7252 = vmatpush1.msra.mxu0 0.0
    %7253 = vmatprep.subr.mxu0 0.0
    %7254 = vmatpush1.msra.mxu0 0.0
    %7255 = vmatprep.subr.mxu0 0.0
    %7256 = vmatpush1.msra.mxu0 0.0
    %7257 = vmatprep.subr.mxu0 0.0
    %7258 = vmatpush1.msra.mxu0 0.0
    %7259 = vmatprep.subr.mxu0 0.0
    %7260 = vmatpush1.msra.mxu0 0.0
    %7261 = vmatprep.subr.mxu0 0.0
    %7262 = vmatpush1.msra.mxu0 0.0
    %7263 = vmatprep.subr.mxu0 0.0
    %7264 = vmatpush1.msra.mxu0 0.0
    %7265 = vmatprep.subr.mxu0 0.0
    %7266 = vmatpush1.msra.mxu0 0.0
    %7267 = vmatprep.subr.mxu0 0.0
    %7268 = vmatpush1.msra.mxu0 0.0
    %7269 = vmatprep.subr.mxu0 0.0
    %7270 = vmatpush1.msra.mxu0 0.0
    %7271 = vmatprep.subr.mxu0 0.0
    %7272 = vmatpush1.msra.mxu0 0.0
    %7273 = vmatprep.subr.mxu0 0.0
    %7274 = vmatpush1.msra.mxu0 0.0
    %7275 = vmatprep.subr.mxu0 0.0
    %7276 = vmatpush1.msra.mxu0 0.0
    %7277 = vmatprep.subr.mxu0 0.0
    %7278 = vmatpush1.msra.mxu0 0.0
    %7279 = vmatprep.subr.mxu0 0.0
    %7280 = vmatpush1.msra.mxu0 0.0
    %7281 = vmatprep.subr.mxu0 0.0
    %7282 = vmatpush1.msra.mxu0 0.0
    %7283 = vmatprep.subr.mxu0 0.0
    %7284 = vmatpush1.msra.mxu0 0.0
    %7285 = vmatprep.subr.mxu0 0.0
    %7286 = vmatpush1.msra.mxu0 0.0
    %7287 = vmatprep.subr.mxu0 0.0
    %7288 = vmatpush1.msra.mxu0 0.0
    %7289 = vmatprep.subr.mxu0 0.0
    %7290 = vmatpush1.msra.mxu0 0.0
    %7291 = vmatprep.subr.mxu0 0.0
    %7292 = vmatpush1.msra.mxu0 0.0
    %7293 = vmatprep.subr.mxu0 0.0
    %7294 = vmatpush1.msra.mxu0 0.0
    %7295 = vmatprep.subr.mxu0 0.0
    %7296 = vmatpush1.msra.mxu0 0.0
    %7297 = vmatprep.subr.mxu0 0.0
    %7298 = vmatpush1.msra.mxu0 0.0
    %7299 = vmatprep.subr.mxu0 0.0
    %7300 = vmatpush1.msra.mxu0 0.0
    %7301 = vmatprep.subr.mxu0 0.0
    %7302 = vmatpush1.msra.mxu0 0.0
    %7303 = vmatprep.mubr.f32.mxu0 0.0
    %7304 = vmatmul.mubr.f32.gmra.mrb[0].mxu0 %v7234
    %v7305 = vpop.f32.mrb[0].mxu0
    %v7306 = vadd.f32 0.0, %v7305
    %v7307 = vpop.f32.mrb[0].mxu0
    %7308 = vmatprep.mubr.f32.mxu0 0.0
    %7309 = vmatmul.mubr.f32.gmra.mrb[0].mxu0 %v7237
    %v7310 = vpop.f32.mrb[0].mxu0
    %v7311 = vadd.f32 0.0, %v7310
    %v7312 = vpop.f32.mrb[0].mxu0
    %7313 = vdwg.mxu0
    %v7314 = vmul.f32 %v7306, %v3886
    %v7315 = vmul.f32 %v7311, %v3886
    %7316 = vmatprep.subr.mxu0 0.0
    %7317 = vmatpush1.msra.mxu0 %v7314
    %7318 = vmatprep.subr.mxu0 0.0
    %7319 = vmatpush1.msra.mxu0 %v7315
    %7320 = vmatprep.subr.mxu0 0.0
    %7321 = vmatpush1.msra.mxu0 0.0
    %7322 = vmatprep.subr.mxu0 0.0
    %7323 = vmatpush1.msra.mxu0 0.0
    %7324 = vmatprep.subr.mxu0 0.0
    %7325 = vmatpush1.msra.mxu0 0.0
    %7326 = vmatprep.subr.mxu0 0.0
    %7327 = vmatpush1.msra.mxu0 0.0
    %7328 = vmatprep.subr.mxu0 0.0
    %7329 = vmatpush1.msra.mxu0 0.0
    %7330 = vmatprep.subr.mxu0 0.0
    %7331 = vmatpush1.msra.mxu0 0.0
    %7332 = vmatprep.subr.mxu0 0.0
    %7333 = vmatpush1.msra.mxu0 0.0
    %7334 = vmatprep.subr.mxu0 0.0
    %7335 = vmatpush1.msra.mxu0 0.0
    %7336 = vmatprep.subr.mxu0 0.0
    %7337 = vmatpush1.msra.mxu0 0.0
    %7338 = vmatprep.subr.mxu0 0.0
    %7339 = vmatpush1.msra.mxu0 0.0
    %7340 = vmatprep.subr.mxu0 0.0
    %7341 = vmatpush1.msra.mxu0 0.0
    %7342 = vmatprep.subr.mxu0 0.0
    %7343 = vmatpush1.msra.mxu0 0.0
    %7344 = vmatprep.subr.mxu0 0.0
    %7345 = vmatpush1.msra.mxu0 0.0
    %7346 = vmatprep.subr.mxu0 0.0
    %7347 = vmatpush1.msra.mxu0 0.0
    %7348 = vmatprep.subr.mxu0 0.0
    %7349 = vmatpush1.msra.mxu0 0.0
    %7350 = vmatprep.subr.mxu0 0.0
    %7351 = vmatpush1.msra.mxu0 0.0
    %7352 = vmatprep.subr.mxu0 0.0
    %7353 = vmatpush1.msra.mxu0 0.0
    %7354 = vmatprep.subr.mxu0 0.0
    %7355 = vmatpush1.msra.mxu0 0.0
    %7356 = vmatprep.subr.mxu0 0.0
    %7357 = vmatpush1.msra.mxu0 0.0
    %7358 = vmatprep.subr.mxu0 0.0
    %7359 = vmatpush1.msra.mxu0 0.0
    %7360 = vmatprep.subr.mxu0 0.0
    %7361 = vmatpush1.msra.mxu0 0.0
    %7362 = vmatprep.subr.mxu0 0.0
    %7363 = vmatpush1.msra.mxu0 0.0
    %7364 = vmatprep.subr.mxu0 0.0
    %7365 = vmatpush1.msra.mxu0 0.0
    %7366 = vmatprep.subr.mxu0 0.0
    %7367 = vmatpush1.msra.mxu0 0.0
    %7368 = vmatprep.subr.mxu0 0.0
    %7369 = vmatpush1.msra.mxu0 0.0
    %7370 = vmatprep.subr.mxu0 0.0
    %7371 = vmatpush1.msra.mxu0 0.0
    %7372 = vmatprep.subr.mxu0 0.0
    %7373 = vmatpush1.msra.mxu0 0.0
    %7374 = vmatprep.subr.mxu0 0.0
    %7375 = vmatpush1.msra.mxu0 0.0
    %7376 = vmatprep.subr.mxu0 0.0
    %7377 = vmatpush1.msra.mxu0 0.0
    %7378 = vmatprep.subr.mxu0 0.0
    %7379 = vmatpush1.msra.mxu0 0.0
    %7380 = vmatprep.mubr.f32.mxu0 0.0
    %7381 = vmatmul.mubr.f32.gmra.mrb[0].mxu0 %v4130
    %v7382 = vpop.f32.mrb[0].mxu0
    %v7383 = vadd.f32 0.0, %v7382
    %v7384 = vpop.f32.mrb[0].mxu0
    %7385 = vdwg.mxu0
    %v7386 = vsel %vm4202, %v7383, -inf
    %7387 = vmax.xlane.f32.xlu0 %v7386
    %v7388 = vpop.xlane.xlu0 %7387
    %v7389 = vsub.f32 %v7383, %v7388
    %v7390 = vmul.f32 %v7389, 1.442695
    %v7391 = vpow.pop %v7390
    %v7392 = vsel %vm4202, %v7391, 0.0
    %7393 = vadd.xlane.f32.xlu0 %v7392
    %v7394 = vpop.xlane.xlu0 %7393
    %v7395 = vrcp.pop %v7394
    %v7396 = vmul.f32 %v7391, %v7395
    %7398 = vrot.lane.b32.xlu0 %v7396, 8
    %v7399 = vpop.permute.xlu0 %7398
    %v7401 = vsel %vm4218, %v7396, %v7399
    %v7402 = vmul.f32 %v7401, %v3894
    %v7404 = vsel %vm332, %v7402, 0
    %7406 = vmatprep.subr.mxu0 0.0
    %7407 = vmatpush1.msra.mxu0 %v3767
    %7408 = vmatprep.subr.mxu0 0.0
    %7409 = vmatpush1.msra.mxu0 %v3768
    %7410 = vmatprep.subr.mxu0 0.0
    %7411 = vmatpush1.msra.mxu0 0.0
    %7412 = vmatprep.subr.mxu0 0.0
    %7413 = vmatpush1.msra.mxu0 0.0
    %7414 = vmatprep.subr.mxu0 0.0
    %7415 = vmatpush1.msra.mxu0 0.0
    %7416 = vmatprep.subr.mxu0 0.0
    %7417 = vmatpush1.msra.mxu0 0.0
    %7418 = vmatprep.subr.mxu0 0.0
    %7419 = vmatpush1.msra.mxu0 0.0
    %7420 = vmatprep.subr.mxu0 0.0
    %7421 = vmatpush1.msra.mxu0 0.0
    %7422 = vmatprep.subr.mxu0 0.0
    %7423 = vmatpush1.msra.mxu0 0.0
    %7424 = vmatprep.subr.mxu0 0.0
    %7425 = vmatpush1.msra.mxu0 0.0
    %7426 = vmatprep.subr.mxu0 0.0
    %7427 = vmatpush1.msra.mxu0 0.0
    %7428 = vmatprep.subr.mxu0 0.0
    %7429 = vmatpush1.msra.mxu0 0.0
    %7430 = vmatprep.subr.mxu0 0.0
    %7431 = vmatpush1.msra.mxu0 0.0
    %7432 = vmatprep.subr.mxu0 0.0
    %7433 = vmatpush1.msra.mxu0 0.0
    %7434 = vmatprep.subr.mxu0 0.0
    %7435 = vmatpush1.msra.mxu0 0.0
    %7436 = vmatprep.subr.mxu0 0.0
    %7437 = vmatpush1.msra.mxu0 0.0
    %7438 = vmatprep.subr.mxu0 0.0
    %7439 = vmatpush1.msra.mxu0 0.0
    %7440 = vmatprep.subr.mxu0 0.0
    %7441 = vmatpush1.msra.mxu0 0.0
    %7442 = vmatprep.subr.mxu0 0.0
    %7443 = vmatpush1.msra.mxu0 0.0
    %7444 = vmatprep.subr.mxu0 0.0
    %7445 = vmatpush1.msra.mxu0 0.0
    %7446 = vmatprep.subr.mxu0 0.0
    %7447 = vmatpush1.msra.mxu0 0.0
    %7448 = vmatprep.subr.mxu0 0.0
    %7449 = vmatpush1.msra.mxu0 0.0
    %7450 = vmatprep.subr.mxu0 0.0
    %7451 = vmatpush1.msra.mxu0 0.0
    %7452 = vmatprep.subr.mxu0 0.0
    %7453 = vmatpush1.msra.mxu0 0.0
    %7454 = vmatprep.subr.mxu0 0.0
    %7455 = vmatpush1.msra.mxu0 0.0
    %7456 = vmatprep.subr.mxu0 0.0
    %7457 = vmatpush1.msra.mxu0 0.0
    %7458 = vmatprep.subr.mxu0 0.0
    %7459 = vmatpush1.msra.mxu0 0.0
    %7460 = vmatprep.subr.mxu0 0.0
    %7461 = vmatpush1.msra.mxu0 0.0
    %7462 = vmatprep.subr.mxu0 0.0
    %7463 = vmatpush1.msra.mxu0 0.0
    %7464 = vmatprep.subr.mxu0 0.0
    %7465 = vmatpush1.msra.mxu0 0.0
    %7466 = vmatprep.subr.mxu0 0.0
    %7467 = vmatpush1.msra.mxu0 0.0
    %7468 = vmatprep.subr.mxu0 0.0
    %7469 = vmatpush1.msra.mxu0 0.0
    %7470 = vmatprep.mubr.f32.mxu0 0.0
    %7471 = vmatmul.mubr.f32.gmra.mrb[0].mxu0 %v7404
    %v7472 = vpop.f32.mrb[0].mxu0
    %v7473 = vadd.f32 0.0, %v7472
    %v7474 = vpop.f32.mrb[0].mxu0
    %7475 = vdwg.mxu0
    %v7477 = vrot.slane %v7473, 6
    %7478 = vrot.lane.b32.xlu0 %v7477, 32
    %v7479 = vpop.permute.xlu0 %7478
    %v7481 = vsel %vm617, %v7123, %v7479
    %v7483 = vrot.slane %v7481, 2
    %v7484 = vsel %vm4305, %v7483, 0
    %7486 = vmatprep.subr.mxu0 0.0
    %7487 = vmatpush1.msra.mxu0 %v3900
    %7488 = vmatprep.subr.mxu0 0.0
    %7489 = vmatpush1.msra.mxu0 %v3901
    %7490 = vmatprep.subr.mxu0 0.0
    %7491 = vmatpush1.msra.mxu0 %v3902
    %7492 = vmatprep.subr.mxu0 0.0
    %7493 = vmatpush1.msra.mxu0 %v3903
    %7494 = vmatprep.subr.mxu0 0.0
    %7495 = vmatpush1.msra.mxu0 %v3904
    %7496 = vmatprep.subr.mxu0 0.0
    %7497 = vmatpush1.msra.mxu0 %v3905
    %7498 = vmatprep.subr.mxu0 0.0
    %7499 = vmatpush1.msra.mxu0 %v3906
    %7500 = vmatprep.subr.mxu0 0.0
    %7501 = vmatpush1.msra.mxu0 %v3907
    %7502 = vmatprep.subr.mxu0 0.0
    %7503 = vmatpush1.msra.mxu0 %v3908
    %7504 = vmatprep.subr.mxu0 0.0
    %7505 = vmatpush1.msra.mxu0 %v3909
    %7506 = vmatprep.subr.mxu0 0.0
    %7507 = vmatpush1.msra.mxu0 %v3910
    %7508 = vmatprep.subr.mxu0 0.0
    %7509 = vmatpush1.msra.mxu0 %v3911
    %7510 = vmatprep.subr.mxu0 0.0
    %7511 = vmatpush1.msra.mxu0 0.0
    %7512 = vmatprep.subr.mxu0 0.0
    %7513 = vmatpush1.msra.mxu0 0.0
    %7514 = vmatprep.subr.mxu0 0.0
    %7515 = vmatpush1.msra.mxu0 0.0
    %7516 = vmatprep.subr.mxu0 0.0
    %7517 = vmatpush1.msra.mxu0 0.0
    %7518 = vmatprep.subr.mxu0 0.0
    %7519 = vmatpush1.msra.mxu0 0.0
    %7520 = vmatprep.subr.mxu0 0.0
    %7521 = vmatpush1.msra.mxu0 0.0
    %7522 = vmatprep.subr.mxu0 0.0
    %7523 = vmatpush1.msra.mxu0 0.0
    %7524 = vmatprep.subr.mxu0 0.0
    %7525 = vmatpush1.msra.mxu0 0.0
    %7526 = vmatprep.subr.mxu0 0.0
    %7527 = vmatpush1.msra.mxu0 0.0
    %7528 = vmatprep.subr.mxu0 0.0
    %7529 = vmatpush1.msra.mxu0 0.0
    %7530 = vmatprep.subr.mxu0 0.0
    %7531 = vmatpush1.msra.mxu0 0.0
    %7532 = vmatprep.subr.mxu0 0.0
    %7533 = vmatpush1.msra.mxu0 0.0
    %7534 = vmatprep.subr.mxu0 0.0
    %7535 = vmatpush1.msra.mxu0 0.0
    %7536 = vmatprep.subr.mxu0 0.0
    %7537 = vmatpush1.msra.mxu0 0.0
    %7538 = vmatprep.subr.mxu0 0.0
    %7539 = vmatpush1.msra.mxu0 0.0
    %7540 = vmatprep.subr.mxu0 0.0
    %7541 = vmatpush1.msra.mxu0 0.0
    %7542 = vmatprep.subr.mxu0 0.0
    %7543 = vmatpush1.msra.mxu0 0.0
    %7544 = vmatprep.subr.mxu0 0.0
    %7545 = vmatpush1.msra.mxu0 0.0
    %7546 = vmatprep.subr.mxu0 0.0
    %7547 = vmatpush1.msra.mxu0 0.0
    %7548 = vmatprep.subr.mxu0 0.0
    %7549 = vmatpush1.msra.mxu0 0.0
    %7550 = vmatprep.mubr.f32.mxu0 0.0
    %7551 = vmatmul.mubr.f32.gmra.mrb[0].mxu0 %v7484
    %v7552 = vpop.f32.mrb[0].mxu0
    %v7553 = vadd.f32 %v4303, %v7552
    %v7554 = vpop.f32.mrb[0].mxu0
    %7555 = vdwg.mxu0
    %7556 = vrot.lane.b32.xlu0 %v7193, 96
    %v7557 = vpop.permute.xlu0 %7556
    %v7559 = vadd.f32 %v7553, %v7557
    %v7560 = vxor.u32 %v7559, 2147483648
    %v7561 = vmul.f32 %v7560, 1.442695
    %v7562 = vpow.pop %v7561
    %v7563 = vadd.f32 %v7562, 1.0
    %v7564 = vrcp.pop %v7563
    %v7565 = vmul.f32 1.0, %v7564
    %7566 = vrot.lane.b32.xlu0 %v7193, 32
    %v7567 = vpop.permute.xlu0 %7566
    %v7569 = vmul.f32 %v7565, %v7567
    %7571 = vrot.lane.b32.xlu0 %v7569, 64
    %v7572 = vpop.permute.xlu0 %7571
    %v7574 = vadd.f32 %v7553, %v7572
    %v7575 = vtanh.pop %v7574
    %v7576 = vsub.f32 1.0, %v7565
    %7578 = vrot.lane.b32.xlu0 %v7575, 96
    %v7579 = vpop.permute.xlu0 %7578
    %v7581 = vmul.f32 %v7576, %v7579
    %v7582 = vmul.f32 %v7565, %v6951
    %v7583 = vadd.f32 %v7581, %v7582
    %7585 = vrot.lane.b32.xlu0 %v7583, 96
    %v7586 = vpop.permute.xlu0 %7585
    %7588 = vrot.lane.b32.xlu0 %v7473, 32
    %v7589 = vpop.permute.xlu0 %7588
    %v7592 = vrot.slane %v7123, 2
    %7593 = vrot.lane.b32.xlu0 %v7592, 96
    %v7594 = vpop.permute.xlu0 %7593
    %v7596 = vsel %vm617, %v7586, %v7589
    %v7597 = vsel %vm4305, %v7596, %v7594
    %7598 = vmatprep.subr.mxu0 0.0
    %7599 = vmatpush1.msra.mxu0 %v3913
    %7600 = vmatprep.subr.mxu0 0.0
    %7601 = vmatpush1.msra.mxu0 %v3914
    %7602 = vmatprep.subr.mxu0 0.0
    %7603 = vmatpush1.msra.mxu0 %v3915
    %7604 = vmatprep.subr.mxu0 0.0
    %7605 = vmatpush1.msra.mxu0 %v3916
    %7606 = vmatprep.subr.mxu0 0.0
    %7607 = vmatpush1.msra.mxu0 %v3917
    %7608 = vmatprep.subr.mxu0 0.0
    %7609 = vmatpush1.msra.mxu0 %v3918
    %7610 = vmatprep.subr.mxu0 0.0
    %7611 = vmatpush1.msra.mxu0 %v3919
    %7612 = vmatprep.subr.mxu0 0.0
    %7613 = vmatpush1.msra.mxu0 %v3920
    %7614 = vmatprep.subr.mxu0 0.0
    %7615 = vmatpush1.msra.mxu0 %v3921
    %7616 = vmatprep.subr.mxu0 0.0
    %7617 = vmatpush1.msra.mxu0 %v3922
    %7618 = vmatprep.subr.mxu0 0.0
    %7619 = vmatpush1.msra.mxu0 %v3923
    %7620 = vmatprep.subr.mxu0 0.0
    %7621 = vmatpush1.msra.mxu0 %v3924
    %7622 = vmatprep.subr.mxu0 0.0
    %7623 = vmatpush1.msra.mxu0 %v3925
    %7624 = vmatprep.subr.mxu0 0.0
    %7625 = vmatpush1.msra.mxu0 %v3926
    %7626 = vmatprep.subr.mxu0 0.0
    %7627 = vmatpush1.msra.mxu0 %v3927
    %7628 = vmatprep.subr.mxu0 0.0
    %7629 = vmatpush1.msra.mxu0 %v3928
    %7630 = vmatprep.subr.mxu0 0.0
    %7631 = vmatpush1.msra.mxu0 0.0
    %7632 = vmatprep.subr.mxu0 0.0
    %7633 = vmatpush1.msra.mxu0 0.0
    %7634 = vmatprep.subr.mxu0 0.0
    %7635 = vmatpush1.msra.mxu0 0.0
    %7636 = vmatprep.subr.mxu0 0.0
    %7637 = vmatpush1.msra.mxu0 0.0
    %7638 = vmatprep.subr.mxu0 0.0
    %7639 = vmatpush1.msra.mxu0 0.0
    %7640 = vmatprep.subr.mxu0 0.0
    %7641 = vmatpush1.msra.mxu0 0.0
    %7642 = vmatprep.subr.mxu0 0.0
    %7643 = vmatpush1.msra.mxu0 0.0
    %7644 = vmatprep.subr.mxu0 0.0
    %7645 = vmatpush1.msra.mxu0 0.0
    %7646 = vmatprep.subr.mxu0 0.0
    %7647 = vmatpush1.msra.mxu0 0.0
    %7648 = vmatprep.subr.mxu0 0.0
    %7649 = vmatpush1.msra.mxu0 0.0
    %7650 = vmatprep.subr.mxu0 0.0
    %7651 = vmatpush1.msra.mxu0 0.0
    %7652 = vmatprep.subr.mxu0 0.0
    %7653 = vmatpush1.msra.mxu0 0.0
    %7654 = vmatprep.subr.mxu0 0.0
    %7655 = vmatpush1.msra.mxu0 0.0
    %7656 = vmatprep.subr.mxu0 0.0
    %7657 = vmatpush1.msra.mxu0 0.0
    %7658 = vmatprep.subr.mxu0 0.0
    %7659 = vmatpush1.msra.mxu0 0.0
    %7660 = vmatprep.subr.mxu0 0.0
    %7661 = vmatpush1.msra.mxu0 0.0
    %7662 = vmatprep.mubr.f32.mxu0 0.0
    %7663 = vmatmul.mubr.f32.gmra.mrb[0].mxu0 %v7597
    %v7664 = vpop.f32.mrb[0].mxu0
    %v7665 = vadd.f32 %v4424, %v7664
    %v7666 = vpop.f32.mrb[0].mxu0
    %7667 = vdwg.mxu0
    %v7668 = vsel %vm4496, %v7665, -inf
    %7669 = vmax.xlane.f32.xlu0 %v7668
    %v7670 = vpop.xlane.xlu0 %7669
    %vm7671 = vcmp.eq.f32.partialorder %v7665, %v7670
    %v7672 = vsel %vm7671, 1, 0
    %v7673 = vcvt.s32.f32 %v7672
    %v7675 = vsel %vm332, %v7673, 0
    %7677 = vmatprep.subr.mxu0 0.0
    %7678 = vmatpush1.msra.mxu0 %v508
    %7679 = vmatprep.subr.mxu0 0.0
    %7680 = vmatpush1.msra.mxu0 %v509
    %7681 = vmatprep.subr.mxu0 0.0
    %7682 = vmatpush1.msra.mxu0 0.0
    %7683 = vmatprep.subr.mxu0 0.0
    %7684 = vmatpush1.msra.mxu0 0.0
    %7685 = vmatprep.subr.mxu0 0.0
    %7686 = vmatpush1.msra.mxu0 0.0
    %7687 = vmatprep.subr.mxu0 0.0
    %7688 = vmatpush1.msra.mxu0 0.0
    %7689 = vmatprep.subr.mxu0 0.0
    %7690 = vmatpush1.msra.mxu0 0.0
    %7691 = vmatprep.subr.mxu0 0.0
    %7692 = vmatpush1.msra.mxu0 0.0
    %7693 = vmatprep.subr.mxu0 0.0
    %7694 = vmatpush1.msra.mxu0 0.0
    %7695 = vmatprep.subr.mxu0 0.0
    %7696 = vmatpush1.msra.mxu0 0.0
    %7697 = vmatprep.subr.mxu0 0.0
    %7698 = vmatpush1.msra.mxu0 0.0
    %7699 = vmatprep.subr.mxu0 0.0
    %7700 = vmatpush1.msra.mxu0 0.0
    %7701 = vmatprep.subr.mxu0 0.0
    %7702 = vmatpush1.msra.mxu0 0.0
    %7703 = vmatprep.subr.mxu0 0.0
    %7704 = vmatpush1.msra.mxu0 0.0
    %7705 = vmatprep.subr.mxu0 0.0
    %7706 = vmatpush1.msra.mxu0 0.0
    %7707 = vmatprep.subr.mxu0 0.0
    %7708 = vmatpush1.msra.mxu0 0.0
    %7709 = vmatprep.subr.mxu0 0.0
    %7710 = vmatpush1.msra.mxu0 0.0
    %7711 = vmatprep.subr.mxu0 0.0
    %7712 = vmatpush1.msra.mxu0 0.0
    %7713 = vmatprep.subr.mxu0 0.0
    %7714 = vmatpush1.msra.mxu0 0.0
    %7715 = vmatprep.subr.mxu0 0.0
    %7716 = vmatpush1.msra.mxu0 0.0
    %7717 = vmatprep.subr.mxu0 0.0
    %7718 = vmatpush1.msra.mxu0 0.0
    %7719 = vmatprep.subr.mxu0 0.0
    %7720 = vmatpush1.msra.mxu0 0.0
    %7721 = vmatprep.subr.mxu0 0.0
    %7722 = vmatpush1.msra.mxu0 0.0
    %7723 = vmatprep.subr.mxu0 0.0
    %7724 = vmatpush1.msra.mxu0 0.0
    %7725 = vmatprep.subr.mxu0 0.0
    %7726 = vmatpush1.msra.mxu0 0.0
    %7727 = vmatprep.subr.mxu0 0.0
    %7728 = vmatpush1.msra.mxu0 0.0
    %7729 = vmatprep.subr.mxu0 0.0
    %7730 = vmatpush1.msra.mxu0 0.0
    %7731 = vmatprep.subr.mxu0 0.0
    %7732 = vmatpush1.msra.mxu0 0.0
    %7733 = vmatprep.subr.mxu0 0.0
    %7734 = vmatpush1.msra.mxu0 0.0
    %7735 = vmatprep.subr.mxu0 0.0
    %7736 = vmatpush1.msra.mxu0 0.0
    %7737 = vmatprep.subr.mxu0 0.0
    %7738 = vmatpush1.msra.mxu0 0.0
    %7739 = vmatprep.subr.mxu0 0.0
    %7740 = vmatpush1.msra.mxu0 0.0
    %7741 = vmatprep.mubr.f32.mxu0 0.0
    %7742 = vmatmul.mubr.f32.gmra.mrb[0].mxu0 %v7675
    %v7743 = vpop.f32.mrb[0].mxu0
    %v7744 = vadd.f32 0.0, %v7743
    %v7745 = vpop.f32.mrb[0].mxu0
    %7746 = vdwg.mxu0
    %s7747 = sld [smem:[#allocation8 + $0x6]]
    %p7748 = scmp.gt.s32.totalorder %s7747, 0
    %s7749 = scalar_select %p7748, 1, 0
    %s7750 = scvt.s32.f32 %s7749
    %v7751 = vstv %s7750
    %v7752 = vmul.f32 %v7751, %v588
    %s7753 = ssub.f32 1.0, %s7750
    %v7754 = vstv %s7753
    %v7755 = vmul.f32 %v7754, %v7744
    %v7757 = vrot.slane %v7755, 4
    %v7759 = vadd.f32 %v7752, %v7757
    %v7760 = vsel %vm617, %v7586, 0
    %7762 = vmatprep.subr.mxu0 0.0
    %7763 = vmatpush1.msra.mxu0 %v3895
    %7764 = vmatprep.subr.mxu0 0.0
    %7765 = vmatpush1.msra.mxu0 %v3896
    %7766 = vmatprep.subr.mxu0 0.0
    %7767 = vmatpush1.msra.mxu0 %v3897
    %7768 = vmatprep.subr.mxu0 0.0
    %7769 = vmatpush1.msra.mxu0 %v3898
    %7770 = vmatprep.subr.mxu0 0.0
    %7771 = vmatpush1.msra.mxu0 0.0
    %7772 = vmatprep.subr.mxu0 0.0
    %7773 = vmatpush1.msra.mxu0 0.0
    %7774 = vmatprep.subr.mxu0 0.0
    %7775 = vmatpush1.msra.mxu0 0.0
    %7776 = vmatprep.subr.mxu0 0.0
    %7777 = vmatpush1.msra.mxu0 0.0
    %7778 = vmatprep.subr.mxu0 0.0
    %7779 = vmatpush1.msra.mxu0 0.0
    %7780 = vmatprep.subr.mxu0 0.0
    %7781 = vmatpush1.msra.mxu0 0.0
    %7782 = vmatprep.subr.mxu0 0.0
    %7783 = vmatpush1.msra.mxu0 0.0
    %7784 = vmatprep.subr.mxu0 0.0
    %7785 = vmatpush1.msra.mxu0 0.0
    %7786 = vmatprep.subr.mxu0 0.0
    %7787 = vmatpush1.msra.mxu0 0.0
    %7788 = vmatprep.subr.mxu0 0.0
    %7789 = vmatpush1.msra.mxu0 0.0
    %7790 = vmatprep.subr.mxu0 0.0
    %7791 = vmatpush1.msra.mxu0 0.0
    %7792 = vmatprep.subr.mxu0 0.0
    %7793 = vmatpush1.msra.mxu0 0.0
    %7794 = vmatprep.subr.mxu0 0.0
    %7795 = vmatpush1.msra.mxu0 0.0
    %7796 = vmatprep.subr.mxu0 0.0
    %7797 = vmatpush1.msra.mxu0 0.0
    %7798 = vmatprep.subr.mxu0 0.0
    %7799 = vmatpush1.msra.mxu0 0.0
    %7800 = vmatprep.subr.mxu0 0.0
    %7801 = vmatpush1.msra.mxu0 0.0
    %7802 = vmatprep.subr.mxu0 0.0
    %7803 = vmatpush1.msra.mxu0 0.0
    %7804 = vmatprep.subr.mxu0 0.0
    %7805 = vmatpush1.msra.mxu0 0.0
    %7806 = vmatprep.subr.mxu0 0.0
    %7807 = vmatpush1.msra.mxu0 0.0
    %7808 = vmatprep.subr.mxu0 0.0
    %7809 = vmatpush1.msra.mxu0 0.0
    %7810 = vmatprep.subr.mxu0 0.0
    %7811 = vmatpush1.msra.mxu0 0.0
    %7812 = vmatprep.subr.mxu0 0.0
    %7813 = vmatpush1.msra.mxu0 0.0
    %7814 = vmatprep.subr.mxu0 0.0
    %7815 = vmatpush1.msra.mxu0 0.0
    %7816 = vmatprep.subr.mxu0 0.0
    %7817 = vmatpush1.msra.mxu0 0.0
    %7818 = vmatprep.subr.mxu0 0.0
    %7819 = vmatpush1.msra.mxu0 0.0
    %7820 = vmatprep.subr.mxu0 0.0
    %7821 = vmatpush1.msra.mxu0 0.0
    %7822 = vmatprep.subr.mxu0 0.0
    %7823 = vmatpush1.msra.mxu0 0.0
    %7824 = vmatprep.subr.mxu0 0.0
    %7825 = vmatpush1.msra.mxu0 0.0
    %7826 = vmatprep.mubr.f32.mxu0 0.0
    %7827 = vmatmul.mubr.f32.gmra.mrb[0].mxu0 %v7760
    %v7828 = vpop.f32.mrb[0].mxu0
    %v7829 = vadd.f32 %v3934, %v7828
    %v7830 = vpop.f32.mrb[0].mxu0
    %7831 = vdwg.mxu0
    %v7834 = vunpack.c.l.s4 1966171168
    %v7835 = vunpack.c.0.s8 %v7834
    %v7836 = vlaneseq
    %v7837 = vshrl.u32 %v7836, 7
    %v7838 = vsub.s32 %v7835, %v7837
    %v7839 = vrot.slane %v7829, %v7838
    %v7840 = vcombine.high %v7839, %v7839
    %v7842 = vunpack.c.l.s4 1966171168
    %v7843 = vunpack.c.0.s8 %v7842
    %v7844 = vlaneseq
    %v7845 = vshrl.u32 %v7844, 7
    %v7846 = vsub.s32 %v7843, %v7845
    %v7847 = vrot.slane %v7839, %v7846
    %v7849 = vunpack.c.l.s4 1966171168
    %v7850 = vunpack.c.0.s8 %v7849
    %v7851 = vlaneseq
    %v7852 = vshrl.u32 %v7851, 7
    %v7853 = vsub.s32 %v7850, %v7852
    %v7854 = vrot.slane %v7840, %v7853
    %v7855 = vlaneseq
    %v7856 = vshrl.u32 %v7855, 7
    %v7857 = vsub.s32 0, %v7856
    %v7858 = vrot.slane %v7847, %v7857
    %v7859 = vlaneseq
    %v7860 = vshrl.u32 %v7859, 7
    %v7861 = vsub.s32 0, %v7860
    %v7862 = vrot.slane %v7854, %v7861
    %v7865 = vadd.f32 %v7858, %v3850
    %v7866 = vadd.f32 %v7862, %v3855
    %v7867 = vtanh.pop %v7865
    %v7868 = vtanh.pop %v7866
    %v7870 = vsel %vm617, %v7867, 0
    %v7873 = vsel %vm617, %v7868, 0
    %7875 = vmatprep.subr.mxu0 0.0
    %7876 = vmatpush1.msra.mxu0 %v3865
    %7877 = vmatprep.subr.mxu0 0.0
    %7878 = vmatpush1.msra.mxu0 %v3870
    %7879 = vmatprep.subr.mxu0 0.0
    %7880 = vmatpush1.msra.mxu0 %v3875
    %7881 = vmatprep.subr.mxu0 0.0
    %7882 = vmatpush1.msra.mxu0 %v3880
    %7883 = vmatprep.subr.mxu0 0.0
    %7884 = vmatpush1.msra.mxu0 0.0
    %7885 = vmatprep.subr.mxu0 0.0
    %7886 = vmatpush1.msra.mxu0 0.0
    %7887 = vmatprep.subr.mxu0 0.0
    %7888 = vmatpush1.msra.mxu0 0.0
    %7889 = vmatprep.subr.mxu0 0.0
    %7890 = vmatpush1.msra.mxu0 0.0
    %7891 = vmatprep.subr.mxu0 0.0
    %7892 = vmatpush1.msra.mxu0 0.0
    %7893 = vmatprep.subr.mxu0 0.0
    %7894 = vmatpush1.msra.mxu0 0.0
    %7895 = vmatprep.subr.mxu0 0.0
    %7896 = vmatpush1.msra.mxu0 0.0
    %7897 = vmatprep.subr.mxu0 0.0
    %7898 = vmatpush1.msra.mxu0 0.0
    %7899 = vmatprep.subr.mxu0 0.0
    %7900 = vmatpush1.msra.mxu0 0.0
    %7901 = vmatprep.subr.mxu0 0.0
    %7902 = vmatpush1.msra.mxu0 0.0
    %7903 = vmatprep.subr.mxu0 0.0
    %7904 = vmatpush1.msra.mxu0 0.0
    %7905 = vmatprep.subr.mxu0 0.0
    %7906 = vmatpush1.msra.mxu0 0.0
    %7907 = vmatprep.subr.mxu0 0.0
    %7908 = vmatpush1.msra.mxu0 0.0
    %7909 = vmatprep.subr.mxu0 0.0
    %7910 = vmatpush1.msra.mxu0 0.0
    %7911 = vmatprep.subr.mxu0 0.0
    %7912 = vmatpush1.msra.mxu0 0.0
    %7913 = vmatprep.subr.mxu0 0.0
    %7914 = vmatpush1.msra.mxu0 0.0
    %7915 = vmatprep.subr.mxu0 0.0
    %7916 = vmatpush1.msra.mxu0 0.0
    %7917 = vmatprep.subr.mxu0 0.0
    %7918 = vmatpush1.msra.mxu0 0.0
    %7919 = vmatprep.subr.mxu0 0.0
    %7920 = vmatpush1.msra.mxu0 0.0
    %7921 = vmatprep.subr.mxu0 0.0
    %7922 = vmatpush1.msra.mxu0 0.0
    %7923 = vmatprep.subr.mxu0 0.0
    %7924 = vmatpush1.msra.mxu0 0.0
    %7925 = vmatprep.subr.mxu0 0.0
    %7926 = vmatpush1.msra.mxu0 0.0
    %7927 = vmatprep.subr.mxu0 0.0
    %7928 = vmatpush1.msra.mxu0 0.0
    %7929 = vmatprep.subr.mxu0 0.0
    %7930 = vmatpush1.msra.mxu0 0.0
    %7931 = vmatprep.subr.mxu0 0.0
    %7932 = vmatpush1.msra.mxu0 0.0
    %7933 = vmatprep.subr.mxu0 0.0
    %7934 = vmatpush1.msra.mxu0 0.0
    %7935 = vmatprep.subr.mxu0 0.0
    %7936 = vmatpush1.msra.mxu0 0.0
    %7937 = vmatprep.subr.mxu0 0.0
    %7938 = vmatpush1.msra.mxu0 0.0
    %7939 = vmatprep.mubr.f32.mxu0 0.0
    %7940 = vmatmul.mubr.f32.gmra.mrb[0].mxu0 %v7870
    %v7941 = vpop.f32.mrb[0].mxu0
    %v7942 = vadd.f32 0.0, %v7941
    %v7943 = vpop.f32.mrb[0].mxu0
    %7944 = vmatprep.mubr.f32.mxu0 0.0
    %7945 = vmatmul.mubr.f32.gmra.mrb[0].mxu0 %v7873
    %v7946 = vpop.f32.mrb[0].mxu0
    %v7947 = vadd.f32 0.0, %v7946
    %v7948 = vpop.f32.mrb[0].mxu0
    %7949 = vdwg.mxu0
    %v7950 = vmul.f32 %v7942, %v3886
    %v7951 = vmul.f32 %v7947, %v3886
    %7952 = vmatprep.subr.mxu0 0.0
    %7953 = vmatpush1.msra.mxu0 %v7950
    %7954 = vmatprep.subr.mxu0 0.0
    %7955 = vmatpush1.msra.mxu0 %v7951
    %7956 = vmatprep.subr.mxu0 0.0
    %7957 = vmatpush1.msra.mxu0 0.0
    %7958 = vmatprep.subr.mxu0 0.0
    %7959 = vmatpush1.msra.mxu0 0.0
    %7960 = vmatprep.subr.mxu0 0.0
    %7961 = vmatpush1.msra.mxu0 0.0
    %7962 = vmatprep.subr.mxu0 0.0
    %7963 = vmatpush1.msra.mxu0 0.0
    %7964 = vmatprep.subr.mxu0 0.0
    %7965 = vmatpush1.msra.mxu0 0.0
    %7966 = vmatprep.subr.mxu0 0.0
    %7967 = vmatpush1.msra.mxu0 0.0
    %7968 = vmatprep.subr.mxu0 0.0
    %7969 = vmatpush1.msra.mxu0 0.0
    %7970 = vmatprep.subr.mxu0 0.0
    %7971 = vmatpush1.msra.mxu0 0.0
    %7972 = vmatprep.subr.mxu0 0.0
    %7973 = vmatpush1.msra.mxu0 0.0
    %7974 = vmatprep.subr.mxu0 0.0
    %7975 = vmatpush1.msra.mxu0 0.0
    %7976 = vmatprep.subr.mxu0 0.0
    %7977 = vmatpush1.msra.mxu0 0.0
    %7978 = vmatprep.subr.mxu0 0.0
    %7979 = vmatpush1.msra.mxu0 0.0
    %7980 = vmatprep.subr.mxu0 0.0
    %7981 = vmatpush1.msra.mxu0 0.0
    %7982 = vmatprep.subr.mxu0 0.0
    %7983 = vmatpush1.msra.mxu0 0.0
    %7984 = vmatprep.subr.mxu0 0.0
    %7985 = vmatpush1.msra.mxu0 0.0
    %7986 = vmatprep.subr.mxu0 0.0
    %7987 = vmatpush1.msra.mxu0 0.0
    %7988 = vmatprep.subr.mxu0 0.0
    %7989 = vmatpush1.msra.mxu0 0.0
    %7990 = vmatprep.subr.mxu0 0.0
    %7991 = vmatpush1.msra.mxu0 0.0
    %7992 = vmatprep.subr.mxu0 0.0
    %7993 = vmatpush1.msra.mxu0 0.0
    %7994 = vmatprep.subr.mxu0 0.0
    %7995 = vmatpush1.msra.mxu0 0.0
    %7996 = vmatprep.subr.mxu0 0.0
    %7997 = vmatpush1.msra.mxu0 0.0
    %7998 = vmatprep.subr.mxu0 0.0
    %7999 = vmatpush1.msra.mxu0 0.0
    %8000 = vmatprep.subr.mxu0 0.0
    %8001 = vmatpush1.msra.mxu0 0.0
    %8002 = vmatprep.subr.mxu0 0.0
    %8003 = vmatpush1.msra.mxu0 0.0
    %8004 = vmatprep.subr.mxu0 0.0
    %8005 = vmatpush1.msra.mxu0 0.0
    %8006 = vmatprep.subr.mxu0 0.0
    %8007 = vmatpush1.msra.mxu0 0.0
    %8008 = vmatprep.subr.mxu0 0.0
    %8009 = vmatpush1.msra.mxu0 0.0
    %8010 = vmatprep.subr.mxu0 0.0
    %8011 = vmatpush1.msra.mxu0 0.0
    %8012 = vmatprep.subr.mxu0 0.0
    %8013 = vmatpush1.msra.mxu0 0.0
    %8014 = vmatprep.subr.mxu0 0.0
    %8015 = vmatpush1.msra.mxu0 0.0
    %8016 = vmatprep.mubr.f32.mxu0 0.0
    %8017 = vmatmul.mubr.f32.gmra.mrb[0].mxu0 %v4130
    %v8018 = vpop.f32.mrb[0].mxu0
    %v8019 = vadd.f32 0.0, %v8018
    %v8020 = vpop.f32.mrb[0].mxu0
    %8021 = vdwg.mxu0
    %v8022 = vsel %vm4202, %v8019, -inf
    %8023 = vmax.xlane.f32.xlu0 %v8022
    %v8024 = vpop.xlane.xlu0 %8023
    %v8025 = vsub.f32 %v8019, %v8024
    %v8026 = vmul.f32 %v8025, 1.442695
    %v8027 = vpow.pop %v8026
    %v8028 = vsel %vm4202, %v8027, 0.0
    %8029 = vadd.xlane.f32.xlu0 %v8028
    %v8030 = vpop.xlane.xlu0 %8029
    %v8031 = vrcp.pop %v8030
    %v8032 = vmul.f32 %v8027, %v8031
    %8034 = vrot.lane.b32.xlu0 %v8032, 8
    %v8035 = vpop.permute.xlu0 %8034
    %v8037 = vsel %vm4218, %v8032, %v8035
    %v8038 = vmul.f32 %v8037, %v3894
    %v8040 = vsel %vm332, %v8038, 0
    %8042 = vmatprep.subr.mxu0 0.0
    %8043 = vmatpush1.msra.mxu0 %v3767
    %8044 = vmatprep.subr.mxu0 0.0
    %8045 = vmatpush1.msra.mxu0 %v3768
    %8046 = vmatprep.subr.mxu0 0.0
    %8047 = vmatpush1.msra.mxu0 0.0
    %8048 = vmatprep.subr.mxu0 0.0
    %8049 = vmatpush1.msra.mxu0 0.0
    %8050 = vmatprep.subr.mxu0 0.0
    %8051 = vmatpush1.msra.mxu0 0.0
    %8052 = vmatprep.subr.mxu0 0.0
    %8053 = vmatpush1.msra.mxu0 0.0
    %8054 = vmatprep.subr.mxu0 0.0
    %8055 = vmatpush1.msra.mxu0 0.0
    %8056 = vmatprep.subr.mxu0 0.0
    %8057 = vmatpush1.msra.mxu0 0.0
    %8058 = vmatprep.subr.mxu0 0.0
    %8059 = vmatpush1.msra.mxu0 0.0
    %8060 = vmatprep.subr.mxu0 0.0
    %8061 = vmatpush1.msra.mxu0 0.0
    %8062 = vmatprep.subr.mxu0 0.0
    %8063 = vmatpush1.msra.mxu0 0.0
    %8064 = vmatprep.subr.mxu0 0.0
    %8065 = vmatpush1.msra.mxu0 0.0
    %8066 = vmatprep.subr.mxu0 0.0
    %8067 = vmatpush1.msra.mxu0 0.0
    %8068 = vmatprep.subr.mxu0 0.0
    %8069 = vmatpush1.msra.mxu0 0.0
    %8070 = vmatprep.subr.mxu0 0.0
    %8071 = vmatpush1.msra.mxu0 0.0
    %8072 = vmatprep.subr.mxu0 0.0
    %8073 = vmatpush1.msra.mxu0 0.0
    %8074 = vmatprep.subr.mxu0 0.0
    %8075 = vmatpush1.msra.mxu0 0.0
    %8076 = vmatprep.subr.mxu0 0.0
    %8077 = vmatpush1.msra.mxu0 0.0
    %8078 = vmatprep.subr.mxu0 0.0
    %8079 = vmatpush1.msra.mxu0 0.0
    %8080 = vmatprep.subr.mxu0 0.0
    %8081 = vmatpush1.msra.mxu0 0.0
    %8082 = vmatprep.subr.mxu0 0.0
    %8083 = vmatpush1.msra.mxu0 0.0
    %8084 = vmatprep.subr.mxu0 0.0
    %8085 = vmatpush1.msra.mxu0 0.0
    %8086 = vmatprep.subr.mxu0 0.0
    %8087 = vmatpush1.msra.mxu0 0.0
    %8088 = vmatprep.subr.mxu0 0.0
    %8089 = vmatpush1.msra.mxu0 0.0
    %8090 = vmatprep.subr.mxu0 0.0
    %8091 = vmatpush1.msra.mxu0 0.0
    %8092 = vmatprep.subr.mxu0 0.0
    %8093 = vmatpush1.msra.mxu0 0.0
    %8094 = vmatprep.subr.mxu0 0.0
    %8095 = vmatpush1.msra.mxu0 0.0
    %8096 = vmatprep.subr.mxu0 0.0
    %8097 = vmatpush1.msra.mxu0 0.0
    %8098 = vmatprep.subr.mxu0 0.0
    %8099 = vmatpush1.msra.mxu0 0.0
    %8100 = vmatprep.subr.mxu0 0.0
    %8101 = vmatpush1.msra.mxu0 0.0
    %8102 = vmatprep.subr.mxu0 0.0
    %8103 = vmatpush1.msra.mxu0 0.0
    %8104 = vmatprep.subr.mxu0 0.0
    %8105 = vmatpush1.msra.mxu0 0.0
    %8106 = vmatprep.mubr.f32.mxu0 0.0
    %8107 = vmatmul.mubr.f32.gmra.mrb[0].mxu0 %v8040
    %v8108 = vpop.f32.mrb[0].mxu0
    %v8109 = vadd.f32 0.0, %v8108
    %v8110 = vpop.f32.mrb[0].mxu0
    %8111 = vdwg.mxu0
    %v8113 = vrot.slane %v8109, 4
    %8114 = vrot.lane.b32.xlu0 %v8113, 32
    %v8115 = vpop.permute.xlu0 %8114
    %v8117 = vsel %vm617, %v7759, %v8115
    %v8119 = vrot.slane %v8117, 4
    %v8120 = vsel %vm4305, %v8119, 0
    %8122 = vmatprep.subr.mxu0 0.0
    %8123 = vmatpush1.msra.mxu0 %v3900
    %8124 = vmatprep.subr.mxu0 0.0
    %8125 = vmatpush1.msra.mxu0 %v3901
    %8126 = vmatprep.subr.mxu0 0.0
    %8127 = vmatpush1.msra.mxu0 %v3902
    %8128 = vmatprep.subr.mxu0 0.0
    %8129 = vmatpush1.msra.mxu0 %v3903
    %8130 = vmatprep.subr.mxu0 0.0
    %8131 = vmatpush1.msra.mxu0 %v3904
    %8132 = vmatprep.subr.mxu0 0.0
    %8133 = vmatpush1.msra.mxu0 %v3905
    %8134 = vmatprep.subr.mxu0 0.0
    %8135 = vmatpush1.msra.mxu0 %v3906
    %8136 = vmatprep.subr.mxu0 0.0
    %8137 = vmatpush1.msra.mxu0 %v3907
    %8138 = vmatprep.subr.mxu0 0.0
    %8139 = vmatpush1.msra.mxu0 %v3908
    %8140 = vmatprep.subr.mxu0 0.0
    %8141 = vmatpush1.msra.mxu0 %v3909
    %8142 = vmatprep.subr.mxu0 0.0
    %8143 = vmatpush1.msra.mxu0 %v3910
    %8144 = vmatprep.subr.mxu0 0.0
    %8145 = vmatpush1.msra.mxu0 %v3911
    %8146 = vmatprep.subr.mxu0 0.0
    %8147 = vmatpush1.msra.mxu0 0.0
    %8148 = vmatprep.subr.mxu0 0.0
    %8149 = vmatpush1.msra.mxu0 0.0
    %8150 = vmatprep.subr.mxu0 0.0
    %8151 = vmatpush1.msra.mxu0 0.0
    %8152 = vmatprep.subr.mxu0 0.0
    %8153 = vmatpush1.msra.mxu0 0.0
    %8154 = vmatprep.subr.mxu0 0.0
    %8155 = vmatpush1.msra.mxu0 0.0
    %8156 = vmatprep.subr.mxu0 0.0
    %8157 = vmatpush1.msra.mxu0 0.0
    %8158 = vmatprep.subr.mxu0 0.0
    %8159 = vmatpush1.msra.mxu0 0.0
    %8160 = vmatprep.subr.mxu0 0.0
    %8161 = vmatpush1.msra.mxu0 0.0
    %8162 = vmatprep.subr.mxu0 0.0
    %8163 = vmatpush1.msra.mxu0 0.0
    %8164 = vmatprep.subr.mxu0 0.0
    %8165 = vmatpush1.msra.mxu0 0.0
    %8166 = vmatprep.subr.mxu0 0.0
    %8167 = vmatpush1.msra.mxu0 0.0
    %8168 = vmatprep.subr.mxu0 0.0
    %8169 = vmatpush1.msra.mxu0 0.0
    %8170 = vmatprep.subr.mxu0 0.0
    %8171 = vmatpush1.msra.mxu0 0.0
    %8172 = vmatprep.subr.mxu0 0.0
    %8173 = vmatpush1.msra.mxu0 0.0
    %8174 = vmatprep.subr.mxu0 0.0
    %8175 = vmatpush1.msra.mxu0 0.0
    %8176 = vmatprep.subr.mxu0 0.0
    %8177 = vmatpush1.msra.mxu0 0.0
    %8178 = vmatprep.subr.mxu0 0.0
    %8179 = vmatpush1.msra.mxu0 0.0
    %8180 = vmatprep.subr.mxu0 0.0
    %8181 = vmatpush1.msra.mxu0 0.0
    %8182 = vmatprep.subr.mxu0 0.0
    %8183 = vmatpush1.msra.mxu0 0.0
    %8184 = vmatprep.subr.mxu0 0.0
    %8185 = vmatpush1.msra.mxu0 0.0
    %8186 = vmatprep.mubr.f32.mxu0 0.0
    %8187 = vmatmul.mubr.f32.gmra.mrb[0].mxu0 %v8120
    %v8188 = vpop.f32.mrb[0].mxu0
    %v8189 = vadd.f32 %v4303, %v8188
    %v8190 = vpop.f32.mrb[0].mxu0
    %8191 = vdwg.mxu0
    %8192 = vrot.lane.b32.xlu0 %v7829, 96
    %v8193 = vpop.permute.xlu0 %8192
    %v8195 = vadd.f32 %v8189, %v8193
    %v8196 = vxor.u32 %v8195, 2147483648
    %v8197 = vmul.f32 %v8196, 1.442695
    %v8198 = vpow.pop %v8197
    %v8199 = vadd.f32 %v8198, 1.0
    %v8200 = vrcp.pop %v8199
    %v8201 = vmul.f32 1.0, %v8200
    %8202 = vrot.lane.b32.xlu0 %v7829, 32
    %v8203 = vpop.permute.xlu0 %8202
    %v8205 = vmul.f32 %v8201, %v8203
    %8207 = vrot.lane.b32.xlu0 %v8205, 64
    %v8208 = vpop.permute.xlu0 %8207
    %v8210 = vadd.f32 %v8189, %v8208
    %v8211 = vtanh.pop %v8210
    %v8212 = vsub.f32 1.0, %v8201
    %8214 = vrot.lane.b32.xlu0 %v8211, 96
    %v8215 = vpop.permute.xlu0 %8214
    %v8217 = vmul.f32 %v8212, %v8215
    %v8218 = vmul.f32 %v8201, %v7583
    %v8219 = vadd.f32 %v8217, %v8218
    %8221 = vrot.lane.b32.xlu0 %v8219, 96
    %v8222 = vpop.permute.xlu0 %8221
    %8224 = vrot.lane.b32.xlu0 %v8109, 32
    %v8225 = vpop.permute.xlu0 %8224
    %v8228 = vrot.slane %v7759, 4
    %8229 = vrot.lane.b32.xlu0 %v8228, 96
    %v8230 = vpop.permute.xlu0 %8229
    %v8232 = vsel %vm617, %v8222, %v8225
    %v8233 = vsel %vm4305, %v8232, %v8230
    %8234 = vmatprep.subr.mxu0 0.0
    %8235 = vmatpush1.msra.mxu0 %v3913
    %8236 = vmatprep.subr.mxu0 0.0
    %8237 = vmatpush1.msra.mxu0 %v3914
    %8238 = vmatprep.subr.mxu0 0.0
    %8239 = vmatpush1.msra.mxu0 %v3915
    %8240 = vmatprep.subr.mxu0 0.0
    %8241 = vmatpush1.msra.mxu0 %v3916
    %8242 = vmatprep.subr.mxu0 0.0
    %8243 = vmatpush1.msra.mxu0 %v3917
    %8244 = vmatprep.subr.mxu0 0.0
    %8245 = vmatpush1.msra.mxu0 %v3918
    %8246 = vmatprep.subr.mxu0 0.0
    %8247 = vmatpush1.msra.mxu0 %v3919
    %8248 = vmatprep.subr.mxu0 0.0
    %8249 = vmatpush1.msra.mxu0 %v3920
    %8250 = vmatprep.subr.mxu0 0.0
    %8251 = vmatpush1.msra.mxu0 %v3921
    %8252 = vmatprep.subr.mxu0 0.0
    %8253 = vmatpush1.msra.mxu0 %v3922
    %8254 = vmatprep.subr.mxu0 0.0
    %8255 = vmatpush1.msra.mxu0 %v3923
    %8256 = vmatprep.subr.mxu0 0.0
    %8257 = vmatpush1.msra.mxu0 %v3924
    %8258 = vmatprep.subr.mxu0 0.0
    %8259 = vmatpush1.msra.mxu0 %v3925
    %8260 = vmatprep.subr.mxu0 0.0
    %8261 = vmatpush1.msra.mxu0 %v3926
    %8262 = vmatprep.subr.mxu0 0.0
    %8263 = vmatpush1.msra.mxu0 %v3927
    %8264 = vmatprep.subr.mxu0 0.0
    %8265 = vmatpush1.msra.mxu0 %v3928
    %8266 = vmatprep.subr.mxu0 0.0
    %8267 = vmatpush1.msra.mxu0 0.0
    %8268 = vmatprep.subr.mxu0 0.0
    %8269 = vmatpush1.msra.mxu0 0.0
    %8270 = vmatprep.subr.mxu0 0.0
    %8271 = vmatpush1.msra.mxu0 0.0
    %8272 = vmatprep.subr.mxu0 0.0
    %8273 = vmatpush1.msra.mxu0 0.0
    %8274 = vmatprep.subr.mxu0 0.0
    %8275 = vmatpush1.msra.mxu0 0.0
    %8276 = vmatprep.subr.mxu0 0.0
    %8277 = vmatpush1.msra.mxu0 0.0
    %8278 = vmatprep.subr.mxu0 0.0
    %8279 = vmatpush1.msra.mxu0 0.0
    %8280 = vmatprep.subr.mxu0 0.0
    %8281 = vmatpush1.msra.mxu0 0.0
    %8282 = vmatprep.subr.mxu0 0.0
    %8283 = vmatpush1.msra.mxu0 0.0
    %8284 = vmatprep.subr.mxu0 0.0
    %8285 = vmatpush1.msra.mxu0 0.0
    %8286 = vmatprep.subr.mxu0 0.0
    %8287 = vmatpush1.msra.mxu0 0.0
    %8288 = vmatprep.subr.mxu0 0.0
    %8289 = vmatpush1.msra.mxu0 0.0
    %8290 = vmatprep.subr.mxu0 0.0
    %8291 = vmatpush1.msra.mxu0 0.0
    %8292 = vmatprep.subr.mxu0 0.0
    %8293 = vmatpush1.msra.mxu0 0.0
    %8294 = vmatprep.subr.mxu0 0.0
    %8295 = vmatpush1.msra.mxu0 0.0
    %8296 = vmatprep.subr.mxu0 0.0
    %8297 = vmatpush1.msra.mxu0 0.0
    %8298 = vmatprep.mubr.f32.mxu0 0.0
    %8299 = vmatmul.mubr.f32.gmra.mrb[0].mxu0 %v8233
    %v8300 = vpop.f32.mrb[0].mxu0
    %v8301 = vadd.f32 %v4424, %v8300
    %v8302 = vpop.f32.mrb[0].mxu0
    %8303 = vdwg.mxu0
    %v8305 = vrot.slane %v4493, 6
    %v8308 = vrot.slane %v5130, 4
    %v8311 = vrot.slane %v5766, 2
    %v8314 = vrot.slane %v7029, 6
    %v8317 = vrot.slane %v7665, 4
    %v8320 = vrot.slane %v8301, 2
    %v8322 = vsel %vm311, 0.0, %v8305
    %v8323 = vsel %vm315, %v8322, %v8308
    %v8324 = vsel %vm319, %v8323, %v8311
    %v8325 = vsel %vm311, %v6402, %v8314
    %v8326 = vsel %vm315, %v8325, %v8317
    %v8327 = vsel %vm319, %v8326, %v8320
    %8328 = vst [vmem:[#allocation22] sm:$0xff] %v8324
    %8329 = vst [vmem:[#allocation22 + $0x8] sm:$0xff] %v8327
    // Predicated region
    $region142: #{seq2seq_forward.1} parent=1 // pred_check
      _
    $region143: #{seq2seq_forward.1} parent=1 // pred_check_branch
      %8331 = sbr.rel (0) target = $region145
    $region144: #{seq2seq_forward.1} parent=1 // pred_region
      %s8333 = ssub.s32 256, 256
      %8334 = vsyncadd [#allocation4], %s8333
      %s8335 = sshll.u32 [#allocation22], 4
      %s8336 = int_to_ptr.vmem [resolvable:$true] %s8335
      %8341 = dma.vmem_to_hbm [thread:$0]  %s8336, 256, %s23, [#allocation4], 128, 128, 8
    $region145: #{seq2seq_forward.1} parent=1 // pred_fallthru
      _
    // Predicated region
    $region146: #{seq2seq_forward.1} parent=1 // pred_check
      _
    $region147: #{seq2seq_forward.1} parent=1 // pred_check_branch
      %8343 = sbr.rel (0) target = $region149
    $region148: #{seq2seq_forward.1} parent=1 // pred_region
      %8344 = dma.done [#allocation4], 256
    $region149: #{seq2seq_forward.1} parent=1 // pred_fallthru
      _
    %8345 = vsyncpa [#allocation3], 1
    %8346 = vsyncpa [#allocation11], 1
    %8347 = vsyncpa [#allocation14], 1
    %8348 = vsyncpa [#allocation17], 1
    %8349 = vsyncpa [#allocation20], 1
    %8350 = vsyncpa [#allocation4], 1
    %8351 = vsyncpa [#allocation5], 1
    %8352 = vsyncpa [#allocation7], 1

</llo_original>
